<compile_context>
chip_gen: v5e
topology: v5e:2x2
jax: 0.10.0
libtpu: 0.0.40
codegen_flags: <defaults>
</compile_context>

<pallas_src>
import math

import jax
import jax.numpy as jnp
from jax.experimental import pallas as pl
from jax.experimental.pallas import tpu as pltpu

_LN_EPS = 1e-5  # torch.nn.LayerNorm default


def _layer_norm(v, gamma, beta):
    mu = jnp.mean(v, axis=-1, keepdims=True)
    c = v - mu
    var = jnp.mean(c * c, axis=-1, keepdims=True)
    return c * jax.lax.rsqrt(var + _LN_EPS) * gamma + beta


def _stack_gcnn_kernel(x_ref, wcg_ref, w1_ref, b1_ref, w2_ref, b2_ref,
                       g1_ref, be1_ref, g2_ref, be2_ref, o_ref, abuf):
    # Static config derived from block shapes.
    l = o_ref.shape[1]
    h = o_ref.shape[2]
    num_layers = wcg_ref.shape[0]
    ksize = wcg_ref.shape[1] // h
    pad = (ksize - 1) // 2
    buf_rows = abuf.shape[0]          # round_up(l + pad, 8)
    cdt = wcg_ref.dtype               # matmul operand dtype (f32 or bf16)

    # Load this batch's sequence into the resident activation buffer and zero
    # the tail rows once.  The zero tail provides the conv 'same' padding via
    # the roll wrap-around and keeps every MXU input row initialised.
    abuf[:l, :] = x_ref[0].astype(jnp.float32)
    if buf_rows > l:
        abuf[l:, :] = jnp.zeros((buf_rows - l, h), jnp.float32)

    for layer in range(num_layers):                       # static unroll (small)
        xfull = abuf[...]                                 # (buf_rows, h) f32
        x_res = xfull[:l, :]                              # residual input (f32)

        # ---- gated conv: ONE (buf_rows, K*h) x (K*h, 2h) MXU contraction ----
        # Tap t needs x[i + t - pad]; realised as a sublane roll (XLU), so
        # there are no misaligned slices.  Rows that wrap land in the zero
        # tail, which is exactly the 'same' zero padding.
        taps = []
        for t in range(ksize):
            s = (pad - t) % buf_rows
            x_t = pltpu.roll(xfull, shift=s, axis=0) if s else xfull
            taps.append(x_t.astype(cdt))   # single cast per tap, rolls kept f32
        xcat = taps[0] if ksize == 1 else jnp.concatenate(taps, axis=1)
        conv = jnp.dot(xcat, wcg_ref[layer],
                       preferred_element_type=jnp.float32)       # (buf_rows, 2h)
        gated = conv[:l, :h] * jax.nn.sigmoid(conv[:l, h:])      # a * sigmoid(b)

        # ---- residual + LN1, position-wise FF, residual + LN2 (f32 epilogue) --
        h1 = _layer_norm(gated + x_res, g1_ref[layer], be1_ref[layer])
        f1 = jax.nn.relu(jnp.dot(h1.astype(cdt), w1_ref[layer],
                                 preferred_element_type=jnp.float32)
                         + b1_ref[layer])
        f2 = jnp.dot(f1.astype(cdt), w2_ref[layer],
                     preferred_element_type=jnp.float32) + b2_ref[layer]
        out = _layer_norm(h1 + f2, g2_ref[layer], be2_ref[layer])

        if layer + 1 < num_layers:
            abuf[:l, :] = out                 # tail rows stay zero
        else:
            o_ref[0] = out.astype(o_ref.dtype)


def stack_gated_cnn(x, params):
    """Fused StackGatedCNN forward.  `params` comes from prepare_params()."""
    wcg, w1, b1, w2, b2, g1, be1, g2, be2 = params
    bsz, l, h = x.shape
    num_layers, kh, h2 = wcg.shape
    ksize = kh // h
    pad = (ksize - 1) // 2
    assert h2 == 2 * h and kh == ksize * h
    assert ksize % 2 == 1, "odd kernel_size required for 'same' Conv1d padding"
    assert l % 8 == 0, "seq_len must be a multiple of 8"
    assert h % 128 == 0, "hidden_size must be a multiple of 128 (lane-dense)"
    buf_rows = -(-(l + pad) // 8) * 8

    weights = (wcg, w1, b1, w2, b2, g1, be1, g2, be2)

    # VMEM budget: resident weights (x2 pipeline buffers) + in/out blocks (x2)
    # + f32 activation scratch; must fit comfortably even on v7x (64 MiB).
    est = (2 * sum(int(a.size) * a.dtype.itemsize for a in weights)
           + 2 * 2 * l * h * x.dtype.itemsize
           + buf_rows * h * 4)
    if est > 28 * 1024 * 1024:
        # TODO(synk): per-layer, sequence-tiled fallback (halo DMA) for shapes
        # whose weights + one (L, H) sequence do not fit VMEM.
        raise NotImplementedError(
            f"fused StackGatedCNN kernel needs ~{est >> 20} MiB of VMEM")
    # 32 MiB is <= the scoped default on v6e/v7x and safely below v5e physical.
    vmem_limit = 32 * 1024 * 1024 if est > 12 * 1024 * 1024 else None

    def const_spec(a):
        # Full-array block, constant index -> weights stay VMEM-resident and
        # the DMA is skipped after the first grid step.
        return pl.BlockSpec(a.shape, lambda b: (0,) * a.ndim)

    return pl.pallas_call(
        _stack_gcnn_kernel,
        out_shape=jax.ShapeDtypeStruct((bsz, l, h), x.dtype),
        grid_spec=pltpu.PrefetchScalarGridSpec(
            num_scalar_prefetch=0,
            grid=(bsz,),
            in_specs=[pl.BlockSpec((1, l, h), lambda b: (b, 0, 0))]
                     + [const_spec(a) for a in weights],
            out_specs=pl.BlockSpec((1, l, h), lambda b: (b, 0, 0)),
            scratch_shapes=[pltpu.VMEM((buf_rows, h), jnp.float32)],
        ),
        compiler_params=pltpu.CompilerParams(
            dimension_semantics=("parallel",),
            vmem_limit_bytes=vmem_limit),
    )(x, *weights)


def prepare_params(torch_params, compute_dtype=jnp.bfloat16):
    """PyTorch-layout per-layer params -> stacked kernel layout.

    Conv weights (H_out, H_in, K) -> (K, H_in, H_out); cnn/gate concatenated
    along the output axis and flattened to (K*H_in, 2*H_out) so each layer's
    gated conv is a single MXU contraction.  Linear weights transposed to
    (in, out).  Matmul operands cast to `compute_dtype`; biases / LayerNorm
    params stay f32 (f32 accumulate + f32 epilogue).
    """
    ksize = torch_params[0]["w_cnn"].shape[-1]
    h = torch_params[0]["w_cnn"].shape[0]

    def conv_w(p):
        wc = jnp.transpose(p["w_cnn"], (2, 1, 0))     # (K, H_in, H_out)
        wg = jnp.transpose(p["w_gate"], (2, 1, 0))
        return jnp.concatenate([wc, wg], axis=-1).reshape(ksize * h, 2 * h)

    stack = lambda f, dt: jnp.stack([f(p) for p in torch_params]).astype(dt)
    return (stack(conv_w, compute_dtype),
            stack(lambda p: p["w1"].T, compute_dtype),
            stack(lambda p: p["b1"][None, :], jnp.float32),
            stack(lambda p: p["w2"].T, compute_dtype),
            stack(lambda p: p["b2"][None, :], jnp.float32),
            stack(lambda p: p["ln1_g"][None, :], jnp.float32),
            stack(lambda p: p["ln1_b"][None, :], jnp.float32),
            stack(lambda p: p["ln2_g"][None, :], jnp.float32),
            stack(lambda p: p["ln2_b"][None, :], jnp.float32))


# ----------------------------- pure-JAX reference -----------------------------
def _conv1d_same_ref(x, w):
    k = w.shape[-1]
    pad = (k - 1) // 2
    l = x.shape[1]
    xp = jnp.pad(x, ((0, 0), (pad, pad), (0, 0)))
    out = jnp.zeros(x.shape[:2] + (w.shape[0],), jnp.float32)
    for t in range(k):
        out = out + jnp.einsum("bli,oi->blo", xp[:, t:t + l, :], w[:, :, t],
                               precision=jax.lax.Precision.HIGHEST)
    return out


def stack_gated_cnn_reference(x, torch_params):
    def ln(v, g, b):
        mu = jnp.mean(v, axis=-1, keepdims=True)
        var = jnp.mean((v - mu) ** 2, axis=-1, keepdims=True)
        return (v - mu) / jnp.sqrt(var + _LN_EPS) * g + b

    hp = jax.lax.Precision.HIGHEST
    for p in torch_params:
        a = _conv1d_same_ref(x, p["w_cnn"])
        g = _conv1d_same_ref(x, p["w_gate"])
        gcnn = a * jax.nn.sigmoid(g)
        x = ln(gcnn + x, p["ln1_g"], p["ln1_b"])
        l1 = jax.nn.relu(jnp.matmul(x, p["w1"].T, precision=hp) + p["b1"])
        l2 = jnp.matmul(l1, p["w2"].T, precision=hp) + p["b2"]
        x = ln(x + l2, p["ln2_g"], p["ln2_b"])
    return x


if __name__ == "__main__":
    # config = {'hidden_size': 128, 'kernel_size': 3, 'num_layers': 2}
    # H = 128 keeps the last dim lane-dense; L = 256 fits VMEM comfortably.
    B, L, H, K, NLAYERS = 2, 256, 128, 3, 2

    key = jax.random.PRNGKey(0)
    key, kx = jax.random.split(key)
    x = jax.random.normal(kx, (B, L, H), dtype=jnp.float32)

    torch_params = []
    for _ in range(NLAYERS):
        key, *ks = jax.random.split(key, 11)
        torch_params.append(dict(
            w_cnn=jax.random.normal(ks[0], (H, H, K), jnp.float32) / math.sqrt(H * K),
            w_gate=jax.random.normal(ks[1], (H, H, K), jnp.float32) / math.sqrt(H * K),
            w1=jax.random.normal(ks[2], (H, H), jnp.float32) / math.sqrt(H),
            b1=0.02 * jax.random.normal(ks[3], (H,), jnp.float32),
            w2=jax.random.normal(ks[4], (H, H), jnp.float32) / math.sqrt(H),
            b2=0.02 * jax.random.normal(ks[5], (H,), jnp.float32),
            ln1_g=1.0 + 0.1 * jax.random.normal(ks[6], (H,), jnp.float32),
            ln1_b=0.05 * jax.random.normal(ks[7], (H,), jnp.float32),
            ln2_g=1.0 + 0.1 * jax.random.normal(ks[8], (H,), jnp.float32),
            ln2_b=0.05 * jax.random.normal(ks[9], (H,), jnp.float32),
        ))

    ref = jax.block_until_ready(stack_gated_cnn_reference(x, torch_params))

    # f32 matmul operands (v5e path) -> tight check against the reference.
    out_f32 = jax.block_until_ready(
        stack_gated_cnn(x, prepare_params(torch_params, jnp.float32)))
    assert out_f32.shape == (B, L, H)
    assert jnp.allclose(out_f32, ref, atol=2e-3, rtol=2e-3), \
        f"max abs diff {float(jnp.max(jnp.abs(out_f32 - ref)))}"

    # bf16 matmul operands (default; v6e/v7x MXU path), f32 accumulation.
    out_bf16 = jax.block_until_ready(
        stack_gated_cnn(x, prepare_params(torch_params)))
    assert out_bf16.shape == (B, L, H)
    assert bool(jnp.all(jnp.isfinite(out_bf16)))
    assert jnp.allclose(out_bf16, ref, atol=0.25, rtol=0.25)

    print("KERNEL_OK")
</pallas_src>

<mosaic_0001>
module attributes {stable_mosaic.version = 11 : i64} {
  func.func @_stack_gcnn_kernel(%arg0: i32, %arg1: memref<1x256x128xf32, #tpu.memory_space<vmem>>, %arg2: memref<2x384x256xf32, #tpu.memory_space<vmem>>, %arg3: memref<2x128x128xf32, #tpu.memory_space<vmem>>, %arg4: memref<2x1x128xf32, #tpu.memory_space<vmem>>, %arg5: memref<2x128x128xf32, #tpu.memory_space<vmem>>, %arg6: memref<2x1x128xf32, #tpu.memory_space<vmem>>, %arg7: memref<2x1x128xf32, #tpu.memory_space<vmem>>, %arg8: memref<2x1x128xf32, #tpu.memory_space<vmem>>, %arg9: memref<2x1x128xf32, #tpu.memory_space<vmem>>, %arg10: memref<2x1x128xf32, #tpu.memory_space<vmem>>, %arg11: memref<1x256x128xf32, #tpu.memory_space<vmem>>, %arg12: memref<264x128xf32, #tpu.memory_space<vmem>>) attributes {dimension_semantics = [#tpu.dimension_semantics<parallel>], iteration_bounds = array<i64: 2>, scalar_prefetch = 0 : i64, scratch_operands = 1 : i64, tpu.core_type = #tpu.core_type<tc>, window_params = [{transform_indices = @transform_0, window_bounds = array<i64: 1, 256, 128>}, {pipeline_mode = #tpu.pipeline_mode<synchronous>, transform_indices = @transform_1, window_bounds = array<i64: 2, 384, 256>}, {pipeline_mode = #tpu.pipeline_mode<synchronous>, transform_indices = @transform_2, window_bounds = array<i64: 2, 128, 128>}, {pipeline_mode = #tpu.pipeline_mode<synchronous>, transform_indices = @transform_3, window_bounds = array<i64: 2, 1, 128>}, {pipeline_mode = #tpu.pipeline_mode<synchronous>, transform_indices = @transform_4, window_bounds = array<i64: 2, 128, 128>}, {pipeline_mode = #tpu.pipeline_mode<synchronous>, transform_indices = @transform_5, window_bounds = array<i64: 2, 1, 128>}, {pipeline_mode = #tpu.pipeline_mode<synchronous>, transform_indices = @transform_6, window_bounds = array<i64: 2, 1, 128>}, {pipeline_mode = #tpu.pipeline_mode<synchronous>, transform_indices = @transform_7, window_bounds = array<i64: 2, 1, 128>}, {pipeline_mode = #tpu.pipeline_mode<synchronous>, transform_indices = @transform_8, window_bounds = array<i64: 2, 1, 128>}, {pipeline_mode = #tpu.pipeline_mode<synchronous>, transform_indices = @transform_9, window_bounds = array<i64: 2, 1, 128>}, {transform_indices = @transform_10, window_bounds = array<i64: 1, 256, 128>}]} {
    %c0 = arith.constant 0 : index
    %c0_0 = arith.constant 0 : index
    %c0_1 = arith.constant 0 : index
    %0 = vector.load %arg1[%c0, %c0_0, %c0_1] : memref<1x256x128xf32, #tpu.memory_space<vmem>>, vector<1x256x128xf32>
    %1 = vector.shape_cast %0 : vector<1x256x128xf32> to vector<256x128xf32>
    %c0_2 = arith.constant 0 : index
    %c0_3 = arith.constant 0 : index
    %2 = vector.load %arg12[%c0_2, %c0_3] : memref<264x128xf32, #tpu.memory_space<vmem>>, vector<256x128xf32>
    tpu.vector_store %arg12[%c0_2, %c0_3], %1 {strides = array<i32>} : memref<264x128xf32, #tpu.memory_space<vmem>>, vector<256x128xf32>,
    %cst = arith.constant 0.000000e+00 : f32
    %3 = vector.broadcast %cst : f32 to vector<8x128xf32>
    %c256 = arith.constant 256 : index
    %c0_4 = arith.constant 0 : index
    %4 = vector.load %arg12[%c256, %c0_4] : memref<264x128xf32, #tpu.memory_space<vmem>>, vector<8x128xf32>
    tpu.vector_store %arg12[%c256, %c0_4], %3 {strides = array<i32>} : memref<264x128xf32, #tpu.memory_space<vmem>>, vector<8x128xf32>,
    %c0_5 = arith.constant 0 : index
    %c0_6 = arith.constant 0 : index
    %5 = vector.load %arg12[%c0_5, %c0_6] : memref<264x128xf32, #tpu.memory_space<vmem>>, vector<264x128xf32>
    %6 = vector.extract_strided_slice %5 {offsets = [0, 0], sizes = [256, 128], strides = [1, 1]} : vector<264x128xf32> to vector<256x128xf32>
    %c1_i32 = arith.constant 1 : i32
    %7 = tpu.dynamic_rotate %5 by %c1_i32 dim 0 : vector<264x128xf32>, i32 -> vector<264x128xf32>
    %c263_i32 = arith.constant 263 : i32
    %8 = tpu.dynamic_rotate %5 by %c263_i32 dim 0 : vector<264x128xf32>, i32 -> vector<264x128xf32>
    %9 = tpu.concatenate %7, %5, %8 in 1 : vector<264x128xf32>, vector<264x128xf32>, vector<264x128xf32> -> vector<264x384xf32>
    %c0_7 = arith.constant 0 : index
    %c0_8 = arith.constant 0 : index
    %c0_9 = arith.constant 0 : index
    %10 = vector.load %arg2[%c0_7, %c0_8, %c0_9] : memref<2x384x256xf32, #tpu.memory_space<vmem>>, vector<1x384x256xf32>
    %11 = vector.shape_cast %10 : vector<1x384x256xf32> to vector<384x256xf32>
    %cst_10 = arith.constant dense<0.000000e+00> : vector<264x256xf32>
    %12 = tpu.matmul %9, %11, %cst_10 {dimension_numbers = #tpu.dot_dimension_numbers<[1], [0], [0], [1], [0, 0, 1, 1], [], []>} : vector<264x384xf32>, vector<384x256xf32>, vector<264x256xf32> -> vector<264x256xf32>
    %13 = vector.extract_strided_slice %12 {offsets = [0, 0], sizes = [256, 128], strides = [1, 1]} : vector<264x256xf32> to vector<256x128xf32>
    %14 = vector.extract_strided_slice %12 {offsets = [0, 128], sizes = [256, 128], strides = [1, 1]} : vector<264x256xf32> to vector<256x128xf32>
    %15 = arith.negf %14 : vector<256x128xf32>
    %16 = math.exp %15 : vector<256x128xf32>
    %cst_11 = arith.constant 1.000000e+00 : f32
    %17 = vector.broadcast %cst_11 : f32 to vector<256x128xf32>
    %18 = arith.addf %17, %16 : vector<256x128xf32>
    %19 = arith.divf %17, %18 : vector<256x128xf32>
    %20 = arith.mulf %13, %19 : vector<256x128xf32>
    %21 = arith.addf %20, %6 : vector<256x128xf32>
    %c0_12 = arith.constant 0 : index
    %c0_13 = arith.constant 0 : index
    %c0_14 = arith.constant 0 : index
    %22 = vector.load %arg7[%c0_12, %c0_13, %c0_14] : memref<2x1x128xf32, #tpu.memory_space<vmem>>, vector<1x1x128xf32>
    %23 = vector.shape_cast %22 : vector<1x1x128xf32> to vector<1x128xf32>
    %c0_15 = arith.constant 0 : index
    %c0_16 = arith.constant 0 : index
    %c0_17 = arith.constant 0 : index
    %24 = vector.load %arg8[%c0_15, %c0_16, %c0_17] : memref<2x1x128xf32, #tpu.memory_space<vmem>>, vector<1x1x128xf32>
    %25 = vector.shape_cast %24 : vector<1x1x128xf32> to vector<1x128xf32>
    %cst_18 = arith.constant dense<0.000000e+00> : vector<256xf32>
    %26 = vector.multi_reduction <add>, %21, %cst_18 [1] : vector<256x128xf32> to vector<256xf32>
    %27 = vector.shape_cast %26 : vector<256xf32> to vector<256x1xf32>
    %cst_19 = arith.constant 1.280000e+02 : f32
    %28 = vector.broadcast %cst_19 : f32 to vector<256x1xf32>
    %29 = arith.divf %27, %28 : vector<256x1xf32>
    %30 = vector.broadcast %29 : vector<256x1xf32> to vector<256x128xf32>
    %31 = arith.subf %21, %30 : vector<256x128xf32>
    %32 = arith.mulf %31, %31 : vector<256x128xf32>
    %cst_20 = arith.constant dense<0.000000e+00> : vector<256xf32>
    %33 = vector.multi_reduction <add>, %32, %cst_20 [1] : vector<256x128xf32> to vector<256xf32>
    %34 = vector.shape_cast %33 : vector<256xf32> to vector<256x1xf32>
    %cst_21 = arith.constant 1.280000e+02 : f32
    %35 = vector.broadcast %cst_21 : f32 to vector<256x1xf32>
    %36 = arith.divf %34, %35 : vector<256x1xf32>
    %cst_22 = arith.constant 9.99999974E-6 : f32
    %37 = vector.broadcast %cst_22 : f32 to vector<256x1xf32>
    %38 = arith.addf %36, %37 : vector<256x1xf32>
    %39 = math.rsqrt %38 : vector<256x1xf32>
    %40 = vector.broadcast %39 : vector<256x1xf32> to vector<256x128xf32>
    %41 = arith.mulf %31, %40 : vector<256x128xf32>
    %42 = vector.broadcast %23 : vector<1x128xf32> to vector<256x128xf32>
    %43 = arith.mulf %41, %42 : vector<256x128xf32>
    %44 = vector.broadcast %25 : vector<1x128xf32> to vector<256x128xf32>
    %45 = arith.addf %43, %44 : vector<256x128xf32>
    %c0_23 = arith.constant 0 : index
    %c0_24 = arith.constant 0 : index
    %c0_25 = arith.constant 0 : index
    %46 = vector.load %arg3[%c0_23, %c0_24, %c0_25] : memref<2x128x128xf32, #tpu.memory_space<vmem>>, vector<1x128x128xf32>
    %47 = vector.shape_cast %46 : vector<1x128x128xf32> to vector<128x128xf32>
    %cst_26 = arith.constant dense<0.000000e+00> : vector<256x128xf32>
    %48 = tpu.matmul %45, %47, %cst_26 {dimension_numbers = #tpu.dot_dimension_numbers<[1], [0], [0], [1], [0, 0, 1, 1], [], []>} : vector<256x128xf32>, vector<128x128xf32>, vector<256x128xf32> -> vector<256x128xf32>
    %c0_27 = arith.constant 0 : index
    %c0_28 = arith.constant 0 : index
    %c0_29 = arith.constant 0 : index
    %49 = vector.load %arg4[%c0_27, %c0_28, %c0_29] : memref<2x1x128xf32, #tpu.memory_space<vmem>>, vector<1x1x128xf32>
    %50 = vector.shape_cast %49 : vector<1x1x128xf32> to vector<1x128xf32>
    %51 = vector.broadcast %50 : vector<1x128xf32> to vector<256x128xf32>
    %52 = arith.addf %48, %51 : vector<256x128xf32>
    %cst_30 = arith.constant 0.000000e+00 : f32
    %53 = vector.broadcast %cst_30 : f32 to vector<256x128xf32>
    %54 = arith.maximumf %52, %53 : vector<256x128xf32>
    %c0_31 = arith.constant 0 : index
    %c0_32 = arith.constant 0 : index
    %c0_33 = arith.constant 0 : index
    %55 = vector.load %arg5[%c0_31, %c0_32, %c0_33] : memref<2x128x128xf32, #tpu.memory_space<vmem>>, vector<1x128x128xf32>
    %56 = vector.shape_cast %55 : vector<1x128x128xf32> to vector<128x128xf32>
    %cst_34 = arith.constant dense<0.000000e+00> : vector<256x128xf32>
    %57 = tpu.matmul %54, %56, %cst_34 {dimension_numbers = #tpu.dot_dimension_numbers<[1], [0], [0], [1], [0, 0, 1, 1], [], []>} : vector<256x128xf32>, vector<128x128xf32>, vector<256x128xf32> -> vector<256x128xf32>
    %c0_35 = arith.constant 0 : index
    %c0_36 = arith.constant 0 : index
    %c0_37 = arith.constant 0 : index
    %58 = vector.load %arg6[%c0_35, %c0_36, %c0_37] : memref<2x1x128xf32, #tpu.memory_space<vmem>>, vector<1x1x128xf32>
    %59 = vector.shape_cast %58 : vector<1x1x128xf32> to vector<1x128xf32>
    %60 = vector.broadcast %59 : vector<1x128xf32> to vector<256x128xf32>
    %61 = arith.addf %57, %60 : vector<256x128xf32>
    %62 = arith.addf %45, %61 : vector<256x128xf32>
    %c0_38 = arith.constant 0 : index
    %c0_39 = arith.constant 0 : index
    %c0_40 = arith.constant 0 : index
    %63 = vector.load %arg9[%c0_38, %c0_39, %c0_40] : memref<2x1x128xf32, #tpu.memory_space<vmem>>, vector<1x1x128xf32>
    %64 = vector.shape_cast %63 : vector<1x1x128xf32> to vector<1x128xf32>
    %c0_41 = arith.constant 0 : index
    %c0_42 = arith.constant 0 : index
    %c0_43 = arith.constant 0 : index
    %65 = vector.load %arg10[%c0_41, %c0_42, %c0_43] : memref<2x1x128xf32, #tpu.memory_space<vmem>>, vector<1x1x128xf32>
    %66 = vector.shape_cast %65 : vector<1x1x128xf32> to vector<1x128xf32>
    %cst_44 = arith.constant dense<0.000000e+00> : vector<256xf32>
    %67 = vector.multi_reduction <add>, %62, %cst_44 [1] : vector<256x128xf32> to vector<256xf32>
    %68 = vector.shape_cast %67 : vector<256xf32> to vector<256x1xf32>
    %cst_45 = arith.constant 1.280000e+02 : f32
    %69 = vector.broadcast %cst_45 : f32 to vector<256x1xf32>
    %70 = arith.divf %68, %69 : vector<256x1xf32>
    %71 = vector.broadcast %70 : vector<256x1xf32> to vector<256x128xf32>
    %72 = arith.subf %62, %71 : vector<256x128xf32>
    %73 = arith.mulf %72, %72 : vector<256x128xf32>
    %cst_46 = arith.constant dense<0.000000e+00> : vector<256xf32>
    %74 = vector.multi_reduction <add>, %73, %cst_46 [1] : vector<256x128xf32> to vector<256xf32>
    %75 = vector.shape_cast %74 : vector<256xf32> to vector<256x1xf32>
    %cst_47 = arith.constant 1.280000e+02 : f32
    %76 = vector.broadcast %cst_47 : f32 to vector<256x1xf32>
    %77 = arith.divf %75, %76 : vector<256x1xf32>
    %cst_48 = arith.constant 9.99999974E-6 : f32
    %78 = vector.broadcast %cst_48 : f32 to vector<256x1xf32>
    %79 = arith.addf %77, %78 : vector<256x1xf32>
    %80 = math.rsqrt %79 : vector<256x1xf32>
    %81 = vector.broadcast %80 : vector<256x1xf32> to vector<256x128xf32>
    %82 = arith.mulf %72, %81 : vector<256x128xf32>
    %83 = vector.broadcast %64 : vector<1x128xf32> to vector<256x128xf32>
    %84 = arith.mulf %82, %83 : vector<256x128xf32>
    %85 = vector.broadcast %66 : vector<1x128xf32> to vector<256x128xf32>
    %86 = arith.addf %84, %85 : vector<256x128xf32>
    %c0_49 = arith.constant 0 : index
    %c0_50 = arith.constant 0 : index
    %87 = vector.load %arg12[%c0_49, %c0_50] : memref<264x128xf32, #tpu.memory_space<vmem>>, vector<256x128xf32>
    tpu.vector_store %arg12[%c0_49, %c0_50], %86 {strides = array<i32>} : memref<264x128xf32, #tpu.memory_space<vmem>>, vector<256x128xf32>,
    %c0_51 = arith.constant 0 : index
    %c0_52 = arith.constant 0 : index
    %88 = vector.load %arg12[%c0_51, %c0_52] : memref<264x128xf32, #tpu.memory_space<vmem>>, vector<264x128xf32>
    %89 = vector.extract_strided_slice %88 {offsets = [0, 0], sizes = [256, 128], strides = [1, 1]} : vector<264x128xf32> to vector<256x128xf32>
    %c1_i32_53 = arith.constant 1 : i32
    %90 = tpu.dynamic_rotate %88 by %c1_i32_53 dim 0 : vector<264x128xf32>, i32 -> vector<264x128xf32>
    %c263_i32_54 = arith.constant 263 : i32
    %91 = tpu.dynamic_rotate %88 by %c263_i32_54 dim 0 : vector<264x128xf32>, i32 -> vector<264x128xf32>
    %92 = tpu.concatenate %90, %88, %91 in 1 : vector<264x128xf32>, vector<264x128xf32>, vector<264x128xf32> -> vector<264x384xf32>
    %c1 = arith.constant 1 : index
    %c0_55 = arith.constant 0 : index
    %c0_56 = arith.constant 0 : index
    %93 = vector.load %arg2[%c1, %c0_55, %c0_56] : memref<2x384x256xf32, #tpu.memory_space<vmem>>, vector<1x384x256xf32>
    %94 = vector.shape_cast %93 : vector<1x384x256xf32> to vector<384x256xf32>
    %cst_57 = arith.constant dense<0.000000e+00> : vector<264x256xf32>
    %95 = tpu.matmul %92, %94, %cst_57 {dimension_numbers = #tpu.dot_dimension_numbers<[1], [0], [0], [1], [0, 0, 1, 1], [], []>} : vector<264x384xf32>, vector<384x256xf32>, vector<264x256xf32> -> vector<264x256xf32>
    %96 = vector.extract_strided_slice %95 {offsets = [0, 0], sizes = [256, 128], strides = [1, 1]} : vector<264x256xf32> to vector<256x128xf32>
    %97 = vector.extract_strided_slice %95 {offsets = [0, 128], sizes = [256, 128], strides = [1, 1]} : vector<264x256xf32> to vector<256x128xf32>
    %98 = arith.negf %97 : vector<256x128xf32>
    %99 = math.exp %98 : vector<256x128xf32>
    %cst_58 = arith.constant 1.000000e+00 : f32
    %100 = vector.broadcast %cst_58 : f32 to vector<256x128xf32>
    %101 = arith.addf %100, %99 : vector<256x128xf32>
    %102 = arith.divf %100, %101 : vector<256x128xf32>
    %103 = arith.mulf %96, %102 : vector<256x128xf32>
    %104 = arith.addf %103, %89 : vector<256x128xf32>
    %c1_59 = arith.constant 1 : index
    %c0_60 = arith.constant 0 : index
    %c0_61 = arith.constant 0 : index
    %105 = vector.load %arg7[%c1_59, %c0_60, %c0_61] : memref<2x1x128xf32, #tpu.memory_space<vmem>>, vector<1x1x128xf32>
    %106 = vector.shape_cast %105 : vector<1x1x128xf32> to vector<1x128xf32>
    %c1_62 = arith.constant 1 : index
    %c0_63 = arith.constant 0 : index
    %c0_64 = arith.constant 0 : index
    %107 = vector.load %arg8[%c1_62, %c0_63, %c0_64] : memref<2x1x128xf32, #tpu.memory_space<vmem>>, vector<1x1x128xf32>
    %108 = vector.shape_cast %107 : vector<1x1x128xf32> to vector<1x128xf32>
    %cst_65 = arith.constant dense<0.000000e+00> : vector<256xf32>
    %109 = vector.multi_reduction <add>, %104, %cst_65 [1] : vector<256x128xf32> to vector<256xf32>
    %110 = vector.shape_cast %109 : vector<256xf32> to vector<256x1xf32>
    %cst_66 = arith.constant 1.280000e+02 : f32
    %111 = vector.broadcast %cst_66 : f32 to vector<256x1xf32>
    %112 = arith.divf %110, %111 : vector<256x1xf32>
    %113 = vector.broadcast %112 : vector<256x1xf32> to vector<256x128xf32>
    %114 = arith.subf %104, %113 : vector<256x128xf32>
    %115 = arith.mulf %114, %114 : vector<256x128xf32>
    %cst_67 = arith.constant dense<0.000000e+00> : vector<256xf32>
    %116 = vector.multi_reduction <add>, %115, %cst_67 [1] : vector<256x128xf32> to vector<256xf32>
    %117 = vector.shape_cast %116 : vector<256xf32> to vector<256x1xf32>
    %cst_68 = arith.constant 1.280000e+02 : f32
    %118 = vector.broadcast %cst_68 : f32 to vector<256x1xf32>
    %119 = arith.divf %117, %118 : vector<256x1xf32>
    %cst_69 = arith.constant 9.99999974E-6 : f32
    %120 = vector.broadcast %cst_69 : f32 to vector<256x1xf32>
    %121 = arith.addf %119, %120 : vector<256x1xf32>
    %122 = math.rsqrt %121 : vector<256x1xf32>
    %123 = vector.broadcast %122 : vector<256x1xf32> to vector<256x128xf32>
    %124 = arith.mulf %114, %123 : vector<256x128xf32>
    %125 = vector.broadcast %106 : vector<1x128xf32> to vector<256x128xf32>
    %126 = arith.mulf %124, %125 : vector<256x128xf32>
    %127 = vector.broadcast %108 : vector<1x128xf32> to vector<256x128xf32>
    %128 = arith.addf %126, %127 : vector<256x128xf32>
    %c1_70 = arith.constant 1 : index
    %c0_71 = arith.constant 0 : index
    %c0_72 = arith.constant 0 : index
    %129 = vector.load %arg3[%c1_70, %c0_71, %c0_72] : memref<2x128x128xf32, #tpu.memory_space<vmem>>, vector<1x128x128xf32>
    %130 = vector.shape_cast %129 : vector<1x128x128xf32> to vector<128x128xf32>
    %cst_73 = arith.constant dense<0.000000e+00> : vector<256x128xf32>
    %131 = tpu.matmul %128, %130, %cst_73 {dimension_numbers = #tpu.dot_dimension_numbers<[1], [0], [0], [1], [0, 0, 1, 1], [], []>} : vector<256x128xf32>, vector<128x128xf32>, vector<256x128xf32> -> vector<256x128xf32>
    %c1_74 = arith.constant 1 : index
    %c0_75 = arith.constant 0 : index
    %c0_76 = arith.constant 0 : index
    %132 = vector.load %arg4[%c1_74, %c0_75, %c0_76] : memref<2x1x128xf32, #tpu.memory_space<vmem>>, vector<1x1x128xf32>
    %133 = vector.shape_cast %132 : vector<1x1x128xf32> to vector<1x128xf32>
    %134 = vector.broadcast %133 : vector<1x128xf32> to vector<256x128xf32>
    %135 = arith.addf %131, %134 : vector<256x128xf32>
    %cst_77 = arith.constant 0.000000e+00 : f32
    %136 = vector.broadcast %cst_77 : f32 to vector<256x128xf32>
    %137 = arith.maximumf %135, %136 : vector<256x128xf32>
    %c1_78 = arith.constant 1 : index
    %c0_79 = arith.constant 0 : index
    %c0_80 = arith.constant 0 : index
    %138 = vector.load %arg5[%c1_78, %c0_79, %c0_80] : memref<2x128x128xf32, #tpu.memory_space<vmem>>, vector<1x128x128xf32>
    %139 = vector.shape_cast %138 : vector<1x128x128xf32> to vector<128x128xf32>
    %cst_81 = arith.constant dense<0.000000e+00> : vector<256x128xf32>
    %140 = tpu.matmul %137, %139, %cst_81 {dimension_numbers = #tpu.dot_dimension_numbers<[1], [0], [0], [1], [0, 0, 1, 1], [], []>} : vector<256x128xf32>, vector<128x128xf32>, vector<256x128xf32> -> vector<256x128xf32>
    %c1_82 = arith.constant 1 : index
    %c0_83 = arith.constant 0 : index
    %c0_84 = arith.constant 0 : index
    %141 = vector.load %arg6[%c1_82, %c0_83, %c0_84] : memref<2x1x128xf32, #tpu.memory_space<vmem>>, vector<1x1x128xf32>
    %142 = vector.shape_cast %141 : vector<1x1x128xf32> to vector<1x128xf32>
    %143 = vector.broadcast %142 : vector<1x128xf32> to vector<256x128xf32>
    %144 = arith.addf %140, %143 : vector<256x128xf32>
    %145 = arith.addf %128, %144 : vector<256x128xf32>
    %c1_85 = arith.constant 1 : index
    %c0_86 = arith.constant 0 : index
    %c0_87 = arith.constant 0 : index
    %146 = vector.load %arg9[%c1_85, %c0_86, %c0_87] : memref<2x1x128xf32, #tpu.memory_space<vmem>>, vector<1x1x128xf32>
    %147 = vector.shape_cast %146 : vector<1x1x128xf32> to vector<1x128xf32>
    %c1_88 = arith.constant 1 : index
    %c0_89 = arith.constant 0 : index
    %c0_90 = arith.constant 0 : index
    %148 = vector.load %arg10[%c1_88, %c0_89, %c0_90] : memref<2x1x128xf32, #tpu.memory_space<vmem>>, vector<1x1x128xf32>
    %149 = vector.shape_cast %148 : vector<1x1x128xf32> to vector<1x128xf32>
    %cst_91 = arith.constant dense<0.000000e+00> : vector<256xf32>
    %150 = vector.multi_reduction <add>, %145, %cst_91 [1] : vector<256x128xf32> to vector<256xf32>
    %151 = vector.shape_cast %150 : vector<256xf32> to vector<256x1xf32>
    %cst_92 = arith.constant 1.280000e+02 : f32
    %152 = vector.broadcast %cst_92 : f32 to vector<256x1xf32>
    %153 = arith.divf %151, %152 : vector<256x1xf32>
    %154 = vector.broadcast %153 : vector<256x1xf32> to vector<256x128xf32>
    %155 = arith.subf %145, %154 : vector<256x128xf32>
    %156 = arith.mulf %155, %155 : vector<256x128xf32>
    %cst_93 = arith.constant dense<0.000000e+00> : vector<256xf32>
    %157 = vector.multi_reduction <add>, %156, %cst_93 [1] : vector<256x128xf32> to vector<256xf32>
    %158 = vector.shape_cast %157 : vector<256xf32> to vector<256x1xf32>
    %cst_94 = arith.constant 1.280000e+02 : f32
    %159 = vector.broadcast %cst_94 : f32 to vector<256x1xf32>
    %160 = arith.divf %158, %159 : vector<256x1xf32>
    %cst_95 = arith.constant 9.99999974E-6 : f32
    %161 = vector.broadcast %cst_95 : f32 to vector<256x1xf32>
    %162 = arith.addf %160, %161 : vector<256x1xf32>
    %163 = math.rsqrt %162 : vector<256x1xf32>
    %164 = vector.broadcast %163 : vector<256x1xf32> to vector<256x128xf32>
    %165 = arith.mulf %155, %164 : vector<256x128xf32>
    %166 = vector.broadcast %147 : vector<1x128xf32> to vector<256x128xf32>
    %167 = arith.mulf %165, %166 : vector<256x128xf32>
    %168 = vector.broadcast %149 : vector<1x128xf32> to vector<256x128xf32>
    %169 = arith.addf %167, %168 : vector<256x128xf32>
    %c0_96 = arith.constant 0 : index
    %c0_97 = arith.constant 0 : index
    %c0_98 = arith.constant 0 : index
    %170 = vector.load %arg11[%c0_96, %c0_97, %c0_98] : memref<1x256x128xf32, #tpu.memory_space<vmem>>, vector<1x256x128xf32>
    %171 = vector.shape_cast %170 : vector<1x256x128xf32> to vector<256x128xf32>
    %172 = vector.shape_cast %169 : vector<256x128xf32> to vector<1x256x128xf32>
    tpu.vector_store %arg11[%c0_96, %c0_97, %c0_98], %172 {strides = array<i32>} : memref<1x256x128xf32, #tpu.memory_space<vmem>>, vector<1x256x128xf32>,
    return
  }
  func.func @transform_0(%arg0: i32) -> (i32, i32, i32) {
    %c0_i32 = arith.constant 0 : i32
    %c0_i32_0 = arith.constant 0 : i32
    %c0_i32_1 = arith.constant 0 : i32
    return %arg0, %c0_i32, %c0_i32_0 : i32, i32, i32
  }
  func.func @transform_1(%arg0: i32) -> (i32, i32, i32) {
    %c0_i32 = arith.constant 0 : i32
    %c0_i32_0 = arith.constant 0 : i32
    %c0_i32_1 = arith.constant 0 : i32
    %c0_i32_2 = arith.constant 0 : i32
    return %c0_i32, %c0_i32_0, %c0_i32_1 : i32, i32, i32
  }
  func.func @transform_2(%arg0: i32) -> (i32, i32, i32) {
    %c0_i32 = arith.constant 0 : i32
    %c0_i32_0 = arith.constant 0 : i32
    %c0_i32_1 = arith.constant 0 : i32
    %c0_i32_2 = arith.constant 0 : i32
    return %c0_i32, %c0_i32_0, %c0_i32_1 : i32, i32, i32
  }
  func.func @transform_3(%arg0: i32) -> (i32, i32, i32) {
    %c0_i32 = arith.constant 0 : i32
    %c0_i32_0 = arith.constant 0 : i32
    %c0_i32_1 = arith.constant 0 : i32
    %c0_i32_2 = arith.constant 0 : i32
    return %c0_i32, %c0_i32_0, %c0_i32_1 : i32, i32, i32
  }
  func.func @transform_4(%arg0: i32) -> (i32, i32, i32) {
    %c0_i32 = arith.constant 0 : i32
    %c0_i32_0 = arith.constant 0 : i32
    %c0_i32_1 = arith.constant 0 : i32
    %c0_i32_2 = arith.constant 0 : i32
    return %c0_i32, %c0_i32_0, %c0_i32_1 : i32, i32, i32
  }
  func.func @transform_5(%arg0: i32) -> (i32, i32, i32) {
    %c0_i32 = arith.constant 0 : i32
    %c0_i32_0 = arith.constant 0 : i32
    %c0_i32_1 = arith.constant 0 : i32
    %c0_i32_2 = arith.constant 0 : i32
    return %c0_i32, %c0_i32_0, %c0_i32_1 : i32, i32, i32
  }
  func.func @transform_6(%arg0: i32) -> (i32, i32, i32) {
    %c0_i32 = arith.constant 0 : i32
    %c0_i32_0 = arith.constant 0 : i32
    %c0_i32_1 = arith.constant 0 : i32
    %c0_i32_2 = arith.constant 0 : i32
    return %c0_i32, %c0_i32_0, %c0_i32_1 : i32, i32, i32
  }
  func.func @transform_7(%arg0: i32) -> (i32, i32, i32) {
    %c0_i32 = arith.constant 0 : i32
    %c0_i32_0 = arith.constant 0 : i32
    %c0_i32_1 = arith.constant 0 : i32
    %c0_i32_2 = arith.constant 0 : i32
    return %c0_i32, %c0_i32_0, %c0_i32_1 : i32, i32, i32
  }
  func.func @transform_8(%arg0: i32) -> (i32, i32, i32) {
    %c0_i32 = arith.constant 0 : i32
    %c0_i32_0 = arith.constant 0 : i32
    %c0_i32_1 = arith.constant 0 : i32
    %c0_i32_2 = arith.constant 0 : i32
    return %c0_i32, %c0_i32_0, %c0_i32_1 : i32, i32, i32
  }
  func.func @transform_9(%arg0: i32) -> (i32, i32, i32) {
    %c0_i32 = arith.constant 0 : i32
    %c0_i32_0 = arith.constant 0 : i32
    %c0_i32_1 = arith.constant 0 : i32
    %c0_i32_2 = arith.constant 0 : i32
    return %c0_i32, %c0_i32_0, %c0_i32_1 : i32, i32, i32
  }
  func.func @transform_10(%arg0: i32) -> (i32, i32, i32) {
    %c0_i32 = arith.constant 0 : i32
    %c0_i32_0 = arith.constant 0 : i32
    %c0_i32_1 = arith.constant 0 : i32
    return %arg0, %c0_i32, %c0_i32_0 : i32, i32, i32
  }
}

</mosaic_0001>

<llo_original>
// kernel: tpu_custom_call.1
$region0: #{tpu_custom_call.1}
  #allocation0 [shape = 'u32[]', space=smem, size = 0x4, offset = 0x4, fixed_abs, tag = 'smem constant byte address 0x4 - core index']
  #allocation1 [shape = 'u32[72,128]{1,0:T(1,128)}', space=vmem, size = 0x9000, scoped, tag = 'internal scratch']
  #allocation2 [shape = 'f32[264,128]{1,0:T(8,128)}', space=vmem, size = 0x21000, scoped, tag = 'scratch operand']
  %s0 = inlined_call_operand.hbm [shape: f32[2,256,128], index: 0, kind: input, shape index: {}]
  %s1 = inlined_call_operand.hbm [shape: f32[2,384,256], index: 1, kind: input, shape index: {}]
  %s2 = inlined_call_operand.hbm [shape: f32[2,128,128], index: 2, kind: input, shape index: {}]
  %s3 = inlined_call_operand.vmem [shape: f32[2,1,128], index: 3, kind: input, shape index: {}]
  %s4 = inlined_call_operand.hbm [shape: f32[2,128,128], index: 4, kind: input, shape index: {}]
  %s5 = inlined_call_operand.vmem [shape: f32[2,1,128], index: 5, kind: input, shape index: {}]
  %s6 = inlined_call_operand.hbm [shape: f32[2,1,128], index: 6, kind: input, shape index: {}]
  %s7 = inlined_call_operand.vmem [shape: f32[2,1,128], index: 7, kind: input, shape index: {}]
  %s8 = inlined_call_operand.hbm [shape: f32[2,1,128], index: 8, kind: input, shape index: {}]
  %s9 = inlined_call_operand.vmem [shape: f32[2,1,128], index: 9, kind: input, shape index: {}]
  %s10 = inlined_call_operand.hbm [shape: f32[2,256,128], index: 10, kind: output, shape index: {}]
  %s11 = sld [smem:[#allocation0]]
  $region97: #{tpu_custom_call.1} parent=0
    _
  %s13 = ssub.s32 1, %s11
  %s14 = scalar_select 0, %s13, %s11
  $region1: #{tpu_custom_call.1} parent=0
    #allocation3 [shape = 'u8[262144]{0}', space=vmem, size = 0x40000, scoped, tag = 'input window, operand 0']
    #allocation4 [shape = 's32[2]{0}', space=sflag, size = 0x8, scoped, tag = 'scoped memory for tpu_custom_call.1']
    #allocation5 [shape = 's32[2]{0}', space=sflag, size = 0x8, scoped, tag = 'scoped memory for tpu_custom_call.1']
    #allocation6 [shape = 'u8[786432]{0}', space=vmem, size = 0xc0000, scoped, tag = 'input window, operand 1, single buffered']
    #allocation7 [shape = 's32[1]{0}', space=sflag, size = 0x4, scoped, tag = 'scoped memory for tpu_custom_call.1']
    #allocation8 [shape = 'u8[131072]{0}', space=vmem, size = 0x20000, scoped, tag = 'input window, operand 2, single buffered']
    #allocation9 [shape = 'u8[131072]{0}', space=vmem, size = 0x20000, scoped, tag = 'input window, operand 4, single buffered']
    #allocation10 [shape = 's32[1]{0}', space=sflag, size = 0x4, scoped, tag = 'scoped memory for tpu_custom_call.1']
    #allocation11 [shape = 'u8[1024]{0}', space=vmem, size = 0x400, scoped, tag = 'input window, operand 6, single buffered']
    #allocation12 [shape = 'u8[1024]{0}', space=vmem, size = 0x400, scoped, tag = 'input window, operand 8, single buffered']
    #allocation13 [shape = 's32[1]{0}', space=sflag, size = 0x4, scoped, tag = 'scoped memory for tpu_custom_call.1']
    #allocation14 [shape = 'u8[262144]{0}', space=vmem, size = 0x40000, scoped, tag = 'output window, operand 0']
    %15 = vsyncpa [#allocation4], 0
    %s16 = scalar_lea.sflag [#allocation4], 1
    %17 = vsyncpa %s16, 0
    %18 = vsyncpa [#allocation7], 0
    %19 = vsyncpa [#allocation10], 0
    %20 = vsyncpa [#allocation13], 0
    %21 = vsyncpa [#allocation5], 0
    %s22 = scalar_lea.sflag [#allocation5], 1
    %23 = vsyncpa %s22, 0
    loop: start=0, step=1, limit=4
    $region2: #{tpu_custom_call.1} parent=1 // loop_pre_header
      _
    $region3: #{tpu_custom_call.1} parent=1 // loop_header
      %s25 = sphi 0, %s29
      %p26 = scmp.ge.s32.totalorder %s25, 4
      %s35 = sphi 0, %s37
      %s38 = sphi 0, %s35
      %s39 = sphi 0, %s38
      %s55 = sphi 0, %s39
      %s59 = sphi 0, %s59
      %s61 = sphi 0, %s59
      %s62 = sphi 0, %s61
      %s76 = sphi 0, %s62
      %s80 = sphi 0, %s80
      %s82 = sphi 0, %s80
      %s83 = sphi 0, %s82
      %s97 = sphi 0, %s83
      %s101 = sphi 0, %s101
      %s103 = sphi 0, %s101
      %s104 = sphi 0, %s103
      %s118 = sphi 0, %s104
      %s122 = sphi 0, %s122
      %s124 = sphi 0, %s122
      %s125 = sphi 0, %s124
      %s139 = sphi 0, %s125
      %s143 = sphi 0, %s143
      %s145 = sphi 0, %s143
      %s146 = sphi 0, %s145
      %s160 = sphi 0, %s146
      %s164 = sphi 0, %s164
      %s166 = sphi 0, %s164
      %s167 = sphi 0, %s166
      %s181 = sphi 0, %s167
      %s185 = sphi 0, %s185
      %s187 = sphi 0, %s185
      %s188 = sphi 0, %s187
      %s202 = sphi 0, %s188
      %s206 = sphi 0, %s206
      %s208 = sphi 0, %s206
      %s209 = sphi 0, %s208
      %s223 = sphi 0, %s209
      %s227 = sphi 0, %s227
      %s229 = sphi 0, %s227
      %s230 = sphi 0, %s229
      %s244 = sphi 0, %s230
      %s250 = sphi 0, %s252
      %s253 = sphi 0, %s250
      %s254 = sphi 0, %s253
      %s270 = sphi 0, %s254
    $region4: #{tpu_custom_call.1} parent=1 // loop_header_branch
      %28 = sbr.rel (%p26) target = $region8
    $region5: #{tpu_custom_call.1} parent=1 // loop_body
      %s30 = ssub.s32 %s25, 1
      %s31 = ssub.s32 %s25, 2
      %s32 = sadd.s32 %s25, 1
      %s33 = ssub.s32 %s25, %s32
      %p34 = scmp.eq.s32.totalorder %s33, 0
      %s36 = sadd.s32 %s35, 1
      %s37 = scalar_select %p34, %s35, %s36
      %p40 = pneg %p34
      %p41 = scmp.eq.s32.totalorder %s25, 1
      %p42 = por %p40, %p41
      %p43 = scmp.ne.s32.totalorder %s35, %s38
      %p44 = scmp.eq.s32.totalorder %s25, 0
      %p45 = por %p43, %p44
      %p46 = scmp.ne.s32.totalorder %s35, %s38
      %p47 = scmp.eq.s32.totalorder %s30, 1
      %p48 = por %p46, %p47
      %p49 = scmp.ne.s32.totalorder %s38, %s39
      %p50 = scmp.eq.s32.totalorder %s30, 0
      %p51 = por %p49, %p50
      %p52 = scmp.ne.s32.totalorder %s38, %s39
      %p53 = scmp.eq.s32.totalorder %s31, 1
      %p54 = por %p52, %p53
      %p56 = scmp.ne.s32.totalorder %s39, %s55
      %p57 = scmp.eq.s32.totalorder %s31, 0
      %p58 = por %p56, %p57
      %s60 = sadd.s32 %s59, 1
      %p63 = scmp.eq.s32.totalorder %s25, 1
      %p64 = scmp.ne.s32.totalorder %s59, %s61
      %p65 = scmp.eq.s32.totalorder %s25, 0
      %p66 = por %p64, %p65
      %p67 = scmp.ne.s32.totalorder %s59, %s61
      %p68 = scmp.eq.s32.totalorder %s30, 1
      %p69 = por %p67, %p68
      %p70 = scmp.ne.s32.totalorder %s61, %s62
      %p71 = scmp.eq.s32.totalorder %s30, 0
      %p72 = por %p70, %p71
      %p73 = scmp.ne.s32.totalorder %s61, %s62
      %p74 = scmp.eq.s32.totalorder %s31, 1
      %p75 = por %p73, %p74
      %p77 = scmp.ne.s32.totalorder %s62, %s76
      %p78 = scmp.eq.s32.totalorder %s31, 0
      %p79 = por %p77, %p78
      %s81 = sadd.s32 %s80, 1
      %p84 = scmp.eq.s32.totalorder %s25, 1
      %p85 = scmp.ne.s32.totalorder %s80, %s82
      %p86 = scmp.eq.s32.totalorder %s25, 0
      %p87 = por %p85, %p86
      %p88 = scmp.ne.s32.totalorder %s80, %s82
      %p89 = scmp.eq.s32.totalorder %s30, 1
      %p90 = por %p88, %p89
      %p91 = scmp.ne.s32.totalorder %s82, %s83
      %p92 = scmp.eq.s32.totalorder %s30, 0
      %p93 = por %p91, %p92
      %p94 = scmp.ne.s32.totalorder %s82, %s83
      %p95 = scmp.eq.s32.totalorder %s31, 1
      %p96 = por %p94, %p95
      %p98 = scmp.ne.s32.totalorder %s83, %s97
      %p99 = scmp.eq.s32.totalorder %s31, 0
      %p100 = por %p98, %p99
      %s102 = sadd.s32 %s101, 1
      %p105 = scmp.eq.s32.totalorder %s25, 1
      %p106 = scmp.ne.s32.totalorder %s101, %s103
      %p107 = scmp.eq.s32.totalorder %s25, 0
      %p108 = por %p106, %p107
      %p109 = scmp.ne.s32.totalorder %s101, %s103
      %p110 = scmp.eq.s32.totalorder %s30, 1
      %p111 = por %p109, %p110
      %p112 = scmp.ne.s32.totalorder %s103, %s104
      %p113 = scmp.eq.s32.totalorder %s30, 0
      %p114 = por %p112, %p113
      %p115 = scmp.ne.s32.totalorder %s103, %s104
      %p116 = scmp.eq.s32.totalorder %s31, 1
      %p117 = por %p115, %p116
      %p119 = scmp.ne.s32.totalorder %s104, %s118
      %p120 = scmp.eq.s32.totalorder %s31, 0
      %p121 = por %p119, %p120
      %s123 = sadd.s32 %s122, 1
      %p126 = scmp.eq.s32.totalorder %s25, 1
      %p127 = scmp.ne.s32.totalorder %s122, %s124
      %p128 = scmp.eq.s32.totalorder %s25, 0
      %p129 = por %p127, %p128
      %p130 = scmp.ne.s32.totalorder %s122, %s124
      %p131 = scmp.eq.s32.totalorder %s30, 1
      %p132 = por %p130, %p131
      %p133 = scmp.ne.s32.totalorder %s124, %s125
      %p134 = scmp.eq.s32.totalorder %s30, 0
      %p135 = por %p133, %p134
      %p136 = scmp.ne.s32.totalorder %s124, %s125
      %p137 = scmp.eq.s32.totalorder %s31, 1
      %p138 = por %p136, %p137
      %p140 = scmp.ne.s32.totalorder %s125, %s139
      %p141 = scmp.eq.s32.totalorder %s31, 0
      %p142 = por %p140, %p141
      %s144 = sadd.s32 %s143, 1
      %p147 = scmp.eq.s32.totalorder %s25, 1
      %p148 = scmp.ne.s32.totalorder %s143, %s145
      %p149 = scmp.eq.s32.totalorder %s25, 0
      %p150 = por %p148, %p149
      %p151 = scmp.ne.s32.totalorder %s143, %s145
      %p152 = scmp.eq.s32.totalorder %s30, 1
      %p153 = por %p151, %p152
      %p154 = scmp.ne.s32.totalorder %s145, %s146
      %p155 = scmp.eq.s32.totalorder %s30, 0
      %p156 = por %p154, %p155
      %p157 = scmp.ne.s32.totalorder %s145, %s146
      %p158 = scmp.eq.s32.totalorder %s31, 1
      %p159 = por %p157, %p158
      %p161 = scmp.ne.s32.totalorder %s146, %s160
      %p162 = scmp.eq.s32.totalorder %s31, 0
      %p163 = por %p161, %p162
      %s165 = sadd.s32 %s164, 1
      %p168 = scmp.eq.s32.totalorder %s25, 1
      %p169 = scmp.ne.s32.totalorder %s164, %s166
      %p170 = scmp.eq.s32.totalorder %s25, 0
      %p171 = por %p169, %p170
      %p172 = scmp.ne.s32.totalorder %s164, %s166
      %p173 = scmp.eq.s32.totalorder %s30, 1
      %p174 = por %p172, %p173
      %p175 = scmp.ne.s32.totalorder %s166, %s167
      %p176 = scmp.eq.s32.totalorder %s30, 0
      %p177 = por %p175, %p176
      %p178 = scmp.ne.s32.totalorder %s166, %s167
      %p179 = scmp.eq.s32.totalorder %s31, 1
      %p180 = por %p178, %p179
      %p182 = scmp.ne.s32.totalorder %s167, %s181
      %p183 = scmp.eq.s32.totalorder %s31, 0
      %p184 = por %p182, %p183
      %s186 = sadd.s32 %s185, 1
      %p189 = scmp.eq.s32.totalorder %s25, 1
      %p190 = scmp.ne.s32.totalorder %s185, %s187
      %p191 = scmp.eq.s32.totalorder %s25, 0
      %p192 = por %p190, %p191
      %p193 = scmp.ne.s32.totalorder %s185, %s187
      %p194 = scmp.eq.s32.totalorder %s30, 1
      %p195 = por %p193, %p194
      %p196 = scmp.ne.s32.totalorder %s187, %s188
      %p197 = scmp.eq.s32.totalorder %s30, 0
      %p198 = por %p196, %p197
      %p199 = scmp.ne.s32.totalorder %s187, %s188
      %p200 = scmp.eq.s32.totalorder %s31, 1
      %p201 = por %p199, %p200
      %p203 = scmp.ne.s32.totalorder %s188, %s202
      %p204 = scmp.eq.s32.totalorder %s31, 0
      %p205 = por %p203, %p204
      %s207 = sadd.s32 %s206, 1
      %p210 = scmp.eq.s32.totalorder %s25, 1
      %p211 = scmp.ne.s32.totalorder %s206, %s208
      %p212 = scmp.eq.s32.totalorder %s25, 0
      %p213 = por %p211, %p212
      %p214 = scmp.ne.s32.totalorder %s206, %s208
      %p215 = scmp.eq.s32.totalorder %s30, 1
      %p216 = por %p214, %p215
      %p217 = scmp.ne.s32.totalorder %s208, %s209
      %p218 = scmp.eq.s32.totalorder %s30, 0
      %p219 = por %p217, %p218
      %p220 = scmp.ne.s32.totalorder %s208, %s209
      %p221 = scmp.eq.s32.totalorder %s31, 1
      %p222 = por %p220, %p221
      %p224 = scmp.ne.s32.totalorder %s209, %s223
      %p225 = scmp.eq.s32.totalorder %s31, 0
      %p226 = por %p224, %p225
      %s228 = sadd.s32 %s227, 1
      %p231 = scmp.eq.s32.totalorder %s25, 1
      %p232 = scmp.ne.s32.totalorder %s227, %s229
      %p233 = scmp.eq.s32.totalorder %s25, 0
      %p234 = por %p232, %p233
      %p235 = scmp.ne.s32.totalorder %s227, %s229
      %p236 = scmp.eq.s32.totalorder %s30, 1
      %p237 = por %p235, %p236
      %p238 = scmp.ne.s32.totalorder %s229, %s230
      %p239 = scmp.eq.s32.totalorder %s30, 0
      %p240 = por %p238, %p239
      %p241 = scmp.ne.s32.totalorder %s229, %s230
      %p242 = scmp.eq.s32.totalorder %s31, 1
      %p243 = por %p241, %p242
      %p245 = scmp.ne.s32.totalorder %s230, %s244
      %p246 = scmp.eq.s32.totalorder %s31, 0
      %p247 = por %p245, %p246
      %s248 = ssub.s32 %s25, %s32
      %p249 = scmp.eq.s32.totalorder %s248, 0
      %s251 = sadd.s32 %s250, 1
      %s252 = scalar_select %p249, %s250, %s251
      %p255 = pneg %p249
      %p256 = scmp.eq.s32.totalorder %s25, 1
      %p257 = por %p255, %p256
      %p258 = scmp.ne.s32.totalorder %s250, %s253
      %p259 = scmp.eq.s32.totalorder %s25, 0
      %p260 = por %p258, %p259
      %p261 = scmp.ne.s32.totalorder %s250, %s253
      %p262 = scmp.eq.s32.totalorder %s30, 1
      %p263 = por %p261, %p262
      %p264 = scmp.ne.s32.totalorder %s253, %s254
      %p265 = scmp.eq.s32.totalorder %s30, 0
      %p266 = por %p264, %p265
      %p267 = scmp.ne.s32.totalorder %s253, %s254
      %p268 = scmp.eq.s32.totalorder %s31, 1
      %p269 = por %p267, %p268
      %p271 = scmp.ne.s32.totalorder %s254, %s270
      %p272 = scmp.eq.s32.totalorder %s31, 0
      %p273 = por %p271, %p272
      %p274 = scmp.le.s32.totalorder 1, %s25
      %p275 = scmp.lt.s32.totalorder %s25, 3
      %p276 = pnand %p274, %p275
      %p277 = pneg %p276
      // Predicated region
      $region9: #{tpu_custom_call.1} parent=5 // pred_check
        _
      $region10: #{tpu_custom_call.1} parent=5 // pred_check_branch
        %279 = sbr.rel (%p276) target = $region12
      $region11: #{tpu_custom_call.1} parent=5 // pred_region
        %s280 = ssub.s32 %s25, 1
        // Predicated region
        $region13: #{tpu_custom_call.1} parent=11 // pred_check
          %p281 = pneg %p72
        $region14: #{tpu_custom_call.1} parent=11 // pred_check_branch
          %283 = sbr.rel (%p281) target = $region16
        $region15: #{tpu_custom_call.1} parent=11 // pred_region
          %285 = vsyncadd [#allocation7], 0
          %s286 = sshll.u32 %s1, 4
          %s287 = int_to_ptr.hbm [resolvable:$true] %s286
          %s288 = sshll.u32 [#allocation6], 4
          %s289 = int_to_ptr.vmem [resolvable:$true] %s288
          %294 = dma.hbm_to_vmem [thread:$0]  %s287, 24576, %s289, [#allocation7], 256, 256, 16
        $region16: #{tpu_custom_call.1} parent=11 // pred_fallthru
          _
        // Predicated region
        $region17: #{tpu_custom_call.1} parent=11 // pred_check
          %p295 = pneg %p93
        $region18: #{tpu_custom_call.1} parent=11 // pred_check_branch
          %297 = sbr.rel (%p295) target = $region20
        $region19: #{tpu_custom_call.1} parent=11 // pred_region
          %299 = vsyncadd [#allocation7], 0
          %s300 = sshll.u32 %s2, 4
          %s301 = int_to_ptr.hbm [resolvable:$true] %s300
          %s302 = sshll.u32 [#allocation8], 4
          %s303 = int_to_ptr.vmem [resolvable:$true] %s302
          %308 = dma.hbm_to_vmem [thread:$0]  %s301, 4096, %s303, [#allocation7], 128, 128, 8
        $region20: #{tpu_custom_call.1} parent=11 // pred_fallthru
          _
        // Predicated region
        $region21: #{tpu_custom_call.1} parent=11 // pred_check
          %p309 = pneg %p114
        $region22: #{tpu_custom_call.1} parent=11 // pred_check_branch
          %311 = sbr.rel (%p309) target = $region24
        $region23: #{tpu_custom_call.1} parent=11 // pred_region
          _
        $region24: #{tpu_custom_call.1} parent=11 // pred_fallthru
          _
        // Predicated region
        $region25: #{tpu_custom_call.1} parent=11 // pred_check
          %p312 = pneg %p135
        $region26: #{tpu_custom_call.1} parent=11 // pred_check_branch
          %314 = sbr.rel (%p312) target = $region28
        $region27: #{tpu_custom_call.1} parent=11 // pred_region
          %316 = vsyncadd [#allocation10], 0
          %s317 = sshll.u32 %s4, 4
          %s318 = int_to_ptr.hbm [resolvable:$true] %s317
          %s319 = sshll.u32 [#allocation9], 4
          %s320 = int_to_ptr.vmem [resolvable:$true] %s319
          %325 = dma.hbm_to_vmem [thread:$0]  %s318, 4096, %s320, [#allocation10], 128, 128, 8
        $region28: #{tpu_custom_call.1} parent=11 // pred_fallthru
          _
        // Predicated region
        $region29: #{tpu_custom_call.1} parent=11 // pred_check
          %p326 = pneg %p156
        $region30: #{tpu_custom_call.1} parent=11 // pred_check_branch
          %328 = sbr.rel (%p326) target = $region32
        $region31: #{tpu_custom_call.1} parent=11 // pred_region
          _
        $region32: #{tpu_custom_call.1} parent=11 // pred_fallthru
          _
        // Predicated region
        $region33: #{tpu_custom_call.1} parent=11 // pred_check
          %p329 = pneg %p177
        $region34: #{tpu_custom_call.1} parent=11 // pred_check_branch
          %331 = sbr.rel (%p329) target = $region36
        $region35: #{tpu_custom_call.1} parent=11 // pred_region
          %333 = vsyncadd [#allocation10], 0
          %s334 = sshll.u32 %s6, 4
          %s335 = int_to_ptr.hbm [resolvable:$true] %s334
          %s336 = sshll.u32 [#allocation11], 4
          %s337 = int_to_ptr.vmem [resolvable:$true] %s336
          %342 = dma.hbm_to_vmem [thread:$0]  %s335, 32, %s337, [#allocation10], 16, 16, 1
        $region36: #{tpu_custom_call.1} parent=11 // pred_fallthru
          _
        // Predicated region
        $region37: #{tpu_custom_call.1} parent=11 // pred_check
          %p343 = pneg %p198
        $region38: #{tpu_custom_call.1} parent=11 // pred_check_branch
          %345 = sbr.rel (%p343) target = $region40
        $region39: #{tpu_custom_call.1} parent=11 // pred_region
          _
        $region40: #{tpu_custom_call.1} parent=11 // pred_fallthru
          _
        // Predicated region
        $region41: #{tpu_custom_call.1} parent=11 // pred_check
          %p346 = pneg %p219
        $region42: #{tpu_custom_call.1} parent=11 // pred_check_branch
          %348 = sbr.rel (%p346) target = $region44
        $region43: #{tpu_custom_call.1} parent=11 // pred_region
          %350 = vsyncadd [#allocation13], 0
          %s351 = sshll.u32 %s8, 4
          %s352 = int_to_ptr.hbm [resolvable:$true] %s351
          %s353 = sshll.u32 [#allocation12], 4
          %s354 = int_to_ptr.vmem [resolvable:$true] %s353
          %359 = dma.hbm_to_vmem [thread:$0]  %s352, 32, %s354, [#allocation13], 16, 16, 1
        $region44: #{tpu_custom_call.1} parent=11 // pred_fallthru
          _
        // Predicated region
        $region45: #{tpu_custom_call.1} parent=11 // pred_check
          %p360 = pneg %p240
        $region46: #{tpu_custom_call.1} parent=11 // pred_check_branch
          %362 = sbr.rel (%p360) target = $region48
        $region47: #{tpu_custom_call.1} parent=11 // pred_region
          _
        $region48: #{tpu_custom_call.1} parent=11 // pred_fallthru
          _
      $region12: #{tpu_custom_call.1} parent=5 // pred_fallthru
        _
      %p363 = scmp.lt.s32.totalorder %s25, 2
      // Predicated region
      $region49: #{tpu_custom_call.1} parent=5 // pred_check
        %p364 = pneg %p363
      $region50: #{tpu_custom_call.1} parent=5 // pred_check_branch
        %366 = sbr.rel (%p364) target = $region52
      $region51: #{tpu_custom_call.1} parent=5 // pred_region
        // Predicated region
        $region53: #{tpu_custom_call.1} parent=51 // pred_check
          %p367 = pneg %p45
        $region54: #{tpu_custom_call.1} parent=51 // pred_check_branch
          %369 = sbr.rel (%p367) target = $region56
        $region55: #{tpu_custom_call.1} parent=51 // pred_region
          %s370 = sand.u32 %s35, 1
          %s371 = scalar_lea.sflag [#allocation4], %s370
          %s372 = sand.u32 %s35, 1
          %s373 = smul.addr %s372, 256
          %s374 = scalar_lea.vmem [#allocation3], %s373
          %376 = vsyncadd %s371, 0
          %s377 = smul.addr %s25, 32
          %s378 = smul.addr %s377, 8
          %s379 = scalar_lea.hbm %s0, %s378
          %s380 = sshll.u32 %s379, 4
          %s381 = int_to_ptr.hbm [resolvable:$true] %s380
          %s382 = sshll.u32 %s374, 4
          %s383 = int_to_ptr.vmem [resolvable:$true] %s382
          %388 = dma.hbm_to_vmem [thread:$0]  %s381, 4096, %s383, %s371, 128, 128, 8
        $region56: #{tpu_custom_call.1} parent=51 // pred_fallthru
          _
      $region52: #{tpu_custom_call.1} parent=5 // pred_fallthru
        _
      %p389 = scmp.le.s32.totalorder 1, %s25
      %p390 = scmp.lt.s32.totalorder %s25, 3
      %p391 = pnand %p389, %p390
      %p392 = pneg %p391
      // Predicated region
      $region57: #{tpu_custom_call.1} parent=5 // pred_check
        _
      $region58: #{tpu_custom_call.1} parent=5 // pred_check_branch
        %394 = sbr.rel (%p391) target = $region60
      $region59: #{tpu_custom_call.1} parent=5 // pred_region
        %s395 = ssub.s32 %s25, 1
        %s396 = sand.u32 %s38, 1
        %s397 = scalar_lea.sflag [#allocation4], %s396
        %s398 = sand.u32 %s38, 1
        %s399 = smul.addr %s398, 256
        %s400 = scalar_lea.vmem [#allocation3], %s399
        // Predicated region
        $region61: #{tpu_custom_call.1} parent=59 // pred_check
          %p401 = pneg %p51
        $region62: #{tpu_custom_call.1} parent=59 // pred_check_branch
          %403 = sbr.rel (%p401) target = $region64
        $region63: #{tpu_custom_call.1} parent=59 // pred_region
          %405 = dma.done %s397, 4096
        $region64: #{tpu_custom_call.1} parent=59 // pred_fallthru
          _
        // Predicated region
        $region65: #{tpu_custom_call.1} parent=59 // pred_check
          %p406 = pneg %p72
        $region66: #{tpu_custom_call.1} parent=59 // pred_check_branch
          %408 = sbr.rel (%p406) target = $region68
        $region67: #{tpu_custom_call.1} parent=59 // pred_region
          %410 = dma.done [#allocation7], 24576
        $region68: #{tpu_custom_call.1} parent=59 // pred_fallthru
          _
        // Predicated region
        $region69: #{tpu_custom_call.1} parent=59 // pred_check
          %p411 = pneg %p93
        $region70: #{tpu_custom_call.1} parent=59 // pred_check_branch
          %413 = sbr.rel (%p411) target = $region72
        $region71: #{tpu_custom_call.1} parent=59 // pred_region
          %415 = dma.done [#allocation7], 4096
        $region72: #{tpu_custom_call.1} parent=59 // pred_fallthru
          _
        // Predicated region
        $region73: #{tpu_custom_call.1} parent=59 // pred_check
          %p416 = pneg %p135
        $region74: #{tpu_custom_call.1} parent=59 // pred_check_branch
          %418 = sbr.rel (%p416) target = $region76
        $region75: #{tpu_custom_call.1} parent=59 // pred_region
          %420 = dma.done [#allocation10], 4096
        $region76: #{tpu_custom_call.1} parent=59 // pred_fallthru
          _
        // Predicated region
        $region77: #{tpu_custom_call.1} parent=59 // pred_check
          %p421 = pneg %p177
        $region78: #{tpu_custom_call.1} parent=59 // pred_check_branch
          %423 = sbr.rel (%p421) target = $region80
        $region79: #{tpu_custom_call.1} parent=59 // pred_region
          %425 = dma.done [#allocation10], 32
        $region80: #{tpu_custom_call.1} parent=59 // pred_fallthru
          _
        // Predicated region
        $region81: #{tpu_custom_call.1} parent=59 // pred_check
          %p426 = pneg %p219
        $region82: #{tpu_custom_call.1} parent=59 // pred_check_branch
          %428 = sbr.rel (%p426) target = $region84
        $region83: #{tpu_custom_call.1} parent=59 // pred_region
          %430 = dma.done [#allocation13], 32
        $region84: #{tpu_custom_call.1} parent=59 // pred_fallthru
          _
        %s431 = sand.u32 %s38, 1
        %s432 = scalar_lea.sflag [#allocation4], %s431
        %s433 = sand.u32 %s38, 1
        %s434 = smul.addr %s433, 256
        %s435 = scalar_lea.vmem [#allocation3], %s434
        %p436 = pneg %p51
        %p437 = pneg %p48
        %p438 = pneg %p72
        %p439 = pneg %p69
        %p440 = pneg %p93
        %p441 = pneg %p90
        %p442 = pneg %p114
        %p443 = pneg %p111
        %p444 = pneg %p135
        %p445 = pneg %p132
        %p446 = pneg %p156
        %p447 = pneg %p153
        %p448 = pneg %p177
        %p449 = pneg %p174
        %p450 = pneg %p198
        %p451 = pneg %p195
        %p452 = pneg %p219
        %p453 = pneg %p216
        %p454 = pneg %p240
        %p455 = pneg %p237
        %p456 = pneg %p266
        %p457 = pneg %p263
        %s458 = sand.u32 %s253, 1
        %s459 = scalar_lea.sflag [#allocation5], %s458
        %s460 = sand.u32 %s253, 1
        %s461 = smul.addr %s460, 256
        %s462 = scalar_lea.vmem [#allocation14], %s461
        %v463 = vld [vmem:[%s400] sm:$0xff]
        %v464 = vld [vmem:[%s400 + $0x8] sm:$0xff]
        %v465 = vld [vmem:[%s400 + $0x10] sm:$0xff]
        %v466 = vld [vmem:[%s400 + $0x18] sm:$0xff]
        %v467 = vld [vmem:[%s400 + $0x20] sm:$0xff]
        %v468 = vld [vmem:[%s400 + $0x28] sm:$0xff]
        %v469 = vld [vmem:[%s400 + $0x30] sm:$0xff]
        %v470 = vld [vmem:[%s400 + $0x38] sm:$0xff]
        %v471 = vld [vmem:[%s400 + $0x40] sm:$0xff]
        %v472 = vld [vmem:[%s400 + $0x48] sm:$0xff]
        %v473 = vld [vmem:[%s400 + $0x50] sm:$0xff]
        %v474 = vld [vmem:[%s400 + $0x58] sm:$0xff]
        %v475 = vld [vmem:[%s400 + $0x60] sm:$0xff]
        %v476 = vld [vmem:[%s400 + $0x68] sm:$0xff]
        %v477 = vld [vmem:[%s400 + $0x70] sm:$0xff]
        %v478 = vld [vmem:[%s400 + $0x78] sm:$0xff]
        %v479 = vld [vmem:[%s400 + $0x80] sm:$0xff]
        %v480 = vld [vmem:[%s400 + $0x88] sm:$0xff]
        %v481 = vld [vmem:[%s400 + $0x90] sm:$0xff]
        %v482 = vld [vmem:[%s400 + $0x98] sm:$0xff]
        %v483 = vld [vmem:[%s400 + $0xa0] sm:$0xff]
        %v484 = vld [vmem:[%s400 + $0xa8] sm:$0xff]
        %v485 = vld [vmem:[%s400 + $0xb0] sm:$0xff]
        %v486 = vld [vmem:[%s400 + $0xb8] sm:$0xff]
        %v487 = vld [vmem:[%s400 + $0xc0] sm:$0xff]
        %v488 = vld [vmem:[%s400 + $0xc8] sm:$0xff]
        %v489 = vld [vmem:[%s400 + $0xd0] sm:$0xff]
        %v490 = vld [vmem:[%s400 + $0xd8] sm:$0xff]
        %v491 = vld [vmem:[%s400 + $0xe0] sm:$0xff]
        %v492 = vld [vmem:[%s400 + $0xe8] sm:$0xff]
        %v493 = vld [vmem:[%s400 + $0xf0] sm:$0xff]
        %v494 = vld [vmem:[%s400 + $0xf8] sm:$0xff]
        %495 = vst [vmem:[#allocation2] sm:$0xff] %v463
        %496 = vst [vmem:[#allocation2 + $0x8] sm:$0xff] %v464
        %497 = vst [vmem:[#allocation2 + $0x10] sm:$0xff] %v465
        %498 = vst [vmem:[#allocation2 + $0x18] sm:$0xff] %v466
        %499 = vst [vmem:[#allocation2 + $0x20] sm:$0xff] %v467
        %500 = vst [vmem:[#allocation2 + $0x28] sm:$0xff] %v468
        %501 = vst [vmem:[#allocation2 + $0x30] sm:$0xff] %v469
        %502 = vst [vmem:[#allocation2 + $0x38] sm:$0xff] %v470
        %503 = vst [vmem:[#allocation2 + $0x40] sm:$0xff] %v471
        %504 = vst [vmem:[#allocation2 + $0x48] sm:$0xff] %v472
        %505 = vst [vmem:[#allocation2 + $0x50] sm:$0xff] %v473
        %506 = vst [vmem:[#allocation2 + $0x58] sm:$0xff] %v474
        %507 = vst [vmem:[#allocation2 + $0x60] sm:$0xff] %v475
        %508 = vst [vmem:[#allocation2 + $0x68] sm:$0xff] %v476
        %509 = vst [vmem:[#allocation2 + $0x70] sm:$0xff] %v477
        %510 = vst [vmem:[#allocation2 + $0x78] sm:$0xff] %v478
        %511 = vst [vmem:[#allocation2 + $0x80] sm:$0xff] %v479
        %512 = vst [vmem:[#allocation2 + $0x88] sm:$0xff] %v480
        %513 = vst [vmem:[#allocation2 + $0x90] sm:$0xff] %v481
        %514 = vst [vmem:[#allocation2 + $0x98] sm:$0xff] %v482
        %515 = vst [vmem:[#allocation2 + $0xa0] sm:$0xff] %v483
        %516 = vst [vmem:[#allocation2 + $0xa8] sm:$0xff] %v484
        %517 = vst [vmem:[#allocation2 + $0xb0] sm:$0xff] %v485
        %518 = vst [vmem:[#allocation2 + $0xb8] sm:$0xff] %v486
        %519 = vst [vmem:[#allocation2 + $0xc0] sm:$0xff] %v487
        %520 = vst [vmem:[#allocation2 + $0xc8] sm:$0xff] %v488
        %521 = vst [vmem:[#allocation2 + $0xd0] sm:$0xff] %v489
        %522 = vst [vmem:[#allocation2 + $0xd8] sm:$0xff] %v490
        %523 = vst [vmem:[#allocation2 + $0xe0] sm:$0xff] %v491
        %524 = vst [vmem:[#allocation2 + $0xe8] sm:$0xff] %v492
        %525 = vst [vmem:[#allocation2 + $0xf0] sm:$0xff] %v493
        %526 = vst [vmem:[#allocation2 + $0xf8] sm:$0xff] %v494
        %527 = vst [vmem:[#allocation2 + $0x100] sm:$0xff] 0.0
        %v528 = vld [vmem:[#allocation2] sm:$0xff]
        %v529 = vld [vmem:[#allocation2 + $0x8] sm:$0xff]
        %v530 = vld [vmem:[#allocation2 + $0x10] sm:$0xff]
        %v531 = vld [vmem:[#allocation2 + $0x18] sm:$0xff]
        %v532 = vld [vmem:[#allocation2 + $0x20] sm:$0xff]
        %v533 = vld [vmem:[#allocation2 + $0x28] sm:$0xff]
        %v534 = vld [vmem:[#allocation2 + $0x30] sm:$0xff]
        %v535 = vld [vmem:[#allocation2 + $0x38] sm:$0xff]
        %v536 = vld [vmem:[#allocation2 + $0x40] sm:$0xff]
        %v537 = vld [vmem:[#allocation2 + $0x48] sm:$0xff]
        %v538 = vld [vmem:[#allocation2 + $0x50] sm:$0xff]
        %v539 = vld [vmem:[#allocation2 + $0x58] sm:$0xff]
        %v540 = vld [vmem:[#allocation2 + $0x60] sm:$0xff]
        %v541 = vld [vmem:[#allocation2 + $0x68] sm:$0xff]
        %v542 = vld [vmem:[#allocation2 + $0x70] sm:$0xff]
        %v543 = vld [vmem:[#allocation2 + $0x78] sm:$0xff]
        %v544 = vld [vmem:[#allocation2 + $0x80] sm:$0xff]
        %v545 = vld [vmem:[#allocation2 + $0x88] sm:$0xff]
        %v546 = vld [vmem:[#allocation2 + $0x90] sm:$0xff]
        %v547 = vld [vmem:[#allocation2 + $0x98] sm:$0xff]
        %v548 = vld [vmem:[#allocation2 + $0xa0] sm:$0xff]
        %v549 = vld [vmem:[#allocation2 + $0xa8] sm:$0xff]
        %v550 = vld [vmem:[#allocation2 + $0xb0] sm:$0xff]
        %v551 = vld [vmem:[#allocation2 + $0xb8] sm:$0xff]
        %v552 = vld [vmem:[#allocation2 + $0xc0] sm:$0xff]
        %v553 = vld [vmem:[#allocation2 + $0xc8] sm:$0xff]
        %v554 = vld [vmem:[#allocation2 + $0xd0] sm:$0xff]
        %v555 = vld [vmem:[#allocation2 + $0xd8] sm:$0xff]
        %v556 = vld [vmem:[#allocation2 + $0xe0] sm:$0xff]
        %v557 = vld [vmem:[#allocation2 + $0xe8] sm:$0xff]
        %v558 = vld [vmem:[#allocation2 + $0xf0] sm:$0xff]
        %v559 = vld [vmem:[#allocation2 + $0xf8] sm:$0xff]
        %v560 = vld [vmem:[#allocation2 + $0x100] sm:$0xff]
        %v561 = vrot.slane %v528, 7
        %v562 = vrot.slane %v529, 7
        %v563 = vrot.slane %v530, 7
        %v564 = vrot.slane %v531, 7
        %v565 = vrot.slane %v532, 7
        %v566 = vrot.slane %v533, 7
        %v567 = vrot.slane %v534, 7
        %v568 = vrot.slane %v535, 7
        %v569 = vrot.slane %v536, 7
        %v570 = vrot.slane %v537, 7
        %v571 = vrot.slane %v538, 7
        %v572 = vrot.slane %v539, 7
        %v573 = vrot.slane %v540, 7
        %v574 = vrot.slane %v541, 7
        %v575 = vrot.slane %v542, 7
        %v576 = vrot.slane %v543, 7
        %v577 = vrot.slane %v544, 7
        %v578 = vrot.slane %v545, 7
        %v579 = vrot.slane %v546, 7
        %v580 = vrot.slane %v547, 7
        %v581 = vrot.slane %v548, 7
        %v582 = vrot.slane %v549, 7
        %v583 = vrot.slane %v550, 7
        %v584 = vrot.slane %v551, 7
        %v585 = vrot.slane %v552, 7
        %v586 = vrot.slane %v553, 7
        %v587 = vrot.slane %v554, 7
        %v588 = vrot.slane %v555, 7
        %v589 = vrot.slane %v556, 7
        %v590 = vrot.slane %v557, 7
        %v591 = vrot.slane %v558, 7
        %v592 = vrot.slane %v559, 7
        %v593 = vrot.slane %v560, 7
        %v594 = vlaneseq
        %v595 = vshrl.u32 %v594, 7
        %vm596 = vcmp.lt.s32.totalorder %v595, 1
        %v597 = vsel %vm596, %v592, %v593
        %v598 = vsel %vm596, %v591, %v592
        %v599 = vsel %vm596, %v590, %v591
        %v600 = vsel %vm596, %v589, %v590
        %v601 = vsel %vm596, %v588, %v589
        %v602 = vsel %vm596, %v587, %v588
        %v603 = vsel %vm596, %v586, %v587
        %v604 = vsel %vm596, %v585, %v586
        %v605 = vsel %vm596, %v584, %v585
        %v606 = vsel %vm596, %v583, %v584
        %v607 = vsel %vm596, %v582, %v583
        %v608 = vsel %vm596, %v581, %v582
        %v609 = vsel %vm596, %v580, %v581
        %v610 = vsel %vm596, %v579, %v580
        %v611 = vsel %vm596, %v578, %v579
        %v612 = vsel %vm596, %v577, %v578
        %v613 = vsel %vm596, %v576, %v577
        %v614 = vsel %vm596, %v575, %v576
        %v615 = vsel %vm596, %v574, %v575
        %v616 = vsel %vm596, %v573, %v574
        %v617 = vsel %vm596, %v572, %v573
        %v618 = vsel %vm596, %v571, %v572
        %v619 = vsel %vm596, %v570, %v571
        %v620 = vsel %vm596, %v569, %v570
        %v621 = vsel %vm596, %v568, %v569
        %v622 = vsel %vm596, %v567, %v568
        %v623 = vsel %vm596, %v566, %v567
        %v624 = vsel %vm596, %v565, %v566
        %v625 = vsel %vm596, %v564, %v565
        %v626 = vsel %vm596, %v563, %v564
        %v627 = vsel %vm596, %v562, %v563
        %v628 = vsel %vm596, %v561, %v562
        %v629 = vsel %vm596, %v593, %v561
        %v630 = vrot.slane %v528, 1
        %v631 = vrot.slane %v529, 1
        %v632 = vrot.slane %v530, 1
        %v633 = vrot.slane %v531, 1
        %v634 = vrot.slane %v532, 1
        %v635 = vrot.slane %v533, 1
        %v636 = vrot.slane %v534, 1
        %v637 = vrot.slane %v535, 1
        %v638 = vrot.slane %v536, 1
        %v639 = vrot.slane %v537, 1
        %v640 = vrot.slane %v538, 1
        %v641 = vrot.slane %v539, 1
        %v642 = vrot.slane %v540, 1
        %v643 = vrot.slane %v541, 1
        %v644 = vrot.slane %v542, 1
        %v645 = vrot.slane %v543, 1
        %v646 = vrot.slane %v544, 1
        %v647 = vrot.slane %v545, 1
        %v648 = vrot.slane %v546, 1
        %v649 = vrot.slane %v547, 1
        %v650 = vrot.slane %v548, 1
        %v651 = vrot.slane %v549, 1
        %v652 = vrot.slane %v550, 1
        %v653 = vrot.slane %v551, 1
        %v654 = vrot.slane %v552, 1
        %v655 = vrot.slane %v553, 1
        %v656 = vrot.slane %v554, 1
        %v657 = vrot.slane %v555, 1
        %v658 = vrot.slane %v556, 1
        %v659 = vrot.slane %v557, 1
        %v660 = vrot.slane %v558, 1
        %v661 = vrot.slane %v559, 1
        %v662 = vrot.slane %v560, 1
        %vm663 = vcmp.lt.s32.totalorder %v595, 7
        %v664 = vsel %vm663, %v661, %v662
        %v665 = vsel %vm663, %v660, %v661
        %v666 = vsel %vm663, %v659, %v660
        %v667 = vsel %vm663, %v658, %v659
        %v668 = vsel %vm663, %v657, %v658
        %v669 = vsel %vm663, %v656, %v657
        %v670 = vsel %vm663, %v655, %v656
        %v671 = vsel %vm663, %v654, %v655
        %v672 = vsel %vm663, %v653, %v654
        %v673 = vsel %vm663, %v652, %v653
        %v674 = vsel %vm663, %v651, %v652
        %v675 = vsel %vm663, %v650, %v651
        %v676 = vsel %vm663, %v649, %v650
        %v677 = vsel %vm663, %v648, %v649
        %v678 = vsel %vm663, %v647, %v648
        %v679 = vsel %vm663, %v646, %v647
        %v680 = vsel %vm663, %v645, %v646
        %v681 = vsel %vm663, %v644, %v645
        %v682 = vsel %vm663, %v643, %v644
        %v683 = vsel %vm663, %v642, %v643
        %v684 = vsel %vm663, %v641, %v642
        %v685 = vsel %vm663, %v640, %v641
        %v686 = vsel %vm663, %v639, %v640
        %v687 = vsel %vm663, %v638, %v639
        %v688 = vsel %vm663, %v637, %v638
        %v689 = vsel %vm663, %v636, %v637
        %v690 = vsel %vm663, %v635, %v636
        %v691 = vsel %vm663, %v634, %v635
        %v692 = vsel %vm663, %v633, %v634
        %v693 = vsel %vm663, %v632, %v633
        %v694 = vsel %vm663, %v631, %v632
        %v695 = vsel %vm663, %v630, %v631
        %v696 = vsel %vm663, %v662, %v630
        %v697 = vld [vmem:[#allocation6] sm:$0xff]
        %v698 = vld [vmem:[#allocation6 + $0x8] sm:$0xff]
        %v699 = vld [vmem:[#allocation6 + $0x10] sm:$0xff]
        %v700 = vld [vmem:[#allocation6 + $0x18] sm:$0xff]
        %v701 = vld [vmem:[#allocation6 + $0x20] sm:$0xff]
        %v702 = vld [vmem:[#allocation6 + $0x28] sm:$0xff]
        %v703 = vld [vmem:[#allocation6 + $0x30] sm:$0xff]
        %v704 = vld [vmem:[#allocation6 + $0x38] sm:$0xff]
        %v705 = vld [vmem:[#allocation6 + $0x40] sm:$0xff]
        %v706 = vld [vmem:[#allocation6 + $0x48] sm:$0xff]
        %v707 = vld [vmem:[#allocation6 + $0x50] sm:$0xff]
        %v708 = vld [vmem:[#allocation6 + $0x58] sm:$0xff]
        %v709 = vld [vmem:[#allocation6 + $0x60] sm:$0xff]
        %v710 = vld [vmem:[#allocation6 + $0x68] sm:$0xff]
        %v711 = vld [vmem:[#allocation6 + $0x70] sm:$0xff]
        %v712 = vld [vmem:[#allocation6 + $0x78] sm:$0xff]
        %v713 = vld [vmem:[#allocation6 + $0x80] sm:$0xff]
        %v714 = vld [vmem:[#allocation6 + $0x88] sm:$0xff]
        %v715 = vld [vmem:[#allocation6 + $0x90] sm:$0xff]
        %v716 = vld [vmem:[#allocation6 + $0x98] sm:$0xff]
        %v717 = vld [vmem:[#allocation6 + $0xa0] sm:$0xff]
        %v718 = vld [vmem:[#allocation6 + $0xa8] sm:$0xff]
        %v719 = vld [vmem:[#allocation6 + $0xb0] sm:$0xff]
        %v720 = vld [vmem:[#allocation6 + $0xb8] sm:$0xff]
        %v721 = vld [vmem:[#allocation6 + $0xc0] sm:$0xff]
        %v722 = vld [vmem:[#allocation6 + $0xc8] sm:$0xff]
        %v723 = vld [vmem:[#allocation6 + $0xd0] sm:$0xff]
        %v724 = vld [vmem:[#allocation6 + $0xd8] sm:$0xff]
        %v725 = vld [vmem:[#allocation6 + $0xe0] sm:$0xff]
        %v726 = vld [vmem:[#allocation6 + $0xe8] sm:$0xff]
        %v727 = vld [vmem:[#allocation6 + $0xf0] sm:$0xff]
        %v728 = vld [vmem:[#allocation6 + $0xf8] sm:$0xff]
        %v729 = vld [vmem:[#allocation6 + $0x100] sm:$0xff]
        %v730 = vld [vmem:[#allocation6 + $0x108] sm:$0xff]
        %v731 = vld [vmem:[#allocation6 + $0x110] sm:$0xff]
        %v732 = vld [vmem:[#allocation6 + $0x118] sm:$0xff]
        %v733 = vld [vmem:[#allocation6 + $0x120] sm:$0xff]
        %v734 = vld [vmem:[#allocation6 + $0x128] sm:$0xff]
        %v735 = vld [vmem:[#allocation6 + $0x130] sm:$0xff]
        %v736 = vld [vmem:[#allocation6 + $0x138] sm:$0xff]
        %v737 = vld [vmem:[#allocation6 + $0x140] sm:$0xff]
        %v738 = vld [vmem:[#allocation6 + $0x148] sm:$0xff]
        %v739 = vld [vmem:[#allocation6 + $0x150] sm:$0xff]
        %v740 = vld [vmem:[#allocation6 + $0x158] sm:$0xff]
        %v741 = vld [vmem:[#allocation6 + $0x160] sm:$0xff]
        %v742 = vld [vmem:[#allocation6 + $0x168] sm:$0xff]
        %v743 = vld [vmem:[#allocation6 + $0x170] sm:$0xff]
        %v744 = vld [vmem:[#allocation6 + $0x178] sm:$0xff]
        %v745 = vld [vmem:[#allocation6 + $0x180] sm:$0xff]
        %v746 = vld [vmem:[#allocation6 + $0x188] sm:$0xff]
        %v747 = vld [vmem:[#allocation6 + $0x190] sm:$0xff]
        %v748 = vld [vmem:[#allocation6 + $0x198] sm:$0xff]
        %v749 = vld [vmem:[#allocation6 + $0x1a0] sm:$0xff]
        %v750 = vld [vmem:[#allocation6 + $0x1a8] sm:$0xff]
        %v751 = vld [vmem:[#allocation6 + $0x1b0] sm:$0xff]
        %v752 = vld [vmem:[#allocation6 + $0x1b8] sm:$0xff]
        %v753 = vld [vmem:[#allocation6 + $0x1c0] sm:$0xff]
        %v754 = vld [vmem:[#allocation6 + $0x1c8] sm:$0xff]
        %v755 = vld [vmem:[#allocation6 + $0x1d0] sm:$0xff]
        %v756 = vld [vmem:[#allocation6 + $0x1d8] sm:$0xff]
        %v757 = vld [vmem:[#allocation6 + $0x1e0] sm:$0xff]
        %v758 = vld [vmem:[#allocation6 + $0x1e8] sm:$0xff]
        %v759 = vld [vmem:[#allocation6 + $0x1f0] sm:$0xff]
        %v760 = vld [vmem:[#allocation6 + $0x1f8] sm:$0xff]
        %v761 = vld [vmem:[#allocation6 + $0x200] sm:$0xff]
        %v762 = vld [vmem:[#allocation6 + $0x208] sm:$0xff]
        %v763 = vld [vmem:[#allocation6 + $0x210] sm:$0xff]
        %v764 = vld [vmem:[#allocation6 + $0x218] sm:$0xff]
        %v765 = vld [vmem:[#allocation6 + $0x220] sm:$0xff]
        %v766 = vld [vmem:[#allocation6 + $0x228] sm:$0xff]
        %v767 = vld [vmem:[#allocation6 + $0x230] sm:$0xff]
        %v768 = vld [vmem:[#allocation6 + $0x238] sm:$0xff]
        %v769 = vld [vmem:[#allocation6 + $0x240] sm:$0xff]
        %v770 = vld [vmem:[#allocation6 + $0x248] sm:$0xff]
        %v771 = vld [vmem:[#allocation6 + $0x250] sm:$0xff]
        %v772 = vld [vmem:[#allocation6 + $0x258] sm:$0xff]
        %v773 = vld [vmem:[#allocation6 + $0x260] sm:$0xff]
        %v774 = vld [vmem:[#allocation6 + $0x268] sm:$0xff]
        %v775 = vld [vmem:[#allocation6 + $0x270] sm:$0xff]
        %v776 = vld [vmem:[#allocation6 + $0x278] sm:$0xff]
        %v777 = vld [vmem:[#allocation6 + $0x280] sm:$0xff]
        %v778 = vld [vmem:[#allocation6 + $0x288] sm:$0xff]
        %v779 = vld [vmem:[#allocation6 + $0x290] sm:$0xff]
        %v780 = vld [vmem:[#allocation6 + $0x298] sm:$0xff]
        %v781 = vld [vmem:[#allocation6 + $0x2a0] sm:$0xff]
        %v782 = vld [vmem:[#allocation6 + $0x2a8] sm:$0xff]
        %v783 = vld [vmem:[#allocation6 + $0x2b0] sm:$0xff]
        %v784 = vld [vmem:[#allocation6 + $0x2b8] sm:$0xff]
        %v785 = vld [vmem:[#allocation6 + $0x2c0] sm:$0xff]
        %v786 = vld [vmem:[#allocation6 + $0x2c8] sm:$0xff]
        %v787 = vld [vmem:[#allocation6 + $0x2d0] sm:$0xff]
        %v788 = vld [vmem:[#allocation6 + $0x2d8] sm:$0xff]
        %v789 = vld [vmem:[#allocation6 + $0x2e0] sm:$0xff]
        %v790 = vld [vmem:[#allocation6 + $0x2e8] sm:$0xff]
        %v791 = vld [vmem:[#allocation6 + $0x2f0] sm:$0xff]
        %v792 = vld [vmem:[#allocation6 + $0x2f8] sm:$0xff]
        %793 = vmatpush.msra.mxu0 %v727
        %794 = vmatpush.msra.mxu0 %v725
        %795 = vmatpush.msra.mxu0 %v723
        %796 = vmatpush.msra.mxu0 %v721
        %797 = vmatpush.msra.mxu0 %v719
        %798 = vmatpush.msra.mxu0 %v717
        %799 = vmatpush.msra.mxu0 %v715
        %800 = vmatpush.msra.mxu0 %v713
        %801 = vmatpush.msra.mxu0 %v711
        %802 = vmatpush.msra.mxu0 %v709
        %803 = vmatpush.msra.mxu0 %v707
        %804 = vmatpush.msra.mxu0 %v705
        %805 = vmatpush.msra.mxu0 %v703
        %806 = vmatpush.msra.mxu0 %v701
        %807 = vmatpush.msra.mxu0 %v699
        %808 = vmatpush.msra.mxu0 %v697
        %809 = vmatmul.f32.gmra.mxu0 %v629
        %v810 = vpop.f32.mrf.mxu0
        %v811 = vadd.f32 0.0, %v810
        %812 = vmatmul.f32.gmra.mxu0 %v628
        %v813 = vpop.f32.mrf.mxu0
        %v814 = vadd.f32 0.0, %v813
        %815 = vmatmul.f32.gmra.mxu0 %v627
        %v816 = vpop.f32.mrf.mxu0
        %v817 = vadd.f32 0.0, %v816
        %818 = vmatmul.f32.gmra.mxu0 %v626
        %v819 = vpop.f32.mrf.mxu0
        %v820 = vadd.f32 0.0, %v819
        %821 = vmatmul.f32.gmra.mxu0 %v625
        %v822 = vpop.f32.mrf.mxu0
        %v823 = vadd.f32 0.0, %v822
        %824 = vmatmul.f32.gmra.mxu0 %v624
        %v825 = vpop.f32.mrf.mxu0
        %v826 = vadd.f32 0.0, %v825
        %827 = vmatmul.f32.gmra.mxu0 %v623
        %v828 = vpop.f32.mrf.mxu0
        %v829 = vadd.f32 0.0, %v828
        %830 = vmatmul.f32.gmra.mxu0 %v622
        %v831 = vpop.f32.mrf.mxu0
        %v832 = vadd.f32 0.0, %v831
        %833 = vmatmul.f32.gmra.mxu0 %v621
        %v834 = vpop.f32.mrf.mxu0
        %v835 = vadd.f32 0.0, %v834
        %836 = vmatmul.f32.gmra.mxu0 %v620
        %v837 = vpop.f32.mrf.mxu0
        %v838 = vadd.f32 0.0, %v837
        %839 = vmatmul.f32.gmra.mxu0 %v619
        %v840 = vpop.f32.mrf.mxu0
        %v841 = vadd.f32 0.0, %v840
        %842 = vmatmul.f32.gmra.mxu0 %v618
        %v843 = vpop.f32.mrf.mxu0
        %v844 = vadd.f32 0.0, %v843
        %845 = vmatmul.f32.gmra.mxu0 %v617
        %v846 = vpop.f32.mrf.mxu0
        %v847 = vadd.f32 0.0, %v846
        %848 = vmatmul.f32.gmra.mxu0 %v616
        %v849 = vpop.f32.mrf.mxu0
        %v850 = vadd.f32 0.0, %v849
        %851 = vmatmul.f32.gmra.mxu0 %v615
        %v852 = vpop.f32.mrf.mxu0
        %v853 = vadd.f32 0.0, %v852
        %854 = vmatmul.f32.gmra.mxu0 %v614
        %v855 = vpop.f32.mrf.mxu0
        %v856 = vadd.f32 0.0, %v855
        %857 = vmatmul.f32.gmra.mxu0 %v613
        %v858 = vpop.f32.mrf.mxu0
        %v859 = vadd.f32 0.0, %v858
        %860 = vmatmul.f32.gmra.mxu0 %v612
        %v861 = vpop.f32.mrf.mxu0
        %v862 = vadd.f32 0.0, %v861
        %863 = vmatmul.f32.gmra.mxu0 %v611
        %v864 = vpop.f32.mrf.mxu0
        %v865 = vadd.f32 0.0, %v864
        %866 = vmatmul.f32.gmra.mxu0 %v610
        %v867 = vpop.f32.mrf.mxu0
        %v868 = vadd.f32 0.0, %v867
        %869 = vmatmul.f32.gmra.mxu0 %v609
        %v870 = vpop.f32.mrf.mxu0
        %v871 = vadd.f32 0.0, %v870
        %872 = vmatmul.f32.gmra.mxu0 %v608
        %v873 = vpop.f32.mrf.mxu0
        %v874 = vadd.f32 0.0, %v873
        %875 = vmatmul.f32.gmra.mxu0 %v607
        %v876 = vpop.f32.mrf.mxu0
        %v877 = vadd.f32 0.0, %v876
        %878 = vmatmul.f32.gmra.mxu0 %v606
        %v879 = vpop.f32.mrf.mxu0
        %v880 = vadd.f32 0.0, %v879
        %881 = vmatmul.f32.gmra.mxu0 %v605
        %v882 = vpop.f32.mrf.mxu0
        %v883 = vadd.f32 0.0, %v882
        %884 = vmatmul.f32.gmra.mxu0 %v604
        %v885 = vpop.f32.mrf.mxu0
        %v886 = vadd.f32 0.0, %v885
        %887 = vmatmul.f32.gmra.mxu0 %v603
        %v888 = vpop.f32.mrf.mxu0
        %v889 = vadd.f32 0.0, %v888
        %890 = vmatmul.f32.gmra.mxu0 %v602
        %v891 = vpop.f32.mrf.mxu0
        %v892 = vadd.f32 0.0, %v891
        %893 = vmatmul.f32.gmra.mxu0 %v601
        %v894 = vpop.f32.mrf.mxu0
        %v895 = vadd.f32 0.0, %v894
        %896 = vmatmul.f32.gmra.mxu0 %v600
        %v897 = vpop.f32.mrf.mxu0
        %v898 = vadd.f32 0.0, %v897
        %899 = vmatmul.f32.gmra.mxu0 %v599
        %v900 = vpop.f32.mrf.mxu0
        %v901 = vadd.f32 0.0, %v900
        %902 = vmatmul.f32.gmra.mxu0 %v598
        %v903 = vpop.f32.mrf.mxu0
        %v904 = vadd.f32 0.0, %v903
        %905 = vmatmul.f32.gmra.mxu0 %v597
        %v906 = vpop.f32.mrf.mxu0
        %907 = vdwg.mxu0
        %908 = vmatpush.msra.mxu0 %v759
        %909 = vmatpush.msra.mxu0 %v757
        %910 = vmatpush.msra.mxu0 %v755
        %911 = vmatpush.msra.mxu0 %v753
        %912 = vmatpush.msra.mxu0 %v751
        %913 = vmatpush.msra.mxu0 %v749
        %914 = vmatpush.msra.mxu0 %v747
        %915 = vmatpush.msra.mxu0 %v745
        %916 = vmatpush.msra.mxu0 %v743
        %917 = vmatpush.msra.mxu0 %v741
        %918 = vmatpush.msra.mxu0 %v739
        %919 = vmatpush.msra.mxu0 %v737
        %920 = vmatpush.msra.mxu0 %v735
        %921 = vmatpush.msra.mxu0 %v733
        %922 = vmatpush.msra.mxu0 %v731
        %923 = vmatpush.msra.mxu0 %v729
        %924 = vmatmul.f32.gmra.mxu0 %v528
        %v925 = vpop.f32.mrf.mxu0
        %v926 = vadd.f32 %v811, %v925
        %927 = vmatmul.f32.gmra.mxu0 %v529
        %v928 = vpop.f32.mrf.mxu0
        %v929 = vadd.f32 %v814, %v928
        %930 = vmatmul.f32.gmra.mxu0 %v530
        %v931 = vpop.f32.mrf.mxu0
        %v932 = vadd.f32 %v817, %v931
        %933 = vmatmul.f32.gmra.mxu0 %v531
        %v934 = vpop.f32.mrf.mxu0
        %v935 = vadd.f32 %v820, %v934
        %936 = vmatmul.f32.gmra.mxu0 %v532
        %v937 = vpop.f32.mrf.mxu0
        %v938 = vadd.f32 %v823, %v937
        %939 = vmatmul.f32.gmra.mxu0 %v533
        %v940 = vpop.f32.mrf.mxu0
        %v941 = vadd.f32 %v826, %v940
        %942 = vmatmul.f32.gmra.mxu0 %v534
        %v943 = vpop.f32.mrf.mxu0
        %v944 = vadd.f32 %v829, %v943
        %945 = vmatmul.f32.gmra.mxu0 %v535
        %v946 = vpop.f32.mrf.mxu0
        %v947 = vadd.f32 %v832, %v946
        %948 = vmatmul.f32.gmra.mxu0 %v536
        %v949 = vpop.f32.mrf.mxu0
        %v950 = vadd.f32 %v835, %v949
        %951 = vmatmul.f32.gmra.mxu0 %v537
        %v952 = vpop.f32.mrf.mxu0
        %v953 = vadd.f32 %v838, %v952
        %954 = vmatmul.f32.gmra.mxu0 %v538
        %v955 = vpop.f32.mrf.mxu0
        %v956 = vadd.f32 %v841, %v955
        %957 = vmatmul.f32.gmra.mxu0 %v539
        %v958 = vpop.f32.mrf.mxu0
        %v959 = vadd.f32 %v844, %v958
        %960 = vmatmul.f32.gmra.mxu0 %v540
        %v961 = vpop.f32.mrf.mxu0
        %v962 = vadd.f32 %v847, %v961
        %963 = vmatmul.f32.gmra.mxu0 %v541
        %v964 = vpop.f32.mrf.mxu0
        %v965 = vadd.f32 %v850, %v964
        %966 = vmatmul.f32.gmra.mxu0 %v542
        %v967 = vpop.f32.mrf.mxu0
        %v968 = vadd.f32 %v853, %v967
        %969 = vmatmul.f32.gmra.mxu0 %v543
        %v970 = vpop.f32.mrf.mxu0
        %v971 = vadd.f32 %v856, %v970
        %972 = vmatmul.f32.gmra.mxu0 %v544
        %v973 = vpop.f32.mrf.mxu0
        %v974 = vadd.f32 %v859, %v973
        %975 = vmatmul.f32.gmra.mxu0 %v545
        %v976 = vpop.f32.mrf.mxu0
        %v977 = vadd.f32 %v862, %v976
        %978 = vmatmul.f32.gmra.mxu0 %v546
        %v979 = vpop.f32.mrf.mxu0
        %v980 = vadd.f32 %v865, %v979
        %981 = vmatmul.f32.gmra.mxu0 %v547
        %v982 = vpop.f32.mrf.mxu0
        %v983 = vadd.f32 %v868, %v982
        %984 = vmatmul.f32.gmra.mxu0 %v548
        %v985 = vpop.f32.mrf.mxu0
        %v986 = vadd.f32 %v871, %v985
        %987 = vmatmul.f32.gmra.mxu0 %v549
        %v988 = vpop.f32.mrf.mxu0
        %v989 = vadd.f32 %v874, %v988
        %990 = vmatmul.f32.gmra.mxu0 %v550
        %v991 = vpop.f32.mrf.mxu0
        %v992 = vadd.f32 %v877, %v991
        %993 = vmatmul.f32.gmra.mxu0 %v551
        %v994 = vpop.f32.mrf.mxu0
        %v995 = vadd.f32 %v880, %v994
        %996 = vmatmul.f32.gmra.mxu0 %v552
        %v997 = vpop.f32.mrf.mxu0
        %v998 = vadd.f32 %v883, %v997
        %999 = vmatmul.f32.gmra.mxu0 %v553
        %v1000 = vpop.f32.mrf.mxu0
        %v1001 = vadd.f32 %v886, %v1000
        %1002 = vmatmul.f32.gmra.mxu0 %v554
        %v1003 = vpop.f32.mrf.mxu0
        %v1004 = vadd.f32 %v889, %v1003
        %1005 = vmatmul.f32.gmra.mxu0 %v555
        %v1006 = vpop.f32.mrf.mxu0
        %v1007 = vadd.f32 %v892, %v1006
        %1008 = vmatmul.f32.gmra.mxu0 %v556
        %v1009 = vpop.f32.mrf.mxu0
        %v1010 = vadd.f32 %v895, %v1009
        %1011 = vmatmul.f32.gmra.mxu0 %v557
        %v1012 = vpop.f32.mrf.mxu0
        %v1013 = vadd.f32 %v898, %v1012
        %1014 = vmatmul.f32.gmra.mxu0 %v558
        %v1015 = vpop.f32.mrf.mxu0
        %v1016 = vadd.f32 %v901, %v1015
        %1017 = vmatmul.f32.gmra.mxu0 %v559
        %v1018 = vpop.f32.mrf.mxu0
        %v1019 = vadd.f32 %v904, %v1018
        %1020 = vmatmul.f32.gmra.mxu0 %v560
        %v1021 = vpop.f32.mrf.mxu0
        %1022 = vdwg.mxu0
        %1023 = vmatpush.msra.mxu0 %v791
        %1024 = vmatpush.msra.mxu0 %v789
        %1025 = vmatpush.msra.mxu0 %v787
        %1026 = vmatpush.msra.mxu0 %v785
        %1027 = vmatpush.msra.mxu0 %v783
        %1028 = vmatpush.msra.mxu0 %v781
        %1029 = vmatpush.msra.mxu0 %v779
        %1030 = vmatpush.msra.mxu0 %v777
        %1031 = vmatpush.msra.mxu0 %v775
        %1032 = vmatpush.msra.mxu0 %v773
        %1033 = vmatpush.msra.mxu0 %v771
        %1034 = vmatpush.msra.mxu0 %v769
        %1035 = vmatpush.msra.mxu0 %v767
        %1036 = vmatpush.msra.mxu0 %v765
        %1037 = vmatpush.msra.mxu0 %v763
        %1038 = vmatpush.msra.mxu0 %v761
        %1039 = vmatmul.f32.gmra.mxu0 %v695
        %v1040 = vpop.f32.mrf.mxu0
        %v1041 = vadd.f32 %v926, %v1040
        %1042 = vmatmul.f32.gmra.mxu0 %v694
        %v1043 = vpop.f32.mrf.mxu0
        %v1044 = vadd.f32 %v929, %v1043
        %1045 = vmatmul.f32.gmra.mxu0 %v693
        %v1046 = vpop.f32.mrf.mxu0
        %v1047 = vadd.f32 %v932, %v1046
        %1048 = vmatmul.f32.gmra.mxu0 %v692
        %v1049 = vpop.f32.mrf.mxu0
        %v1050 = vadd.f32 %v935, %v1049
        %1051 = vmatmul.f32.gmra.mxu0 %v691
        %v1052 = vpop.f32.mrf.mxu0
        %v1053 = vadd.f32 %v938, %v1052
        %1054 = vmatmul.f32.gmra.mxu0 %v690
        %v1055 = vpop.f32.mrf.mxu0
        %v1056 = vadd.f32 %v941, %v1055
        %1057 = vmatmul.f32.gmra.mxu0 %v689
        %v1058 = vpop.f32.mrf.mxu0
        %v1059 = vadd.f32 %v944, %v1058
        %1060 = vmatmul.f32.gmra.mxu0 %v688
        %v1061 = vpop.f32.mrf.mxu0
        %v1062 = vadd.f32 %v947, %v1061
        %1063 = vmatmul.f32.gmra.mxu0 %v687
        %v1064 = vpop.f32.mrf.mxu0
        %v1065 = vadd.f32 %v950, %v1064
        %1066 = vmatmul.f32.gmra.mxu0 %v686
        %v1067 = vpop.f32.mrf.mxu0
        %v1068 = vadd.f32 %v953, %v1067
        %1069 = vmatmul.f32.gmra.mxu0 %v685
        %v1070 = vpop.f32.mrf.mxu0
        %v1071 = vadd.f32 %v956, %v1070
        %1072 = vmatmul.f32.gmra.mxu0 %v684
        %v1073 = vpop.f32.mrf.mxu0
        %v1074 = vadd.f32 %v959, %v1073
        %1075 = vmatmul.f32.gmra.mxu0 %v683
        %v1076 = vpop.f32.mrf.mxu0
        %v1077 = vadd.f32 %v962, %v1076
        %1078 = vmatmul.f32.gmra.mxu0 %v682
        %v1079 = vpop.f32.mrf.mxu0
        %v1080 = vadd.f32 %v965, %v1079
        %1081 = vmatmul.f32.gmra.mxu0 %v681
        %v1082 = vpop.f32.mrf.mxu0
        %v1083 = vadd.f32 %v968, %v1082
        %1084 = vmatmul.f32.gmra.mxu0 %v680
        %v1085 = vpop.f32.mrf.mxu0
        %v1086 = vadd.f32 %v971, %v1085
        %1087 = vmatmul.f32.gmra.mxu0 %v679
        %v1088 = vpop.f32.mrf.mxu0
        %v1089 = vadd.f32 %v974, %v1088
        %1090 = vmatmul.f32.gmra.mxu0 %v678
        %v1091 = vpop.f32.mrf.mxu0
        %v1092 = vadd.f32 %v977, %v1091
        %1093 = vmatmul.f32.gmra.mxu0 %v677
        %v1094 = vpop.f32.mrf.mxu0
        %v1095 = vadd.f32 %v980, %v1094
        %1096 = vmatmul.f32.gmra.mxu0 %v676
        %v1097 = vpop.f32.mrf.mxu0
        %v1098 = vadd.f32 %v983, %v1097
        %1099 = vmatmul.f32.gmra.mxu0 %v675
        %v1100 = vpop.f32.mrf.mxu0
        %v1101 = vadd.f32 %v986, %v1100
        %1102 = vmatmul.f32.gmra.mxu0 %v674
        %v1103 = vpop.f32.mrf.mxu0
        %v1104 = vadd.f32 %v989, %v1103
        %1105 = vmatmul.f32.gmra.mxu0 %v673
        %v1106 = vpop.f32.mrf.mxu0
        %v1107 = vadd.f32 %v992, %v1106
        %1108 = vmatmul.f32.gmra.mxu0 %v672
        %v1109 = vpop.f32.mrf.mxu0
        %v1110 = vadd.f32 %v995, %v1109
        %1111 = vmatmul.f32.gmra.mxu0 %v671
        %v1112 = vpop.f32.mrf.mxu0
        %v1113 = vadd.f32 %v998, %v1112
        %1114 = vmatmul.f32.gmra.mxu0 %v670
        %v1115 = vpop.f32.mrf.mxu0
        %v1116 = vadd.f32 %v1001, %v1115
        %1117 = vmatmul.f32.gmra.mxu0 %v669
        %v1118 = vpop.f32.mrf.mxu0
        %v1119 = vadd.f32 %v1004, %v1118
        %1120 = vmatmul.f32.gmra.mxu0 %v668
        %v1121 = vpop.f32.mrf.mxu0
        %v1122 = vadd.f32 %v1007, %v1121
        %1123 = vmatmul.f32.gmra.mxu0 %v667
        %v1124 = vpop.f32.mrf.mxu0
        %v1125 = vadd.f32 %v1010, %v1124
        %1126 = vmatmul.f32.gmra.mxu0 %v666
        %v1127 = vpop.f32.mrf.mxu0
        %v1128 = vadd.f32 %v1013, %v1127
        %1129 = vmatmul.f32.gmra.mxu0 %v665
        %v1130 = vpop.f32.mrf.mxu0
        %v1131 = vadd.f32 %v1016, %v1130
        %1132 = vmatmul.f32.gmra.mxu0 %v664
        %v1133 = vpop.f32.mrf.mxu0
        %v1134 = vadd.f32 %v1019, %v1133
        %1135 = vmatmul.f32.gmra.mxu0 %v696
        %v1136 = vpop.f32.mrf.mxu0
        %1137 = vdwg.mxu0
        %1138 = vmatpush.msra.mxu0 %v728
        %1139 = vmatpush.msra.mxu0 %v726
        %1140 = vmatpush.msra.mxu0 %v724
        %1141 = vmatpush.msra.mxu0 %v722
        %1142 = vmatpush.msra.mxu0 %v720
        %1143 = vmatpush.msra.mxu0 %v718
        %1144 = vmatpush.msra.mxu0 %v716
        %1145 = vmatpush.msra.mxu0 %v714
        %1146 = vmatpush.msra.mxu0 %v712
        %1147 = vmatpush.msra.mxu0 %v710
        %1148 = vmatpush.msra.mxu0 %v708
        %1149 = vmatpush.msra.mxu0 %v706
        %1150 = vmatpush.msra.mxu0 %v704
        %1151 = vmatpush.msra.mxu0 %v702
        %1152 = vmatpush.msra.mxu0 %v700
        %1153 = vmatpush.msra.mxu0 %v698
        %1154 = vmatmul.f32.gmra.mxu0 %v629
        %v1155 = vpop.f32.mrf.mxu0
        %v1156 = vadd.f32 0.0, %v1155
        %1157 = vmatmul.f32.gmra.mxu0 %v628
        %v1158 = vpop.f32.mrf.mxu0
        %v1159 = vadd.f32 0.0, %v1158
        %1160 = vmatmul.f32.gmra.mxu0 %v627
        %v1161 = vpop.f32.mrf.mxu0
        %v1162 = vadd.f32 0.0, %v1161
        %1163 = vmatmul.f32.gmra.mxu0 %v626
        %v1164 = vpop.f32.mrf.mxu0
        %v1165 = vadd.f32 0.0, %v1164
        %1166 = vmatmul.f32.gmra.mxu0 %v625
        %v1167 = vpop.f32.mrf.mxu0
        %v1168 = vadd.f32 0.0, %v1167
        %1169 = vmatmul.f32.gmra.mxu0 %v624
        %v1170 = vpop.f32.mrf.mxu0
        %v1171 = vadd.f32 0.0, %v1170
        %1172 = vmatmul.f32.gmra.mxu0 %v623
        %v1173 = vpop.f32.mrf.mxu0
        %v1174 = vadd.f32 0.0, %v1173
        %1175 = vmatmul.f32.gmra.mxu0 %v622
        %v1176 = vpop.f32.mrf.mxu0
        %v1177 = vadd.f32 0.0, %v1176
        %1178 = vmatmul.f32.gmra.mxu0 %v621
        %v1179 = vpop.f32.mrf.mxu0
        %v1180 = vadd.f32 0.0, %v1179
        %1181 = vmatmul.f32.gmra.mxu0 %v620
        %v1182 = vpop.f32.mrf.mxu0
        %v1183 = vadd.f32 0.0, %v1182
        %1184 = vmatmul.f32.gmra.mxu0 %v619
        %v1185 = vpop.f32.mrf.mxu0
        %v1186 = vadd.f32 0.0, %v1185
        %1187 = vmatmul.f32.gmra.mxu0 %v618
        %v1188 = vpop.f32.mrf.mxu0
        %v1189 = vadd.f32 0.0, %v1188
        %1190 = vmatmul.f32.gmra.mxu0 %v617
        %v1191 = vpop.f32.mrf.mxu0
        %v1192 = vadd.f32 0.0, %v1191
        %1193 = vmatmul.f32.gmra.mxu0 %v616
        %v1194 = vpop.f32.mrf.mxu0
        %v1195 = vadd.f32 0.0, %v1194
        %1196 = vmatmul.f32.gmra.mxu0 %v615
        %v1197 = vpop.f32.mrf.mxu0
        %v1198 = vadd.f32 0.0, %v1197
        %1199 = vmatmul.f32.gmra.mxu0 %v614
        %v1200 = vpop.f32.mrf.mxu0
        %v1201 = vadd.f32 0.0, %v1200
        %1202 = vmatmul.f32.gmra.mxu0 %v613
        %v1203 = vpop.f32.mrf.mxu0
        %v1204 = vadd.f32 0.0, %v1203
        %1205 = vmatmul.f32.gmra.mxu0 %v612
        %v1206 = vpop.f32.mrf.mxu0
        %v1207 = vadd.f32 0.0, %v1206
        %1208 = vmatmul.f32.gmra.mxu0 %v611
        %v1209 = vpop.f32.mrf.mxu0
        %v1210 = vadd.f32 0.0, %v1209
        %1211 = vmatmul.f32.gmra.mxu0 %v610
        %v1212 = vpop.f32.mrf.mxu0
        %v1213 = vadd.f32 0.0, %v1212
        %1214 = vmatmul.f32.gmra.mxu0 %v609
        %v1215 = vpop.f32.mrf.mxu0
        %v1216 = vadd.f32 0.0, %v1215
        %1217 = vmatmul.f32.gmra.mxu0 %v608
        %v1218 = vpop.f32.mrf.mxu0
        %v1219 = vadd.f32 0.0, %v1218
        %1220 = vmatmul.f32.gmra.mxu0 %v607
        %v1221 = vpop.f32.mrf.mxu0
        %v1222 = vadd.f32 0.0, %v1221
        %1223 = vmatmul.f32.gmra.mxu0 %v606
        %v1224 = vpop.f32.mrf.mxu0
        %v1225 = vadd.f32 0.0, %v1224
        %1226 = vmatmul.f32.gmra.mxu0 %v605
        %v1227 = vpop.f32.mrf.mxu0
        %v1228 = vadd.f32 0.0, %v1227
        %1229 = vmatmul.f32.gmra.mxu0 %v604
        %v1230 = vpop.f32.mrf.mxu0
        %v1231 = vadd.f32 0.0, %v1230
        %1232 = vmatmul.f32.gmra.mxu0 %v603
        %v1233 = vpop.f32.mrf.mxu0
        %v1234 = vadd.f32 0.0, %v1233
        %1235 = vmatmul.f32.gmra.mxu0 %v602
        %v1236 = vpop.f32.mrf.mxu0
        %v1237 = vadd.f32 0.0, %v1236
        %1238 = vmatmul.f32.gmra.mxu0 %v601
        %v1239 = vpop.f32.mrf.mxu0
        %v1240 = vadd.f32 0.0, %v1239
        %1241 = vmatmul.f32.gmra.mxu0 %v600
        %v1242 = vpop.f32.mrf.mxu0
        %v1243 = vadd.f32 0.0, %v1242
        %1244 = vmatmul.f32.gmra.mxu0 %v599
        %v1245 = vpop.f32.mrf.mxu0
        %v1246 = vadd.f32 0.0, %v1245
        %1247 = vmatmul.f32.gmra.mxu0 %v598
        %v1248 = vpop.f32.mrf.mxu0
        %v1249 = vadd.f32 0.0, %v1248
        %1250 = vmatmul.f32.gmra.mxu0 %v597
        %v1251 = vpop.f32.mrf.mxu0
        %1252 = vdwg.mxu0
        %1253 = vmatpush.msra.mxu0 %v760
        %1254 = vmatpush.msra.mxu0 %v758
        %1255 = vmatpush.msra.mxu0 %v756
        %1256 = vmatpush.msra.mxu0 %v754
        %1257 = vmatpush.msra.mxu0 %v752
        %1258 = vmatpush.msra.mxu0 %v750
        %1259 = vmatpush.msra.mxu0 %v748
        %1260 = vmatpush.msra.mxu0 %v746
        %1261 = vmatpush.msra.mxu0 %v744
        %1262 = vmatpush.msra.mxu0 %v742
        %1263 = vmatpush.msra.mxu0 %v740
        %1264 = vmatpush.msra.mxu0 %v738
        %1265 = vmatpush.msra.mxu0 %v736
        %1266 = vmatpush.msra.mxu0 %v734
        %1267 = vmatpush.msra.mxu0 %v732
        %1268 = vmatpush.msra.mxu0 %v730
        %1269 = vmatmul.f32.gmra.mxu0 %v528
        %v1270 = vpop.f32.mrf.mxu0
        %v1271 = vadd.f32 %v1156, %v1270
        %1272 = vmatmul.f32.gmra.mxu0 %v529
        %v1273 = vpop.f32.mrf.mxu0
        %v1274 = vadd.f32 %v1159, %v1273
        %1275 = vmatmul.f32.gmra.mxu0 %v530
        %v1276 = vpop.f32.mrf.mxu0
        %v1277 = vadd.f32 %v1162, %v1276
        %1278 = vmatmul.f32.gmra.mxu0 %v531
        %v1279 = vpop.f32.mrf.mxu0
        %v1280 = vadd.f32 %v1165, %v1279
        %1281 = vmatmul.f32.gmra.mxu0 %v532
        %v1282 = vpop.f32.mrf.mxu0
        %v1283 = vadd.f32 %v1168, %v1282
        %1284 = vmatmul.f32.gmra.mxu0 %v533
        %v1285 = vpop.f32.mrf.mxu0
        %v1286 = vadd.f32 %v1171, %v1285
        %1287 = vmatmul.f32.gmra.mxu0 %v534
        %v1288 = vpop.f32.mrf.mxu0
        %v1289 = vadd.f32 %v1174, %v1288
        %1290 = vmatmul.f32.gmra.mxu0 %v535
        %v1291 = vpop.f32.mrf.mxu0
        %v1292 = vadd.f32 %v1177, %v1291
        %1293 = vmatmul.f32.gmra.mxu0 %v536
        %v1294 = vpop.f32.mrf.mxu0
        %v1295 = vadd.f32 %v1180, %v1294
        %1296 = vmatmul.f32.gmra.mxu0 %v537
        %v1297 = vpop.f32.mrf.mxu0
        %v1298 = vadd.f32 %v1183, %v1297
        %1299 = vmatmul.f32.gmra.mxu0 %v538
        %v1300 = vpop.f32.mrf.mxu0
        %v1301 = vadd.f32 %v1186, %v1300
        %1302 = vmatmul.f32.gmra.mxu0 %v539
        %v1303 = vpop.f32.mrf.mxu0
        %v1304 = vadd.f32 %v1189, %v1303
        %1305 = vmatmul.f32.gmra.mxu0 %v540
        %v1306 = vpop.f32.mrf.mxu0
        %v1307 = vadd.f32 %v1192, %v1306
        %1308 = vmatmul.f32.gmra.mxu0 %v541
        %v1309 = vpop.f32.mrf.mxu0
        %v1310 = vadd.f32 %v1195, %v1309
        %1311 = vmatmul.f32.gmra.mxu0 %v542
        %v1312 = vpop.f32.mrf.mxu0
        %v1313 = vadd.f32 %v1198, %v1312
        %1314 = vmatmul.f32.gmra.mxu0 %v543
        %v1315 = vpop.f32.mrf.mxu0
        %v1316 = vadd.f32 %v1201, %v1315
        %1317 = vmatmul.f32.gmra.mxu0 %v544
        %v1318 = vpop.f32.mrf.mxu0
        %v1319 = vadd.f32 %v1204, %v1318
        %1320 = vmatmul.f32.gmra.mxu0 %v545
        %v1321 = vpop.f32.mrf.mxu0
        %v1322 = vadd.f32 %v1207, %v1321
        %1323 = vmatmul.f32.gmra.mxu0 %v546
        %v1324 = vpop.f32.mrf.mxu0
        %v1325 = vadd.f32 %v1210, %v1324
        %1326 = vmatmul.f32.gmra.mxu0 %v547
        %v1327 = vpop.f32.mrf.mxu0
        %v1328 = vadd.f32 %v1213, %v1327
        %1329 = vmatmul.f32.gmra.mxu0 %v548
        %v1330 = vpop.f32.mrf.mxu0
        %v1331 = vadd.f32 %v1216, %v1330
        %1332 = vmatmul.f32.gmra.mxu0 %v549
        %v1333 = vpop.f32.mrf.mxu0
        %v1334 = vadd.f32 %v1219, %v1333
        %1335 = vmatmul.f32.gmra.mxu0 %v550
        %v1336 = vpop.f32.mrf.mxu0
        %v1337 = vadd.f32 %v1222, %v1336
        %1338 = vmatmul.f32.gmra.mxu0 %v551
        %v1339 = vpop.f32.mrf.mxu0
        %v1340 = vadd.f32 %v1225, %v1339
        %1341 = vmatmul.f32.gmra.mxu0 %v552
        %v1342 = vpop.f32.mrf.mxu0
        %v1343 = vadd.f32 %v1228, %v1342
        %1344 = vmatmul.f32.gmra.mxu0 %v553
        %v1345 = vpop.f32.mrf.mxu0
        %v1346 = vadd.f32 %v1231, %v1345
        %1347 = vmatmul.f32.gmra.mxu0 %v554
        %v1348 = vpop.f32.mrf.mxu0
        %v1349 = vadd.f32 %v1234, %v1348
        %1350 = vmatmul.f32.gmra.mxu0 %v555
        %v1351 = vpop.f32.mrf.mxu0
        %v1352 = vadd.f32 %v1237, %v1351
        %1353 = vmatmul.f32.gmra.mxu0 %v556
        %v1354 = vpop.f32.mrf.mxu0
        %v1355 = vadd.f32 %v1240, %v1354
        %1356 = vmatmul.f32.gmra.mxu0 %v557
        %v1357 = vpop.f32.mrf.mxu0
        %v1358 = vadd.f32 %v1243, %v1357
        %1359 = vmatmul.f32.gmra.mxu0 %v558
        %v1360 = vpop.f32.mrf.mxu0
        %v1361 = vadd.f32 %v1246, %v1360
        %1362 = vmatmul.f32.gmra.mxu0 %v559
        %v1363 = vpop.f32.mrf.mxu0
        %v1364 = vadd.f32 %v1249, %v1363
        %1365 = vmatmul.f32.gmra.mxu0 %v560
        %v1366 = vpop.f32.mrf.mxu0
        %1367 = vdwg.mxu0
        %1368 = vmatpush.msra.mxu0 %v792
        %1369 = vmatpush.msra.mxu0 %v790
        %1370 = vmatpush.msra.mxu0 %v788
        %1371 = vmatpush.msra.mxu0 %v786
        %1372 = vmatpush.msra.mxu0 %v784
        %1373 = vmatpush.msra.mxu0 %v782
        %1374 = vmatpush.msra.mxu0 %v780
        %1375 = vmatpush.msra.mxu0 %v778
        %1376 = vmatpush.msra.mxu0 %v776
        %1377 = vmatpush.msra.mxu0 %v774
        %1378 = vmatpush.msra.mxu0 %v772
        %1379 = vmatpush.msra.mxu0 %v770
        %1380 = vmatpush.msra.mxu0 %v768
        %1381 = vmatpush.msra.mxu0 %v766
        %1382 = vmatpush.msra.mxu0 %v764
        %1383 = vmatpush.msra.mxu0 %v762
        %1384 = vmatmul.f32.gmra.mxu0 %v695
        %v1385 = vpop.f32.mrf.mxu0
        %v1386 = vadd.f32 %v1271, %v1385
        %1387 = vmatmul.f32.gmra.mxu0 %v694
        %v1388 = vpop.f32.mrf.mxu0
        %v1389 = vadd.f32 %v1274, %v1388
        %1390 = vmatmul.f32.gmra.mxu0 %v693
        %v1391 = vpop.f32.mrf.mxu0
        %v1392 = vadd.f32 %v1277, %v1391
        %1393 = vmatmul.f32.gmra.mxu0 %v692
        %v1394 = vpop.f32.mrf.mxu0
        %v1395 = vadd.f32 %v1280, %v1394
        %1396 = vmatmul.f32.gmra.mxu0 %v691
        %v1397 = vpop.f32.mrf.mxu0
        %v1398 = vadd.f32 %v1283, %v1397
        %1399 = vmatmul.f32.gmra.mxu0 %v690
        %v1400 = vpop.f32.mrf.mxu0
        %v1401 = vadd.f32 %v1286, %v1400
        %1402 = vmatmul.f32.gmra.mxu0 %v689
        %v1403 = vpop.f32.mrf.mxu0
        %v1404 = vadd.f32 %v1289, %v1403
        %1405 = vmatmul.f32.gmra.mxu0 %v688
        %v1406 = vpop.f32.mrf.mxu0
        %v1407 = vadd.f32 %v1292, %v1406
        %1408 = vmatmul.f32.gmra.mxu0 %v687
        %v1409 = vpop.f32.mrf.mxu0
        %v1410 = vadd.f32 %v1295, %v1409
        %1411 = vmatmul.f32.gmra.mxu0 %v686
        %v1412 = vpop.f32.mrf.mxu0
        %v1413 = vadd.f32 %v1298, %v1412
        %1414 = vmatmul.f32.gmra.mxu0 %v685
        %v1415 = vpop.f32.mrf.mxu0
        %v1416 = vadd.f32 %v1301, %v1415
        %1417 = vmatmul.f32.gmra.mxu0 %v684
        %v1418 = vpop.f32.mrf.mxu0
        %v1419 = vadd.f32 %v1304, %v1418
        %1420 = vmatmul.f32.gmra.mxu0 %v683
        %v1421 = vpop.f32.mrf.mxu0
        %v1422 = vadd.f32 %v1307, %v1421
        %1423 = vmatmul.f32.gmra.mxu0 %v682
        %v1424 = vpop.f32.mrf.mxu0
        %v1425 = vadd.f32 %v1310, %v1424
        %1426 = vmatmul.f32.gmra.mxu0 %v681
        %v1427 = vpop.f32.mrf.mxu0
        %v1428 = vadd.f32 %v1313, %v1427
        %1429 = vmatmul.f32.gmra.mxu0 %v680
        %v1430 = vpop.f32.mrf.mxu0
        %v1431 = vadd.f32 %v1316, %v1430
        %1432 = vmatmul.f32.gmra.mxu0 %v679
        %v1433 = vpop.f32.mrf.mxu0
        %v1434 = vadd.f32 %v1319, %v1433
        %1435 = vmatmul.f32.gmra.mxu0 %v678
        %v1436 = vpop.f32.mrf.mxu0
        %v1437 = vadd.f32 %v1322, %v1436
        %1438 = vmatmul.f32.gmra.mxu0 %v677
        %v1439 = vpop.f32.mrf.mxu0
        %v1440 = vadd.f32 %v1325, %v1439
        %1441 = vmatmul.f32.gmra.mxu0 %v676
        %v1442 = vpop.f32.mrf.mxu0
        %v1443 = vadd.f32 %v1328, %v1442
        %1444 = vmatmul.f32.gmra.mxu0 %v675
        %v1445 = vpop.f32.mrf.mxu0
        %v1446 = vadd.f32 %v1331, %v1445
        %1447 = vmatmul.f32.gmra.mxu0 %v674
        %v1448 = vpop.f32.mrf.mxu0
        %v1449 = vadd.f32 %v1334, %v1448
        %1450 = vmatmul.f32.gmra.mxu0 %v673
        %v1451 = vpop.f32.mrf.mxu0
        %v1452 = vadd.f32 %v1337, %v1451
        %1453 = vmatmul.f32.gmra.mxu0 %v672
        %v1454 = vpop.f32.mrf.mxu0
        %v1455 = vadd.f32 %v1340, %v1454
        %1456 = vmatmul.f32.gmra.mxu0 %v671
        %v1457 = vpop.f32.mrf.mxu0
        %v1458 = vadd.f32 %v1343, %v1457
        %1459 = vmatmul.f32.gmra.mxu0 %v670
        %v1460 = vpop.f32.mrf.mxu0
        %v1461 = vadd.f32 %v1346, %v1460
        %1462 = vmatmul.f32.gmra.mxu0 %v669
        %v1463 = vpop.f32.mrf.mxu0
        %v1464 = vadd.f32 %v1349, %v1463
        %1465 = vmatmul.f32.gmra.mxu0 %v668
        %v1466 = vpop.f32.mrf.mxu0
        %v1467 = vadd.f32 %v1352, %v1466
        %1468 = vmatmul.f32.gmra.mxu0 %v667
        %v1469 = vpop.f32.mrf.mxu0
        %v1470 = vadd.f32 %v1355, %v1469
        %1471 = vmatmul.f32.gmra.mxu0 %v666
        %v1472 = vpop.f32.mrf.mxu0
        %v1473 = vadd.f32 %v1358, %v1472
        %1474 = vmatmul.f32.gmra.mxu0 %v665
        %v1475 = vpop.f32.mrf.mxu0
        %v1476 = vadd.f32 %v1361, %v1475
        %1477 = vmatmul.f32.gmra.mxu0 %v664
        %v1478 = vpop.f32.mrf.mxu0
        %v1479 = vadd.f32 %v1364, %v1478
        %1480 = vmatmul.f32.gmra.mxu0 %v696
        %v1481 = vpop.f32.mrf.mxu0
        %1482 = vdwg.mxu0
        %v1483 = vxor.u32 %v1386, 2147483648
        %v1484 = vxor.u32 %v1389, 2147483648
        %v1485 = vxor.u32 %v1392, 2147483648
        %v1486 = vxor.u32 %v1395, 2147483648
        %v1487 = vxor.u32 %v1398, 2147483648
        %v1488 = vxor.u32 %v1401, 2147483648
        %v1489 = vxor.u32 %v1404, 2147483648
        %v1490 = vxor.u32 %v1407, 2147483648
        %v1491 = vxor.u32 %v1410, 2147483648
        %v1492 = vxor.u32 %v1413, 2147483648
        %v1493 = vxor.u32 %v1416, 2147483648
        %v1494 = vxor.u32 %v1419, 2147483648
        %v1495 = vxor.u32 %v1422, 2147483648
        %v1496 = vxor.u32 %v1425, 2147483648
        %v1497 = vxor.u32 %v1428, 2147483648
        %v1498 = vxor.u32 %v1431, 2147483648
        %v1499 = vxor.u32 %v1434, 2147483648
        %v1500 = vxor.u32 %v1437, 2147483648
        %v1501 = vxor.u32 %v1440, 2147483648
        %v1502 = vxor.u32 %v1443, 2147483648
        %v1503 = vxor.u32 %v1446, 2147483648
        %v1504 = vxor.u32 %v1449, 2147483648
        %v1505 = vxor.u32 %v1452, 2147483648
        %v1506 = vxor.u32 %v1455, 2147483648
        %v1507 = vxor.u32 %v1458, 2147483648
        %v1508 = vxor.u32 %v1461, 2147483648
        %v1509 = vxor.u32 %v1464, 2147483648
        %v1510 = vxor.u32 %v1467, 2147483648
        %v1511 = vxor.u32 %v1470, 2147483648
        %v1512 = vxor.u32 %v1473, 2147483648
        %v1513 = vxor.u32 %v1476, 2147483648
        %v1514 = vxor.u32 %v1479, 2147483648
        %v1515 = vmul.f32 %v1483, 1.442695
        %v1516 = vpow.pop %v1515
        %v1517 = vmul.f32 %v1484, 1.442695
        %v1518 = vpow.pop %v1517
        %v1519 = vmul.f32 %v1485, 1.442695
        %v1520 = vpow.pop %v1519
        %v1521 = vmul.f32 %v1486, 1.442695
        %v1522 = vpow.pop %v1521
        %v1523 = vmul.f32 %v1487, 1.442695
        %v1524 = vpow.pop %v1523
        %v1525 = vmul.f32 %v1488, 1.442695
        %v1526 = vpow.pop %v1525
        %v1527 = vmul.f32 %v1489, 1.442695
        %v1528 = vpow.pop %v1527
        %v1529 = vmul.f32 %v1490, 1.442695
        %v1530 = vpow.pop %v1529
        %v1531 = vmul.f32 %v1491, 1.442695
        %v1532 = vpow.pop %v1531
        %v1533 = vmul.f32 %v1492, 1.442695
        %v1534 = vpow.pop %v1533
        %v1535 = vmul.f32 %v1493, 1.442695
        %v1536 = vpow.pop %v1535
        %v1537 = vmul.f32 %v1494, 1.442695
        %v1538 = vpow.pop %v1537
        %v1539 = vmul.f32 %v1495, 1.442695
        %v1540 = vpow.pop %v1539
        %v1541 = vmul.f32 %v1496, 1.442695
        %v1542 = vpow.pop %v1541
        %v1543 = vmul.f32 %v1497, 1.442695
        %v1544 = vpow.pop %v1543
        %v1545 = vmul.f32 %v1498, 1.442695
        %v1546 = vpow.pop %v1545
        %v1547 = vmul.f32 %v1499, 1.442695
        %v1548 = vpow.pop %v1547
        %v1549 = vmul.f32 %v1500, 1.442695
        %v1550 = vpow.pop %v1549
        %v1551 = vmul.f32 %v1501, 1.442695
        %v1552 = vpow.pop %v1551
        %v1553 = vmul.f32 %v1502, 1.442695
        %v1554 = vpow.pop %v1553
        %v1555 = vmul.f32 %v1503, 1.442695
        %v1556 = vpow.pop %v1555
        %v1557 = vmul.f32 %v1504, 1.442695
        %v1558 = vpow.pop %v1557
        %v1559 = vmul.f32 %v1505, 1.442695
        %v1560 = vpow.pop %v1559
        %v1561 = vmul.f32 %v1506, 1.442695
        %v1562 = vpow.pop %v1561
        %v1563 = vmul.f32 %v1507, 1.442695
        %v1564 = vpow.pop %v1563
        %v1565 = vmul.f32 %v1508, 1.442695
        %v1566 = vpow.pop %v1565
        %v1567 = vmul.f32 %v1509, 1.442695
        %v1568 = vpow.pop %v1567
        %v1569 = vmul.f32 %v1510, 1.442695
        %v1570 = vpow.pop %v1569
        %v1571 = vmul.f32 %v1511, 1.442695
        %v1572 = vpow.pop %v1571
        %v1573 = vmul.f32 %v1512, 1.442695
        %v1574 = vpow.pop %v1573
        %v1575 = vmul.f32 %v1513, 1.442695
        %v1576 = vpow.pop %v1575
        %v1577 = vmul.f32 %v1514, 1.442695
        %v1578 = vpow.pop %v1577
        %v1579 = vadd.f32 %v1516, 1.0
        %v1580 = vadd.f32 %v1518, 1.0
        %v1581 = vadd.f32 %v1520, 1.0
        %v1582 = vadd.f32 %v1522, 1.0
        %v1583 = vadd.f32 %v1524, 1.0
        %v1584 = vadd.f32 %v1526, 1.0
        %v1585 = vadd.f32 %v1528, 1.0
        %v1586 = vadd.f32 %v1530, 1.0
        %v1587 = vadd.f32 %v1532, 1.0
        %v1588 = vadd.f32 %v1534, 1.0
        %v1589 = vadd.f32 %v1536, 1.0
        %v1590 = vadd.f32 %v1538, 1.0
        %v1591 = vadd.f32 %v1540, 1.0
        %v1592 = vadd.f32 %v1542, 1.0
        %v1593 = vadd.f32 %v1544, 1.0
        %v1594 = vadd.f32 %v1546, 1.0
        %v1595 = vadd.f32 %v1548, 1.0
        %v1596 = vadd.f32 %v1550, 1.0
        %v1597 = vadd.f32 %v1552, 1.0
        %v1598 = vadd.f32 %v1554, 1.0
        %v1599 = vadd.f32 %v1556, 1.0
        %v1600 = vadd.f32 %v1558, 1.0
        %v1601 = vadd.f32 %v1560, 1.0
        %v1602 = vadd.f32 %v1562, 1.0
        %v1603 = vadd.f32 %v1564, 1.0
        %v1604 = vadd.f32 %v1566, 1.0
        %v1605 = vadd.f32 %v1568, 1.0
        %v1606 = vadd.f32 %v1570, 1.0
        %v1607 = vadd.f32 %v1572, 1.0
        %v1608 = vadd.f32 %v1574, 1.0
        %v1609 = vadd.f32 %v1576, 1.0
        %v1610 = vadd.f32 %v1578, 1.0
        %v1611 = vrcp.pop %v1579
        %v1612 = vmul.f32 %v1579, %v1611
        %v1613 = vsub.f32 1.0, %v1612
        %v1614 = vmul.f32 %v1611, %v1613
        %v1615 = vadd.f32 %v1611, %v1614
        %vm1616 = vweird.f32 %v1579
        %vm1617 = vweird.f32 %v1611
        %vm1618 = vmor %vm1616, %vm1617
        %v1619 = vsel %vm1618, %v1611, %v1615
        %v1620 = vand.u32 2147483647, %v1579
        %vm1621 = vcmp.eq.f32.partialorder %v1620, 8.507059e+37
        %v1622 = vand.u32 %v1579, 2147483648
        %v1623 = vor.u32 1.1754944e-38, %v1622
        %v1624 = vsel %vm1621, %v1623, %v1619
        %v1625 = vmul.f32 1.0, %v1624
        %v1626 = vrcp.pop %v1580
        %v1627 = vmul.f32 %v1580, %v1626
        %v1628 = vsub.f32 1.0, %v1627
        %v1629 = vmul.f32 %v1626, %v1628
        %v1630 = vadd.f32 %v1626, %v1629
        %vm1631 = vweird.f32 %v1580
        %vm1632 = vweird.f32 %v1626
        %vm1633 = vmor %vm1631, %vm1632
        %v1634 = vsel %vm1633, %v1626, %v1630
        %v1635 = vand.u32 2147483647, %v1580
        %vm1636 = vcmp.eq.f32.partialorder %v1635, 8.507059e+37
        %v1637 = vand.u32 %v1580, 2147483648
        %v1638 = vor.u32 1.1754944e-38, %v1637
        %v1639 = vsel %vm1636, %v1638, %v1634
        %v1640 = vmul.f32 1.0, %v1639
        %v1641 = vrcp.pop %v1581
        %v1642 = vmul.f32 %v1581, %v1641
        %v1643 = vsub.f32 1.0, %v1642
        %v1644 = vmul.f32 %v1641, %v1643
        %v1645 = vadd.f32 %v1641, %v1644
        %vm1646 = vweird.f32 %v1581
        %vm1647 = vweird.f32 %v1641
        %vm1648 = vmor %vm1646, %vm1647
        %v1649 = vsel %vm1648, %v1641, %v1645
        %v1650 = vand.u32 2147483647, %v1581
        %vm1651 = vcmp.eq.f32.partialorder %v1650, 8.507059e+37
        %v1652 = vand.u32 %v1581, 2147483648
        %v1653 = vor.u32 1.1754944e-38, %v1652
        %v1654 = vsel %vm1651, %v1653, %v1649
        %v1655 = vmul.f32 1.0, %v1654
        %v1656 = vrcp.pop %v1582
        %v1657 = vmul.f32 %v1582, %v1656
        %v1658 = vsub.f32 1.0, %v1657
        %v1659 = vmul.f32 %v1656, %v1658
        %v1660 = vadd.f32 %v1656, %v1659
        %vm1661 = vweird.f32 %v1582
        %vm1662 = vweird.f32 %v1656
        %vm1663 = vmor %vm1661, %vm1662
        %v1664 = vsel %vm1663, %v1656, %v1660
        %v1665 = vand.u32 2147483647, %v1582
        %vm1666 = vcmp.eq.f32.partialorder %v1665, 8.507059e+37
        %v1667 = vand.u32 %v1582, 2147483648
        %v1668 = vor.u32 1.1754944e-38, %v1667
        %v1669 = vsel %vm1666, %v1668, %v1664
        %v1670 = vmul.f32 1.0, %v1669
        %v1671 = vrcp.pop %v1583
        %v1672 = vmul.f32 %v1583, %v1671
        %v1673 = vsub.f32 1.0, %v1672
        %v1674 = vmul.f32 %v1671, %v1673
        %v1675 = vadd.f32 %v1671, %v1674
        %vm1676 = vweird.f32 %v1583
        %vm1677 = vweird.f32 %v1671
        %vm1678 = vmor %vm1676, %vm1677
        %v1679 = vsel %vm1678, %v1671, %v1675
        %v1680 = vand.u32 2147483647, %v1583
        %vm1681 = vcmp.eq.f32.partialorder %v1680, 8.507059e+37
        %v1682 = vand.u32 %v1583, 2147483648
        %v1683 = vor.u32 1.1754944e-38, %v1682
        %v1684 = vsel %vm1681, %v1683, %v1679
        %v1685 = vmul.f32 1.0, %v1684
        %v1686 = vrcp.pop %v1584
        %v1687 = vmul.f32 %v1584, %v1686
        %v1688 = vsub.f32 1.0, %v1687
        %v1689 = vmul.f32 %v1686, %v1688
        %v1690 = vadd.f32 %v1686, %v1689
        %vm1691 = vweird.f32 %v1584
        %vm1692 = vweird.f32 %v1686
        %vm1693 = vmor %vm1691, %vm1692
        %v1694 = vsel %vm1693, %v1686, %v1690
        %v1695 = vand.u32 2147483647, %v1584
        %vm1696 = vcmp.eq.f32.partialorder %v1695, 8.507059e+37
        %v1697 = vand.u32 %v1584, 2147483648
        %v1698 = vor.u32 1.1754944e-38, %v1697
        %v1699 = vsel %vm1696, %v1698, %v1694
        %v1700 = vmul.f32 1.0, %v1699
        %v1701 = vrcp.pop %v1585
        %v1702 = vmul.f32 %v1585, %v1701
        %v1703 = vsub.f32 1.0, %v1702
        %v1704 = vmul.f32 %v1701, %v1703
        %v1705 = vadd.f32 %v1701, %v1704
        %vm1706 = vweird.f32 %v1585
        %vm1707 = vweird.f32 %v1701
        %vm1708 = vmor %vm1706, %vm1707
        %v1709 = vsel %vm1708, %v1701, %v1705
        %v1710 = vand.u32 2147483647, %v1585
        %vm1711 = vcmp.eq.f32.partialorder %v1710, 8.507059e+37
        %v1712 = vand.u32 %v1585, 2147483648
        %v1713 = vor.u32 1.1754944e-38, %v1712
        %v1714 = vsel %vm1711, %v1713, %v1709
        %v1715 = vmul.f32 1.0, %v1714
        %v1716 = vrcp.pop %v1586
        %v1717 = vmul.f32 %v1586, %v1716
        %v1718 = vsub.f32 1.0, %v1717
        %v1719 = vmul.f32 %v1716, %v1718
        %v1720 = vadd.f32 %v1716, %v1719
        %vm1721 = vweird.f32 %v1586
        %vm1722 = vweird.f32 %v1716
        %vm1723 = vmor %vm1721, %vm1722
        %v1724 = vsel %vm1723, %v1716, %v1720
        %v1725 = vand.u32 2147483647, %v1586
        %vm1726 = vcmp.eq.f32.partialorder %v1725, 8.507059e+37
        %v1727 = vand.u32 %v1586, 2147483648
        %v1728 = vor.u32 1.1754944e-38, %v1727
        %v1729 = vsel %vm1726, %v1728, %v1724
        %v1730 = vmul.f32 1.0, %v1729
        %v1731 = vrcp.pop %v1587
        %v1732 = vmul.f32 %v1587, %v1731
        %v1733 = vsub.f32 1.0, %v1732
        %v1734 = vmul.f32 %v1731, %v1733
        %v1735 = vadd.f32 %v1731, %v1734
        %vm1736 = vweird.f32 %v1587
        %vm1737 = vweird.f32 %v1731
        %vm1738 = vmor %vm1736, %vm1737
        %v1739 = vsel %vm1738, %v1731, %v1735
        %v1740 = vand.u32 2147483647, %v1587
        %vm1741 = vcmp.eq.f32.partialorder %v1740, 8.507059e+37
        %v1742 = vand.u32 %v1587, 2147483648
        %v1743 = vor.u32 1.1754944e-38, %v1742
        %v1744 = vsel %vm1741, %v1743, %v1739
        %v1745 = vmul.f32 1.0, %v1744
        %v1746 = vrcp.pop %v1588
        %v1747 = vmul.f32 %v1588, %v1746
        %v1748 = vsub.f32 1.0, %v1747
        %v1749 = vmul.f32 %v1746, %v1748
        %v1750 = vadd.f32 %v1746, %v1749
        %vm1751 = vweird.f32 %v1588
        %vm1752 = vweird.f32 %v1746
        %vm1753 = vmor %vm1751, %vm1752
        %v1754 = vsel %vm1753, %v1746, %v1750
        %v1755 = vand.u32 2147483647, %v1588
        %vm1756 = vcmp.eq.f32.partialorder %v1755, 8.507059e+37
        %v1757 = vand.u32 %v1588, 2147483648
        %v1758 = vor.u32 1.1754944e-38, %v1757
        %v1759 = vsel %vm1756, %v1758, %v1754
        %v1760 = vmul.f32 1.0, %v1759
        %v1761 = vrcp.pop %v1589
        %v1762 = vmul.f32 %v1589, %v1761
        %v1763 = vsub.f32 1.0, %v1762
        %v1764 = vmul.f32 %v1761, %v1763
        %v1765 = vadd.f32 %v1761, %v1764
        %vm1766 = vweird.f32 %v1589
        %vm1767 = vweird.f32 %v1761
        %vm1768 = vmor %vm1766, %vm1767
        %v1769 = vsel %vm1768, %v1761, %v1765
        %v1770 = vand.u32 2147483647, %v1589
        %vm1771 = vcmp.eq.f32.partialorder %v1770, 8.507059e+37
        %v1772 = vand.u32 %v1589, 2147483648
        %v1773 = vor.u32 1.1754944e-38, %v1772
        %v1774 = vsel %vm1771, %v1773, %v1769
        %v1775 = vmul.f32 1.0, %v1774
        %v1776 = vrcp.pop %v1590
        %v1777 = vmul.f32 %v1590, %v1776
        %v1778 = vsub.f32 1.0, %v1777
        %v1779 = vmul.f32 %v1776, %v1778
        %v1780 = vadd.f32 %v1776, %v1779
        %vm1781 = vweird.f32 %v1590
        %vm1782 = vweird.f32 %v1776
        %vm1783 = vmor %vm1781, %vm1782
        %v1784 = vsel %vm1783, %v1776, %v1780
        %v1785 = vand.u32 2147483647, %v1590
        %vm1786 = vcmp.eq.f32.partialorder %v1785, 8.507059e+37
        %v1787 = vand.u32 %v1590, 2147483648
        %v1788 = vor.u32 1.1754944e-38, %v1787
        %v1789 = vsel %vm1786, %v1788, %v1784
        %v1790 = vmul.f32 1.0, %v1789
        %v1791 = vrcp.pop %v1591
        %v1792 = vmul.f32 %v1591, %v1791
        %v1793 = vsub.f32 1.0, %v1792
        %v1794 = vmul.f32 %v1791, %v1793
        %v1795 = vadd.f32 %v1791, %v1794
        %vm1796 = vweird.f32 %v1591
        %vm1797 = vweird.f32 %v1791
        %vm1798 = vmor %vm1796, %vm1797
        %v1799 = vsel %vm1798, %v1791, %v1795
        %v1800 = vand.u32 2147483647, %v1591
        %vm1801 = vcmp.eq.f32.partialorder %v1800, 8.507059e+37
        %v1802 = vand.u32 %v1591, 2147483648
        %v1803 = vor.u32 1.1754944e-38, %v1802
        %v1804 = vsel %vm1801, %v1803, %v1799
        %v1805 = vmul.f32 1.0, %v1804
        %v1806 = vrcp.pop %v1592
        %v1807 = vmul.f32 %v1592, %v1806
        %v1808 = vsub.f32 1.0, %v1807
        %v1809 = vmul.f32 %v1806, %v1808
        %v1810 = vadd.f32 %v1806, %v1809
        %vm1811 = vweird.f32 %v1592
        %vm1812 = vweird.f32 %v1806
        %vm1813 = vmor %vm1811, %vm1812
        %v1814 = vsel %vm1813, %v1806, %v1810
        %v1815 = vand.u32 2147483647, %v1592
        %vm1816 = vcmp.eq.f32.partialorder %v1815, 8.507059e+37
        %v1817 = vand.u32 %v1592, 2147483648
        %v1818 = vor.u32 1.1754944e-38, %v1817
        %v1819 = vsel %vm1816, %v1818, %v1814
        %v1820 = vmul.f32 1.0, %v1819
        %v1821 = vrcp.pop %v1593
        %v1822 = vmul.f32 %v1593, %v1821
        %v1823 = vsub.f32 1.0, %v1822
        %v1824 = vmul.f32 %v1821, %v1823
        %v1825 = vadd.f32 %v1821, %v1824
        %vm1826 = vweird.f32 %v1593
        %vm1827 = vweird.f32 %v1821
        %vm1828 = vmor %vm1826, %vm1827
        %v1829 = vsel %vm1828, %v1821, %v1825
        %v1830 = vand.u32 2147483647, %v1593
        %vm1831 = vcmp.eq.f32.partialorder %v1830, 8.507059e+37
        %v1832 = vand.u32 %v1593, 2147483648
        %v1833 = vor.u32 1.1754944e-38, %v1832
        %v1834 = vsel %vm1831, %v1833, %v1829
        %v1835 = vmul.f32 1.0, %v1834
        %v1836 = vrcp.pop %v1594
        %v1837 = vmul.f32 %v1594, %v1836
        %v1838 = vsub.f32 1.0, %v1837
        %v1839 = vmul.f32 %v1836, %v1838
        %v1840 = vadd.f32 %v1836, %v1839
        %vm1841 = vweird.f32 %v1594
        %vm1842 = vweird.f32 %v1836
        %vm1843 = vmor %vm1841, %vm1842
        %v1844 = vsel %vm1843, %v1836, %v1840
        %v1845 = vand.u32 2147483647, %v1594
        %vm1846 = vcmp.eq.f32.partialorder %v1845, 8.507059e+37
        %v1847 = vand.u32 %v1594, 2147483648
        %v1848 = vor.u32 1.1754944e-38, %v1847
        %v1849 = vsel %vm1846, %v1848, %v1844
        %v1850 = vmul.f32 1.0, %v1849
        %v1851 = vrcp.pop %v1595
        %v1852 = vmul.f32 %v1595, %v1851
        %v1853 = vsub.f32 1.0, %v1852
        %v1854 = vmul.f32 %v1851, %v1853
        %v1855 = vadd.f32 %v1851, %v1854
        %vm1856 = vweird.f32 %v1595
        %vm1857 = vweird.f32 %v1851
        %vm1858 = vmor %vm1856, %vm1857
        %v1859 = vsel %vm1858, %v1851, %v1855
        %v1860 = vand.u32 2147483647, %v1595
        %vm1861 = vcmp.eq.f32.partialorder %v1860, 8.507059e+37
        %v1862 = vand.u32 %v1595, 2147483648
        %v1863 = vor.u32 1.1754944e-38, %v1862
        %v1864 = vsel %vm1861, %v1863, %v1859
        %v1865 = vmul.f32 1.0, %v1864
        %v1866 = vrcp.pop %v1596
        %v1867 = vmul.f32 %v1596, %v1866
        %v1868 = vsub.f32 1.0, %v1867
        %v1869 = vmul.f32 %v1866, %v1868
        %v1870 = vadd.f32 %v1866, %v1869
        %vm1871 = vweird.f32 %v1596
        %vm1872 = vweird.f32 %v1866
        %vm1873 = vmor %vm1871, %vm1872
        %v1874 = vsel %vm1873, %v1866, %v1870
        %v1875 = vand.u32 2147483647, %v1596
        %vm1876 = vcmp.eq.f32.partialorder %v1875, 8.507059e+37
        %v1877 = vand.u32 %v1596, 2147483648
        %v1878 = vor.u32 1.1754944e-38, %v1877
        %v1879 = vsel %vm1876, %v1878, %v1874
        %v1880 = vmul.f32 1.0, %v1879
        %v1881 = vrcp.pop %v1597
        %v1882 = vmul.f32 %v1597, %v1881
        %v1883 = vsub.f32 1.0, %v1882
        %v1884 = vmul.f32 %v1881, %v1883
        %v1885 = vadd.f32 %v1881, %v1884
        %vm1886 = vweird.f32 %v1597
        %vm1887 = vweird.f32 %v1881
        %vm1888 = vmor %vm1886, %vm1887
        %v1889 = vsel %vm1888, %v1881, %v1885
        %v1890 = vand.u32 2147483647, %v1597
        %vm1891 = vcmp.eq.f32.partialorder %v1890, 8.507059e+37
        %v1892 = vand.u32 %v1597, 2147483648
        %v1893 = vor.u32 1.1754944e-38, %v1892
        %v1894 = vsel %vm1891, %v1893, %v1889
        %v1895 = vmul.f32 1.0, %v1894
        %v1896 = vrcp.pop %v1598
        %v1897 = vmul.f32 %v1598, %v1896
        %v1898 = vsub.f32 1.0, %v1897
        %v1899 = vmul.f32 %v1896, %v1898
        %v1900 = vadd.f32 %v1896, %v1899
        %vm1901 = vweird.f32 %v1598
        %vm1902 = vweird.f32 %v1896
        %vm1903 = vmor %vm1901, %vm1902
        %v1904 = vsel %vm1903, %v1896, %v1900
        %v1905 = vand.u32 2147483647, %v1598
        %vm1906 = vcmp.eq.f32.partialorder %v1905, 8.507059e+37
        %v1907 = vand.u32 %v1598, 2147483648
        %v1908 = vor.u32 1.1754944e-38, %v1907
        %v1909 = vsel %vm1906, %v1908, %v1904
        %v1910 = vmul.f32 1.0, %v1909
        %v1911 = vrcp.pop %v1599
        %v1912 = vmul.f32 %v1599, %v1911
        %v1913 = vsub.f32 1.0, %v1912
        %v1914 = vmul.f32 %v1911, %v1913
        %v1915 = vadd.f32 %v1911, %v1914
        %vm1916 = vweird.f32 %v1599
        %vm1917 = vweird.f32 %v1911
        %vm1918 = vmor %vm1916, %vm1917
        %v1919 = vsel %vm1918, %v1911, %v1915
        %v1920 = vand.u32 2147483647, %v1599
        %vm1921 = vcmp.eq.f32.partialorder %v1920, 8.507059e+37
        %v1922 = vand.u32 %v1599, 2147483648
        %v1923 = vor.u32 1.1754944e-38, %v1922
        %v1924 = vsel %vm1921, %v1923, %v1919
        %v1925 = vmul.f32 1.0, %v1924
        %v1926 = vrcp.pop %v1600
        %v1927 = vmul.f32 %v1600, %v1926
        %v1928 = vsub.f32 1.0, %v1927
        %v1929 = vmul.f32 %v1926, %v1928
        %v1930 = vadd.f32 %v1926, %v1929
        %vm1931 = vweird.f32 %v1600
        %vm1932 = vweird.f32 %v1926
        %vm1933 = vmor %vm1931, %vm1932
        %v1934 = vsel %vm1933, %v1926, %v1930
        %v1935 = vand.u32 2147483647, %v1600
        %vm1936 = vcmp.eq.f32.partialorder %v1935, 8.507059e+37
        %v1937 = vand.u32 %v1600, 2147483648
        %v1938 = vor.u32 1.1754944e-38, %v1937
        %v1939 = vsel %vm1936, %v1938, %v1934
        %v1940 = vmul.f32 1.0, %v1939
        %v1941 = vrcp.pop %v1601
        %v1942 = vmul.f32 %v1601, %v1941
        %v1943 = vsub.f32 1.0, %v1942
        %v1944 = vmul.f32 %v1941, %v1943
        %v1945 = vadd.f32 %v1941, %v1944
        %vm1946 = vweird.f32 %v1601
        %vm1947 = vweird.f32 %v1941
        %vm1948 = vmor %vm1946, %vm1947
        %v1949 = vsel %vm1948, %v1941, %v1945
        %v1950 = vand.u32 2147483647, %v1601
        %vm1951 = vcmp.eq.f32.partialorder %v1950, 8.507059e+37
        %v1952 = vand.u32 %v1601, 2147483648
        %v1953 = vor.u32 1.1754944e-38, %v1952
        %v1954 = vsel %vm1951, %v1953, %v1949
        %v1955 = vmul.f32 1.0, %v1954
        %v1956 = vrcp.pop %v1602
        %v1957 = vmul.f32 %v1602, %v1956
        %v1958 = vsub.f32 1.0, %v1957
        %v1959 = vmul.f32 %v1956, %v1958
        %v1960 = vadd.f32 %v1956, %v1959
        %vm1961 = vweird.f32 %v1602
        %vm1962 = vweird.f32 %v1956
        %vm1963 = vmor %vm1961, %vm1962
        %v1964 = vsel %vm1963, %v1956, %v1960
        %v1965 = vand.u32 2147483647, %v1602
        %vm1966 = vcmp.eq.f32.partialorder %v1965, 8.507059e+37
        %v1967 = vand.u32 %v1602, 2147483648
        %v1968 = vor.u32 1.1754944e-38, %v1967
        %v1969 = vsel %vm1966, %v1968, %v1964
        %v1970 = vmul.f32 1.0, %v1969
        %v1971 = vrcp.pop %v1603
        %v1972 = vmul.f32 %v1603, %v1971
        %v1973 = vsub.f32 1.0, %v1972
        %v1974 = vmul.f32 %v1971, %v1973
        %v1975 = vadd.f32 %v1971, %v1974
        %vm1976 = vweird.f32 %v1603
        %vm1977 = vweird.f32 %v1971
        %vm1978 = vmor %vm1976, %vm1977
        %v1979 = vsel %vm1978, %v1971, %v1975
        %v1980 = vand.u32 2147483647, %v1603
        %vm1981 = vcmp.eq.f32.partialorder %v1980, 8.507059e+37
        %v1982 = vand.u32 %v1603, 2147483648
        %v1983 = vor.u32 1.1754944e-38, %v1982
        %v1984 = vsel %vm1981, %v1983, %v1979
        %v1985 = vmul.f32 1.0, %v1984
        %v1986 = vrcp.pop %v1604
        %v1987 = vmul.f32 %v1604, %v1986
        %v1988 = vsub.f32 1.0, %v1987
        %v1989 = vmul.f32 %v1986, %v1988
        %v1990 = vadd.f32 %v1986, %v1989
        %vm1991 = vweird.f32 %v1604
        %vm1992 = vweird.f32 %v1986
        %vm1993 = vmor %vm1991, %vm1992
        %v1994 = vsel %vm1993, %v1986, %v1990
        %v1995 = vand.u32 2147483647, %v1604
        %vm1996 = vcmp.eq.f32.partialorder %v1995, 8.507059e+37
        %v1997 = vand.u32 %v1604, 2147483648
        %v1998 = vor.u32 1.1754944e-38, %v1997
        %v1999 = vsel %vm1996, %v1998, %v1994
        %v2000 = vmul.f32 1.0, %v1999
        %v2001 = vrcp.pop %v1605
        %v2002 = vmul.f32 %v1605, %v2001
        %v2003 = vsub.f32 1.0, %v2002
        %v2004 = vmul.f32 %v2001, %v2003
        %v2005 = vadd.f32 %v2001, %v2004
        %vm2006 = vweird.f32 %v1605
        %vm2007 = vweird.f32 %v2001
        %vm2008 = vmor %vm2006, %vm2007
        %v2009 = vsel %vm2008, %v2001, %v2005
        %v2010 = vand.u32 2147483647, %v1605
        %vm2011 = vcmp.eq.f32.partialorder %v2010, 8.507059e+37
        %v2012 = vand.u32 %v1605, 2147483648
        %v2013 = vor.u32 1.1754944e-38, %v2012
        %v2014 = vsel %vm2011, %v2013, %v2009
        %v2015 = vmul.f32 1.0, %v2014
        %v2016 = vrcp.pop %v1606
        %v2017 = vmul.f32 %v1606, %v2016
        %v2018 = vsub.f32 1.0, %v2017
        %v2019 = vmul.f32 %v2016, %v2018
        %v2020 = vadd.f32 %v2016, %v2019
        %vm2021 = vweird.f32 %v1606
        %vm2022 = vweird.f32 %v2016
        %vm2023 = vmor %vm2021, %vm2022
        %v2024 = vsel %vm2023, %v2016, %v2020
        %v2025 = vand.u32 2147483647, %v1606
        %vm2026 = vcmp.eq.f32.partialorder %v2025, 8.507059e+37
        %v2027 = vand.u32 %v1606, 2147483648
        %v2028 = vor.u32 1.1754944e-38, %v2027
        %v2029 = vsel %vm2026, %v2028, %v2024
        %v2030 = vmul.f32 1.0, %v2029
        %v2031 = vrcp.pop %v1607
        %v2032 = vmul.f32 %v1607, %v2031
        %v2033 = vsub.f32 1.0, %v2032
        %v2034 = vmul.f32 %v2031, %v2033
        %v2035 = vadd.f32 %v2031, %v2034
        %vm2036 = vweird.f32 %v1607
        %vm2037 = vweird.f32 %v2031
        %vm2038 = vmor %vm2036, %vm2037
        %v2039 = vsel %vm2038, %v2031, %v2035
        %v2040 = vand.u32 2147483647, %v1607
        %vm2041 = vcmp.eq.f32.partialorder %v2040, 8.507059e+37
        %v2042 = vand.u32 %v1607, 2147483648
        %v2043 = vor.u32 1.1754944e-38, %v2042
        %v2044 = vsel %vm2041, %v2043, %v2039
        %v2045 = vmul.f32 1.0, %v2044
        %v2046 = vrcp.pop %v1608
        %v2047 = vmul.f32 %v1608, %v2046
        %v2048 = vsub.f32 1.0, %v2047
        %v2049 = vmul.f32 %v2046, %v2048
        %v2050 = vadd.f32 %v2046, %v2049
        %vm2051 = vweird.f32 %v1608
        %vm2052 = vweird.f32 %v2046
        %vm2053 = vmor %vm2051, %vm2052
        %v2054 = vsel %vm2053, %v2046, %v2050
        %v2055 = vand.u32 2147483647, %v1608
        %vm2056 = vcmp.eq.f32.partialorder %v2055, 8.507059e+37
        %v2057 = vand.u32 %v1608, 2147483648
        %v2058 = vor.u32 1.1754944e-38, %v2057
        %v2059 = vsel %vm2056, %v2058, %v2054
        %v2060 = vmul.f32 1.0, %v2059
        %v2061 = vrcp.pop %v1609
        %v2062 = vmul.f32 %v1609, %v2061
        %v2063 = vsub.f32 1.0, %v2062
        %v2064 = vmul.f32 %v2061, %v2063
        %v2065 = vadd.f32 %v2061, %v2064
        %vm2066 = vweird.f32 %v1609
        %vm2067 = vweird.f32 %v2061
        %vm2068 = vmor %vm2066, %vm2067
        %v2069 = vsel %vm2068, %v2061, %v2065
        %v2070 = vand.u32 2147483647, %v1609
        %vm2071 = vcmp.eq.f32.partialorder %v2070, 8.507059e+37
        %v2072 = vand.u32 %v1609, 2147483648
        %v2073 = vor.u32 1.1754944e-38, %v2072
        %v2074 = vsel %vm2071, %v2073, %v2069
        %v2075 = vmul.f32 1.0, %v2074
        %v2076 = vrcp.pop %v1610
        %v2077 = vmul.f32 %v1610, %v2076
        %v2078 = vsub.f32 1.0, %v2077
        %v2079 = vmul.f32 %v2076, %v2078
        %v2080 = vadd.f32 %v2076, %v2079
        %vm2081 = vweird.f32 %v1610
        %vm2082 = vweird.f32 %v2076
        %vm2083 = vmor %vm2081, %vm2082
        %v2084 = vsel %vm2083, %v2076, %v2080
        %v2085 = vand.u32 2147483647, %v1610
        %vm2086 = vcmp.eq.f32.partialorder %v2085, 8.507059e+37
        %v2087 = vand.u32 %v1610, 2147483648
        %v2088 = vor.u32 1.1754944e-38, %v2087
        %v2089 = vsel %vm2086, %v2088, %v2084
        %v2090 = vmul.f32 1.0, %v2089
        %v2091 = vmul.f32 %v1041, %v1625
        %v2092 = vmul.f32 %v1044, %v1640
        %v2093 = vmul.f32 %v1047, %v1655
        %v2094 = vmul.f32 %v1050, %v1670
        %v2095 = vmul.f32 %v1053, %v1685
        %v2096 = vmul.f32 %v1056, %v1700
        %v2097 = vmul.f32 %v1059, %v1715
        %v2098 = vmul.f32 %v1062, %v1730
        %v2099 = vmul.f32 %v1065, %v1745
        %v2100 = vmul.f32 %v1068, %v1760
        %v2101 = vmul.f32 %v1071, %v1775
        %v2102 = vmul.f32 %v1074, %v1790
        %v2103 = vmul.f32 %v1077, %v1805
        %v2104 = vmul.f32 %v1080, %v1820
        %v2105 = vmul.f32 %v1083, %v1835
        %v2106 = vmul.f32 %v1086, %v1850
        %v2107 = vmul.f32 %v1089, %v1865
        %v2108 = vmul.f32 %v1092, %v1880
        %v2109 = vmul.f32 %v1095, %v1895
        %v2110 = vmul.f32 %v1098, %v1910
        %v2111 = vmul.f32 %v1101, %v1925
        %v2112 = vmul.f32 %v1104, %v1940
        %v2113 = vmul.f32 %v1107, %v1955
        %v2114 = vmul.f32 %v1110, %v1970
        %v2115 = vmul.f32 %v1113, %v1985
        %v2116 = vmul.f32 %v1116, %v2000
        %v2117 = vmul.f32 %v1119, %v2015
        %v2118 = vmul.f32 %v1122, %v2030
        %v2119 = vmul.f32 %v1125, %v2045
        %v2120 = vmul.f32 %v1128, %v2060
        %v2121 = vmul.f32 %v1131, %v2075
        %v2122 = vmul.f32 %v1134, %v2090
        %v2123 = vadd.f32 %v2091, %v528
        %v2124 = vadd.f32 %v2092, %v529
        %v2125 = vadd.f32 %v2093, %v530
        %v2126 = vadd.f32 %v2094, %v531
        %v2127 = vadd.f32 %v2095, %v532
        %v2128 = vadd.f32 %v2096, %v533
        %v2129 = vadd.f32 %v2097, %v534
        %v2130 = vadd.f32 %v2098, %v535
        %v2131 = vadd.f32 %v2099, %v536
        %v2132 = vadd.f32 %v2100, %v537
        %v2133 = vadd.f32 %v2101, %v538
        %v2134 = vadd.f32 %v2102, %v539
        %v2135 = vadd.f32 %v2103, %v540
        %v2136 = vadd.f32 %v2104, %v541
        %v2137 = vadd.f32 %v2105, %v542
        %v2138 = vadd.f32 %v2106, %v543
        %v2139 = vadd.f32 %v2107, %v544
        %v2140 = vadd.f32 %v2108, %v545
        %v2141 = vadd.f32 %v2109, %v546
        %v2142 = vadd.f32 %v2110, %v547
        %v2143 = vadd.f32 %v2111, %v548
        %v2144 = vadd.f32 %v2112, %v549
        %v2145 = vadd.f32 %v2113, %v550
        %v2146 = vadd.f32 %v2114, %v551
        %v2147 = vadd.f32 %v2115, %v552
        %v2148 = vadd.f32 %v2116, %v553
        %v2149 = vadd.f32 %v2117, %v554
        %v2150 = vadd.f32 %v2118, %v555
        %v2151 = vadd.f32 %v2119, %v556
        %v2152 = vadd.f32 %v2120, %v557
        %v2153 = vadd.f32 %v2121, %v558
        %v2154 = vadd.f32 %v2122, %v559
        %v2155 = vld [vmem:[#allocation11] sm:$0x1]
        %v2156 = vld [vmem:[%s7] sm:$0x1]
        %2157 = vadd.xlane.f32.xlu0 %v2123
        %v2158 = vpop.xlane.xlu0 %2157
        %2159 = vadd.xlane.f32.xlu0 %v2124
        %v2160 = vpop.xlane.xlu0 %2159
        %2161 = vadd.xlane.f32.xlu0 %v2125
        %v2162 = vpop.xlane.xlu0 %2161
        %2163 = vadd.xlane.f32.xlu0 %v2126
        %v2164 = vpop.xlane.xlu0 %2163
        %2165 = vadd.xlane.f32.xlu0 %v2127
        %v2166 = vpop.xlane.xlu0 %2165
        %2167 = vadd.xlane.f32.xlu0 %v2128
        %v2168 = vpop.xlane.xlu0 %2167
        %2169 = vadd.xlane.f32.xlu0 %v2129
        %v2170 = vpop.xlane.xlu0 %2169
        %2171 = vadd.xlane.f32.xlu0 %v2130
        %v2172 = vpop.xlane.xlu0 %2171
        %2173 = vadd.xlane.f32.xlu0 %v2131
        %v2174 = vpop.xlane.xlu0 %2173
        %2175 = vadd.xlane.f32.xlu0 %v2132
        %v2176 = vpop.xlane.xlu0 %2175
        %2177 = vadd.xlane.f32.xlu0 %v2133
        %v2178 = vpop.xlane.xlu0 %2177
        %2179 = vadd.xlane.f32.xlu0 %v2134
        %v2180 = vpop.xlane.xlu0 %2179
        %2181 = vadd.xlane.f32.xlu0 %v2135
        %v2182 = vpop.xlane.xlu0 %2181
        %2183 = vadd.xlane.f32.xlu0 %v2136
        %v2184 = vpop.xlane.xlu0 %2183
        %2185 = vadd.xlane.f32.xlu0 %v2137
        %v2186 = vpop.xlane.xlu0 %2185
        %2187 = vadd.xlane.f32.xlu0 %v2138
        %v2188 = vpop.xlane.xlu0 %2187
        %2189 = vadd.xlane.f32.xlu0 %v2139
        %v2190 = vpop.xlane.xlu0 %2189
        %2191 = vadd.xlane.f32.xlu0 %v2140
        %v2192 = vpop.xlane.xlu0 %2191
        %2193 = vadd.xlane.f32.xlu0 %v2141
        %v2194 = vpop.xlane.xlu0 %2193
        %2195 = vadd.xlane.f32.xlu0 %v2142
        %v2196 = vpop.xlane.xlu0 %2195
        %2197 = vadd.xlane.f32.xlu0 %v2143
        %v2198 = vpop.xlane.xlu0 %2197
        %2199 = vadd.xlane.f32.xlu0 %v2144
        %v2200 = vpop.xlane.xlu0 %2199
        %2201 = vadd.xlane.f32.xlu0 %v2145
        %v2202 = vpop.xlane.xlu0 %2201
        %2203 = vadd.xlane.f32.xlu0 %v2146
        %v2204 = vpop.xlane.xlu0 %2203
        %2205 = vadd.xlane.f32.xlu0 %v2147
        %v2206 = vpop.xlane.xlu0 %2205
        %2207 = vadd.xlane.f32.xlu0 %v2148
        %v2208 = vpop.xlane.xlu0 %2207
        %2209 = vadd.xlane.f32.xlu0 %v2149
        %v2210 = vpop.xlane.xlu0 %2209
        %2211 = vadd.xlane.f32.xlu0 %v2150
        %v2212 = vpop.xlane.xlu0 %2211
        %2213 = vadd.xlane.f32.xlu0 %v2151
        %v2214 = vpop.xlane.xlu0 %2213
        %2215 = vadd.xlane.f32.xlu0 %v2152
        %v2216 = vpop.xlane.xlu0 %2215
        %2217 = vadd.xlane.f32.xlu0 %v2153
        %v2218 = vpop.xlane.xlu0 %2217
        %2219 = vadd.xlane.f32.xlu0 %v2154
        %v2220 = vpop.xlane.xlu0 %2219
        %v2221 = vrcp.pop 128.0
        %v2222 = vmul.f32 128.0, %v2221
        %v2223 = vsub.f32 1.0, %v2222
        %v2224 = vmul.f32 %v2221, %v2223
        %v2225 = vadd.f32 %v2221, %v2224
        %vm2226 = vweird.f32 %v2221
        %v2227 = vsel %vm2226, %v2221, %v2225
        %v2228 = vmul.f32 %v2158, %v2227
        %v2229 = vmul.f32 %v2160, %v2227
        %v2230 = vmul.f32 %v2162, %v2227
        %v2231 = vmul.f32 %v2164, %v2227
        %v2232 = vmul.f32 %v2166, %v2227
        %v2233 = vmul.f32 %v2168, %v2227
        %v2234 = vmul.f32 %v2170, %v2227
        %v2235 = vmul.f32 %v2172, %v2227
        %v2236 = vmul.f32 %v2174, %v2227
        %v2237 = vmul.f32 %v2176, %v2227
        %v2238 = vmul.f32 %v2178, %v2227
        %v2239 = vmul.f32 %v2180, %v2227
        %v2240 = vmul.f32 %v2182, %v2227
        %v2241 = vmul.f32 %v2184, %v2227
        %v2242 = vmul.f32 %v2186, %v2227
        %v2243 = vmul.f32 %v2188, %v2227
        %v2244 = vmul.f32 %v2190, %v2227
        %v2245 = vmul.f32 %v2192, %v2227
        %v2246 = vmul.f32 %v2194, %v2227
        %v2247 = vmul.f32 %v2196, %v2227
        %v2248 = vmul.f32 %v2198, %v2227
        %v2249 = vmul.f32 %v2200, %v2227
        %v2250 = vmul.f32 %v2202, %v2227
        %v2251 = vmul.f32 %v2204, %v2227
        %v2252 = vmul.f32 %v2206, %v2227
        %v2253 = vmul.f32 %v2208, %v2227
        %v2254 = vmul.f32 %v2210, %v2227
        %v2255 = vmul.f32 %v2212, %v2227
        %v2256 = vmul.f32 %v2214, %v2227
        %v2257 = vmul.f32 %v2216, %v2227
        %v2258 = vmul.f32 %v2218, %v2227
        %v2259 = vmul.f32 %v2220, %v2227
        %v2260 = vsub.f32 %v2123, %v2228
        %v2261 = vsub.f32 %v2124, %v2229
        %v2262 = vsub.f32 %v2125, %v2230
        %v2263 = vsub.f32 %v2126, %v2231
        %v2264 = vsub.f32 %v2127, %v2232
        %v2265 = vsub.f32 %v2128, %v2233
        %v2266 = vsub.f32 %v2129, %v2234
        %v2267 = vsub.f32 %v2130, %v2235
        %v2268 = vsub.f32 %v2131, %v2236
        %v2269 = vsub.f32 %v2132, %v2237
        %v2270 = vsub.f32 %v2133, %v2238
        %v2271 = vsub.f32 %v2134, %v2239
        %v2272 = vsub.f32 %v2135, %v2240
        %v2273 = vsub.f32 %v2136, %v2241
        %v2274 = vsub.f32 %v2137, %v2242
        %v2275 = vsub.f32 %v2138, %v2243
        %v2276 = vsub.f32 %v2139, %v2244
        %v2277 = vsub.f32 %v2140, %v2245
        %v2278 = vsub.f32 %v2141, %v2246
        %v2279 = vsub.f32 %v2142, %v2247
        %v2280 = vsub.f32 %v2143, %v2248
        %v2281 = vsub.f32 %v2144, %v2249
        %v2282 = vsub.f32 %v2145, %v2250
        %v2283 = vsub.f32 %v2146, %v2251
        %v2284 = vsub.f32 %v2147, %v2252
        %v2285 = vsub.f32 %v2148, %v2253
        %v2286 = vsub.f32 %v2149, %v2254
        %v2287 = vsub.f32 %v2150, %v2255
        %v2288 = vsub.f32 %v2151, %v2256
        %v2289 = vsub.f32 %v2152, %v2257
        %v2290 = vsub.f32 %v2153, %v2258
        %v2291 = vsub.f32 %v2154, %v2259
        %v2292 = vmul.f32 %v2260, %v2260
        %v2293 = vmul.f32 %v2261, %v2261
        %v2294 = vmul.f32 %v2262, %v2262
        %v2295 = vmul.f32 %v2263, %v2263
        %v2296 = vmul.f32 %v2264, %v2264
        %v2297 = vmul.f32 %v2265, %v2265
        %v2298 = vmul.f32 %v2266, %v2266
        %v2299 = vmul.f32 %v2267, %v2267
        %v2300 = vmul.f32 %v2268, %v2268
        %v2301 = vmul.f32 %v2269, %v2269
        %v2302 = vmul.f32 %v2270, %v2270
        %v2303 = vmul.f32 %v2271, %v2271
        %v2304 = vmul.f32 %v2272, %v2272
        %v2305 = vmul.f32 %v2273, %v2273
        %v2306 = vmul.f32 %v2274, %v2274
        %v2307 = vmul.f32 %v2275, %v2275
        %v2308 = vmul.f32 %v2276, %v2276
        %v2309 = vmul.f32 %v2277, %v2277
        %v2310 = vmul.f32 %v2278, %v2278
        %v2311 = vmul.f32 %v2279, %v2279
        %v2312 = vmul.f32 %v2280, %v2280
        %v2313 = vmul.f32 %v2281, %v2281
        %v2314 = vmul.f32 %v2282, %v2282
        %v2315 = vmul.f32 %v2283, %v2283
        %v2316 = vmul.f32 %v2284, %v2284
        %v2317 = vmul.f32 %v2285, %v2285
        %v2318 = vmul.f32 %v2286, %v2286
        %v2319 = vmul.f32 %v2287, %v2287
        %v2320 = vmul.f32 %v2288, %v2288
        %v2321 = vmul.f32 %v2289, %v2289
        %v2322 = vmul.f32 %v2290, %v2290
        %v2323 = vmul.f32 %v2291, %v2291
        %2324 = vadd.xlane.f32.xlu0 %v2292
        %v2325 = vpop.xlane.xlu0 %2324
        %2326 = vadd.xlane.f32.xlu0 %v2293
        %v2327 = vpop.xlane.xlu0 %2326
        %2328 = vadd.xlane.f32.xlu0 %v2294
        %v2329 = vpop.xlane.xlu0 %2328
        %2330 = vadd.xlane.f32.xlu0 %v2295
        %v2331 = vpop.xlane.xlu0 %2330
        %2332 = vadd.xlane.f32.xlu0 %v2296
        %v2333 = vpop.xlane.xlu0 %2332
        %2334 = vadd.xlane.f32.xlu0 %v2297
        %v2335 = vpop.xlane.xlu0 %2334
        %2336 = vadd.xlane.f32.xlu0 %v2298
        %v2337 = vpop.xlane.xlu0 %2336
        %2338 = vadd.xlane.f32.xlu0 %v2299
        %v2339 = vpop.xlane.xlu0 %2338
        %2340 = vadd.xlane.f32.xlu0 %v2300
        %v2341 = vpop.xlane.xlu0 %2340
        %2342 = vadd.xlane.f32.xlu0 %v2301
        %v2343 = vpop.xlane.xlu0 %2342
        %2344 = vadd.xlane.f32.xlu0 %v2302
        %v2345 = vpop.xlane.xlu0 %2344
        %2346 = vadd.xlane.f32.xlu0 %v2303
        %v2347 = vpop.xlane.xlu0 %2346
        %2348 = vadd.xlane.f32.xlu0 %v2304
        %v2349 = vpop.xlane.xlu0 %2348
        %2350 = vadd.xlane.f32.xlu0 %v2305
        %v2351 = vpop.xlane.xlu0 %2350
        %2352 = vadd.xlane.f32.xlu0 %v2306
        %v2353 = vpop.xlane.xlu0 %2352
        %2354 = vadd.xlane.f32.xlu0 %v2307
        %v2355 = vpop.xlane.xlu0 %2354
        %2356 = vadd.xlane.f32.xlu0 %v2308
        %v2357 = vpop.xlane.xlu0 %2356
        %2358 = vadd.xlane.f32.xlu0 %v2309
        %v2359 = vpop.xlane.xlu0 %2358
        %2360 = vadd.xlane.f32.xlu0 %v2310
        %v2361 = vpop.xlane.xlu0 %2360
        %2362 = vadd.xlane.f32.xlu0 %v2311
        %v2363 = vpop.xlane.xlu0 %2362
        %2364 = vadd.xlane.f32.xlu0 %v2312
        %v2365 = vpop.xlane.xlu0 %2364
        %2366 = vadd.xlane.f32.xlu0 %v2313
        %v2367 = vpop.xlane.xlu0 %2366
        %2368 = vadd.xlane.f32.xlu0 %v2314
        %v2369 = vpop.xlane.xlu0 %2368
        %2370 = vadd.xlane.f32.xlu0 %v2315
        %v2371 = vpop.xlane.xlu0 %2370
        %2372 = vadd.xlane.f32.xlu0 %v2316
        %v2373 = vpop.xlane.xlu0 %2372
        %2374 = vadd.xlane.f32.xlu0 %v2317
        %v2375 = vpop.xlane.xlu0 %2374
        %2376 = vadd.xlane.f32.xlu0 %v2318
        %v2377 = vpop.xlane.xlu0 %2376
        %2378 = vadd.xlane.f32.xlu0 %v2319
        %v2379 = vpop.xlane.xlu0 %2378
        %2380 = vadd.xlane.f32.xlu0 %v2320
        %v2381 = vpop.xlane.xlu0 %2380
        %2382 = vadd.xlane.f32.xlu0 %v2321
        %v2383 = vpop.xlane.xlu0 %2382
        %2384 = vadd.xlane.f32.xlu0 %v2322
        %v2385 = vpop.xlane.xlu0 %2384
        %2386 = vadd.xlane.f32.xlu0 %v2323
        %v2387 = vpop.xlane.xlu0 %2386
        %v2388 = vmul.f32 %v2325, %v2227
        %v2389 = vmul.f32 %v2327, %v2227
        %v2390 = vmul.f32 %v2329, %v2227
        %v2391 = vmul.f32 %v2331, %v2227
        %v2392 = vmul.f32 %v2333, %v2227
        %v2393 = vmul.f32 %v2335, %v2227
        %v2394 = vmul.f32 %v2337, %v2227
        %v2395 = vmul.f32 %v2339, %v2227
        %v2396 = vmul.f32 %v2341, %v2227
        %v2397 = vmul.f32 %v2343, %v2227
        %v2398 = vmul.f32 %v2345, %v2227
        %v2399 = vmul.f32 %v2347, %v2227
        %v2400 = vmul.f32 %v2349, %v2227
        %v2401 = vmul.f32 %v2351, %v2227
        %v2402 = vmul.f32 %v2353, %v2227
        %v2403 = vmul.f32 %v2355, %v2227
        %v2404 = vmul.f32 %v2357, %v2227
        %v2405 = vmul.f32 %v2359, %v2227
        %v2406 = vmul.f32 %v2361, %v2227
        %v2407 = vmul.f32 %v2363, %v2227
        %v2408 = vmul.f32 %v2365, %v2227
        %v2409 = vmul.f32 %v2367, %v2227
        %v2410 = vmul.f32 %v2369, %v2227
        %v2411 = vmul.f32 %v2371, %v2227
        %v2412 = vmul.f32 %v2373, %v2227
        %v2413 = vmul.f32 %v2375, %v2227
        %v2414 = vmul.f32 %v2377, %v2227
        %v2415 = vmul.f32 %v2379, %v2227
        %v2416 = vmul.f32 %v2381, %v2227
        %v2417 = vmul.f32 %v2383, %v2227
        %v2418 = vmul.f32 %v2385, %v2227
        %v2419 = vmul.f32 %v2387, %v2227
        %v2420 = vadd.f32 %v2388, 1e-05
        %v2421 = vadd.f32 %v2389, 1e-05
        %v2422 = vadd.f32 %v2390, 1e-05
        %v2423 = vadd.f32 %v2391, 1e-05
        %v2424 = vadd.f32 %v2392, 1e-05
        %v2425 = vadd.f32 %v2393, 1e-05
        %v2426 = vadd.f32 %v2394, 1e-05
        %v2427 = vadd.f32 %v2395, 1e-05
        %v2428 = vadd.f32 %v2396, 1e-05
        %v2429 = vadd.f32 %v2397, 1e-05
        %v2430 = vadd.f32 %v2398, 1e-05
        %v2431 = vadd.f32 %v2399, 1e-05
        %v2432 = vadd.f32 %v2400, 1e-05
        %v2433 = vadd.f32 %v2401, 1e-05
        %v2434 = vadd.f32 %v2402, 1e-05
        %v2435 = vadd.f32 %v2403, 1e-05
        %v2436 = vadd.f32 %v2404, 1e-05
        %v2437 = vadd.f32 %v2405, 1e-05
        %v2438 = vadd.f32 %v2406, 1e-05
        %v2439 = vadd.f32 %v2407, 1e-05
        %v2440 = vadd.f32 %v2408, 1e-05
        %v2441 = vadd.f32 %v2409, 1e-05
        %v2442 = vadd.f32 %v2410, 1e-05
        %v2443 = vadd.f32 %v2411, 1e-05
        %v2444 = vadd.f32 %v2412, 1e-05
        %v2445 = vadd.f32 %v2413, 1e-05
        %v2446 = vadd.f32 %v2414, 1e-05
        %v2447 = vadd.f32 %v2415, 1e-05
        %v2448 = vadd.f32 %v2416, 1e-05
        %v2449 = vadd.f32 %v2417, 1e-05
        %v2450 = vadd.f32 %v2418, 1e-05
        %v2451 = vadd.f32 %v2419, 1e-05
        %v2452 = vrsqrt.pop %v2420
        %v2453 = vmul.f32 %v2452, %v2420
        %v2454 = vmul.f32 %v2453, %v2452
        %v2455 = vmul.f32 0.5, %v2454
        %v2456 = vsub.f32 1.5, %v2455
        %v2457 = vmul.f32 %v2452, %v2456
        %vm2458 = vweird.f32 %v2420
        %vm2459 = vweird.f32 %v2452
        %vm2460 = vmor %vm2458, %vm2459
        %v2461 = vsel %vm2460, %v2452, %v2457
        %v2462 = vrsqrt.pop %v2421
        %v2463 = vmul.f32 %v2462, %v2421
        %v2464 = vmul.f32 %v2463, %v2462
        %v2465 = vmul.f32 0.5, %v2464
        %v2466 = vsub.f32 1.5, %v2465
        %v2467 = vmul.f32 %v2462, %v2466
        %vm2468 = vweird.f32 %v2421
        %vm2469 = vweird.f32 %v2462
        %vm2470 = vmor %vm2468, %vm2469
        %v2471 = vsel %vm2470, %v2462, %v2467
        %v2472 = vrsqrt.pop %v2422
        %v2473 = vmul.f32 %v2472, %v2422
        %v2474 = vmul.f32 %v2473, %v2472
        %v2475 = vmul.f32 0.5, %v2474
        %v2476 = vsub.f32 1.5, %v2475
        %v2477 = vmul.f32 %v2472, %v2476
        %vm2478 = vweird.f32 %v2422
        %vm2479 = vweird.f32 %v2472
        %vm2480 = vmor %vm2478, %vm2479
        %v2481 = vsel %vm2480, %v2472, %v2477
        %v2482 = vrsqrt.pop %v2423
        %v2483 = vmul.f32 %v2482, %v2423
        %v2484 = vmul.f32 %v2483, %v2482
        %v2485 = vmul.f32 0.5, %v2484
        %v2486 = vsub.f32 1.5, %v2485
        %v2487 = vmul.f32 %v2482, %v2486
        %vm2488 = vweird.f32 %v2423
        %vm2489 = vweird.f32 %v2482
        %vm2490 = vmor %vm2488, %vm2489
        %v2491 = vsel %vm2490, %v2482, %v2487
        %v2492 = vrsqrt.pop %v2424
        %v2493 = vmul.f32 %v2492, %v2424
        %v2494 = vmul.f32 %v2493, %v2492
        %v2495 = vmul.f32 0.5, %v2494
        %v2496 = vsub.f32 1.5, %v2495
        %v2497 = vmul.f32 %v2492, %v2496
        %vm2498 = vweird.f32 %v2424
        %vm2499 = vweird.f32 %v2492
        %vm2500 = vmor %vm2498, %vm2499
        %v2501 = vsel %vm2500, %v2492, %v2497
        %v2502 = vrsqrt.pop %v2425
        %v2503 = vmul.f32 %v2502, %v2425
        %v2504 = vmul.f32 %v2503, %v2502
        %v2505 = vmul.f32 0.5, %v2504
        %v2506 = vsub.f32 1.5, %v2505
        %v2507 = vmul.f32 %v2502, %v2506
        %vm2508 = vweird.f32 %v2425
        %vm2509 = vweird.f32 %v2502
        %vm2510 = vmor %vm2508, %vm2509
        %v2511 = vsel %vm2510, %v2502, %v2507
        %v2512 = vrsqrt.pop %v2426
        %v2513 = vmul.f32 %v2512, %v2426
        %v2514 = vmul.f32 %v2513, %v2512
        %v2515 = vmul.f32 0.5, %v2514
        %v2516 = vsub.f32 1.5, %v2515
        %v2517 = vmul.f32 %v2512, %v2516
        %vm2518 = vweird.f32 %v2426
        %vm2519 = vweird.f32 %v2512
        %vm2520 = vmor %vm2518, %vm2519
        %v2521 = vsel %vm2520, %v2512, %v2517
        %v2522 = vrsqrt.pop %v2427
        %v2523 = vmul.f32 %v2522, %v2427
        %v2524 = vmul.f32 %v2523, %v2522
        %v2525 = vmul.f32 0.5, %v2524
        %v2526 = vsub.f32 1.5, %v2525
        %v2527 = vmul.f32 %v2522, %v2526
        %vm2528 = vweird.f32 %v2427
        %vm2529 = vweird.f32 %v2522
        %vm2530 = vmor %vm2528, %vm2529
        %v2531 = vsel %vm2530, %v2522, %v2527
        %v2532 = vrsqrt.pop %v2428
        %v2533 = vmul.f32 %v2532, %v2428
        %v2534 = vmul.f32 %v2533, %v2532
        %v2535 = vmul.f32 0.5, %v2534
        %v2536 = vsub.f32 1.5, %v2535
        %v2537 = vmul.f32 %v2532, %v2536
        %vm2538 = vweird.f32 %v2428
        %vm2539 = vweird.f32 %v2532
        %vm2540 = vmor %vm2538, %vm2539
        %v2541 = vsel %vm2540, %v2532, %v2537
        %v2542 = vrsqrt.pop %v2429
        %v2543 = vmul.f32 %v2542, %v2429
        %v2544 = vmul.f32 %v2543, %v2542
        %v2545 = vmul.f32 0.5, %v2544
        %v2546 = vsub.f32 1.5, %v2545
        %v2547 = vmul.f32 %v2542, %v2546
        %vm2548 = vweird.f32 %v2429
        %vm2549 = vweird.f32 %v2542
        %vm2550 = vmor %vm2548, %vm2549
        %v2551 = vsel %vm2550, %v2542, %v2547
        %v2552 = vrsqrt.pop %v2430
        %v2553 = vmul.f32 %v2552, %v2430
        %v2554 = vmul.f32 %v2553, %v2552
        %v2555 = vmul.f32 0.5, %v2554
        %v2556 = vsub.f32 1.5, %v2555
        %v2557 = vmul.f32 %v2552, %v2556
        %vm2558 = vweird.f32 %v2430
        %vm2559 = vweird.f32 %v2552
        %vm2560 = vmor %vm2558, %vm2559
        %v2561 = vsel %vm2560, %v2552, %v2557
        %v2562 = vrsqrt.pop %v2431
        %v2563 = vmul.f32 %v2562, %v2431
        %v2564 = vmul.f32 %v2563, %v2562
        %v2565 = vmul.f32 0.5, %v2564
        %v2566 = vsub.f32 1.5, %v2565
        %v2567 = vmul.f32 %v2562, %v2566
        %vm2568 = vweird.f32 %v2431
        %vm2569 = vweird.f32 %v2562
        %vm2570 = vmor %vm2568, %vm2569
        %v2571 = vsel %vm2570, %v2562, %v2567
        %v2572 = vrsqrt.pop %v2432
        %v2573 = vmul.f32 %v2572, %v2432
        %v2574 = vmul.f32 %v2573, %v2572
        %v2575 = vmul.f32 0.5, %v2574
        %v2576 = vsub.f32 1.5, %v2575
        %v2577 = vmul.f32 %v2572, %v2576
        %vm2578 = vweird.f32 %v2432
        %vm2579 = vweird.f32 %v2572
        %vm2580 = vmor %vm2578, %vm2579
        %v2581 = vsel %vm2580, %v2572, %v2577
        %v2582 = vrsqrt.pop %v2433
        %v2583 = vmul.f32 %v2582, %v2433
        %v2584 = vmul.f32 %v2583, %v2582
        %v2585 = vmul.f32 0.5, %v2584
        %v2586 = vsub.f32 1.5, %v2585
        %v2587 = vmul.f32 %v2582, %v2586
        %vm2588 = vweird.f32 %v2433
        %vm2589 = vweird.f32 %v2582
        %vm2590 = vmor %vm2588, %vm2589
        %v2591 = vsel %vm2590, %v2582, %v2587
        %v2592 = vrsqrt.pop %v2434
        %v2593 = vmul.f32 %v2592, %v2434
        %v2594 = vmul.f32 %v2593, %v2592
        %v2595 = vmul.f32 0.5, %v2594
        %v2596 = vsub.f32 1.5, %v2595
        %v2597 = vmul.f32 %v2592, %v2596
        %vm2598 = vweird.f32 %v2434
        %vm2599 = vweird.f32 %v2592
        %vm2600 = vmor %vm2598, %vm2599
        %v2601 = vsel %vm2600, %v2592, %v2597
        %v2602 = vrsqrt.pop %v2435
        %v2603 = vmul.f32 %v2602, %v2435
        %v2604 = vmul.f32 %v2603, %v2602
        %v2605 = vmul.f32 0.5, %v2604
        %v2606 = vsub.f32 1.5, %v2605
        %v2607 = vmul.f32 %v2602, %v2606
        %vm2608 = vweird.f32 %v2435
        %vm2609 = vweird.f32 %v2602
        %vm2610 = vmor %vm2608, %vm2609
        %v2611 = vsel %vm2610, %v2602, %v2607
        %v2612 = vrsqrt.pop %v2436
        %v2613 = vmul.f32 %v2612, %v2436
        %v2614 = vmul.f32 %v2613, %v2612
        %v2615 = vmul.f32 0.5, %v2614
        %v2616 = vsub.f32 1.5, %v2615
        %v2617 = vmul.f32 %v2612, %v2616
        %vm2618 = vweird.f32 %v2436
        %vm2619 = vweird.f32 %v2612
        %vm2620 = vmor %vm2618, %vm2619
        %v2621 = vsel %vm2620, %v2612, %v2617
        %v2622 = vrsqrt.pop %v2437
        %v2623 = vmul.f32 %v2622, %v2437
        %v2624 = vmul.f32 %v2623, %v2622
        %v2625 = vmul.f32 0.5, %v2624
        %v2626 = vsub.f32 1.5, %v2625
        %v2627 = vmul.f32 %v2622, %v2626
        %vm2628 = vweird.f32 %v2437
        %vm2629 = vweird.f32 %v2622
        %vm2630 = vmor %vm2628, %vm2629
        %v2631 = vsel %vm2630, %v2622, %v2627
        %v2632 = vrsqrt.pop %v2438
        %v2633 = vmul.f32 %v2632, %v2438
        %v2634 = vmul.f32 %v2633, %v2632
        %v2635 = vmul.f32 0.5, %v2634
        %v2636 = vsub.f32 1.5, %v2635
        %v2637 = vmul.f32 %v2632, %v2636
        %vm2638 = vweird.f32 %v2438
        %vm2639 = vweird.f32 %v2632
        %vm2640 = vmor %vm2638, %vm2639
        %v2641 = vsel %vm2640, %v2632, %v2637
        %v2642 = vrsqrt.pop %v2439
        %v2643 = vmul.f32 %v2642, %v2439
        %v2644 = vmul.f32 %v2643, %v2642
        %v2645 = vmul.f32 0.5, %v2644
        %v2646 = vsub.f32 1.5, %v2645
        %v2647 = vmul.f32 %v2642, %v2646
        %vm2648 = vweird.f32 %v2439
        %vm2649 = vweird.f32 %v2642
        %vm2650 = vmor %vm2648, %vm2649
        %v2651 = vsel %vm2650, %v2642, %v2647
        %v2652 = vrsqrt.pop %v2440
        %v2653 = vmul.f32 %v2652, %v2440
        %v2654 = vmul.f32 %v2653, %v2652
        %v2655 = vmul.f32 0.5, %v2654
        %v2656 = vsub.f32 1.5, %v2655
        %v2657 = vmul.f32 %v2652, %v2656
        %vm2658 = vweird.f32 %v2440
        %vm2659 = vweird.f32 %v2652
        %vm2660 = vmor %vm2658, %vm2659
        %v2661 = vsel %vm2660, %v2652, %v2657
        %v2662 = vrsqrt.pop %v2441
        %v2663 = vmul.f32 %v2662, %v2441
        %v2664 = vmul.f32 %v2663, %v2662
        %v2665 = vmul.f32 0.5, %v2664
        %v2666 = vsub.f32 1.5, %v2665
        %v2667 = vmul.f32 %v2662, %v2666
        %vm2668 = vweird.f32 %v2441
        %vm2669 = vweird.f32 %v2662
        %vm2670 = vmor %vm2668, %vm2669
        %v2671 = vsel %vm2670, %v2662, %v2667
        %v2672 = vrsqrt.pop %v2442
        %v2673 = vmul.f32 %v2672, %v2442
        %v2674 = vmul.f32 %v2673, %v2672
        %v2675 = vmul.f32 0.5, %v2674
        %v2676 = vsub.f32 1.5, %v2675
        %v2677 = vmul.f32 %v2672, %v2676
        %vm2678 = vweird.f32 %v2442
        %vm2679 = vweird.f32 %v2672
        %vm2680 = vmor %vm2678, %vm2679
        %v2681 = vsel %vm2680, %v2672, %v2677
        %v2682 = vrsqrt.pop %v2443
        %v2683 = vmul.f32 %v2682, %v2443
        %v2684 = vmul.f32 %v2683, %v2682
        %v2685 = vmul.f32 0.5, %v2684
        %v2686 = vsub.f32 1.5, %v2685
        %v2687 = vmul.f32 %v2682, %v2686
        %vm2688 = vweird.f32 %v2443
        %vm2689 = vweird.f32 %v2682
        %vm2690 = vmor %vm2688, %vm2689
        %v2691 = vsel %vm2690, %v2682, %v2687
        %v2692 = vrsqrt.pop %v2444
        %v2693 = vmul.f32 %v2692, %v2444
        %v2694 = vmul.f32 %v2693, %v2692
        %v2695 = vmul.f32 0.5, %v2694
        %v2696 = vsub.f32 1.5, %v2695
        %v2697 = vmul.f32 %v2692, %v2696
        %vm2698 = vweird.f32 %v2444
        %vm2699 = vweird.f32 %v2692
        %vm2700 = vmor %vm2698, %vm2699
        %v2701 = vsel %vm2700, %v2692, %v2697
        %v2702 = vrsqrt.pop %v2445
        %v2703 = vmul.f32 %v2702, %v2445
        %v2704 = vmul.f32 %v2703, %v2702
        %v2705 = vmul.f32 0.5, %v2704
        %v2706 = vsub.f32 1.5, %v2705
        %v2707 = vmul.f32 %v2702, %v2706
        %vm2708 = vweird.f32 %v2445
        %vm2709 = vweird.f32 %v2702
        %vm2710 = vmor %vm2708, %vm2709
        %v2711 = vsel %vm2710, %v2702, %v2707
        %v2712 = vrsqrt.pop %v2446
        %v2713 = vmul.f32 %v2712, %v2446
        %v2714 = vmul.f32 %v2713, %v2712
        %v2715 = vmul.f32 0.5, %v2714
        %v2716 = vsub.f32 1.5, %v2715
        %v2717 = vmul.f32 %v2712, %v2716
        %vm2718 = vweird.f32 %v2446
        %vm2719 = vweird.f32 %v2712
        %vm2720 = vmor %vm2718, %vm2719
        %v2721 = vsel %vm2720, %v2712, %v2717
        %v2722 = vrsqrt.pop %v2447
        %v2723 = vmul.f32 %v2722, %v2447
        %v2724 = vmul.f32 %v2723, %v2722
        %v2725 = vmul.f32 0.5, %v2724
        %v2726 = vsub.f32 1.5, %v2725
        %v2727 = vmul.f32 %v2722, %v2726
        %vm2728 = vweird.f32 %v2447
        %vm2729 = vweird.f32 %v2722
        %vm2730 = vmor %vm2728, %vm2729
        %v2731 = vsel %vm2730, %v2722, %v2727
        %v2732 = vrsqrt.pop %v2448
        %v2733 = vmul.f32 %v2732, %v2448
        %v2734 = vmul.f32 %v2733, %v2732
        %v2735 = vmul.f32 0.5, %v2734
        %v2736 = vsub.f32 1.5, %v2735
        %v2737 = vmul.f32 %v2732, %v2736
        %vm2738 = vweird.f32 %v2448
        %vm2739 = vweird.f32 %v2732
        %vm2740 = vmor %vm2738, %vm2739
        %v2741 = vsel %vm2740, %v2732, %v2737
        %v2742 = vrsqrt.pop %v2449
        %v2743 = vmul.f32 %v2742, %v2449
        %v2744 = vmul.f32 %v2743, %v2742
        %v2745 = vmul.f32 0.5, %v2744
        %v2746 = vsub.f32 1.5, %v2745
        %v2747 = vmul.f32 %v2742, %v2746
        %vm2748 = vweird.f32 %v2449
        %vm2749 = vweird.f32 %v2742
        %vm2750 = vmor %vm2748, %vm2749
        %v2751 = vsel %vm2750, %v2742, %v2747
        %v2752 = vrsqrt.pop %v2450
        %v2753 = vmul.f32 %v2752, %v2450
        %v2754 = vmul.f32 %v2753, %v2752
        %v2755 = vmul.f32 0.5, %v2754
        %v2756 = vsub.f32 1.5, %v2755
        %v2757 = vmul.f32 %v2752, %v2756
        %vm2758 = vweird.f32 %v2450
        %vm2759 = vweird.f32 %v2752
        %vm2760 = vmor %vm2758, %vm2759
        %v2761 = vsel %vm2760, %v2752, %v2757
        %v2762 = vrsqrt.pop %v2451
        %v2763 = vmul.f32 %v2762, %v2451
        %v2764 = vmul.f32 %v2763, %v2762
        %v2765 = vmul.f32 0.5, %v2764
        %v2766 = vsub.f32 1.5, %v2765
        %v2767 = vmul.f32 %v2762, %v2766
        %vm2768 = vweird.f32 %v2451
        %vm2769 = vweird.f32 %v2762
        %vm2770 = vmor %vm2768, %vm2769
        %v2771 = vsel %vm2770, %v2762, %v2767
        %v2772 = vmul.f32 %v2260, %v2461
        %v2773 = vmul.f32 %v2261, %v2471
        %v2774 = vmul.f32 %v2262, %v2481
        %v2775 = vmul.f32 %v2263, %v2491
        %v2776 = vmul.f32 %v2264, %v2501
        %v2777 = vmul.f32 %v2265, %v2511
        %v2778 = vmul.f32 %v2266, %v2521
        %v2779 = vmul.f32 %v2267, %v2531
        %v2780 = vmul.f32 %v2268, %v2541
        %v2781 = vmul.f32 %v2269, %v2551
        %v2782 = vmul.f32 %v2270, %v2561
        %v2783 = vmul.f32 %v2271, %v2571
        %v2784 = vmul.f32 %v2272, %v2581
        %v2785 = vmul.f32 %v2273, %v2591
        %v2786 = vmul.f32 %v2274, %v2601
        %v2787 = vmul.f32 %v2275, %v2611
        %v2788 = vmul.f32 %v2276, %v2621
        %v2789 = vmul.f32 %v2277, %v2631
        %v2790 = vmul.f32 %v2278, %v2641
        %v2791 = vmul.f32 %v2279, %v2651
        %v2792 = vmul.f32 %v2280, %v2661
        %v2793 = vmul.f32 %v2281, %v2671
        %v2794 = vmul.f32 %v2282, %v2681
        %v2795 = vmul.f32 %v2283, %v2691
        %v2796 = vmul.f32 %v2284, %v2701
        %v2797 = vmul.f32 %v2285, %v2711
        %v2798 = vmul.f32 %v2286, %v2721
        %v2799 = vmul.f32 %v2287, %v2731
        %v2800 = vmul.f32 %v2288, %v2741
        %v2801 = vmul.f32 %v2289, %v2751
        %v2802 = vmul.f32 %v2290, %v2761
        %v2803 = vmul.f32 %v2291, %v2771
        %v2805 = vperm.slane %v2155, 0
        %v2807 = vmul.f32 %v2772, %v2805
        %v2808 = vmul.f32 %v2773, %v2805
        %v2809 = vmul.f32 %v2774, %v2805
        %v2810 = vmul.f32 %v2775, %v2805
        %v2811 = vmul.f32 %v2776, %v2805
        %v2812 = vmul.f32 %v2777, %v2805
        %v2813 = vmul.f32 %v2778, %v2805
        %v2814 = vmul.f32 %v2779, %v2805
        %v2815 = vmul.f32 %v2780, %v2805
        %v2816 = vmul.f32 %v2781, %v2805
        %v2817 = vmul.f32 %v2782, %v2805
        %v2818 = vmul.f32 %v2783, %v2805
        %v2819 = vmul.f32 %v2784, %v2805
        %v2820 = vmul.f32 %v2785, %v2805
        %v2821 = vmul.f32 %v2786, %v2805
        %v2822 = vmul.f32 %v2787, %v2805
        %v2823 = vmul.f32 %v2788, %v2805
        %v2824 = vmul.f32 %v2789, %v2805
        %v2825 = vmul.f32 %v2790, %v2805
        %v2826 = vmul.f32 %v2791, %v2805
        %v2827 = vmul.f32 %v2792, %v2805
        %v2828 = vmul.f32 %v2793, %v2805
        %v2829 = vmul.f32 %v2794, %v2805
        %v2830 = vmul.f32 %v2795, %v2805
        %v2831 = vmul.f32 %v2796, %v2805
        %v2832 = vmul.f32 %v2797, %v2805
        %v2833 = vmul.f32 %v2798, %v2805
        %v2834 = vmul.f32 %v2799, %v2805
        %v2835 = vmul.f32 %v2800, %v2805
        %v2836 = vmul.f32 %v2801, %v2805
        %v2837 = vmul.f32 %v2802, %v2805
        %v2838 = vmul.f32 %v2803, %v2805
        %v2840 = vperm.slane %v2156, 0
        %v2842 = vadd.f32 %v2807, %v2840
        %v2843 = vadd.f32 %v2808, %v2840
        %v2844 = vadd.f32 %v2809, %v2840
        %v2845 = vadd.f32 %v2810, %v2840
        %v2846 = vadd.f32 %v2811, %v2840
        %v2847 = vadd.f32 %v2812, %v2840
        %v2848 = vadd.f32 %v2813, %v2840
        %v2849 = vadd.f32 %v2814, %v2840
        %v2850 = vadd.f32 %v2815, %v2840
        %v2851 = vadd.f32 %v2816, %v2840
        %v2852 = vadd.f32 %v2817, %v2840
        %v2853 = vadd.f32 %v2818, %v2840
        %v2854 = vadd.f32 %v2819, %v2840
        %v2855 = vadd.f32 %v2820, %v2840
        %v2856 = vadd.f32 %v2821, %v2840
        %v2857 = vadd.f32 %v2822, %v2840
        %v2858 = vadd.f32 %v2823, %v2840
        %v2859 = vadd.f32 %v2824, %v2840
        %v2860 = vadd.f32 %v2825, %v2840
        %v2861 = vadd.f32 %v2826, %v2840
        %v2862 = vadd.f32 %v2827, %v2840
        %v2863 = vadd.f32 %v2828, %v2840
        %v2864 = vadd.f32 %v2829, %v2840
        %v2865 = vadd.f32 %v2830, %v2840
        %v2866 = vadd.f32 %v2831, %v2840
        %v2867 = vadd.f32 %v2832, %v2840
        %v2868 = vadd.f32 %v2833, %v2840
        %v2869 = vadd.f32 %v2834, %v2840
        %v2870 = vadd.f32 %v2835, %v2840
        %v2871 = vadd.f32 %v2836, %v2840
        %v2872 = vadd.f32 %v2837, %v2840
        %v2873 = vadd.f32 %v2838, %v2840
        %v2874 = vld [vmem:[#allocation8] sm:$0xff]
        %v2875 = vld [vmem:[#allocation8 + $0x8] sm:$0xff]
        %v2876 = vld [vmem:[#allocation8 + $0x10] sm:$0xff]
        %v2877 = vld [vmem:[#allocation8 + $0x18] sm:$0xff]
        %v2878 = vld [vmem:[#allocation8 + $0x20] sm:$0xff]
        %v2879 = vld [vmem:[#allocation8 + $0x28] sm:$0xff]
        %v2880 = vld [vmem:[#allocation8 + $0x30] sm:$0xff]
        %v2881 = vld [vmem:[#allocation8 + $0x38] sm:$0xff]
        %v2882 = vld [vmem:[#allocation8 + $0x40] sm:$0xff]
        %v2883 = vld [vmem:[#allocation8 + $0x48] sm:$0xff]
        %v2884 = vld [vmem:[#allocation8 + $0x50] sm:$0xff]
        %v2885 = vld [vmem:[#allocation8 + $0x58] sm:$0xff]
        %v2886 = vld [vmem:[#allocation8 + $0x60] sm:$0xff]
        %v2887 = vld [vmem:[#allocation8 + $0x68] sm:$0xff]
        %v2888 = vld [vmem:[#allocation8 + $0x70] sm:$0xff]
        %v2889 = vld [vmem:[#allocation8 + $0x78] sm:$0xff]
        %v2890 = vld [vmem:[%s3] sm:$0x1]
        %v2892 = vperm.slane %v2890, 0
        %2894 = vmatpush.msra.mxu0 %v2889
        %2895 = vmatpush.msra.mxu0 %v2888
        %2896 = vmatpush.msra.mxu0 %v2887
        %2897 = vmatpush.msra.mxu0 %v2886
        %2898 = vmatpush.msra.mxu0 %v2885
        %2899 = vmatpush.msra.mxu0 %v2884
        %2900 = vmatpush.msra.mxu0 %v2883
        %2901 = vmatpush.msra.mxu0 %v2882
        %2902 = vmatpush.msra.mxu0 %v2881
        %2903 = vmatpush.msra.mxu0 %v2880
        %2904 = vmatpush.msra.mxu0 %v2879
        %2905 = vmatpush.msra.mxu0 %v2878
        %2906 = vmatpush.msra.mxu0 %v2877
        %2907 = vmatpush.msra.mxu0 %v2876
        %2908 = vmatpush.msra.mxu0 %v2875
        %2909 = vmatpush.msra.mxu0 %v2874
        %2910 = vmatmul.f32.gmra.mxu0 %v2842
        %v2911 = vpop.f32.mrf.mxu0
        %v2912 = vadd.f32 %v2892, %v2911
        %2913 = vmatmul.f32.gmra.mxu0 %v2843
        %v2914 = vpop.f32.mrf.mxu0
        %v2915 = vadd.f32 %v2892, %v2914
        %2916 = vmatmul.f32.gmra.mxu0 %v2844
        %v2917 = vpop.f32.mrf.mxu0
        %v2918 = vadd.f32 %v2892, %v2917
        %2919 = vmatmul.f32.gmra.mxu0 %v2845
        %v2920 = vpop.f32.mrf.mxu0
        %v2921 = vadd.f32 %v2892, %v2920
        %2922 = vmatmul.f32.gmra.mxu0 %v2846
        %v2923 = vpop.f32.mrf.mxu0
        %v2924 = vadd.f32 %v2892, %v2923
        %2925 = vmatmul.f32.gmra.mxu0 %v2847
        %v2926 = vpop.f32.mrf.mxu0
        %v2927 = vadd.f32 %v2892, %v2926
        %2928 = vmatmul.f32.gmra.mxu0 %v2848
        %v2929 = vpop.f32.mrf.mxu0
        %v2930 = vadd.f32 %v2892, %v2929
        %2931 = vmatmul.f32.gmra.mxu0 %v2849
        %v2932 = vpop.f32.mrf.mxu0
        %v2933 = vadd.f32 %v2892, %v2932
        %2934 = vmatmul.f32.gmra.mxu0 %v2850
        %v2935 = vpop.f32.mrf.mxu0
        %v2936 = vadd.f32 %v2892, %v2935
        %2937 = vmatmul.f32.gmra.mxu0 %v2851
        %v2938 = vpop.f32.mrf.mxu0
        %v2939 = vadd.f32 %v2892, %v2938
        %2940 = vmatmul.f32.gmra.mxu0 %v2852
        %v2941 = vpop.f32.mrf.mxu0
        %v2942 = vadd.f32 %v2892, %v2941
        %2943 = vmatmul.f32.gmra.mxu0 %v2853
        %v2944 = vpop.f32.mrf.mxu0
        %v2945 = vadd.f32 %v2892, %v2944
        %2946 = vmatmul.f32.gmra.mxu0 %v2854
        %v2947 = vpop.f32.mrf.mxu0
        %v2948 = vadd.f32 %v2892, %v2947
        %2949 = vmatmul.f32.gmra.mxu0 %v2855
        %v2950 = vpop.f32.mrf.mxu0
        %v2951 = vadd.f32 %v2892, %v2950
        %2952 = vmatmul.f32.gmra.mxu0 %v2856
        %v2953 = vpop.f32.mrf.mxu0
        %v2954 = vadd.f32 %v2892, %v2953
        %2955 = vmatmul.f32.gmra.mxu0 %v2857
        %v2956 = vpop.f32.mrf.mxu0
        %v2957 = vadd.f32 %v2892, %v2956
        %2958 = vmatmul.f32.gmra.mxu0 %v2858
        %v2959 = vpop.f32.mrf.mxu0
        %v2960 = vadd.f32 %v2892, %v2959
        %2961 = vmatmul.f32.gmra.mxu0 %v2859
        %v2962 = vpop.f32.mrf.mxu0
        %v2963 = vadd.f32 %v2892, %v2962
        %2964 = vmatmul.f32.gmra.mxu0 %v2860
        %v2965 = vpop.f32.mrf.mxu0
        %v2966 = vadd.f32 %v2892, %v2965
        %2967 = vmatmul.f32.gmra.mxu0 %v2861
        %v2968 = vpop.f32.mrf.mxu0
        %v2969 = vadd.f32 %v2892, %v2968
        %2970 = vmatmul.f32.gmra.mxu0 %v2862
        %v2971 = vpop.f32.mrf.mxu0
        %v2972 = vadd.f32 %v2892, %v2971
        %2973 = vmatmul.f32.gmra.mxu0 %v2863
        %v2974 = vpop.f32.mrf.mxu0
        %v2975 = vadd.f32 %v2892, %v2974
        %2976 = vmatmul.f32.gmra.mxu0 %v2864
        %v2977 = vpop.f32.mrf.mxu0
        %v2978 = vadd.f32 %v2892, %v2977
        %2979 = vmatmul.f32.gmra.mxu0 %v2865
        %v2980 = vpop.f32.mrf.mxu0
        %v2981 = vadd.f32 %v2892, %v2980
        %2982 = vmatmul.f32.gmra.mxu0 %v2866
        %v2983 = vpop.f32.mrf.mxu0
        %v2984 = vadd.f32 %v2892, %v2983
        %2985 = vmatmul.f32.gmra.mxu0 %v2867
        %v2986 = vpop.f32.mrf.mxu0
        %v2987 = vadd.f32 %v2892, %v2986
        %2988 = vmatmul.f32.gmra.mxu0 %v2868
        %v2989 = vpop.f32.mrf.mxu0
        %v2990 = vadd.f32 %v2892, %v2989
        %2991 = vmatmul.f32.gmra.mxu0 %v2869
        %v2992 = vpop.f32.mrf.mxu0
        %v2993 = vadd.f32 %v2892, %v2992
        %2994 = vmatmul.f32.gmra.mxu0 %v2870
        %v2995 = vpop.f32.mrf.mxu0
        %v2996 = vadd.f32 %v2892, %v2995
        %2997 = vmatmul.f32.gmra.mxu0 %v2871
        %v2998 = vpop.f32.mrf.mxu0
        %v2999 = vadd.f32 %v2892, %v2998
        %3000 = vmatmul.f32.gmra.mxu0 %v2872
        %v3001 = vpop.f32.mrf.mxu0
        %v3002 = vadd.f32 %v2892, %v3001
        %3003 = vmatmul.f32.gmra.mxu0 %v2873
        %v3004 = vpop.f32.mrf.mxu0
        %v3005 = vadd.f32 %v2892, %v3004
        %3006 = vdwg.mxu0
        %v3007 = vmax.f32 %v2912, 0.0
        %v3008 = vmax.f32 %v2915, 0.0
        %v3009 = vmax.f32 %v2918, 0.0
        %v3010 = vmax.f32 %v2921, 0.0
        %v3011 = vmax.f32 %v2924, 0.0
        %v3012 = vmax.f32 %v2927, 0.0
        %v3013 = vmax.f32 %v2930, 0.0
        %v3014 = vmax.f32 %v2933, 0.0
        %v3015 = vmax.f32 %v2936, 0.0
        %v3016 = vmax.f32 %v2939, 0.0
        %v3017 = vmax.f32 %v2942, 0.0
        %v3018 = vmax.f32 %v2945, 0.0
        %v3019 = vmax.f32 %v2948, 0.0
        %v3020 = vmax.f32 %v2951, 0.0
        %v3021 = vmax.f32 %v2954, 0.0
        %v3022 = vmax.f32 %v2957, 0.0
        %v3023 = vmax.f32 %v2960, 0.0
        %v3024 = vmax.f32 %v2963, 0.0
        %v3025 = vmax.f32 %v2966, 0.0
        %v3026 = vmax.f32 %v2969, 0.0
        %v3027 = vmax.f32 %v2972, 0.0
        %v3028 = vmax.f32 %v2975, 0.0
        %v3029 = vmax.f32 %v2978, 0.0
        %v3030 = vmax.f32 %v2981, 0.0
        %v3031 = vmax.f32 %v2984, 0.0
        %v3032 = vmax.f32 %v2987, 0.0
        %v3033 = vmax.f32 %v2990, 0.0
        %v3034 = vmax.f32 %v2993, 0.0
        %v3035 = vmax.f32 %v2996, 0.0
        %v3036 = vmax.f32 %v2999, 0.0
        %v3037 = vmax.f32 %v3002, 0.0
        %v3038 = vmax.f32 %v3005, 0.0
        %v3039 = vld [vmem:[#allocation9] sm:$0xff]
        %v3040 = vld [vmem:[#allocation9 + $0x8] sm:$0xff]
        %v3041 = vld [vmem:[#allocation9 + $0x10] sm:$0xff]
        %v3042 = vld [vmem:[#allocation9 + $0x18] sm:$0xff]
        %v3043 = vld [vmem:[#allocation9 + $0x20] sm:$0xff]
        %v3044 = vld [vmem:[#allocation9 + $0x28] sm:$0xff]
        %v3045 = vld [vmem:[#allocation9 + $0x30] sm:$0xff]
        %v3046 = vld [vmem:[#allocation9 + $0x38] sm:$0xff]
        %v3047 = vld [vmem:[#allocation9 + $0x40] sm:$0xff]
        %v3048 = vld [vmem:[#allocation9 + $0x48] sm:$0xff]
        %v3049 = vld [vmem:[#allocation9 + $0x50] sm:$0xff]
        %v3050 = vld [vmem:[#allocation9 + $0x58] sm:$0xff]
        %v3051 = vld [vmem:[#allocation9 + $0x60] sm:$0xff]
        %v3052 = vld [vmem:[#allocation9 + $0x68] sm:$0xff]
        %v3053 = vld [vmem:[#allocation9 + $0x70] sm:$0xff]
        %v3054 = vld [vmem:[#allocation9 + $0x78] sm:$0xff]
        %v3055 = vld [vmem:[%s5] sm:$0x1]
        %v3057 = vperm.slane %v3055, 0
        %3059 = vmatpush.msra.mxu0 %v3054
        %3060 = vmatpush.msra.mxu0 %v3053
        %3061 = vmatpush.msra.mxu0 %v3052
        %3062 = vmatpush.msra.mxu0 %v3051
        %3063 = vmatpush.msra.mxu0 %v3050
        %3064 = vmatpush.msra.mxu0 %v3049
        %3065 = vmatpush.msra.mxu0 %v3048
        %3066 = vmatpush.msra.mxu0 %v3047
        %3067 = vmatpush.msra.mxu0 %v3046
        %3068 = vmatpush.msra.mxu0 %v3045
        %3069 = vmatpush.msra.mxu0 %v3044
        %3070 = vmatpush.msra.mxu0 %v3043
        %3071 = vmatpush.msra.mxu0 %v3042
        %3072 = vmatpush.msra.mxu0 %v3041
        %3073 = vmatpush.msra.mxu0 %v3040
        %3074 = vmatpush.msra.mxu0 %v3039
        %3075 = vmatmul.f32.gmra.mxu0 %v3007
        %v3076 = vpop.f32.mrf.mxu0
        %v3077 = vadd.f32 %v3057, %v3076
        %3078 = vmatmul.f32.gmra.mxu0 %v3008
        %v3079 = vpop.f32.mrf.mxu0
        %v3080 = vadd.f32 %v3057, %v3079
        %3081 = vmatmul.f32.gmra.mxu0 %v3009
        %v3082 = vpop.f32.mrf.mxu0
        %v3083 = vadd.f32 %v3057, %v3082
        %3084 = vmatmul.f32.gmra.mxu0 %v3010
        %v3085 = vpop.f32.mrf.mxu0
        %v3086 = vadd.f32 %v3057, %v3085
        %3087 = vmatmul.f32.gmra.mxu0 %v3011
        %v3088 = vpop.f32.mrf.mxu0
        %v3089 = vadd.f32 %v3057, %v3088
        %3090 = vmatmul.f32.gmra.mxu0 %v3012
        %v3091 = vpop.f32.mrf.mxu0
        %v3092 = vadd.f32 %v3057, %v3091
        %3093 = vmatmul.f32.gmra.mxu0 %v3013
        %v3094 = vpop.f32.mrf.mxu0
        %v3095 = vadd.f32 %v3057, %v3094
        %3096 = vmatmul.f32.gmra.mxu0 %v3014
        %v3097 = vpop.f32.mrf.mxu0
        %v3098 = vadd.f32 %v3057, %v3097
        %3099 = vmatmul.f32.gmra.mxu0 %v3015
        %v3100 = vpop.f32.mrf.mxu0
        %v3101 = vadd.f32 %v3057, %v3100
        %3102 = vmatmul.f32.gmra.mxu0 %v3016
        %v3103 = vpop.f32.mrf.mxu0
        %v3104 = vadd.f32 %v3057, %v3103
        %3105 = vmatmul.f32.gmra.mxu0 %v3017
        %v3106 = vpop.f32.mrf.mxu0
        %v3107 = vadd.f32 %v3057, %v3106
        %3108 = vmatmul.f32.gmra.mxu0 %v3018
        %v3109 = vpop.f32.mrf.mxu0
        %v3110 = vadd.f32 %v3057, %v3109
        %3111 = vmatmul.f32.gmra.mxu0 %v3019
        %v3112 = vpop.f32.mrf.mxu0
        %v3113 = vadd.f32 %v3057, %v3112
        %3114 = vmatmul.f32.gmra.mxu0 %v3020
        %v3115 = vpop.f32.mrf.mxu0
        %v3116 = vadd.f32 %v3057, %v3115
        %3117 = vmatmul.f32.gmra.mxu0 %v3021
        %v3118 = vpop.f32.mrf.mxu0
        %v3119 = vadd.f32 %v3057, %v3118
        %3120 = vmatmul.f32.gmra.mxu0 %v3022
        %v3121 = vpop.f32.mrf.mxu0
        %v3122 = vadd.f32 %v3057, %v3121
        %3123 = vmatmul.f32.gmra.mxu0 %v3023
        %v3124 = vpop.f32.mrf.mxu0
        %v3125 = vadd.f32 %v3057, %v3124
        %3126 = vmatmul.f32.gmra.mxu0 %v3024
        %v3127 = vpop.f32.mrf.mxu0
        %v3128 = vadd.f32 %v3057, %v3127
        %3129 = vmatmul.f32.gmra.mxu0 %v3025
        %v3130 = vpop.f32.mrf.mxu0
        %v3131 = vadd.f32 %v3057, %v3130
        %3132 = vmatmul.f32.gmra.mxu0 %v3026
        %v3133 = vpop.f32.mrf.mxu0
        %v3134 = vadd.f32 %v3057, %v3133
        %3135 = vmatmul.f32.gmra.mxu0 %v3027
        %v3136 = vpop.f32.mrf.mxu0
        %v3137 = vadd.f32 %v3057, %v3136
        %3138 = vmatmul.f32.gmra.mxu0 %v3028
        %v3139 = vpop.f32.mrf.mxu0
        %v3140 = vadd.f32 %v3057, %v3139
        %3141 = vmatmul.f32.gmra.mxu0 %v3029
        %v3142 = vpop.f32.mrf.mxu0
        %v3143 = vadd.f32 %v3057, %v3142
        %3144 = vmatmul.f32.gmra.mxu0 %v3030
        %v3145 = vpop.f32.mrf.mxu0
        %v3146 = vadd.f32 %v3057, %v3145
        %3147 = vmatmul.f32.gmra.mxu0 %v3031
        %v3148 = vpop.f32.mrf.mxu0
        %v3149 = vadd.f32 %v3057, %v3148
        %3150 = vmatmul.f32.gmra.mxu0 %v3032
        %v3151 = vpop.f32.mrf.mxu0
        %v3152 = vadd.f32 %v3057, %v3151
        %3153 = vmatmul.f32.gmra.mxu0 %v3033
        %v3154 = vpop.f32.mrf.mxu0
        %v3155 = vadd.f32 %v3057, %v3154
        %3156 = vmatmul.f32.gmra.mxu0 %v3034
        %v3157 = vpop.f32.mrf.mxu0
        %v3158 = vadd.f32 %v3057, %v3157
        %3159 = vmatmul.f32.gmra.mxu0 %v3035
        %v3160 = vpop.f32.mrf.mxu0
        %v3161 = vadd.f32 %v3057, %v3160
        %3162 = vmatmul.f32.gmra.mxu0 %v3036
        %v3163 = vpop.f32.mrf.mxu0
        %v3164 = vadd.f32 %v3057, %v3163
        %3165 = vmatmul.f32.gmra.mxu0 %v3037
        %v3166 = vpop.f32.mrf.mxu0
        %v3167 = vadd.f32 %v3057, %v3166
        %3168 = vmatmul.f32.gmra.mxu0 %v3038
        %v3169 = vpop.f32.mrf.mxu0
        %v3170 = vadd.f32 %v3057, %v3169
        %3171 = vdwg.mxu0
        %v3172 = vadd.f32 %v2842, %v3077
        %v3173 = vadd.f32 %v2843, %v3080
        %v3174 = vadd.f32 %v2844, %v3083
        %v3175 = vadd.f32 %v2845, %v3086
        %v3176 = vadd.f32 %v2846, %v3089
        %v3177 = vadd.f32 %v2847, %v3092
        %v3178 = vadd.f32 %v2848, %v3095
        %v3179 = vadd.f32 %v2849, %v3098
        %v3180 = vadd.f32 %v2850, %v3101
        %v3181 = vadd.f32 %v2851, %v3104
        %v3182 = vadd.f32 %v2852, %v3107
        %v3183 = vadd.f32 %v2853, %v3110
        %v3184 = vadd.f32 %v2854, %v3113
        %v3185 = vadd.f32 %v2855, %v3116
        %v3186 = vadd.f32 %v2856, %v3119
        %v3187 = vadd.f32 %v2857, %v3122
        %v3188 = vadd.f32 %v2858, %v3125
        %v3189 = vadd.f32 %v2859, %v3128
        %v3190 = vadd.f32 %v2860, %v3131
        %v3191 = vadd.f32 %v2861, %v3134
        %v3192 = vadd.f32 %v2862, %v3137
        %v3193 = vadd.f32 %v2863, %v3140
        %v3194 = vadd.f32 %v2864, %v3143
        %v3195 = vadd.f32 %v2865, %v3146
        %v3196 = vadd.f32 %v2866, %v3149
        %v3197 = vadd.f32 %v2867, %v3152
        %v3198 = vadd.f32 %v2868, %v3155
        %v3199 = vadd.f32 %v2869, %v3158
        %v3200 = vadd.f32 %v2870, %v3161
        %v3201 = vadd.f32 %v2871, %v3164
        %v3202 = vadd.f32 %v2872, %v3167
        %v3203 = vadd.f32 %v2873, %v3170
        %v3204 = vld [vmem:[#allocation12] sm:$0x1]
        %v3205 = vld [vmem:[%s9] sm:$0x1]
        %3206 = vadd.xlane.f32.xlu0 %v3172
        %v3207 = vpop.xlane.xlu0 %3206
        %3208 = vadd.xlane.f32.xlu0 %v3173
        %v3209 = vpop.xlane.xlu0 %3208
        %3210 = vadd.xlane.f32.xlu0 %v3174
        %v3211 = vpop.xlane.xlu0 %3210
        %3212 = vadd.xlane.f32.xlu0 %v3175
        %v3213 = vpop.xlane.xlu0 %3212
        %3214 = vadd.xlane.f32.xlu0 %v3176
        %v3215 = vpop.xlane.xlu0 %3214
        %3216 = vadd.xlane.f32.xlu0 %v3177
        %v3217 = vpop.xlane.xlu0 %3216
        %3218 = vadd.xlane.f32.xlu0 %v3178
        %v3219 = vpop.xlane.xlu0 %3218
        %3220 = vadd.xlane.f32.xlu0 %v3179
        %v3221 = vpop.xlane.xlu0 %3220
        %3222 = vadd.xlane.f32.xlu0 %v3180
        %v3223 = vpop.xlane.xlu0 %3222
        %3224 = vadd.xlane.f32.xlu0 %v3181
        %v3225 = vpop.xlane.xlu0 %3224
        %3226 = vadd.xlane.f32.xlu0 %v3182
        %v3227 = vpop.xlane.xlu0 %3226
        %3228 = vadd.xlane.f32.xlu0 %v3183
        %v3229 = vpop.xlane.xlu0 %3228
        %3230 = vadd.xlane.f32.xlu0 %v3184
        %v3231 = vpop.xlane.xlu0 %3230
        %3232 = vadd.xlane.f32.xlu0 %v3185
        %v3233 = vpop.xlane.xlu0 %3232
        %3234 = vadd.xlane.f32.xlu0 %v3186
        %v3235 = vpop.xlane.xlu0 %3234
        %3236 = vadd.xlane.f32.xlu0 %v3187
        %v3237 = vpop.xlane.xlu0 %3236
        %3238 = vadd.xlane.f32.xlu0 %v3188
        %v3239 = vpop.xlane.xlu0 %3238
        %3240 = vadd.xlane.f32.xlu0 %v3189
        %v3241 = vpop.xlane.xlu0 %3240
        %3242 = vadd.xlane.f32.xlu0 %v3190
        %v3243 = vpop.xlane.xlu0 %3242
        %3244 = vadd.xlane.f32.xlu0 %v3191
        %v3245 = vpop.xlane.xlu0 %3244
        %3246 = vadd.xlane.f32.xlu0 %v3192
        %v3247 = vpop.xlane.xlu0 %3246
        %3248 = vadd.xlane.f32.xlu0 %v3193
        %v3249 = vpop.xlane.xlu0 %3248
        %3250 = vadd.xlane.f32.xlu0 %v3194
        %v3251 = vpop.xlane.xlu0 %3250
        %3252 = vadd.xlane.f32.xlu0 %v3195
        %v3253 = vpop.xlane.xlu0 %3252
        %3254 = vadd.xlane.f32.xlu0 %v3196
        %v3255 = vpop.xlane.xlu0 %3254
        %3256 = vadd.xlane.f32.xlu0 %v3197
        %v3257 = vpop.xlane.xlu0 %3256
        %3258 = vadd.xlane.f32.xlu0 %v3198
        %v3259 = vpop.xlane.xlu0 %3258
        %3260 = vadd.xlane.f32.xlu0 %v3199
        %v3261 = vpop.xlane.xlu0 %3260
        %3262 = vadd.xlane.f32.xlu0 %v3200
        %v3263 = vpop.xlane.xlu0 %3262
        %3264 = vadd.xlane.f32.xlu0 %v3201
        %v3265 = vpop.xlane.xlu0 %3264
        %3266 = vadd.xlane.f32.xlu0 %v3202
        %v3267 = vpop.xlane.xlu0 %3266
        %3268 = vadd.xlane.f32.xlu0 %v3203
        %v3269 = vpop.xlane.xlu0 %3268
        %v3270 = vmul.f32 %v3207, %v2227
        %v3271 = vmul.f32 %v3209, %v2227
        %v3272 = vmul.f32 %v3211, %v2227
        %v3273 = vmul.f32 %v3213, %v2227
        %v3274 = vmul.f32 %v3215, %v2227
        %v3275 = vmul.f32 %v3217, %v2227
        %v3276 = vmul.f32 %v3219, %v2227
        %v3277 = vmul.f32 %v3221, %v2227
        %v3278 = vmul.f32 %v3223, %v2227
        %v3279 = vmul.f32 %v3225, %v2227
        %v3280 = vmul.f32 %v3227, %v2227
        %v3281 = vmul.f32 %v3229, %v2227
        %v3282 = vmul.f32 %v3231, %v2227
        %v3283 = vmul.f32 %v3233, %v2227
        %v3284 = vmul.f32 %v3235, %v2227
        %v3285 = vmul.f32 %v3237, %v2227
        %v3286 = vmul.f32 %v3239, %v2227
        %v3287 = vmul.f32 %v3241, %v2227
        %v3288 = vmul.f32 %v3243, %v2227
        %v3289 = vmul.f32 %v3245, %v2227
        %v3290 = vmul.f32 %v3247, %v2227
        %v3291 = vmul.f32 %v3249, %v2227
        %v3292 = vmul.f32 %v3251, %v2227
        %v3293 = vmul.f32 %v3253, %v2227
        %v3294 = vmul.f32 %v3255, %v2227
        %v3295 = vmul.f32 %v3257, %v2227
        %v3296 = vmul.f32 %v3259, %v2227
        %v3297 = vmul.f32 %v3261, %v2227
        %v3298 = vmul.f32 %v3263, %v2227
        %v3299 = vmul.f32 %v3265, %v2227
        %v3300 = vmul.f32 %v3267, %v2227
        %v3301 = vmul.f32 %v3269, %v2227
        %v3302 = vsub.f32 %v3172, %v3270
        %v3303 = vsub.f32 %v3173, %v3271
        %v3304 = vsub.f32 %v3174, %v3272
        %v3305 = vsub.f32 %v3175, %v3273
        %v3306 = vsub.f32 %v3176, %v3274
        %v3307 = vsub.f32 %v3177, %v3275
        %v3308 = vsub.f32 %v3178, %v3276
        %v3309 = vsub.f32 %v3179, %v3277
        %v3310 = vsub.f32 %v3180, %v3278
        %v3311 = vsub.f32 %v3181, %v3279
        %v3312 = vsub.f32 %v3182, %v3280
        %v3313 = vsub.f32 %v3183, %v3281
        %v3314 = vsub.f32 %v3184, %v3282
        %v3315 = vsub.f32 %v3185, %v3283
        %v3316 = vsub.f32 %v3186, %v3284
        %v3317 = vsub.f32 %v3187, %v3285
        %v3318 = vsub.f32 %v3188, %v3286
        %v3319 = vsub.f32 %v3189, %v3287
        %v3320 = vsub.f32 %v3190, %v3288
        %v3321 = vsub.f32 %v3191, %v3289
        %v3322 = vsub.f32 %v3192, %v3290
        %v3323 = vsub.f32 %v3193, %v3291
        %v3324 = vsub.f32 %v3194, %v3292
        %v3325 = vsub.f32 %v3195, %v3293
        %v3326 = vsub.f32 %v3196, %v3294
        %v3327 = vsub.f32 %v3197, %v3295
        %v3328 = vsub.f32 %v3198, %v3296
        %v3329 = vsub.f32 %v3199, %v3297
        %v3330 = vsub.f32 %v3200, %v3298
        %v3331 = vsub.f32 %v3201, %v3299
        %v3332 = vsub.f32 %v3202, %v3300
        %v3333 = vsub.f32 %v3203, %v3301
        %v3334 = vmul.f32 %v3302, %v3302
        %v3335 = vmul.f32 %v3303, %v3303
        %v3336 = vmul.f32 %v3304, %v3304
        %v3337 = vmul.f32 %v3305, %v3305
        %v3338 = vmul.f32 %v3306, %v3306
        %v3339 = vmul.f32 %v3307, %v3307
        %v3340 = vmul.f32 %v3308, %v3308
        %v3341 = vmul.f32 %v3309, %v3309
        %v3342 = vmul.f32 %v3310, %v3310
        %v3343 = vmul.f32 %v3311, %v3311
        %v3344 = vmul.f32 %v3312, %v3312
        %v3345 = vmul.f32 %v3313, %v3313
        %v3346 = vmul.f32 %v3314, %v3314
        %v3347 = vmul.f32 %v3315, %v3315
        %v3348 = vmul.f32 %v3316, %v3316
        %v3349 = vmul.f32 %v3317, %v3317
        %v3350 = vmul.f32 %v3318, %v3318
        %v3351 = vmul.f32 %v3319, %v3319
        %v3352 = vmul.f32 %v3320, %v3320
        %v3353 = vmul.f32 %v3321, %v3321
        %v3354 = vmul.f32 %v3322, %v3322
        %v3355 = vmul.f32 %v3323, %v3323
        %v3356 = vmul.f32 %v3324, %v3324
        %v3357 = vmul.f32 %v3325, %v3325
        %v3358 = vmul.f32 %v3326, %v3326
        %v3359 = vmul.f32 %v3327, %v3327
        %v3360 = vmul.f32 %v3328, %v3328
        %v3361 = vmul.f32 %v3329, %v3329
        %v3362 = vmul.f32 %v3330, %v3330
        %v3363 = vmul.f32 %v3331, %v3331
        %v3364 = vmul.f32 %v3332, %v3332
        %v3365 = vmul.f32 %v3333, %v3333
        %3366 = vadd.xlane.f32.xlu0 %v3334
        %v3367 = vpop.xlane.xlu0 %3366
        %3368 = vadd.xlane.f32.xlu0 %v3335
        %v3369 = vpop.xlane.xlu0 %3368
        %3370 = vadd.xlane.f32.xlu0 %v3336
        %v3371 = vpop.xlane.xlu0 %3370
        %3372 = vadd.xlane.f32.xlu0 %v3337
        %v3373 = vpop.xlane.xlu0 %3372
        %3374 = vadd.xlane.f32.xlu0 %v3338
        %v3375 = vpop.xlane.xlu0 %3374
        %3376 = vadd.xlane.f32.xlu0 %v3339
        %v3377 = vpop.xlane.xlu0 %3376
        %3378 = vadd.xlane.f32.xlu0 %v3340
        %v3379 = vpop.xlane.xlu0 %3378
        %3380 = vadd.xlane.f32.xlu0 %v3341
        %v3381 = vpop.xlane.xlu0 %3380
        %3382 = vadd.xlane.f32.xlu0 %v3342
        %v3383 = vpop.xlane.xlu0 %3382
        %3384 = vadd.xlane.f32.xlu0 %v3343
        %v3385 = vpop.xlane.xlu0 %3384
        %3386 = vadd.xlane.f32.xlu0 %v3344
        %v3387 = vpop.xlane.xlu0 %3386
        %3388 = vadd.xlane.f32.xlu0 %v3345
        %v3389 = vpop.xlane.xlu0 %3388
        %3390 = vadd.xlane.f32.xlu0 %v3346
        %v3391 = vpop.xlane.xlu0 %3390
        %3392 = vadd.xlane.f32.xlu0 %v3347
        %v3393 = vpop.xlane.xlu0 %3392
        %3394 = vadd.xlane.f32.xlu0 %v3348
        %v3395 = vpop.xlane.xlu0 %3394
        %3396 = vadd.xlane.f32.xlu0 %v3349
        %v3397 = vpop.xlane.xlu0 %3396
        %3398 = vadd.xlane.f32.xlu0 %v3350
        %v3399 = vpop.xlane.xlu0 %3398
        %3400 = vadd.xlane.f32.xlu0 %v3351
        %v3401 = vpop.xlane.xlu0 %3400
        %3402 = vadd.xlane.f32.xlu0 %v3352
        %v3403 = vpop.xlane.xlu0 %3402
        %3404 = vadd.xlane.f32.xlu0 %v3353
        %v3405 = vpop.xlane.xlu0 %3404
        %3406 = vadd.xlane.f32.xlu0 %v3354
        %v3407 = vpop.xlane.xlu0 %3406
        %3408 = vadd.xlane.f32.xlu0 %v3355
        %v3409 = vpop.xlane.xlu0 %3408
        %3410 = vadd.xlane.f32.xlu0 %v3356
        %v3411 = vpop.xlane.xlu0 %3410
        %3412 = vadd.xlane.f32.xlu0 %v3357
        %v3413 = vpop.xlane.xlu0 %3412
        %3414 = vadd.xlane.f32.xlu0 %v3358
        %v3415 = vpop.xlane.xlu0 %3414
        %3416 = vadd.xlane.f32.xlu0 %v3359
        %v3417 = vpop.xlane.xlu0 %3416
        %3418 = vadd.xlane.f32.xlu0 %v3360
        %v3419 = vpop.xlane.xlu0 %3418
        %3420 = vadd.xlane.f32.xlu0 %v3361
        %v3421 = vpop.xlane.xlu0 %3420
        %3422 = vadd.xlane.f32.xlu0 %v3362
        %v3423 = vpop.xlane.xlu0 %3422
        %3424 = vadd.xlane.f32.xlu0 %v3363
        %v3425 = vpop.xlane.xlu0 %3424
        %3426 = vadd.xlane.f32.xlu0 %v3364
        %v3427 = vpop.xlane.xlu0 %3426
        %3428 = vadd.xlane.f32.xlu0 %v3365
        %v3429 = vpop.xlane.xlu0 %3428
        %v3430 = vmul.f32 %v3367, %v2227
        %v3431 = vmul.f32 %v3369, %v2227
        %v3432 = vmul.f32 %v3371, %v2227
        %v3433 = vmul.f32 %v3373, %v2227
        %v3434 = vmul.f32 %v3375, %v2227
        %v3435 = vmul.f32 %v3377, %v2227
        %v3436 = vmul.f32 %v3379, %v2227
        %v3437 = vmul.f32 %v3381, %v2227
        %v3438 = vmul.f32 %v3383, %v2227
        %v3439 = vmul.f32 %v3385, %v2227
        %v3440 = vmul.f32 %v3387, %v2227
        %v3441 = vmul.f32 %v3389, %v2227
        %v3442 = vmul.f32 %v3391, %v2227
        %v3443 = vmul.f32 %v3393, %v2227
        %v3444 = vmul.f32 %v3395, %v2227
        %v3445 = vmul.f32 %v3397, %v2227
        %v3446 = vmul.f32 %v3399, %v2227
        %v3447 = vmul.f32 %v3401, %v2227
        %v3448 = vmul.f32 %v3403, %v2227
        %v3449 = vmul.f32 %v3405, %v2227
        %v3450 = vmul.f32 %v3407, %v2227
        %v3451 = vmul.f32 %v3409, %v2227
        %v3452 = vmul.f32 %v3411, %v2227
        %v3453 = vmul.f32 %v3413, %v2227
        %v3454 = vmul.f32 %v3415, %v2227
        %v3455 = vmul.f32 %v3417, %v2227
        %v3456 = vmul.f32 %v3419, %v2227
        %v3457 = vmul.f32 %v3421, %v2227
        %v3458 = vmul.f32 %v3423, %v2227
        %v3459 = vmul.f32 %v3425, %v2227
        %v3460 = vmul.f32 %v3427, %v2227
        %v3461 = vmul.f32 %v3429, %v2227
        %v3462 = vadd.f32 %v3430, 1e-05
        %v3463 = vadd.f32 %v3431, 1e-05
        %v3464 = vadd.f32 %v3432, 1e-05
        %v3465 = vadd.f32 %v3433, 1e-05
        %v3466 = vadd.f32 %v3434, 1e-05
        %v3467 = vadd.f32 %v3435, 1e-05
        %v3468 = vadd.f32 %v3436, 1e-05
        %v3469 = vadd.f32 %v3437, 1e-05
        %v3470 = vadd.f32 %v3438, 1e-05
        %v3471 = vadd.f32 %v3439, 1e-05
        %v3472 = vadd.f32 %v3440, 1e-05
        %v3473 = vadd.f32 %v3441, 1e-05
        %v3474 = vadd.f32 %v3442, 1e-05
        %v3475 = vadd.f32 %v3443, 1e-05
        %v3476 = vadd.f32 %v3444, 1e-05
        %v3477 = vadd.f32 %v3445, 1e-05
        %v3478 = vadd.f32 %v3446, 1e-05
        %v3479 = vadd.f32 %v3447, 1e-05
        %v3480 = vadd.f32 %v3448, 1e-05
        %v3481 = vadd.f32 %v3449, 1e-05
        %v3482 = vadd.f32 %v3450, 1e-05
        %v3483 = vadd.f32 %v3451, 1e-05
        %v3484 = vadd.f32 %v3452, 1e-05
        %v3485 = vadd.f32 %v3453, 1e-05
        %v3486 = vadd.f32 %v3454, 1e-05
        %v3487 = vadd.f32 %v3455, 1e-05
        %v3488 = vadd.f32 %v3456, 1e-05
        %v3489 = vadd.f32 %v3457, 1e-05
        %v3490 = vadd.f32 %v3458, 1e-05
        %v3491 = vadd.f32 %v3459, 1e-05
        %v3492 = vadd.f32 %v3460, 1e-05
        %v3493 = vadd.f32 %v3461, 1e-05
        %v3494 = vrsqrt.pop %v3462
        %v3495 = vmul.f32 %v3494, %v3462
        %v3496 = vmul.f32 %v3495, %v3494
        %v3497 = vmul.f32 0.5, %v3496
        %v3498 = vsub.f32 1.5, %v3497
        %v3499 = vmul.f32 %v3494, %v3498
        %vm3500 = vweird.f32 %v3462
        %vm3501 = vweird.f32 %v3494
        %vm3502 = vmor %vm3500, %vm3501
        %v3503 = vsel %vm3502, %v3494, %v3499
        %v3504 = vrsqrt.pop %v3463
        %v3505 = vmul.f32 %v3504, %v3463
        %v3506 = vmul.f32 %v3505, %v3504
        %v3507 = vmul.f32 0.5, %v3506
        %v3508 = vsub.f32 1.5, %v3507
        %v3509 = vmul.f32 %v3504, %v3508
        %vm3510 = vweird.f32 %v3463
        %vm3511 = vweird.f32 %v3504
        %vm3512 = vmor %vm3510, %vm3511
        %v3513 = vsel %vm3512, %v3504, %v3509
        %v3514 = vrsqrt.pop %v3464
        %v3515 = vmul.f32 %v3514, %v3464
        %v3516 = vmul.f32 %v3515, %v3514
        %v3517 = vmul.f32 0.5, %v3516
        %v3518 = vsub.f32 1.5, %v3517
        %v3519 = vmul.f32 %v3514, %v3518
        %vm3520 = vweird.f32 %v3464
        %vm3521 = vweird.f32 %v3514
        %vm3522 = vmor %vm3520, %vm3521
        %v3523 = vsel %vm3522, %v3514, %v3519
        %v3524 = vrsqrt.pop %v3465
        %v3525 = vmul.f32 %v3524, %v3465
        %v3526 = vmul.f32 %v3525, %v3524
        %v3527 = vmul.f32 0.5, %v3526
        %v3528 = vsub.f32 1.5, %v3527
        %v3529 = vmul.f32 %v3524, %v3528
        %vm3530 = vweird.f32 %v3465
        %vm3531 = vweird.f32 %v3524
        %vm3532 = vmor %vm3530, %vm3531
        %v3533 = vsel %vm3532, %v3524, %v3529
        %v3534 = vrsqrt.pop %v3466
        %v3535 = vmul.f32 %v3534, %v3466
        %v3536 = vmul.f32 %v3535, %v3534
        %v3537 = vmul.f32 0.5, %v3536
        %v3538 = vsub.f32 1.5, %v3537
        %v3539 = vmul.f32 %v3534, %v3538
        %vm3540 = vweird.f32 %v3466
        %vm3541 = vweird.f32 %v3534
        %vm3542 = vmor %vm3540, %vm3541
        %v3543 = vsel %vm3542, %v3534, %v3539
        %v3544 = vrsqrt.pop %v3467
        %v3545 = vmul.f32 %v3544, %v3467
        %v3546 = vmul.f32 %v3545, %v3544
        %v3547 = vmul.f32 0.5, %v3546
        %v3548 = vsub.f32 1.5, %v3547
        %v3549 = vmul.f32 %v3544, %v3548
        %vm3550 = vweird.f32 %v3467
        %vm3551 = vweird.f32 %v3544
        %vm3552 = vmor %vm3550, %vm3551
        %v3553 = vsel %vm3552, %v3544, %v3549
        %v3554 = vrsqrt.pop %v3468
        %v3555 = vmul.f32 %v3554, %v3468
        %v3556 = vmul.f32 %v3555, %v3554
        %v3557 = vmul.f32 0.5, %v3556
        %v3558 = vsub.f32 1.5, %v3557
        %v3559 = vmul.f32 %v3554, %v3558
        %vm3560 = vweird.f32 %v3468
        %vm3561 = vweird.f32 %v3554
        %vm3562 = vmor %vm3560, %vm3561
        %v3563 = vsel %vm3562, %v3554, %v3559
        %v3564 = vrsqrt.pop %v3469
        %v3565 = vmul.f32 %v3564, %v3469
        %v3566 = vmul.f32 %v3565, %v3564
        %v3567 = vmul.f32 0.5, %v3566
        %v3568 = vsub.f32 1.5, %v3567
        %v3569 = vmul.f32 %v3564, %v3568
        %vm3570 = vweird.f32 %v3469
        %vm3571 = vweird.f32 %v3564
        %vm3572 = vmor %vm3570, %vm3571
        %v3573 = vsel %vm3572, %v3564, %v3569
        %v3574 = vrsqrt.pop %v3470
        %v3575 = vmul.f32 %v3574, %v3470
        %v3576 = vmul.f32 %v3575, %v3574
        %v3577 = vmul.f32 0.5, %v3576
        %v3578 = vsub.f32 1.5, %v3577
        %v3579 = vmul.f32 %v3574, %v3578
        %vm3580 = vweird.f32 %v3470
        %vm3581 = vweird.f32 %v3574
        %vm3582 = vmor %vm3580, %vm3581
        %v3583 = vsel %vm3582, %v3574, %v3579
        %v3584 = vrsqrt.pop %v3471
        %v3585 = vmul.f32 %v3584, %v3471
        %v3586 = vmul.f32 %v3585, %v3584
        %v3587 = vmul.f32 0.5, %v3586
        %v3588 = vsub.f32 1.5, %v3587
        %v3589 = vmul.f32 %v3584, %v3588
        %vm3590 = vweird.f32 %v3471
        %vm3591 = vweird.f32 %v3584
        %vm3592 = vmor %vm3590, %vm3591
        %v3593 = vsel %vm3592, %v3584, %v3589
        %v3594 = vrsqrt.pop %v3472
        %v3595 = vmul.f32 %v3594, %v3472
        %v3596 = vmul.f32 %v3595, %v3594
        %v3597 = vmul.f32 0.5, %v3596
        %v3598 = vsub.f32 1.5, %v3597
        %v3599 = vmul.f32 %v3594, %v3598
        %vm3600 = vweird.f32 %v3472
        %vm3601 = vweird.f32 %v3594
        %vm3602 = vmor %vm3600, %vm3601
        %v3603 = vsel %vm3602, %v3594, %v3599
        %v3604 = vrsqrt.pop %v3473
        %v3605 = vmul.f32 %v3604, %v3473
        %v3606 = vmul.f32 %v3605, %v3604
        %v3607 = vmul.f32 0.5, %v3606
        %v3608 = vsub.f32 1.5, %v3607
        %v3609 = vmul.f32 %v3604, %v3608
        %vm3610 = vweird.f32 %v3473
        %vm3611 = vweird.f32 %v3604
        %vm3612 = vmor %vm3610, %vm3611
        %v3613 = vsel %vm3612, %v3604, %v3609
        %v3614 = vrsqrt.pop %v3474
        %v3615 = vmul.f32 %v3614, %v3474
        %v3616 = vmul.f32 %v3615, %v3614
        %v3617 = vmul.f32 0.5, %v3616
        %v3618 = vsub.f32 1.5, %v3617
        %v3619 = vmul.f32 %v3614, %v3618
        %vm3620 = vweird.f32 %v3474
        %vm3621 = vweird.f32 %v3614
        %vm3622 = vmor %vm3620, %vm3621
        %v3623 = vsel %vm3622, %v3614, %v3619
        %v3624 = vrsqrt.pop %v3475
        %v3625 = vmul.f32 %v3624, %v3475
        %v3626 = vmul.f32 %v3625, %v3624
        %v3627 = vmul.f32 0.5, %v3626
        %v3628 = vsub.f32 1.5, %v3627
        %v3629 = vmul.f32 %v3624, %v3628
        %vm3630 = vweird.f32 %v3475
        %vm3631 = vweird.f32 %v3624
        %vm3632 = vmor %vm3630, %vm3631
        %v3633 = vsel %vm3632, %v3624, %v3629
        %v3634 = vrsqrt.pop %v3476
        %v3635 = vmul.f32 %v3634, %v3476
        %v3636 = vmul.f32 %v3635, %v3634
        %v3637 = vmul.f32 0.5, %v3636
        %v3638 = vsub.f32 1.5, %v3637
        %v3639 = vmul.f32 %v3634, %v3638
        %vm3640 = vweird.f32 %v3476
        %vm3641 = vweird.f32 %v3634
        %vm3642 = vmor %vm3640, %vm3641
        %v3643 = vsel %vm3642, %v3634, %v3639
        %v3644 = vrsqrt.pop %v3477
        %v3645 = vmul.f32 %v3644, %v3477
        %v3646 = vmul.f32 %v3645, %v3644
        %v3647 = vmul.f32 0.5, %v3646
        %v3648 = vsub.f32 1.5, %v3647
        %v3649 = vmul.f32 %v3644, %v3648
        %vm3650 = vweird.f32 %v3477
        %vm3651 = vweird.f32 %v3644
        %vm3652 = vmor %vm3650, %vm3651
        %v3653 = vsel %vm3652, %v3644, %v3649
        %v3654 = vrsqrt.pop %v3478
        %v3655 = vmul.f32 %v3654, %v3478
        %v3656 = vmul.f32 %v3655, %v3654
        %v3657 = vmul.f32 0.5, %v3656
        %v3658 = vsub.f32 1.5, %v3657
        %v3659 = vmul.f32 %v3654, %v3658
        %vm3660 = vweird.f32 %v3478
        %vm3661 = vweird.f32 %v3654
        %vm3662 = vmor %vm3660, %vm3661
        %v3663 = vsel %vm3662, %v3654, %v3659
        %v3664 = vrsqrt.pop %v3479
        %v3665 = vmul.f32 %v3664, %v3479
        %v3666 = vmul.f32 %v3665, %v3664
        %v3667 = vmul.f32 0.5, %v3666
        %v3668 = vsub.f32 1.5, %v3667
        %v3669 = vmul.f32 %v3664, %v3668
        %vm3670 = vweird.f32 %v3479
        %vm3671 = vweird.f32 %v3664
        %vm3672 = vmor %vm3670, %vm3671
        %v3673 = vsel %vm3672, %v3664, %v3669
        %v3674 = vrsqrt.pop %v3480
        %v3675 = vmul.f32 %v3674, %v3480
        %v3676 = vmul.f32 %v3675, %v3674
        %v3677 = vmul.f32 0.5, %v3676
        %v3678 = vsub.f32 1.5, %v3677
        %v3679 = vmul.f32 %v3674, %v3678
        %vm3680 = vweird.f32 %v3480
        %vm3681 = vweird.f32 %v3674
        %vm3682 = vmor %vm3680, %vm3681
        %v3683 = vsel %vm3682, %v3674, %v3679
        %v3684 = vrsqrt.pop %v3481
        %v3685 = vmul.f32 %v3684, %v3481
        %v3686 = vmul.f32 %v3685, %v3684
        %v3687 = vmul.f32 0.5, %v3686
        %v3688 = vsub.f32 1.5, %v3687
        %v3689 = vmul.f32 %v3684, %v3688
        %vm3690 = vweird.f32 %v3481
        %vm3691 = vweird.f32 %v3684
        %vm3692 = vmor %vm3690, %vm3691
        %v3693 = vsel %vm3692, %v3684, %v3689
        %v3694 = vrsqrt.pop %v3482
        %v3695 = vmul.f32 %v3694, %v3482
        %v3696 = vmul.f32 %v3695, %v3694
        %v3697 = vmul.f32 0.5, %v3696
        %v3698 = vsub.f32 1.5, %v3697
        %v3699 = vmul.f32 %v3694, %v3698
        %vm3700 = vweird.f32 %v3482
        %vm3701 = vweird.f32 %v3694
        %vm3702 = vmor %vm3700, %vm3701
        %v3703 = vsel %vm3702, %v3694, %v3699
        %v3704 = vrsqrt.pop %v3483
        %v3705 = vmul.f32 %v3704, %v3483
        %v3706 = vmul.f32 %v3705, %v3704
        %v3707 = vmul.f32 0.5, %v3706
        %v3708 = vsub.f32 1.5, %v3707
        %v3709 = vmul.f32 %v3704, %v3708
        %vm3710 = vweird.f32 %v3483
        %vm3711 = vweird.f32 %v3704
        %vm3712 = vmor %vm3710, %vm3711
        %v3713 = vsel %vm3712, %v3704, %v3709
        %v3714 = vrsqrt.pop %v3484
        %v3715 = vmul.f32 %v3714, %v3484
        %v3716 = vmul.f32 %v3715, %v3714
        %v3717 = vmul.f32 0.5, %v3716
        %v3718 = vsub.f32 1.5, %v3717
        %v3719 = vmul.f32 %v3714, %v3718
        %vm3720 = vweird.f32 %v3484
        %vm3721 = vweird.f32 %v3714
        %vm3722 = vmor %vm3720, %vm3721
        %v3723 = vsel %vm3722, %v3714, %v3719
        %v3724 = vrsqrt.pop %v3485
        %v3725 = vmul.f32 %v3724, %v3485
        %v3726 = vmul.f32 %v3725, %v3724
        %v3727 = vmul.f32 0.5, %v3726
        %v3728 = vsub.f32 1.5, %v3727
        %v3729 = vmul.f32 %v3724, %v3728
        %vm3730 = vweird.f32 %v3485
        %vm3731 = vweird.f32 %v3724
        %vm3732 = vmor %vm3730, %vm3731
        %v3733 = vsel %vm3732, %v3724, %v3729
        %v3734 = vrsqrt.pop %v3486
        %v3735 = vmul.f32 %v3734, %v3486
        %v3736 = vmul.f32 %v3735, %v3734
        %v3737 = vmul.f32 0.5, %v3736
        %v3738 = vsub.f32 1.5, %v3737
        %v3739 = vmul.f32 %v3734, %v3738
        %vm3740 = vweird.f32 %v3486
        %vm3741 = vweird.f32 %v3734
        %vm3742 = vmor %vm3740, %vm3741
        %v3743 = vsel %vm3742, %v3734, %v3739
        %v3744 = vrsqrt.pop %v3487
        %v3745 = vmul.f32 %v3744, %v3487
        %v3746 = vmul.f32 %v3745, %v3744
        %v3747 = vmul.f32 0.5, %v3746
        %v3748 = vsub.f32 1.5, %v3747
        %v3749 = vmul.f32 %v3744, %v3748
        %vm3750 = vweird.f32 %v3487
        %vm3751 = vweird.f32 %v3744
        %vm3752 = vmor %vm3750, %vm3751
        %v3753 = vsel %vm3752, %v3744, %v3749
        %v3754 = vrsqrt.pop %v3488
        %v3755 = vmul.f32 %v3754, %v3488
        %v3756 = vmul.f32 %v3755, %v3754
        %v3757 = vmul.f32 0.5, %v3756
        %v3758 = vsub.f32 1.5, %v3757
        %v3759 = vmul.f32 %v3754, %v3758
        %vm3760 = vweird.f32 %v3488
        %vm3761 = vweird.f32 %v3754
        %vm3762 = vmor %vm3760, %vm3761
        %v3763 = vsel %vm3762, %v3754, %v3759
        %v3764 = vrsqrt.pop %v3489
        %v3765 = vmul.f32 %v3764, %v3489
        %v3766 = vmul.f32 %v3765, %v3764
        %v3767 = vmul.f32 0.5, %v3766
        %v3768 = vsub.f32 1.5, %v3767
        %v3769 = vmul.f32 %v3764, %v3768
        %vm3770 = vweird.f32 %v3489
        %vm3771 = vweird.f32 %v3764
        %vm3772 = vmor %vm3770, %vm3771
        %v3773 = vsel %vm3772, %v3764, %v3769
        %v3774 = vrsqrt.pop %v3490
        %v3775 = vmul.f32 %v3774, %v3490
        %v3776 = vmul.f32 %v3775, %v3774
        %v3777 = vmul.f32 0.5, %v3776
        %v3778 = vsub.f32 1.5, %v3777
        %v3779 = vmul.f32 %v3774, %v3778
        %vm3780 = vweird.f32 %v3490
        %vm3781 = vweird.f32 %v3774
        %vm3782 = vmor %vm3780, %vm3781
        %v3783 = vsel %vm3782, %v3774, %v3779
        %v3784 = vrsqrt.pop %v3491
        %v3785 = vmul.f32 %v3784, %v3491
        %v3786 = vmul.f32 %v3785, %v3784
        %v3787 = vmul.f32 0.5, %v3786
        %v3788 = vsub.f32 1.5, %v3787
        %v3789 = vmul.f32 %v3784, %v3788
        %vm3790 = vweird.f32 %v3491
        %vm3791 = vweird.f32 %v3784
        %vm3792 = vmor %vm3790, %vm3791
        %v3793 = vsel %vm3792, %v3784, %v3789
        %v3794 = vrsqrt.pop %v3492
        %v3795 = vmul.f32 %v3794, %v3492
        %v3796 = vmul.f32 %v3795, %v3794
        %v3797 = vmul.f32 0.5, %v3796
        %v3798 = vsub.f32 1.5, %v3797
        %v3799 = vmul.f32 %v3794, %v3798
        %vm3800 = vweird.f32 %v3492
        %vm3801 = vweird.f32 %v3794
        %vm3802 = vmor %vm3800, %vm3801
        %v3803 = vsel %vm3802, %v3794, %v3799
        %v3804 = vrsqrt.pop %v3493
        %v3805 = vmul.f32 %v3804, %v3493
        %v3806 = vmul.f32 %v3805, %v3804
        %v3807 = vmul.f32 0.5, %v3806
        %v3808 = vsub.f32 1.5, %v3807
        %v3809 = vmul.f32 %v3804, %v3808
        %vm3810 = vweird.f32 %v3493
        %vm3811 = vweird.f32 %v3804
        %vm3812 = vmor %vm3810, %vm3811
        %v3813 = vsel %vm3812, %v3804, %v3809
        %v3814 = vmul.f32 %v3302, %v3503
        %v3815 = vmul.f32 %v3303, %v3513
        %v3816 = vmul.f32 %v3304, %v3523
        %v3817 = vmul.f32 %v3305, %v3533
        %v3818 = vmul.f32 %v3306, %v3543
        %v3819 = vmul.f32 %v3307, %v3553
        %v3820 = vmul.f32 %v3308, %v3563
        %v3821 = vmul.f32 %v3309, %v3573
        %v3822 = vmul.f32 %v3310, %v3583
        %v3823 = vmul.f32 %v3311, %v3593
        %v3824 = vmul.f32 %v3312, %v3603
        %v3825 = vmul.f32 %v3313, %v3613
        %v3826 = vmul.f32 %v3314, %v3623
        %v3827 = vmul.f32 %v3315, %v3633
        %v3828 = vmul.f32 %v3316, %v3643
        %v3829 = vmul.f32 %v3317, %v3653
        %v3830 = vmul.f32 %v3318, %v3663
        %v3831 = vmul.f32 %v3319, %v3673
        %v3832 = vmul.f32 %v3320, %v3683
        %v3833 = vmul.f32 %v3321, %v3693
        %v3834 = vmul.f32 %v3322, %v3703
        %v3835 = vmul.f32 %v3323, %v3713
        %v3836 = vmul.f32 %v3324, %v3723
        %v3837 = vmul.f32 %v3325, %v3733
        %v3838 = vmul.f32 %v3326, %v3743
        %v3839 = vmul.f32 %v3327, %v3753
        %v3840 = vmul.f32 %v3328, %v3763
        %v3841 = vmul.f32 %v3329, %v3773
        %v3842 = vmul.f32 %v3330, %v3783
        %v3843 = vmul.f32 %v3331, %v3793
        %v3844 = vmul.f32 %v3332, %v3803
        %v3845 = vmul.f32 %v3333, %v3813
        %v3847 = vperm.slane %v3204, 0
        %v3849 = vmul.f32 %v3814, %v3847
        %v3850 = vmul.f32 %v3815, %v3847
        %v3851 = vmul.f32 %v3816, %v3847
        %v3852 = vmul.f32 %v3817, %v3847
        %v3853 = vmul.f32 %v3818, %v3847
        %v3854 = vmul.f32 %v3819, %v3847
        %v3855 = vmul.f32 %v3820, %v3847
        %v3856 = vmul.f32 %v3821, %v3847
        %v3857 = vmul.f32 %v3822, %v3847
        %v3858 = vmul.f32 %v3823, %v3847
        %v3859 = vmul.f32 %v3824, %v3847
        %v3860 = vmul.f32 %v3825, %v3847
        %v3861 = vmul.f32 %v3826, %v3847
        %v3862 = vmul.f32 %v3827, %v3847
        %v3863 = vmul.f32 %v3828, %v3847
        %v3864 = vmul.f32 %v3829, %v3847
        %v3865 = vmul.f32 %v3830, %v3847
        %v3866 = vmul.f32 %v3831, %v3847
        %v3867 = vmul.f32 %v3832, %v3847
        %v3868 = vmul.f32 %v3833, %v3847
        %v3869 = vmul.f32 %v3834, %v3847
        %v3870 = vmul.f32 %v3835, %v3847
        %v3871 = vmul.f32 %v3836, %v3847
        %v3872 = vmul.f32 %v3837, %v3847
        %v3873 = vmul.f32 %v3838, %v3847
        %v3874 = vmul.f32 %v3839, %v3847
        %v3875 = vmul.f32 %v3840, %v3847
        %v3876 = vmul.f32 %v3841, %v3847
        %v3877 = vmul.f32 %v3842, %v3847
        %v3878 = vmul.f32 %v3843, %v3847
        %v3879 = vmul.f32 %v3844, %v3847
        %v3880 = vmul.f32 %v3845, %v3847
        %v3882 = vperm.slane %v3205, 0
        %v3884 = vadd.f32 %v3849, %v3882
        %v3885 = vadd.f32 %v3850, %v3882
        %v3886 = vadd.f32 %v3851, %v3882
        %v3887 = vadd.f32 %v3852, %v3882
        %v3888 = vadd.f32 %v3853, %v3882
        %v3889 = vadd.f32 %v3854, %v3882
        %v3890 = vadd.f32 %v3855, %v3882
        %v3891 = vadd.f32 %v3856, %v3882
        %v3892 = vadd.f32 %v3857, %v3882
        %v3893 = vadd.f32 %v3858, %v3882
        %v3894 = vadd.f32 %v3859, %v3882
        %v3895 = vadd.f32 %v3860, %v3882
        %v3896 = vadd.f32 %v3861, %v3882
        %v3897 = vadd.f32 %v3862, %v3882
        %v3898 = vadd.f32 %v3863, %v3882
        %v3899 = vadd.f32 %v3864, %v3882
        %v3900 = vadd.f32 %v3865, %v3882
        %v3901 = vadd.f32 %v3866, %v3882
        %v3902 = vadd.f32 %v3867, %v3882
        %v3903 = vadd.f32 %v3868, %v3882
        %v3904 = vadd.f32 %v3869, %v3882
        %v3905 = vadd.f32 %v3870, %v3882
        %v3906 = vadd.f32 %v3871, %v3882
        %v3907 = vadd.f32 %v3872, %v3882
        %v3908 = vadd.f32 %v3873, %v3882
        %v3909 = vadd.f32 %v3874, %v3882
        %v3910 = vadd.f32 %v3875, %v3882
        %v3911 = vadd.f32 %v3876, %v3882
        %v3912 = vadd.f32 %v3877, %v3882
        %v3913 = vadd.f32 %v3878, %v3882
        %v3914 = vadd.f32 %v3879, %v3882
        %v3915 = vadd.f32 %v3880, %v3882
        %3916 = vst [vmem:[#allocation2] sm:$0xff] %v3884
        %3917 = vst [vmem:[#allocation2 + $0x8] sm:$0xff] %v3885
        %3918 = vst [vmem:[#allocation2 + $0x10] sm:$0xff] %v3886
        %3919 = vst [vmem:[#allocation2 + $0x18] sm:$0xff] %v3887
        %3920 = vst [vmem:[#allocation2 + $0x20] sm:$0xff] %v3888
        %3921 = vst [vmem:[#allocation2 + $0x28] sm:$0xff] %v3889
        %3922 = vst [vmem:[#allocation2 + $0x30] sm:$0xff] %v3890
        %3923 = vst [vmem:[#allocation2 + $0x38] sm:$0xff] %v3891
        %3924 = vst [vmem:[#allocation2 + $0x40] sm:$0xff] %v3892
        %3925 = vst [vmem:[#allocation2 + $0x48] sm:$0xff] %v3893
        %3926 = vst [vmem:[#allocation2 + $0x50] sm:$0xff] %v3894
        %3927 = vst [vmem:[#allocation2 + $0x58] sm:$0xff] %v3895
        %3928 = vst [vmem:[#allocation2 + $0x60] sm:$0xff] %v3896
        %3929 = vst [vmem:[#allocation2 + $0x68] sm:$0xff] %v3897
        %3930 = vst [vmem:[#allocation2 + $0x70] sm:$0xff] %v3898
        %3931 = vst [vmem:[#allocation2 + $0x78] sm:$0xff] %v3899
        %3932 = vst [vmem:[#allocation2 + $0x80] sm:$0xff] %v3900
        %3933 = vst [vmem:[#allocation2 + $0x88] sm:$0xff] %v3901
        %3934 = vst [vmem:[#allocation2 + $0x90] sm:$0xff] %v3902
        %3935 = vst [vmem:[#allocation2 + $0x98] sm:$0xff] %v3903
        %3936 = vst [vmem:[#allocation2 + $0xa0] sm:$0xff] %v3904
        %3937 = vst [vmem:[#allocation2 + $0xa8] sm:$0xff] %v3905
        %3938 = vst [vmem:[#allocation2 + $0xb0] sm:$0xff] %v3906
        %3939 = vst [vmem:[#allocation2 + $0xb8] sm:$0xff] %v3907
        %3940 = vst [vmem:[#allocation2 + $0xc0] sm:$0xff] %v3908
        %3941 = vst [vmem:[#allocation2 + $0xc8] sm:$0xff] %v3909
        %3942 = vst [vmem:[#allocation2 + $0xd0] sm:$0xff] %v3910
        %3943 = vst [vmem:[#allocation2 + $0xd8] sm:$0xff] %v3911
        %3944 = vst [vmem:[#allocation2 + $0xe0] sm:$0xff] %v3912
        %3945 = vst [vmem:[#allocation2 + $0xe8] sm:$0xff] %v3913
        %3946 = vst [vmem:[#allocation2 + $0xf0] sm:$0xff] %v3914
        %3947 = vst [vmem:[#allocation2 + $0xf8] sm:$0xff] %v3915
        %v3948 = vld [vmem:[#allocation2] sm:$0xff]
        %v3949 = vld [vmem:[#allocation2 + $0x8] sm:$0xff]
        %v3950 = vld [vmem:[#allocation2 + $0x10] sm:$0xff]
        %v3951 = vld [vmem:[#allocation2 + $0x18] sm:$0xff]
        %v3952 = vld [vmem:[#allocation2 + $0x20] sm:$0xff]
        %v3953 = vld [vmem:[#allocation2 + $0x28] sm:$0xff]
        %v3954 = vld [vmem:[#allocation2 + $0x30] sm:$0xff]
        %v3955 = vld [vmem:[#allocation2 + $0x38] sm:$0xff]
        %v3956 = vld [vmem:[#allocation2 + $0x40] sm:$0xff]
        %v3957 = vld [vmem:[#allocation2 + $0x48] sm:$0xff]
        %v3958 = vld [vmem:[#allocation2 + $0x50] sm:$0xff]
        %v3959 = vld [vmem:[#allocation2 + $0x58] sm:$0xff]
        %v3960 = vld [vmem:[#allocation2 + $0x60] sm:$0xff]
        %v3961 = vld [vmem:[#allocation2 + $0x68] sm:$0xff]
        %v3962 = vld [vmem:[#allocation2 + $0x70] sm:$0xff]
        %v3963 = vld [vmem:[#allocation2 + $0x78] sm:$0xff]
        %v3964 = vld [vmem:[#allocation2 + $0x80] sm:$0xff]
        %v3965 = vld [vmem:[#allocation2 + $0x88] sm:$0xff]
        %v3966 = vld [vmem:[#allocation2 + $0x90] sm:$0xff]
        %v3967 = vld [vmem:[#allocation2 + $0x98] sm:$0xff]
        %v3968 = vld [vmem:[#allocation2 + $0xa0] sm:$0xff]
        %v3969 = vld [vmem:[#allocation2 + $0xa8] sm:$0xff]
        %v3970 = vld [vmem:[#allocation2 + $0xb0] sm:$0xff]
        %v3971 = vld [vmem:[#allocation2 + $0xb8] sm:$0xff]
        %v3972 = vld [vmem:[#allocation2 + $0xc0] sm:$0xff]
        %v3973 = vld [vmem:[#allocation2 + $0xc8] sm:$0xff]
        %v3974 = vld [vmem:[#allocation2 + $0xd0] sm:$0xff]
        %v3975 = vld [vmem:[#allocation2 + $0xd8] sm:$0xff]
        %v3976 = vld [vmem:[#allocation2 + $0xe0] sm:$0xff]
        %v3977 = vld [vmem:[#allocation2 + $0xe8] sm:$0xff]
        %v3978 = vld [vmem:[#allocation2 + $0xf0] sm:$0xff]
        %v3979 = vld [vmem:[#allocation2 + $0xf8] sm:$0xff]
        %v3980 = vld [vmem:[#allocation2 + $0x100] sm:$0xff]
        %v3981 = vrot.slane %v3948, 7
        %v3982 = vrot.slane %v3949, 7
        %v3983 = vrot.slane %v3950, 7
        %v3984 = vrot.slane %v3951, 7
        %v3985 = vrot.slane %v3952, 7
        %v3986 = vrot.slane %v3953, 7
        %v3987 = vrot.slane %v3954, 7
        %v3988 = vrot.slane %v3955, 7
        %v3989 = vrot.slane %v3956, 7
        %v3990 = vrot.slane %v3957, 7
        %v3991 = vrot.slane %v3958, 7
        %v3992 = vrot.slane %v3959, 7
        %v3993 = vrot.slane %v3960, 7
        %v3994 = vrot.slane %v3961, 7
        %v3995 = vrot.slane %v3962, 7
        %v3996 = vrot.slane %v3963, 7
        %v3997 = vrot.slane %v3964, 7
        %v3998 = vrot.slane %v3965, 7
        %v3999 = vrot.slane %v3966, 7
        %v4000 = vrot.slane %v3967, 7
        %v4001 = vrot.slane %v3968, 7
        %v4002 = vrot.slane %v3969, 7
        %v4003 = vrot.slane %v3970, 7
        %v4004 = vrot.slane %v3971, 7
        %v4005 = vrot.slane %v3972, 7
        %v4006 = vrot.slane %v3973, 7
        %v4007 = vrot.slane %v3974, 7
        %v4008 = vrot.slane %v3975, 7
        %v4009 = vrot.slane %v3976, 7
        %v4010 = vrot.slane %v3977, 7
        %v4011 = vrot.slane %v3978, 7
        %v4012 = vrot.slane %v3979, 7
        %v4013 = vrot.slane %v3980, 7
        %v4014 = vsel %vm596, %v4012, %v4013
        %v4015 = vsel %vm596, %v4011, %v4012
        %v4016 = vsel %vm596, %v4010, %v4011
        %v4017 = vsel %vm596, %v4009, %v4010
        %v4018 = vsel %vm596, %v4008, %v4009
        %v4019 = vsel %vm596, %v4007, %v4008
        %v4020 = vsel %vm596, %v4006, %v4007
        %v4021 = vsel %vm596, %v4005, %v4006
        %v4022 = vsel %vm596, %v4004, %v4005
        %v4023 = vsel %vm596, %v4003, %v4004
        %v4024 = vsel %vm596, %v4002, %v4003
        %v4025 = vsel %vm596, %v4001, %v4002
        %v4026 = vsel %vm596, %v4000, %v4001
        %v4027 = vsel %vm596, %v3999, %v4000
        %v4028 = vsel %vm596, %v3998, %v3999
        %v4029 = vsel %vm596, %v3997, %v3998
        %v4030 = vsel %vm596, %v3996, %v3997
        %v4031 = vsel %vm596, %v3995, %v3996
        %v4032 = vsel %vm596, %v3994, %v3995
        %v4033 = vsel %vm596, %v3993, %v3994
        %v4034 = vsel %vm596, %v3992, %v3993
        %v4035 = vsel %vm596, %v3991, %v3992
        %v4036 = vsel %vm596, %v3990, %v3991
        %v4037 = vsel %vm596, %v3989, %v3990
        %v4038 = vsel %vm596, %v3988, %v3989
        %v4039 = vsel %vm596, %v3987, %v3988
        %v4040 = vsel %vm596, %v3986, %v3987
        %v4041 = vsel %vm596, %v3985, %v3986
        %v4042 = vsel %vm596, %v3984, %v3985
        %v4043 = vsel %vm596, %v3983, %v3984
        %v4044 = vsel %vm596, %v3982, %v3983
        %v4045 = vsel %vm596, %v3981, %v3982
        %v4046 = vsel %vm596, %v4013, %v3981
        %v4047 = vrot.slane %v3948, 1
        %v4048 = vrot.slane %v3949, 1
        %v4049 = vrot.slane %v3950, 1
        %v4050 = vrot.slane %v3951, 1
        %v4051 = vrot.slane %v3952, 1
        %v4052 = vrot.slane %v3953, 1
        %v4053 = vrot.slane %v3954, 1
        %v4054 = vrot.slane %v3955, 1
        %v4055 = vrot.slane %v3956, 1
        %v4056 = vrot.slane %v3957, 1
        %v4057 = vrot.slane %v3958, 1
        %v4058 = vrot.slane %v3959, 1
        %v4059 = vrot.slane %v3960, 1
        %v4060 = vrot.slane %v3961, 1
        %v4061 = vrot.slane %v3962, 1
        %v4062 = vrot.slane %v3963, 1
        %v4063 = vrot.slane %v3964, 1
        %v4064 = vrot.slane %v3965, 1
        %v4065 = vrot.slane %v3966, 1
        %v4066 = vrot.slane %v3967, 1
        %v4067 = vrot.slane %v3968, 1
        %v4068 = vrot.slane %v3969, 1
        %v4069 = vrot.slane %v3970, 1
        %v4070 = vrot.slane %v3971, 1
        %v4071 = vrot.slane %v3972, 1
        %v4072 = vrot.slane %v3973, 1
        %v4073 = vrot.slane %v3974, 1
        %v4074 = vrot.slane %v3975, 1
        %v4075 = vrot.slane %v3976, 1
        %v4076 = vrot.slane %v3977, 1
        %v4077 = vrot.slane %v3978, 1
        %v4078 = vrot.slane %v3979, 1
        %v4079 = vrot.slane %v3980, 1
        %v4080 = vsel %vm663, %v4078, %v4079
        %v4081 = vsel %vm663, %v4077, %v4078
        %v4082 = vsel %vm663, %v4076, %v4077
        %v4083 = vsel %vm663, %v4075, %v4076
        %v4084 = vsel %vm663, %v4074, %v4075
        %v4085 = vsel %vm663, %v4073, %v4074
        %v4086 = vsel %vm663, %v4072, %v4073
        %v4087 = vsel %vm663, %v4071, %v4072
        %v4088 = vsel %vm663, %v4070, %v4071
        %v4089 = vsel %vm663, %v4069, %v4070
        %v4090 = vsel %vm663, %v4068, %v4069
        %v4091 = vsel %vm663, %v4067, %v4068
        %v4092 = vsel %vm663, %v4066, %v4067
        %v4093 = vsel %vm663, %v4065, %v4066
        %v4094 = vsel %vm663, %v4064, %v4065
        %v4095 = vsel %vm663, %v4063, %v4064
        %v4096 = vsel %vm663, %v4062, %v4063
        %v4097 = vsel %vm663, %v4061, %v4062
        %v4098 = vsel %vm663, %v4060, %v4061
        %v4099 = vsel %vm663, %v4059, %v4060
        %v4100 = vsel %vm663, %v4058, %v4059
        %v4101 = vsel %vm663, %v4057, %v4058
        %v4102 = vsel %vm663, %v4056, %v4057
        %v4103 = vsel %vm663, %v4055, %v4056
        %v4104 = vsel %vm663, %v4054, %v4055
        %v4105 = vsel %vm663, %v4053, %v4054
        %v4106 = vsel %vm663, %v4052, %v4053
        %v4107 = vsel %vm663, %v4051, %v4052
        %v4108 = vsel %vm663, %v4050, %v4051
        %v4109 = vsel %vm663, %v4049, %v4050
        %v4110 = vsel %vm663, %v4048, %v4049
        %v4111 = vsel %vm663, %v4047, %v4048
        %v4112 = vsel %vm663, %v4079, %v4047
        %s4113 = scalar_lea.vmem [#allocation6], 768
        %v4114 = vld [vmem:[%s4113] sm:$0xff]
        %v4115 = vld [vmem:[%s4113 + $0x8] sm:$0xff]
        %v4116 = vld [vmem:[%s4113 + $0x10] sm:$0xff]
        %v4117 = vld [vmem:[%s4113 + $0x18] sm:$0xff]
        %v4118 = vld [vmem:[%s4113 + $0x20] sm:$0xff]
        %v4119 = vld [vmem:[%s4113 + $0x28] sm:$0xff]
        %v4120 = vld [vmem:[%s4113 + $0x30] sm:$0xff]
        %v4121 = vld [vmem:[%s4113 + $0x38] sm:$0xff]
        %v4122 = vld [vmem:[%s4113 + $0x40] sm:$0xff]
        %v4123 = vld [vmem:[%s4113 + $0x48] sm:$0xff]
        %v4124 = vld [vmem:[%s4113 + $0x50] sm:$0xff]
        %v4125 = vld [vmem:[%s4113 + $0x58] sm:$0xff]
        %v4126 = vld [vmem:[%s4113 + $0x60] sm:$0xff]
        %v4127 = vld [vmem:[%s4113 + $0x68] sm:$0xff]
        %v4128 = vld [vmem:[%s4113 + $0x70] sm:$0xff]
        %v4129 = vld [vmem:[%s4113 + $0x78] sm:$0xff]
        %v4130 = vld [vmem:[%s4113 + $0x80] sm:$0xff]
        %v4131 = vld [vmem:[%s4113 + $0x88] sm:$0xff]
        %v4132 = vld [vmem:[%s4113 + $0x90] sm:$0xff]
        %v4133 = vld [vmem:[%s4113 + $0x98] sm:$0xff]
        %v4134 = vld [vmem:[%s4113 + $0xa0] sm:$0xff]
        %v4135 = vld [vmem:[%s4113 + $0xa8] sm:$0xff]
        %v4136 = vld [vmem:[%s4113 + $0xb0] sm:$0xff]
        %v4137 = vld [vmem:[%s4113 + $0xb8] sm:$0xff]
        %v4138 = vld [vmem:[%s4113 + $0xc0] sm:$0xff]
        %v4139 = vld [vmem:[%s4113 + $0xc8] sm:$0xff]
        %v4140 = vld [vmem:[%s4113 + $0xd0] sm:$0xff]
        %v4141 = vld [vmem:[%s4113 + $0xd8] sm:$0xff]
        %v4142 = vld [vmem:[%s4113 + $0xe0] sm:$0xff]
        %v4143 = vld [vmem:[%s4113 + $0xe8] sm:$0xff]
        %v4144 = vld [vmem:[%s4113 + $0xf0] sm:$0xff]
        %v4145 = vld [vmem:[%s4113 + $0xf8] sm:$0xff]
        %v4146 = vld [vmem:[%s4113 + $0x100] sm:$0xff]
        %v4147 = vld [vmem:[%s4113 + $0x108] sm:$0xff]
        %v4148 = vld [vmem:[%s4113 + $0x110] sm:$0xff]
        %v4149 = vld [vmem:[%s4113 + $0x118] sm:$0xff]
        %v4150 = vld [vmem:[%s4113 + $0x120] sm:$0xff]
        %v4151 = vld [vmem:[%s4113 + $0x128] sm:$0xff]
        %v4152 = vld [vmem:[%s4113 + $0x130] sm:$0xff]
        %v4153 = vld [vmem:[%s4113 + $0x138] sm:$0xff]
        %v4154 = vld [vmem:[%s4113 + $0x140] sm:$0xff]
        %v4155 = vld [vmem:[%s4113 + $0x148] sm:$0xff]
        %v4156 = vld [vmem:[%s4113 + $0x150] sm:$0xff]
        %v4157 = vld [vmem:[%s4113 + $0x158] sm:$0xff]
        %v4158 = vld [vmem:[%s4113 + $0x160] sm:$0xff]
        %v4159 = vld [vmem:[%s4113 + $0x168] sm:$0xff]
        %v4160 = vld [vmem:[%s4113 + $0x170] sm:$0xff]
        %v4161 = vld [vmem:[%s4113 + $0x178] sm:$0xff]
        %v4162 = vld [vmem:[%s4113 + $0x180] sm:$0xff]
        %v4163 = vld [vmem:[%s4113 + $0x188] sm:$0xff]
        %v4164 = vld [vmem:[%s4113 + $0x190] sm:$0xff]
        %v4165 = vld [vmem:[%s4113 + $0x198] sm:$0xff]
        %v4166 = vld [vmem:[%s4113 + $0x1a0] sm:$0xff]
        %v4167 = vld [vmem:[%s4113 + $0x1a8] sm:$0xff]
        %v4168 = vld [vmem:[%s4113 + $0x1b0] sm:$0xff]
        %v4169 = vld [vmem:[%s4113 + $0x1b8] sm:$0xff]
        %v4170 = vld [vmem:[%s4113 + $0x1c0] sm:$0xff]
        %v4171 = vld [vmem:[%s4113 + $0x1c8] sm:$0xff]
        %v4172 = vld [vmem:[%s4113 + $0x1d0] sm:$0xff]
        %v4173 = vld [vmem:[%s4113 + $0x1d8] sm:$0xff]
        %v4174 = vld [vmem:[%s4113 + $0x1e0] sm:$0xff]
        %v4175 = vld [vmem:[%s4113 + $0x1e8] sm:$0xff]
        %v4176 = vld [vmem:[%s4113 + $0x1f0] sm:$0xff]
        %v4177 = vld [vmem:[%s4113 + $0x1f8] sm:$0xff]
        %v4178 = vld [vmem:[%s4113 + $0x200] sm:$0xff]
        %v4179 = vld [vmem:[%s4113 + $0x208] sm:$0xff]
        %v4180 = vld [vmem:[%s4113 + $0x210] sm:$0xff]
        %v4181 = vld [vmem:[%s4113 + $0x218] sm:$0xff]
        %v4182 = vld [vmem:[%s4113 + $0x220] sm:$0xff]
        %v4183 = vld [vmem:[%s4113 + $0x228] sm:$0xff]
        %v4184 = vld [vmem:[%s4113 + $0x230] sm:$0xff]
        %v4185 = vld [vmem:[%s4113 + $0x238] sm:$0xff]
        %v4186 = vld [vmem:[%s4113 + $0x240] sm:$0xff]
        %v4187 = vld [vmem:[%s4113 + $0x248] sm:$0xff]
        %v4188 = vld [vmem:[%s4113 + $0x250] sm:$0xff]
        %v4189 = vld [vmem:[%s4113 + $0x258] sm:$0xff]
        %v4190 = vld [vmem:[%s4113 + $0x260] sm:$0xff]
        %v4191 = vld [vmem:[%s4113 + $0x268] sm:$0xff]
        %v4192 = vld [vmem:[%s4113 + $0x270] sm:$0xff]
        %v4193 = vld [vmem:[%s4113 + $0x278] sm:$0xff]
        %v4194 = vld [vmem:[%s4113 + $0x280] sm:$0xff]
        %v4195 = vld [vmem:[%s4113 + $0x288] sm:$0xff]
        %v4196 = vld [vmem:[%s4113 + $0x290] sm:$0xff]
        %v4197 = vld [vmem:[%s4113 + $0x298] sm:$0xff]
        %v4198 = vld [vmem:[%s4113 + $0x2a0] sm:$0xff]
        %v4199 = vld [vmem:[%s4113 + $0x2a8] sm:$0xff]
        %v4200 = vld [vmem:[%s4113 + $0x2b0] sm:$0xff]
        %v4201 = vld [vmem:[%s4113 + $0x2b8] sm:$0xff]
        %v4202 = vld [vmem:[%s4113 + $0x2c0] sm:$0xff]
        %v4203 = vld [vmem:[%s4113 + $0x2c8] sm:$0xff]
        %v4204 = vld [vmem:[%s4113 + $0x2d0] sm:$0xff]
        %v4205 = vld [vmem:[%s4113 + $0x2d8] sm:$0xff]
        %v4206 = vld [vmem:[%s4113 + $0x2e0] sm:$0xff]
        %v4207 = vld [vmem:[%s4113 + $0x2e8] sm:$0xff]
        %v4208 = vld [vmem:[%s4113 + $0x2f0] sm:$0xff]
        %v4209 = vld [vmem:[%s4113 + $0x2f8] sm:$0xff]
        %4210 = vmatpush.msra.mxu0 %v4144
        %4211 = vmatpush.msra.mxu0 %v4142
        %4212 = vmatpush.msra.mxu0 %v4140
        %4213 = vmatpush.msra.mxu0 %v4138
        %4214 = vmatpush.msra.mxu0 %v4136
        %4215 = vmatpush.msra.mxu0 %v4134
        %4216 = vmatpush.msra.mxu0 %v4132
        %4217 = vmatpush.msra.mxu0 %v4130
        %4218 = vmatpush.msra.mxu0 %v4128
        %4219 = vmatpush.msra.mxu0 %v4126
        %4220 = vmatpush.msra.mxu0 %v4124
        %4221 = vmatpush.msra.mxu0 %v4122
        %4222 = vmatpush.msra.mxu0 %v4120
        %4223 = vmatpush.msra.mxu0 %v4118
        %4224 = vmatpush.msra.mxu0 %v4116
        %4225 = vmatpush.msra.mxu0 %v4114
        %4226 = vmatmul.f32.gmra.mxu0 %v4046
        %v4227 = vpop.f32.mrf.mxu0
        %v4228 = vadd.f32 0.0, %v4227
        %4229 = vmatmul.f32.gmra.mxu0 %v4045
        %v4230 = vpop.f32.mrf.mxu0
        %v4231 = vadd.f32 0.0, %v4230
        %4232 = vmatmul.f32.gmra.mxu0 %v4044
        %v4233 = vpop.f32.mrf.mxu0
        %v4234 = vadd.f32 0.0, %v4233
        %4235 = vmatmul.f32.gmra.mxu0 %v4043
        %v4236 = vpop.f32.mrf.mxu0
        %v4237 = vadd.f32 0.0, %v4236
        %4238 = vmatmul.f32.gmra.mxu0 %v4042
        %v4239 = vpop.f32.mrf.mxu0
        %v4240 = vadd.f32 0.0, %v4239
        %4241 = vmatmul.f32.gmra.mxu0 %v4041
        %v4242 = vpop.f32.mrf.mxu0
        %v4243 = vadd.f32 0.0, %v4242
        %4244 = vmatmul.f32.gmra.mxu0 %v4040
        %v4245 = vpop.f32.mrf.mxu0
        %v4246 = vadd.f32 0.0, %v4245
        %4247 = vmatmul.f32.gmra.mxu0 %v4039
        %v4248 = vpop.f32.mrf.mxu0
        %v4249 = vadd.f32 0.0, %v4248
        %4250 = vmatmul.f32.gmra.mxu0 %v4038
        %v4251 = vpop.f32.mrf.mxu0
        %v4252 = vadd.f32 0.0, %v4251
        %4253 = vmatmul.f32.gmra.mxu0 %v4037
        %v4254 = vpop.f32.mrf.mxu0
        %v4255 = vadd.f32 0.0, %v4254
        %4256 = vmatmul.f32.gmra.mxu0 %v4036
        %v4257 = vpop.f32.mrf.mxu0
        %v4258 = vadd.f32 0.0, %v4257
        %4259 = vmatmul.f32.gmra.mxu0 %v4035
        %v4260 = vpop.f32.mrf.mxu0
        %v4261 = vadd.f32 0.0, %v4260
        %4262 = vmatmul.f32.gmra.mxu0 %v4034
        %v4263 = vpop.f32.mrf.mxu0
        %v4264 = vadd.f32 0.0, %v4263
        %4265 = vmatmul.f32.gmra.mxu0 %v4033
        %v4266 = vpop.f32.mrf.mxu0
        %v4267 = vadd.f32 0.0, %v4266
        %4268 = vmatmul.f32.gmra.mxu0 %v4032
        %v4269 = vpop.f32.mrf.mxu0
        %v4270 = vadd.f32 0.0, %v4269
        %4271 = vmatmul.f32.gmra.mxu0 %v4031
        %v4272 = vpop.f32.mrf.mxu0
        %v4273 = vadd.f32 0.0, %v4272
        %4274 = vmatmul.f32.gmra.mxu0 %v4030
        %v4275 = vpop.f32.mrf.mxu0
        %v4276 = vadd.f32 0.0, %v4275
        %4277 = vmatmul.f32.gmra.mxu0 %v4029
        %v4278 = vpop.f32.mrf.mxu0
        %v4279 = vadd.f32 0.0, %v4278
        %4280 = vmatmul.f32.gmra.mxu0 %v4028
        %v4281 = vpop.f32.mrf.mxu0
        %v4282 = vadd.f32 0.0, %v4281
        %4283 = vmatmul.f32.gmra.mxu0 %v4027
        %v4284 = vpop.f32.mrf.mxu0
        %v4285 = vadd.f32 0.0, %v4284
        %4286 = vmatmul.f32.gmra.mxu0 %v4026
        %v4287 = vpop.f32.mrf.mxu0
        %v4288 = vadd.f32 0.0, %v4287
        %4289 = vmatmul.f32.gmra.mxu0 %v4025
        %v4290 = vpop.f32.mrf.mxu0
        %v4291 = vadd.f32 0.0, %v4290
        %4292 = vmatmul.f32.gmra.mxu0 %v4024
        %v4293 = vpop.f32.mrf.mxu0
        %v4294 = vadd.f32 0.0, %v4293
        %4295 = vmatmul.f32.gmra.mxu0 %v4023
        %v4296 = vpop.f32.mrf.mxu0
        %v4297 = vadd.f32 0.0, %v4296
        %4298 = vmatmul.f32.gmra.mxu0 %v4022
        %v4299 = vpop.f32.mrf.mxu0
        %v4300 = vadd.f32 0.0, %v4299
        %4301 = vmatmul.f32.gmra.mxu0 %v4021
        %v4302 = vpop.f32.mrf.mxu0
        %v4303 = vadd.f32 0.0, %v4302
        %4304 = vmatmul.f32.gmra.mxu0 %v4020
        %v4305 = vpop.f32.mrf.mxu0
        %v4306 = vadd.f32 0.0, %v4305
        %4307 = vmatmul.f32.gmra.mxu0 %v4019
        %v4308 = vpop.f32.mrf.mxu0
        %v4309 = vadd.f32 0.0, %v4308
        %4310 = vmatmul.f32.gmra.mxu0 %v4018
        %v4311 = vpop.f32.mrf.mxu0
        %v4312 = vadd.f32 0.0, %v4311
        %4313 = vmatmul.f32.gmra.mxu0 %v4017
        %v4314 = vpop.f32.mrf.mxu0
        %v4315 = vadd.f32 0.0, %v4314
        %4316 = vmatmul.f32.gmra.mxu0 %v4016
        %v4317 = vpop.f32.mrf.mxu0
        %v4318 = vadd.f32 0.0, %v4317
        %4319 = vmatmul.f32.gmra.mxu0 %v4015
        %v4320 = vpop.f32.mrf.mxu0
        %v4321 = vadd.f32 0.0, %v4320
        %4322 = vmatmul.f32.gmra.mxu0 %v4014
        %v4323 = vpop.f32.mrf.mxu0
        %4324 = vdwg.mxu0
        %4325 = vmatpush.msra.mxu0 %v4176
        %4326 = vmatpush.msra.mxu0 %v4174
        %4327 = vmatpush.msra.mxu0 %v4172
        %4328 = vmatpush.msra.mxu0 %v4170
        %4329 = vmatpush.msra.mxu0 %v4168
        %4330 = vmatpush.msra.mxu0 %v4166
        %4331 = vmatpush.msra.mxu0 %v4164
        %4332 = vmatpush.msra.mxu0 %v4162
        %4333 = vmatpush.msra.mxu0 %v4160
        %4334 = vmatpush.msra.mxu0 %v4158
        %4335 = vmatpush.msra.mxu0 %v4156
        %4336 = vmatpush.msra.mxu0 %v4154
        %4337 = vmatpush.msra.mxu0 %v4152
        %4338 = vmatpush.msra.mxu0 %v4150
        %4339 = vmatpush.msra.mxu0 %v4148
        %4340 = vmatpush.msra.mxu0 %v4146
        %4341 = vmatmul.f32.gmra.mxu0 %v3948
        %v4342 = vpop.f32.mrf.mxu0
        %v4343 = vadd.f32 %v4228, %v4342
        %4344 = vmatmul.f32.gmra.mxu0 %v3949
        %v4345 = vpop.f32.mrf.mxu0
        %v4346 = vadd.f32 %v4231, %v4345
        %4347 = vmatmul.f32.gmra.mxu0 %v3950
        %v4348 = vpop.f32.mrf.mxu0
        %v4349 = vadd.f32 %v4234, %v4348
        %4350 = vmatmul.f32.gmra.mxu0 %v3951
        %v4351 = vpop.f32.mrf.mxu0
        %v4352 = vadd.f32 %v4237, %v4351
        %4353 = vmatmul.f32.gmra.mxu0 %v3952
        %v4354 = vpop.f32.mrf.mxu0
        %v4355 = vadd.f32 %v4240, %v4354
        %4356 = vmatmul.f32.gmra.mxu0 %v3953
        %v4357 = vpop.f32.mrf.mxu0
        %v4358 = vadd.f32 %v4243, %v4357
        %4359 = vmatmul.f32.gmra.mxu0 %v3954
        %v4360 = vpop.f32.mrf.mxu0
        %v4361 = vadd.f32 %v4246, %v4360
        %4362 = vmatmul.f32.gmra.mxu0 %v3955
        %v4363 = vpop.f32.mrf.mxu0
        %v4364 = vadd.f32 %v4249, %v4363
        %4365 = vmatmul.f32.gmra.mxu0 %v3956
        %v4366 = vpop.f32.mrf.mxu0
        %v4367 = vadd.f32 %v4252, %v4366
        %4368 = vmatmul.f32.gmra.mxu0 %v3957
        %v4369 = vpop.f32.mrf.mxu0
        %v4370 = vadd.f32 %v4255, %v4369
        %4371 = vmatmul.f32.gmra.mxu0 %v3958
        %v4372 = vpop.f32.mrf.mxu0
        %v4373 = vadd.f32 %v4258, %v4372
        %4374 = vmatmul.f32.gmra.mxu0 %v3959
        %v4375 = vpop.f32.mrf.mxu0
        %v4376 = vadd.f32 %v4261, %v4375
        %4377 = vmatmul.f32.gmra.mxu0 %v3960
        %v4378 = vpop.f32.mrf.mxu0
        %v4379 = vadd.f32 %v4264, %v4378
        %4380 = vmatmul.f32.gmra.mxu0 %v3961
        %v4381 = vpop.f32.mrf.mxu0
        %v4382 = vadd.f32 %v4267, %v4381
        %4383 = vmatmul.f32.gmra.mxu0 %v3962
        %v4384 = vpop.f32.mrf.mxu0
        %v4385 = vadd.f32 %v4270, %v4384
        %4386 = vmatmul.f32.gmra.mxu0 %v3963
        %v4387 = vpop.f32.mrf.mxu0
        %v4388 = vadd.f32 %v4273, %v4387
        %4389 = vmatmul.f32.gmra.mxu0 %v3964
        %v4390 = vpop.f32.mrf.mxu0
        %v4391 = vadd.f32 %v4276, %v4390
        %4392 = vmatmul.f32.gmra.mxu0 %v3965
        %v4393 = vpop.f32.mrf.mxu0
        %v4394 = vadd.f32 %v4279, %v4393
        %4395 = vmatmul.f32.gmra.mxu0 %v3966
        %v4396 = vpop.f32.mrf.mxu0
        %v4397 = vadd.f32 %v4282, %v4396
        %4398 = vmatmul.f32.gmra.mxu0 %v3967
        %v4399 = vpop.f32.mrf.mxu0
        %v4400 = vadd.f32 %v4285, %v4399
        %4401 = vmatmul.f32.gmra.mxu0 %v3968
        %v4402 = vpop.f32.mrf.mxu0
        %v4403 = vadd.f32 %v4288, %v4402
        %4404 = vmatmul.f32.gmra.mxu0 %v3969
        %v4405 = vpop.f32.mrf.mxu0
        %v4406 = vadd.f32 %v4291, %v4405
        %4407 = vmatmul.f32.gmra.mxu0 %v3970
        %v4408 = vpop.f32.mrf.mxu0
        %v4409 = vadd.f32 %v4294, %v4408
        %4410 = vmatmul.f32.gmra.mxu0 %v3971
        %v4411 = vpop.f32.mrf.mxu0
        %v4412 = vadd.f32 %v4297, %v4411
        %4413 = vmatmul.f32.gmra.mxu0 %v3972
        %v4414 = vpop.f32.mrf.mxu0
        %v4415 = vadd.f32 %v4300, %v4414
        %4416 = vmatmul.f32.gmra.mxu0 %v3973
        %v4417 = vpop.f32.mrf.mxu0
        %v4418 = vadd.f32 %v4303, %v4417
        %4419 = vmatmul.f32.gmra.mxu0 %v3974
        %v4420 = vpop.f32.mrf.mxu0
        %v4421 = vadd.f32 %v4306, %v4420
        %4422 = vmatmul.f32.gmra.mxu0 %v3975
        %v4423 = vpop.f32.mrf.mxu0
        %v4424 = vadd.f32 %v4309, %v4423
        %4425 = vmatmul.f32.gmra.mxu0 %v3976
        %v4426 = vpop.f32.mrf.mxu0
        %v4427 = vadd.f32 %v4312, %v4426
        %4428 = vmatmul.f32.gmra.mxu0 %v3977
        %v4429 = vpop.f32.mrf.mxu0
        %v4430 = vadd.f32 %v4315, %v4429
        %4431 = vmatmul.f32.gmra.mxu0 %v3978
        %v4432 = vpop.f32.mrf.mxu0
        %v4433 = vadd.f32 %v4318, %v4432
        %4434 = vmatmul.f32.gmra.mxu0 %v3979
        %v4435 = vpop.f32.mrf.mxu0
        %v4436 = vadd.f32 %v4321, %v4435
        %4437 = vmatmul.f32.gmra.mxu0 %v3980
        %v4438 = vpop.f32.mrf.mxu0
        %4439 = vdwg.mxu0
        %4440 = vmatpush.msra.mxu0 %v4208
        %4441 = vmatpush.msra.mxu0 %v4206
        %4442 = vmatpush.msra.mxu0 %v4204
        %4443 = vmatpush.msra.mxu0 %v4202
        %4444 = vmatpush.msra.mxu0 %v4200
        %4445 = vmatpush.msra.mxu0 %v4198
        %4446 = vmatpush.msra.mxu0 %v4196
        %4447 = vmatpush.msra.mxu0 %v4194
        %4448 = vmatpush.msra.mxu0 %v4192
        %4449 = vmatpush.msra.mxu0 %v4190
        %4450 = vmatpush.msra.mxu0 %v4188
        %4451 = vmatpush.msra.mxu0 %v4186
        %4452 = vmatpush.msra.mxu0 %v4184
        %4453 = vmatpush.msra.mxu0 %v4182
        %4454 = vmatpush.msra.mxu0 %v4180
        %4455 = vmatpush.msra.mxu0 %v4178
        %4456 = vmatmul.f32.gmra.mxu0 %v4111
        %v4457 = vpop.f32.mrf.mxu0
        %v4458 = vadd.f32 %v4343, %v4457
        %4459 = vmatmul.f32.gmra.mxu0 %v4110
        %v4460 = vpop.f32.mrf.mxu0
        %v4461 = vadd.f32 %v4346, %v4460
        %4462 = vmatmul.f32.gmra.mxu0 %v4109
        %v4463 = vpop.f32.mrf.mxu0
        %v4464 = vadd.f32 %v4349, %v4463
        %4465 = vmatmul.f32.gmra.mxu0 %v4108
        %v4466 = vpop.f32.mrf.mxu0
        %v4467 = vadd.f32 %v4352, %v4466
        %4468 = vmatmul.f32.gmra.mxu0 %v4107
        %v4469 = vpop.f32.mrf.mxu0
        %v4470 = vadd.f32 %v4355, %v4469
        %4471 = vmatmul.f32.gmra.mxu0 %v4106
        %v4472 = vpop.f32.mrf.mxu0
        %v4473 = vadd.f32 %v4358, %v4472
        %4474 = vmatmul.f32.gmra.mxu0 %v4105
        %v4475 = vpop.f32.mrf.mxu0
        %v4476 = vadd.f32 %v4361, %v4475
        %4477 = vmatmul.f32.gmra.mxu0 %v4104
        %v4478 = vpop.f32.mrf.mxu0
        %v4479 = vadd.f32 %v4364, %v4478
        %4480 = vmatmul.f32.gmra.mxu0 %v4103
        %v4481 = vpop.f32.mrf.mxu0
        %v4482 = vadd.f32 %v4367, %v4481
        %4483 = vmatmul.f32.gmra.mxu0 %v4102
        %v4484 = vpop.f32.mrf.mxu0
        %v4485 = vadd.f32 %v4370, %v4484
        %4486 = vmatmul.f32.gmra.mxu0 %v4101
        %v4487 = vpop.f32.mrf.mxu0
        %v4488 = vadd.f32 %v4373, %v4487
        %4489 = vmatmul.f32.gmra.mxu0 %v4100
        %v4490 = vpop.f32.mrf.mxu0
        %v4491 = vadd.f32 %v4376, %v4490
        %4492 = vmatmul.f32.gmra.mxu0 %v4099
        %v4493 = vpop.f32.mrf.mxu0
        %v4494 = vadd.f32 %v4379, %v4493
        %4495 = vmatmul.f32.gmra.mxu0 %v4098
        %v4496 = vpop.f32.mrf.mxu0
        %v4497 = vadd.f32 %v4382, %v4496
        %4498 = vmatmul.f32.gmra.mxu0 %v4097
        %v4499 = vpop.f32.mrf.mxu0
        %v4500 = vadd.f32 %v4385, %v4499
        %4501 = vmatmul.f32.gmra.mxu0 %v4096
        %v4502 = vpop.f32.mrf.mxu0
        %v4503 = vadd.f32 %v4388, %v4502
        %4504 = vmatmul.f32.gmra.mxu0 %v4095
        %v4505 = vpop.f32.mrf.mxu0
        %v4506 = vadd.f32 %v4391, %v4505
        %4507 = vmatmul.f32.gmra.mxu0 %v4094
        %v4508 = vpop.f32.mrf.mxu0
        %v4509 = vadd.f32 %v4394, %v4508
        %4510 = vmatmul.f32.gmra.mxu0 %v4093
        %v4511 = vpop.f32.mrf.mxu0
        %v4512 = vadd.f32 %v4397, %v4511
        %4513 = vmatmul.f32.gmra.mxu0 %v4092
        %v4514 = vpop.f32.mrf.mxu0
        %v4515 = vadd.f32 %v4400, %v4514
        %4516 = vmatmul.f32.gmra.mxu0 %v4091
        %v4517 = vpop.f32.mrf.mxu0
        %v4518 = vadd.f32 %v4403, %v4517
        %4519 = vmatmul.f32.gmra.mxu0 %v4090
        %v4520 = vpop.f32.mrf.mxu0
        %v4521 = vadd.f32 %v4406, %v4520
        %4522 = vmatmul.f32.gmra.mxu0 %v4089
        %v4523 = vpop.f32.mrf.mxu0
        %v4524 = vadd.f32 %v4409, %v4523
        %4525 = vmatmul.f32.gmra.mxu0 %v4088
        %v4526 = vpop.f32.mrf.mxu0
        %v4527 = vadd.f32 %v4412, %v4526
        %4528 = vmatmul.f32.gmra.mxu0 %v4087
        %v4529 = vpop.f32.mrf.mxu0
        %v4530 = vadd.f32 %v4415, %v4529
        %4531 = vmatmul.f32.gmra.mxu0 %v4086
        %v4532 = vpop.f32.mrf.mxu0
        %v4533 = vadd.f32 %v4418, %v4532
        %4534 = vmatmul.f32.gmra.mxu0 %v4085
        %v4535 = vpop.f32.mrf.mxu0
        %v4536 = vadd.f32 %v4421, %v4535
        %4537 = vmatmul.f32.gmra.mxu0 %v4084
        %v4538 = vpop.f32.mrf.mxu0
        %v4539 = vadd.f32 %v4424, %v4538
        %4540 = vmatmul.f32.gmra.mxu0 %v4083
        %v4541 = vpop.f32.mrf.mxu0
        %v4542 = vadd.f32 %v4427, %v4541
        %4543 = vmatmul.f32.gmra.mxu0 %v4082
        %v4544 = vpop.f32.mrf.mxu0
        %v4545 = vadd.f32 %v4430, %v4544
        %4546 = vmatmul.f32.gmra.mxu0 %v4081
        %v4547 = vpop.f32.mrf.mxu0
        %v4548 = vadd.f32 %v4433, %v4547
        %4549 = vmatmul.f32.gmra.mxu0 %v4080
        %v4550 = vpop.f32.mrf.mxu0
        %v4551 = vadd.f32 %v4436, %v4550
        %4552 = vmatmul.f32.gmra.mxu0 %v4112
        %v4553 = vpop.f32.mrf.mxu0
        %4554 = vdwg.mxu0
        %4555 = vmatpush.msra.mxu0 %v4145
        %4556 = vmatpush.msra.mxu0 %v4143
        %4557 = vmatpush.msra.mxu0 %v4141
        %4558 = vmatpush.msra.mxu0 %v4139
        %4559 = vmatpush.msra.mxu0 %v4137
        %4560 = vmatpush.msra.mxu0 %v4135
        %4561 = vmatpush.msra.mxu0 %v4133
        %4562 = vmatpush.msra.mxu0 %v4131
        %4563 = vmatpush.msra.mxu0 %v4129
        %4564 = vmatpush.msra.mxu0 %v4127
        %4565 = vmatpush.msra.mxu0 %v4125
        %4566 = vmatpush.msra.mxu0 %v4123
        %4567 = vmatpush.msra.mxu0 %v4121
        %4568 = vmatpush.msra.mxu0 %v4119
        %4569 = vmatpush.msra.mxu0 %v4117
        %4570 = vmatpush.msra.mxu0 %v4115
        %4571 = vmatmul.f32.gmra.mxu0 %v4046
        %v4572 = vpop.f32.mrf.mxu0
        %v4573 = vadd.f32 0.0, %v4572
        %4574 = vmatmul.f32.gmra.mxu0 %v4045
        %v4575 = vpop.f32.mrf.mxu0
        %v4576 = vadd.f32 0.0, %v4575
        %4577 = vmatmul.f32.gmra.mxu0 %v4044
        %v4578 = vpop.f32.mrf.mxu0
        %v4579 = vadd.f32 0.0, %v4578
        %4580 = vmatmul.f32.gmra.mxu0 %v4043
        %v4581 = vpop.f32.mrf.mxu0
        %v4582 = vadd.f32 0.0, %v4581
        %4583 = vmatmul.f32.gmra.mxu0 %v4042
        %v4584 = vpop.f32.mrf.mxu0
        %v4585 = vadd.f32 0.0, %v4584
        %4586 = vmatmul.f32.gmra.mxu0 %v4041
        %v4587 = vpop.f32.mrf.mxu0
        %v4588 = vadd.f32 0.0, %v4587
        %4589 = vmatmul.f32.gmra.mxu0 %v4040
        %v4590 = vpop.f32.mrf.mxu0
        %v4591 = vadd.f32 0.0, %v4590
        %4592 = vmatmul.f32.gmra.mxu0 %v4039
        %v4593 = vpop.f32.mrf.mxu0
        %v4594 = vadd.f32 0.0, %v4593
        %4595 = vmatmul.f32.gmra.mxu0 %v4038
        %v4596 = vpop.f32.mrf.mxu0
        %v4597 = vadd.f32 0.0, %v4596
        %4598 = vmatmul.f32.gmra.mxu0 %v4037
        %v4599 = vpop.f32.mrf.mxu0
        %v4600 = vadd.f32 0.0, %v4599
        %4601 = vmatmul.f32.gmra.mxu0 %v4036
        %v4602 = vpop.f32.mrf.mxu0
        %v4603 = vadd.f32 0.0, %v4602
        %4604 = vmatmul.f32.gmra.mxu0 %v4035
        %v4605 = vpop.f32.mrf.mxu0
        %v4606 = vadd.f32 0.0, %v4605
        %4607 = vmatmul.f32.gmra.mxu0 %v4034
        %v4608 = vpop.f32.mrf.mxu0
        %v4609 = vadd.f32 0.0, %v4608
        %4610 = vmatmul.f32.gmra.mxu0 %v4033
        %v4611 = vpop.f32.mrf.mxu0
        %v4612 = vadd.f32 0.0, %v4611
        %4613 = vmatmul.f32.gmra.mxu0 %v4032
        %v4614 = vpop.f32.mrf.mxu0
        %v4615 = vadd.f32 0.0, %v4614
        %4616 = vmatmul.f32.gmra.mxu0 %v4031
        %v4617 = vpop.f32.mrf.mxu0
        %v4618 = vadd.f32 0.0, %v4617
        %4619 = vmatmul.f32.gmra.mxu0 %v4030
        %v4620 = vpop.f32.mrf.mxu0
        %v4621 = vadd.f32 0.0, %v4620
        %4622 = vmatmul.f32.gmra.mxu0 %v4029
        %v4623 = vpop.f32.mrf.mxu0
        %v4624 = vadd.f32 0.0, %v4623
        %4625 = vmatmul.f32.gmra.mxu0 %v4028
        %v4626 = vpop.f32.mrf.mxu0
        %v4627 = vadd.f32 0.0, %v4626
        %4628 = vmatmul.f32.gmra.mxu0 %v4027
        %v4629 = vpop.f32.mrf.mxu0
        %v4630 = vadd.f32 0.0, %v4629
        %4631 = vmatmul.f32.gmra.mxu0 %v4026
        %v4632 = vpop.f32.mrf.mxu0
        %v4633 = vadd.f32 0.0, %v4632
        %4634 = vmatmul.f32.gmra.mxu0 %v4025
        %v4635 = vpop.f32.mrf.mxu0
        %v4636 = vadd.f32 0.0, %v4635
        %4637 = vmatmul.f32.gmra.mxu0 %v4024
        %v4638 = vpop.f32.mrf.mxu0
        %v4639 = vadd.f32 0.0, %v4638
        %4640 = vmatmul.f32.gmra.mxu0 %v4023
        %v4641 = vpop.f32.mrf.mxu0
        %v4642 = vadd.f32 0.0, %v4641
        %4643 = vmatmul.f32.gmra.mxu0 %v4022
        %v4644 = vpop.f32.mrf.mxu0
        %v4645 = vadd.f32 0.0, %v4644
        %4646 = vmatmul.f32.gmra.mxu0 %v4021
        %v4647 = vpop.f32.mrf.mxu0
        %v4648 = vadd.f32 0.0, %v4647
        %4649 = vmatmul.f32.gmra.mxu0 %v4020
        %v4650 = vpop.f32.mrf.mxu0
        %v4651 = vadd.f32 0.0, %v4650
        %4652 = vmatmul.f32.gmra.mxu0 %v4019
        %v4653 = vpop.f32.mrf.mxu0
        %v4654 = vadd.f32 0.0, %v4653
        %4655 = vmatmul.f32.gmra.mxu0 %v4018
        %v4656 = vpop.f32.mrf.mxu0
        %v4657 = vadd.f32 0.0, %v4656
        %4658 = vmatmul.f32.gmra.mxu0 %v4017
        %v4659 = vpop.f32.mrf.mxu0
        %v4660 = vadd.f32 0.0, %v4659
        %4661 = vmatmul.f32.gmra.mxu0 %v4016
        %v4662 = vpop.f32.mrf.mxu0
        %v4663 = vadd.f32 0.0, %v4662
        %4664 = vmatmul.f32.gmra.mxu0 %v4015
        %v4665 = vpop.f32.mrf.mxu0
        %v4666 = vadd.f32 0.0, %v4665
        %4667 = vmatmul.f32.gmra.mxu0 %v4014
        %v4668 = vpop.f32.mrf.mxu0
        %4669 = vdwg.mxu0
        %4670 = vmatpush.msra.mxu0 %v4177
        %4671 = vmatpush.msra.mxu0 %v4175
        %4672 = vmatpush.msra.mxu0 %v4173
        %4673 = vmatpush.msra.mxu0 %v4171
        %4674 = vmatpush.msra.mxu0 %v4169
        %4675 = vmatpush.msra.mxu0 %v4167
        %4676 = vmatpush.msra.mxu0 %v4165
        %4677 = vmatpush.msra.mxu0 %v4163
        %4678 = vmatpush.msra.mxu0 %v4161
        %4679 = vmatpush.msra.mxu0 %v4159
        %4680 = vmatpush.msra.mxu0 %v4157
        %4681 = vmatpush.msra.mxu0 %v4155
        %4682 = vmatpush.msra.mxu0 %v4153
        %4683 = vmatpush.msra.mxu0 %v4151
        %4684 = vmatpush.msra.mxu0 %v4149
        %4685 = vmatpush.msra.mxu0 %v4147
        %4686 = vmatmul.f32.gmra.mxu0 %v3948
        %v4687 = vpop.f32.mrf.mxu0
        %v4688 = vadd.f32 %v4573, %v4687
        %4689 = vmatmul.f32.gmra.mxu0 %v3949
        %v4690 = vpop.f32.mrf.mxu0
        %v4691 = vadd.f32 %v4576, %v4690
        %4692 = vmatmul.f32.gmra.mxu0 %v3950
        %v4693 = vpop.f32.mrf.mxu0
        %v4694 = vadd.f32 %v4579, %v4693
        %4695 = vmatmul.f32.gmra.mxu0 %v3951
        %v4696 = vpop.f32.mrf.mxu0
        %v4697 = vadd.f32 %v4582, %v4696
        %4698 = vmatmul.f32.gmra.mxu0 %v3952
        %v4699 = vpop.f32.mrf.mxu0
        %v4700 = vadd.f32 %v4585, %v4699
        %4701 = vmatmul.f32.gmra.mxu0 %v3953
        %v4702 = vpop.f32.mrf.mxu0
        %v4703 = vadd.f32 %v4588, %v4702
        %4704 = vmatmul.f32.gmra.mxu0 %v3954
        %v4705 = vpop.f32.mrf.mxu0
        %v4706 = vadd.f32 %v4591, %v4705
        %4707 = vmatmul.f32.gmra.mxu0 %v3955
        %v4708 = vpop.f32.mrf.mxu0
        %v4709 = vadd.f32 %v4594, %v4708
        %4710 = vmatmul.f32.gmra.mxu0 %v3956
        %v4711 = vpop.f32.mrf.mxu0
        %v4712 = vadd.f32 %v4597, %v4711
        %4713 = vmatmul.f32.gmra.mxu0 %v3957
        %v4714 = vpop.f32.mrf.mxu0
        %v4715 = vadd.f32 %v4600, %v4714
        %4716 = vmatmul.f32.gmra.mxu0 %v3958
        %v4717 = vpop.f32.mrf.mxu0
        %v4718 = vadd.f32 %v4603, %v4717
        %4719 = vmatmul.f32.gmra.mxu0 %v3959
        %v4720 = vpop.f32.mrf.mxu0
        %v4721 = vadd.f32 %v4606, %v4720
        %4722 = vmatmul.f32.gmra.mxu0 %v3960
        %v4723 = vpop.f32.mrf.mxu0
        %v4724 = vadd.f32 %v4609, %v4723
        %4725 = vmatmul.f32.gmra.mxu0 %v3961
        %v4726 = vpop.f32.mrf.mxu0
        %v4727 = vadd.f32 %v4612, %v4726
        %4728 = vmatmul.f32.gmra.mxu0 %v3962
        %v4729 = vpop.f32.mrf.mxu0
        %v4730 = vadd.f32 %v4615, %v4729
        %4731 = vmatmul.f32.gmra.mxu0 %v3963
        %v4732 = vpop.f32.mrf.mxu0
        %v4733 = vadd.f32 %v4618, %v4732
        %4734 = vmatmul.f32.gmra.mxu0 %v3964
        %v4735 = vpop.f32.mrf.mxu0
        %v4736 = vadd.f32 %v4621, %v4735
        %4737 = vmatmul.f32.gmra.mxu0 %v3965
        %v4738 = vpop.f32.mrf.mxu0
        %v4739 = vadd.f32 %v4624, %v4738
        %4740 = vmatmul.f32.gmra.mxu0 %v3966
        %v4741 = vpop.f32.mrf.mxu0
        %v4742 = vadd.f32 %v4627, %v4741
        %4743 = vmatmul.f32.gmra.mxu0 %v3967
        %v4744 = vpop.f32.mrf.mxu0
        %v4745 = vadd.f32 %v4630, %v4744
        %4746 = vmatmul.f32.gmra.mxu0 %v3968
        %v4747 = vpop.f32.mrf.mxu0
        %v4748 = vadd.f32 %v4633, %v4747
        %4749 = vmatmul.f32.gmra.mxu0 %v3969
        %v4750 = vpop.f32.mrf.mxu0
        %v4751 = vadd.f32 %v4636, %v4750
        %4752 = vmatmul.f32.gmra.mxu0 %v3970
        %v4753 = vpop.f32.mrf.mxu0
        %v4754 = vadd.f32 %v4639, %v4753
        %4755 = vmatmul.f32.gmra.mxu0 %v3971
        %v4756 = vpop.f32.mrf.mxu0
        %v4757 = vadd.f32 %v4642, %v4756
        %4758 = vmatmul.f32.gmra.mxu0 %v3972
        %v4759 = vpop.f32.mrf.mxu0
        %v4760 = vadd.f32 %v4645, %v4759
        %4761 = vmatmul.f32.gmra.mxu0 %v3973
        %v4762 = vpop.f32.mrf.mxu0
        %v4763 = vadd.f32 %v4648, %v4762
        %4764 = vmatmul.f32.gmra.mxu0 %v3974
        %v4765 = vpop.f32.mrf.mxu0
        %v4766 = vadd.f32 %v4651, %v4765
        %4767 = vmatmul.f32.gmra.mxu0 %v3975
        %v4768 = vpop.f32.mrf.mxu0
        %v4769 = vadd.f32 %v4654, %v4768
        %4770 = vmatmul.f32.gmra.mxu0 %v3976
        %v4771 = vpop.f32.mrf.mxu0
        %v4772 = vadd.f32 %v4657, %v4771
        %4773 = vmatmul.f32.gmra.mxu0 %v3977
        %v4774 = vpop.f32.mrf.mxu0
        %v4775 = vadd.f32 %v4660, %v4774
        %4776 = vmatmul.f32.gmra.mxu0 %v3978
        %v4777 = vpop.f32.mrf.mxu0
        %v4778 = vadd.f32 %v4663, %v4777
        %4779 = vmatmul.f32.gmra.mxu0 %v3979
        %v4780 = vpop.f32.mrf.mxu0
        %v4781 = vadd.f32 %v4666, %v4780
        %4782 = vmatmul.f32.gmra.mxu0 %v3980
        %v4783 = vpop.f32.mrf.mxu0
        %4784 = vdwg.mxu0
        %4785 = vmatpush.msra.mxu0 %v4209
        %4786 = vmatpush.msra.mxu0 %v4207
        %4787 = vmatpush.msra.mxu0 %v4205
        %4788 = vmatpush.msra.mxu0 %v4203
        %4789 = vmatpush.msra.mxu0 %v4201
        %4790 = vmatpush.msra.mxu0 %v4199
        %4791 = vmatpush.msra.mxu0 %v4197
        %4792 = vmatpush.msra.mxu0 %v4195
        %4793 = vmatpush.msra.mxu0 %v4193
        %4794 = vmatpush.msra.mxu0 %v4191
        %4795 = vmatpush.msra.mxu0 %v4189
        %4796 = vmatpush.msra.mxu0 %v4187
        %4797 = vmatpush.msra.mxu0 %v4185
        %4798 = vmatpush.msra.mxu0 %v4183
        %4799 = vmatpush.msra.mxu0 %v4181
        %4800 = vmatpush.msra.mxu0 %v4179
        %4801 = vmatmul.f32.gmra.mxu0 %v4111
        %v4802 = vpop.f32.mrf.mxu0
        %v4803 = vadd.f32 %v4688, %v4802
        %4804 = vmatmul.f32.gmra.mxu0 %v4110
        %v4805 = vpop.f32.mrf.mxu0
        %v4806 = vadd.f32 %v4691, %v4805
        %4807 = vmatmul.f32.gmra.mxu0 %v4109
        %v4808 = vpop.f32.mrf.mxu0
        %v4809 = vadd.f32 %v4694, %v4808
        %4810 = vmatmul.f32.gmra.mxu0 %v4108
        %v4811 = vpop.f32.mrf.mxu0
        %v4812 = vadd.f32 %v4697, %v4811
        %4813 = vmatmul.f32.gmra.mxu0 %v4107
        %v4814 = vpop.f32.mrf.mxu0
        %v4815 = vadd.f32 %v4700, %v4814
        %4816 = vmatmul.f32.gmra.mxu0 %v4106
        %v4817 = vpop.f32.mrf.mxu0
        %v4818 = vadd.f32 %v4703, %v4817
        %4819 = vmatmul.f32.gmra.mxu0 %v4105
        %v4820 = vpop.f32.mrf.mxu0
        %v4821 = vadd.f32 %v4706, %v4820
        %4822 = vmatmul.f32.gmra.mxu0 %v4104
        %v4823 = vpop.f32.mrf.mxu0
        %v4824 = vadd.f32 %v4709, %v4823
        %4825 = vmatmul.f32.gmra.mxu0 %v4103
        %v4826 = vpop.f32.mrf.mxu0
        %v4827 = vadd.f32 %v4712, %v4826
        %4828 = vmatmul.f32.gmra.mxu0 %v4102
        %v4829 = vpop.f32.mrf.mxu0
        %v4830 = vadd.f32 %v4715, %v4829
        %4831 = vmatmul.f32.gmra.mxu0 %v4101
        %v4832 = vpop.f32.mrf.mxu0
        %v4833 = vadd.f32 %v4718, %v4832
        %4834 = vmatmul.f32.gmra.mxu0 %v4100
        %v4835 = vpop.f32.mrf.mxu0
        %v4836 = vadd.f32 %v4721, %v4835
        %4837 = vmatmul.f32.gmra.mxu0 %v4099
        %v4838 = vpop.f32.mrf.mxu0
        %v4839 = vadd.f32 %v4724, %v4838
        %4840 = vmatmul.f32.gmra.mxu0 %v4098
        %v4841 = vpop.f32.mrf.mxu0
        %v4842 = vadd.f32 %v4727, %v4841
        %4843 = vmatmul.f32.gmra.mxu0 %v4097
        %v4844 = vpop.f32.mrf.mxu0
        %v4845 = vadd.f32 %v4730, %v4844
        %4846 = vmatmul.f32.gmra.mxu0 %v4096
        %v4847 = vpop.f32.mrf.mxu0
        %v4848 = vadd.f32 %v4733, %v4847
        %4849 = vmatmul.f32.gmra.mxu0 %v4095
        %v4850 = vpop.f32.mrf.mxu0
        %v4851 = vadd.f32 %v4736, %v4850
        %4852 = vmatmul.f32.gmra.mxu0 %v4094
        %v4853 = vpop.f32.mrf.mxu0
        %v4854 = vadd.f32 %v4739, %v4853
        %4855 = vmatmul.f32.gmra.mxu0 %v4093
        %v4856 = vpop.f32.mrf.mxu0
        %v4857 = vadd.f32 %v4742, %v4856
        %4858 = vmatmul.f32.gmra.mxu0 %v4092
        %v4859 = vpop.f32.mrf.mxu0
        %v4860 = vadd.f32 %v4745, %v4859
        %4861 = vmatmul.f32.gmra.mxu0 %v4091
        %v4862 = vpop.f32.mrf.mxu0
        %v4863 = vadd.f32 %v4748, %v4862
        %4864 = vmatmul.f32.gmra.mxu0 %v4090
        %v4865 = vpop.f32.mrf.mxu0
        %v4866 = vadd.f32 %v4751, %v4865
        %4867 = vmatmul.f32.gmra.mxu0 %v4089
        %v4868 = vpop.f32.mrf.mxu0
        %v4869 = vadd.f32 %v4754, %v4868
        %4870 = vmatmul.f32.gmra.mxu0 %v4088
        %v4871 = vpop.f32.mrf.mxu0
        %v4872 = vadd.f32 %v4757, %v4871
        %4873 = vmatmul.f32.gmra.mxu0 %v4087
        %v4874 = vpop.f32.mrf.mxu0
        %v4875 = vadd.f32 %v4760, %v4874
        %4876 = vmatmul.f32.gmra.mxu0 %v4086
        %v4877 = vpop.f32.mrf.mxu0
        %v4878 = vadd.f32 %v4763, %v4877
        %4879 = vmatmul.f32.gmra.mxu0 %v4085
        %v4880 = vpop.f32.mrf.mxu0
        %v4881 = vadd.f32 %v4766, %v4880
        %4882 = vmatmul.f32.gmra.mxu0 %v4084
        %v4883 = vpop.f32.mrf.mxu0
        %v4884 = vadd.f32 %v4769, %v4883
        %4885 = vmatmul.f32.gmra.mxu0 %v4083
        %v4886 = vpop.f32.mrf.mxu0
        %v4887 = vadd.f32 %v4772, %v4886
        %4888 = vmatmul.f32.gmra.mxu0 %v4082
        %v4889 = vpop.f32.mrf.mxu0
        %v4890 = vadd.f32 %v4775, %v4889
        %4891 = vmatmul.f32.gmra.mxu0 %v4081
        %v4892 = vpop.f32.mrf.mxu0
        %v4893 = vadd.f32 %v4778, %v4892
        %4894 = vmatmul.f32.gmra.mxu0 %v4080
        %v4895 = vpop.f32.mrf.mxu0
        %v4896 = vadd.f32 %v4781, %v4895
        %4897 = vmatmul.f32.gmra.mxu0 %v4112
        %v4898 = vpop.f32.mrf.mxu0
        %4899 = vdwg.mxu0
        %v4900 = vxor.u32 %v4803, 2147483648
        %v4901 = vxor.u32 %v4806, 2147483648
        %v4902 = vxor.u32 %v4809, 2147483648
        %v4903 = vxor.u32 %v4812, 2147483648
        %v4904 = vxor.u32 %v4815, 2147483648
        %v4905 = vxor.u32 %v4818, 2147483648
        %v4906 = vxor.u32 %v4821, 2147483648
        %v4907 = vxor.u32 %v4824, 2147483648
        %v4908 = vxor.u32 %v4827, 2147483648
        %v4909 = vxor.u32 %v4830, 2147483648
        %v4910 = vxor.u32 %v4833, 2147483648
        %v4911 = vxor.u32 %v4836, 2147483648
        %v4912 = vxor.u32 %v4839, 2147483648
        %v4913 = vxor.u32 %v4842, 2147483648
        %v4914 = vxor.u32 %v4845, 2147483648
        %v4915 = vxor.u32 %v4848, 2147483648
        %v4916 = vxor.u32 %v4851, 2147483648
        %v4917 = vxor.u32 %v4854, 2147483648
        %v4918 = vxor.u32 %v4857, 2147483648
        %v4919 = vxor.u32 %v4860, 2147483648
        %v4920 = vxor.u32 %v4863, 2147483648
        %v4921 = vxor.u32 %v4866, 2147483648
        %v4922 = vxor.u32 %v4869, 2147483648
        %v4923 = vxor.u32 %v4872, 2147483648
        %v4924 = vxor.u32 %v4875, 2147483648
        %v4925 = vxor.u32 %v4878, 2147483648
        %v4926 = vxor.u32 %v4881, 2147483648
        %v4927 = vxor.u32 %v4884, 2147483648
        %v4928 = vxor.u32 %v4887, 2147483648
        %v4929 = vxor.u32 %v4890, 2147483648
        %v4930 = vxor.u32 %v4893, 2147483648
        %v4931 = vxor.u32 %v4896, 2147483648
        %v4932 = vmul.f32 %v4900, 1.442695
        %v4933 = vpow.pop %v4932
        %v4934 = vmul.f32 %v4901, 1.442695
        %v4935 = vpow.pop %v4934
        %v4936 = vmul.f32 %v4902, 1.442695
        %v4937 = vpow.pop %v4936
        %v4938 = vmul.f32 %v4903, 1.442695
        %v4939 = vpow.pop %v4938
        %v4940 = vmul.f32 %v4904, 1.442695
        %v4941 = vpow.pop %v4940
        %v4942 = vmul.f32 %v4905, 1.442695
        %v4943 = vpow.pop %v4942
        %v4944 = vmul.f32 %v4906, 1.442695
        %v4945 = vpow.pop %v4944
        %v4946 = vmul.f32 %v4907, 1.442695
        %v4947 = vpow.pop %v4946
        %v4948 = vmul.f32 %v4908, 1.442695
        %v4949 = vpow.pop %v4948
        %v4950 = vmul.f32 %v4909, 1.442695
        %v4951 = vpow.pop %v4950
        %v4952 = vmul.f32 %v4910, 1.442695
        %v4953 = vpow.pop %v4952
        %v4954 = vmul.f32 %v4911, 1.442695
        %v4955 = vpow.pop %v4954
        %v4956 = vmul.f32 %v4912, 1.442695
        %v4957 = vpow.pop %v4956
        %v4958 = vmul.f32 %v4913, 1.442695
        %v4959 = vpow.pop %v4958
        %v4960 = vmul.f32 %v4914, 1.442695
        %v4961 = vpow.pop %v4960
        %v4962 = vmul.f32 %v4915, 1.442695
        %v4963 = vpow.pop %v4962
        %v4964 = vmul.f32 %v4916, 1.442695
        %v4965 = vpow.pop %v4964
        %v4966 = vmul.f32 %v4917, 1.442695
        %v4967 = vpow.pop %v4966
        %v4968 = vmul.f32 %v4918, 1.442695
        %v4969 = vpow.pop %v4968
        %v4970 = vmul.f32 %v4919, 1.442695
        %v4971 = vpow.pop %v4970
        %v4972 = vmul.f32 %v4920, 1.442695
        %v4973 = vpow.pop %v4972
        %v4974 = vmul.f32 %v4921, 1.442695
        %v4975 = vpow.pop %v4974
        %v4976 = vmul.f32 %v4922, 1.442695
        %v4977 = vpow.pop %v4976
        %v4978 = vmul.f32 %v4923, 1.442695
        %v4979 = vpow.pop %v4978
        %v4980 = vmul.f32 %v4924, 1.442695
        %v4981 = vpow.pop %v4980
        %v4982 = vmul.f32 %v4925, 1.442695
        %v4983 = vpow.pop %v4982
        %v4984 = vmul.f32 %v4926, 1.442695
        %v4985 = vpow.pop %v4984
        %v4986 = vmul.f32 %v4927, 1.442695
        %v4987 = vpow.pop %v4986
        %v4988 = vmul.f32 %v4928, 1.442695
        %v4989 = vpow.pop %v4988
        %v4990 = vmul.f32 %v4929, 1.442695
        %v4991 = vpow.pop %v4990
        %v4992 = vmul.f32 %v4930, 1.442695
        %v4993 = vpow.pop %v4992
        %v4994 = vmul.f32 %v4931, 1.442695
        %v4995 = vpow.pop %v4994
        %v4996 = vadd.f32 %v4933, 1.0
        %v4997 = vadd.f32 %v4935, 1.0
        %v4998 = vadd.f32 %v4937, 1.0
        %v4999 = vadd.f32 %v4939, 1.0
        %v5000 = vadd.f32 %v4941, 1.0
        %v5001 = vadd.f32 %v4943, 1.0
        %v5002 = vadd.f32 %v4945, 1.0
        %v5003 = vadd.f32 %v4947, 1.0
        %v5004 = vadd.f32 %v4949, 1.0
        %v5005 = vadd.f32 %v4951, 1.0
        %v5006 = vadd.f32 %v4953, 1.0
        %v5007 = vadd.f32 %v4955, 1.0
        %v5008 = vadd.f32 %v4957, 1.0
        %v5009 = vadd.f32 %v4959, 1.0
        %v5010 = vadd.f32 %v4961, 1.0
        %v5011 = vadd.f32 %v4963, 1.0
        %v5012 = vadd.f32 %v4965, 1.0
        %v5013 = vadd.f32 %v4967, 1.0
        %v5014 = vadd.f32 %v4969, 1.0
        %v5015 = vadd.f32 %v4971, 1.0
        %v5016 = vadd.f32 %v4973, 1.0
        %v5017 = vadd.f32 %v4975, 1.0
        %v5018 = vadd.f32 %v4977, 1.0
        %v5019 = vadd.f32 %v4979, 1.0
        %v5020 = vadd.f32 %v4981, 1.0
        %v5021 = vadd.f32 %v4983, 1.0
        %v5022 = vadd.f32 %v4985, 1.0
        %v5023 = vadd.f32 %v4987, 1.0
        %v5024 = vadd.f32 %v4989, 1.0
        %v5025 = vadd.f32 %v4991, 1.0
        %v5026 = vadd.f32 %v4993, 1.0
        %v5027 = vadd.f32 %v4995, 1.0
        %v5028 = vrcp.pop %v4996
        %v5029 = vmul.f32 %v4996, %v5028
        %v5030 = vsub.f32 1.0, %v5029
        %v5031 = vmul.f32 %v5028, %v5030
        %v5032 = vadd.f32 %v5028, %v5031
        %vm5033 = vweird.f32 %v4996
        %vm5034 = vweird.f32 %v5028
        %vm5035 = vmor %vm5033, %vm5034
        %v5036 = vsel %vm5035, %v5028, %v5032
        %v5037 = vand.u32 2147483647, %v4996
        %vm5038 = vcmp.eq.f32.partialorder %v5037, 8.507059e+37
        %v5039 = vand.u32 %v4996, 2147483648
        %v5040 = vor.u32 1.1754944e-38, %v5039
        %v5041 = vsel %vm5038, %v5040, %v5036
        %v5042 = vmul.f32 1.0, %v5041
        %v5043 = vrcp.pop %v4997
        %v5044 = vmul.f32 %v4997, %v5043
        %v5045 = vsub.f32 1.0, %v5044
        %v5046 = vmul.f32 %v5043, %v5045
        %v5047 = vadd.f32 %v5043, %v5046
        %vm5048 = vweird.f32 %v4997
        %vm5049 = vweird.f32 %v5043
        %vm5050 = vmor %vm5048, %vm5049
        %v5051 = vsel %vm5050, %v5043, %v5047
        %v5052 = vand.u32 2147483647, %v4997
        %vm5053 = vcmp.eq.f32.partialorder %v5052, 8.507059e+37
        %v5054 = vand.u32 %v4997, 2147483648
        %v5055 = vor.u32 1.1754944e-38, %v5054
        %v5056 = vsel %vm5053, %v5055, %v5051
        %v5057 = vmul.f32 1.0, %v5056
        %v5058 = vrcp.pop %v4998
        %v5059 = vmul.f32 %v4998, %v5058
        %v5060 = vsub.f32 1.0, %v5059
        %v5061 = vmul.f32 %v5058, %v5060
        %v5062 = vadd.f32 %v5058, %v5061
        %vm5063 = vweird.f32 %v4998
        %vm5064 = vweird.f32 %v5058
        %vm5065 = vmor %vm5063, %vm5064
        %v5066 = vsel %vm5065, %v5058, %v5062
        %v5067 = vand.u32 2147483647, %v4998
        %vm5068 = vcmp.eq.f32.partialorder %v5067, 8.507059e+37
        %v5069 = vand.u32 %v4998, 2147483648
        %v5070 = vor.u32 1.1754944e-38, %v5069
        %v5071 = vsel %vm5068, %v5070, %v5066
        %v5072 = vmul.f32 1.0, %v5071
        %v5073 = vrcp.pop %v4999
        %v5074 = vmul.f32 %v4999, %v5073
        %v5075 = vsub.f32 1.0, %v5074
        %v5076 = vmul.f32 %v5073, %v5075
        %v5077 = vadd.f32 %v5073, %v5076
        %vm5078 = vweird.f32 %v4999
        %vm5079 = vweird.f32 %v5073
        %vm5080 = vmor %vm5078, %vm5079
        %v5081 = vsel %vm5080, %v5073, %v5077
        %v5082 = vand.u32 2147483647, %v4999
        %vm5083 = vcmp.eq.f32.partialorder %v5082, 8.507059e+37
        %v5084 = vand.u32 %v4999, 2147483648
        %v5085 = vor.u32 1.1754944e-38, %v5084
        %v5086 = vsel %vm5083, %v5085, %v5081
        %v5087 = vmul.f32 1.0, %v5086
        %v5088 = vrcp.pop %v5000
        %v5089 = vmul.f32 %v5000, %v5088
        %v5090 = vsub.f32 1.0, %v5089
        %v5091 = vmul.f32 %v5088, %v5090
        %v5092 = vadd.f32 %v5088, %v5091
        %vm5093 = vweird.f32 %v5000
        %vm5094 = vweird.f32 %v5088
        %vm5095 = vmor %vm5093, %vm5094
        %v5096 = vsel %vm5095, %v5088, %v5092
        %v5097 = vand.u32 2147483647, %v5000
        %vm5098 = vcmp.eq.f32.partialorder %v5097, 8.507059e+37
        %v5099 = vand.u32 %v5000, 2147483648
        %v5100 = vor.u32 1.1754944e-38, %v5099
        %v5101 = vsel %vm5098, %v5100, %v5096
        %v5102 = vmul.f32 1.0, %v5101
        %v5103 = vrcp.pop %v5001
        %v5104 = vmul.f32 %v5001, %v5103
        %v5105 = vsub.f32 1.0, %v5104
        %v5106 = vmul.f32 %v5103, %v5105
        %v5107 = vadd.f32 %v5103, %v5106
        %vm5108 = vweird.f32 %v5001
        %vm5109 = vweird.f32 %v5103
        %vm5110 = vmor %vm5108, %vm5109
        %v5111 = vsel %vm5110, %v5103, %v5107
        %v5112 = vand.u32 2147483647, %v5001
        %vm5113 = vcmp.eq.f32.partialorder %v5112, 8.507059e+37
        %v5114 = vand.u32 %v5001, 2147483648
        %v5115 = vor.u32 1.1754944e-38, %v5114
        %v5116 = vsel %vm5113, %v5115, %v5111
        %v5117 = vmul.f32 1.0, %v5116
        %v5118 = vrcp.pop %v5002
        %v5119 = vmul.f32 %v5002, %v5118
        %v5120 = vsub.f32 1.0, %v5119
        %v5121 = vmul.f32 %v5118, %v5120
        %v5122 = vadd.f32 %v5118, %v5121
        %vm5123 = vweird.f32 %v5002
        %vm5124 = vweird.f32 %v5118
        %vm5125 = vmor %vm5123, %vm5124
        %v5126 = vsel %vm5125, %v5118, %v5122
        %v5127 = vand.u32 2147483647, %v5002
        %vm5128 = vcmp.eq.f32.partialorder %v5127, 8.507059e+37
        %v5129 = vand.u32 %v5002, 2147483648
        %v5130 = vor.u32 1.1754944e-38, %v5129
        %v5131 = vsel %vm5128, %v5130, %v5126
        %v5132 = vmul.f32 1.0, %v5131
        %v5133 = vrcp.pop %v5003
        %v5134 = vmul.f32 %v5003, %v5133
        %v5135 = vsub.f32 1.0, %v5134
        %v5136 = vmul.f32 %v5133, %v5135
        %v5137 = vadd.f32 %v5133, %v5136
        %vm5138 = vweird.f32 %v5003
        %vm5139 = vweird.f32 %v5133
        %vm5140 = vmor %vm5138, %vm5139
        %v5141 = vsel %vm5140, %v5133, %v5137
        %v5142 = vand.u32 2147483647, %v5003
        %vm5143 = vcmp.eq.f32.partialorder %v5142, 8.507059e+37
        %v5144 = vand.u32 %v5003, 2147483648
        %v5145 = vor.u32 1.1754944e-38, %v5144
        %v5146 = vsel %vm5143, %v5145, %v5141
        %v5147 = vmul.f32 1.0, %v5146
        %v5148 = vrcp.pop %v5004
        %v5149 = vmul.f32 %v5004, %v5148
        %v5150 = vsub.f32 1.0, %v5149
        %v5151 = vmul.f32 %v5148, %v5150
        %v5152 = vadd.f32 %v5148, %v5151
        %vm5153 = vweird.f32 %v5004
        %vm5154 = vweird.f32 %v5148
        %vm5155 = vmor %vm5153, %vm5154
        %v5156 = vsel %vm5155, %v5148, %v5152
        %v5157 = vand.u32 2147483647, %v5004
        %vm5158 = vcmp.eq.f32.partialorder %v5157, 8.507059e+37
        %v5159 = vand.u32 %v5004, 2147483648
        %v5160 = vor.u32 1.1754944e-38, %v5159
        %v5161 = vsel %vm5158, %v5160, %v5156
        %v5162 = vmul.f32 1.0, %v5161
        %v5163 = vrcp.pop %v5005
        %v5164 = vmul.f32 %v5005, %v5163
        %v5165 = vsub.f32 1.0, %v5164
        %v5166 = vmul.f32 %v5163, %v5165
        %v5167 = vadd.f32 %v5163, %v5166
        %vm5168 = vweird.f32 %v5005
        %vm5169 = vweird.f32 %v5163
        %vm5170 = vmor %vm5168, %vm5169
        %v5171 = vsel %vm5170, %v5163, %v5167
        %v5172 = vand.u32 2147483647, %v5005
        %vm5173 = vcmp.eq.f32.partialorder %v5172, 8.507059e+37
        %v5174 = vand.u32 %v5005, 2147483648
        %v5175 = vor.u32 1.1754944e-38, %v5174
        %v5176 = vsel %vm5173, %v5175, %v5171
        %v5177 = vmul.f32 1.0, %v5176
        %v5178 = vrcp.pop %v5006
        %v5179 = vmul.f32 %v5006, %v5178
        %v5180 = vsub.f32 1.0, %v5179
        %v5181 = vmul.f32 %v5178, %v5180
        %v5182 = vadd.f32 %v5178, %v5181
        %vm5183 = vweird.f32 %v5006
        %vm5184 = vweird.f32 %v5178
        %vm5185 = vmor %vm5183, %vm5184
        %v5186 = vsel %vm5185, %v5178, %v5182
        %v5187 = vand.u32 2147483647, %v5006
        %vm5188 = vcmp.eq.f32.partialorder %v5187, 8.507059e+37
        %v5189 = vand.u32 %v5006, 2147483648
        %v5190 = vor.u32 1.1754944e-38, %v5189
        %v5191 = vsel %vm5188, %v5190, %v5186
        %v5192 = vmul.f32 1.0, %v5191
        %v5193 = vrcp.pop %v5007
        %v5194 = vmul.f32 %v5007, %v5193
        %v5195 = vsub.f32 1.0, %v5194
        %v5196 = vmul.f32 %v5193, %v5195
        %v5197 = vadd.f32 %v5193, %v5196
        %vm5198 = vweird.f32 %v5007
        %vm5199 = vweird.f32 %v5193
        %vm5200 = vmor %vm5198, %vm5199
        %v5201 = vsel %vm5200, %v5193, %v5197
        %v5202 = vand.u32 2147483647, %v5007
        %vm5203 = vcmp.eq.f32.partialorder %v5202, 8.507059e+37
        %v5204 = vand.u32 %v5007, 2147483648
        %v5205 = vor.u32 1.1754944e-38, %v5204
        %v5206 = vsel %vm5203, %v5205, %v5201
        %v5207 = vmul.f32 1.0, %v5206
        %v5208 = vrcp.pop %v5008
        %v5209 = vmul.f32 %v5008, %v5208
        %v5210 = vsub.f32 1.0, %v5209
        %v5211 = vmul.f32 %v5208, %v5210
        %v5212 = vadd.f32 %v5208, %v5211
        %vm5213 = vweird.f32 %v5008
        %vm5214 = vweird.f32 %v5208
        %vm5215 = vmor %vm5213, %vm5214
        %v5216 = vsel %vm5215, %v5208, %v5212
        %v5217 = vand.u32 2147483647, %v5008
        %vm5218 = vcmp.eq.f32.partialorder %v5217, 8.507059e+37
        %v5219 = vand.u32 %v5008, 2147483648
        %v5220 = vor.u32 1.1754944e-38, %v5219
        %v5221 = vsel %vm5218, %v5220, %v5216
        %v5222 = vmul.f32 1.0, %v5221
        %v5223 = vrcp.pop %v5009
        %v5224 = vmul.f32 %v5009, %v5223
        %v5225 = vsub.f32 1.0, %v5224
        %v5226 = vmul.f32 %v5223, %v5225
        %v5227 = vadd.f32 %v5223, %v5226
        %vm5228 = vweird.f32 %v5009
        %vm5229 = vweird.f32 %v5223
        %vm5230 = vmor %vm5228, %vm5229
        %v5231 = vsel %vm5230, %v5223, %v5227
        %v5232 = vand.u32 2147483647, %v5009
        %vm5233 = vcmp.eq.f32.partialorder %v5232, 8.507059e+37
        %v5234 = vand.u32 %v5009, 2147483648
        %v5235 = vor.u32 1.1754944e-38, %v5234
        %v5236 = vsel %vm5233, %v5235, %v5231
        %v5237 = vmul.f32 1.0, %v5236
        %v5238 = vrcp.pop %v5010
        %v5239 = vmul.f32 %v5010, %v5238
        %v5240 = vsub.f32 1.0, %v5239
        %v5241 = vmul.f32 %v5238, %v5240
        %v5242 = vadd.f32 %v5238, %v5241
        %vm5243 = vweird.f32 %v5010
        %vm5244 = vweird.f32 %v5238
        %vm5245 = vmor %vm5243, %vm5244
        %v5246 = vsel %vm5245, %v5238, %v5242
        %v5247 = vand.u32 2147483647, %v5010
        %vm5248 = vcmp.eq.f32.partialorder %v5247, 8.507059e+37
        %v5249 = vand.u32 %v5010, 2147483648
        %v5250 = vor.u32 1.1754944e-38, %v5249
        %v5251 = vsel %vm5248, %v5250, %v5246
        %v5252 = vmul.f32 1.0, %v5251
        %v5253 = vrcp.pop %v5011
        %v5254 = vmul.f32 %v5011, %v5253
        %v5255 = vsub.f32 1.0, %v5254
        %v5256 = vmul.f32 %v5253, %v5255
        %v5257 = vadd.f32 %v5253, %v5256
        %vm5258 = vweird.f32 %v5011
        %vm5259 = vweird.f32 %v5253
        %vm5260 = vmor %vm5258, %vm5259
        %v5261 = vsel %vm5260, %v5253, %v5257
        %v5262 = vand.u32 2147483647, %v5011
        %vm5263 = vcmp.eq.f32.partialorder %v5262, 8.507059e+37
        %v5264 = vand.u32 %v5011, 2147483648
        %v5265 = vor.u32 1.1754944e-38, %v5264
        %v5266 = vsel %vm5263, %v5265, %v5261
        %v5267 = vmul.f32 1.0, %v5266
        %v5268 = vrcp.pop %v5012
        %v5269 = vmul.f32 %v5012, %v5268
        %v5270 = vsub.f32 1.0, %v5269
        %v5271 = vmul.f32 %v5268, %v5270
        %v5272 = vadd.f32 %v5268, %v5271
        %vm5273 = vweird.f32 %v5012
        %vm5274 = vweird.f32 %v5268
        %vm5275 = vmor %vm5273, %vm5274
        %v5276 = vsel %vm5275, %v5268, %v5272
        %v5277 = vand.u32 2147483647, %v5012
        %vm5278 = vcmp.eq.f32.partialorder %v5277, 8.507059e+37
        %v5279 = vand.u32 %v5012, 2147483648
        %v5280 = vor.u32 1.1754944e-38, %v5279
        %v5281 = vsel %vm5278, %v5280, %v5276
        %v5282 = vmul.f32 1.0, %v5281
        %v5283 = vrcp.pop %v5013
        %v5284 = vmul.f32 %v5013, %v5283
        %v5285 = vsub.f32 1.0, %v5284
        %v5286 = vmul.f32 %v5283, %v5285
        %v5287 = vadd.f32 %v5283, %v5286
        %vm5288 = vweird.f32 %v5013
        %vm5289 = vweird.f32 %v5283
        %vm5290 = vmor %vm5288, %vm5289
        %v5291 = vsel %vm5290, %v5283, %v5287
        %v5292 = vand.u32 2147483647, %v5013
        %vm5293 = vcmp.eq.f32.partialorder %v5292, 8.507059e+37
        %v5294 = vand.u32 %v5013, 2147483648
        %v5295 = vor.u32 1.1754944e-38, %v5294
        %v5296 = vsel %vm5293, %v5295, %v5291
        %v5297 = vmul.f32 1.0, %v5296
        %v5298 = vrcp.pop %v5014
        %v5299 = vmul.f32 %v5014, %v5298
        %v5300 = vsub.f32 1.0, %v5299
        %v5301 = vmul.f32 %v5298, %v5300
        %v5302 = vadd.f32 %v5298, %v5301
        %vm5303 = vweird.f32 %v5014
        %vm5304 = vweird.f32 %v5298
        %vm5305 = vmor %vm5303, %vm5304
        %v5306 = vsel %vm5305, %v5298, %v5302
        %v5307 = vand.u32 2147483647, %v5014
        %vm5308 = vcmp.eq.f32.partialorder %v5307, 8.507059e+37
        %v5309 = vand.u32 %v5014, 2147483648
        %v5310 = vor.u32 1.1754944e-38, %v5309
        %v5311 = vsel %vm5308, %v5310, %v5306
        %v5312 = vmul.f32 1.0, %v5311
        %v5313 = vrcp.pop %v5015
        %v5314 = vmul.f32 %v5015, %v5313
        %v5315 = vsub.f32 1.0, %v5314
        %v5316 = vmul.f32 %v5313, %v5315
        %v5317 = vadd.f32 %v5313, %v5316
        %vm5318 = vweird.f32 %v5015
        %vm5319 = vweird.f32 %v5313
        %vm5320 = vmor %vm5318, %vm5319
        %v5321 = vsel %vm5320, %v5313, %v5317
        %v5322 = vand.u32 2147483647, %v5015
        %vm5323 = vcmp.eq.f32.partialorder %v5322, 8.507059e+37
        %v5324 = vand.u32 %v5015, 2147483648
        %v5325 = vor.u32 1.1754944e-38, %v5324
        %v5326 = vsel %vm5323, %v5325, %v5321
        %v5327 = vmul.f32 1.0, %v5326
        %v5328 = vrcp.pop %v5016
        %v5329 = vmul.f32 %v5016, %v5328
        %v5330 = vsub.f32 1.0, %v5329
        %v5331 = vmul.f32 %v5328, %v5330
        %v5332 = vadd.f32 %v5328, %v5331
        %vm5333 = vweird.f32 %v5016
        %vm5334 = vweird.f32 %v5328
        %vm5335 = vmor %vm5333, %vm5334
        %v5336 = vsel %vm5335, %v5328, %v5332
        %v5337 = vand.u32 2147483647, %v5016
        %vm5338 = vcmp.eq.f32.partialorder %v5337, 8.507059e+37
        %v5339 = vand.u32 %v5016, 2147483648
        %v5340 = vor.u32 1.1754944e-38, %v5339
        %v5341 = vsel %vm5338, %v5340, %v5336
        %v5342 = vmul.f32 1.0, %v5341
        %v5343 = vrcp.pop %v5017
        %v5344 = vmul.f32 %v5017, %v5343
        %v5345 = vsub.f32 1.0, %v5344
        %v5346 = vmul.f32 %v5343, %v5345
        %v5347 = vadd.f32 %v5343, %v5346
        %vm5348 = vweird.f32 %v5017
        %vm5349 = vweird.f32 %v5343
        %vm5350 = vmor %vm5348, %vm5349
        %v5351 = vsel %vm5350, %v5343, %v5347
        %v5352 = vand.u32 2147483647, %v5017
        %vm5353 = vcmp.eq.f32.partialorder %v5352, 8.507059e+37
        %v5354 = vand.u32 %v5017, 2147483648
        %v5355 = vor.u32 1.1754944e-38, %v5354
        %v5356 = vsel %vm5353, %v5355, %v5351
        %v5357 = vmul.f32 1.0, %v5356
        %v5358 = vrcp.pop %v5018
        %v5359 = vmul.f32 %v5018, %v5358
        %v5360 = vsub.f32 1.0, %v5359
        %v5361 = vmul.f32 %v5358, %v5360
        %v5362 = vadd.f32 %v5358, %v5361
        %vm5363 = vweird.f32 %v5018
        %vm5364 = vweird.f32 %v5358
        %vm5365 = vmor %vm5363, %vm5364
        %v5366 = vsel %vm5365, %v5358, %v5362
        %v5367 = vand.u32 2147483647, %v5018
        %vm5368 = vcmp.eq.f32.partialorder %v5367, 8.507059e+37
        %v5369 = vand.u32 %v5018, 2147483648
        %v5370 = vor.u32 1.1754944e-38, %v5369
        %v5371 = vsel %vm5368, %v5370, %v5366
        %v5372 = vmul.f32 1.0, %v5371
        %v5373 = vrcp.pop %v5019
        %v5374 = vmul.f32 %v5019, %v5373
        %v5375 = vsub.f32 1.0, %v5374
        %v5376 = vmul.f32 %v5373, %v5375
        %v5377 = vadd.f32 %v5373, %v5376
        %vm5378 = vweird.f32 %v5019
        %vm5379 = vweird.f32 %v5373
        %vm5380 = vmor %vm5378, %vm5379
        %v5381 = vsel %vm5380, %v5373, %v5377
        %v5382 = vand.u32 2147483647, %v5019
        %vm5383 = vcmp.eq.f32.partialorder %v5382, 8.507059e+37
        %v5384 = vand.u32 %v5019, 2147483648
        %v5385 = vor.u32 1.1754944e-38, %v5384
        %v5386 = vsel %vm5383, %v5385, %v5381
        %v5387 = vmul.f32 1.0, %v5386
        %v5388 = vrcp.pop %v5020
        %v5389 = vmul.f32 %v5020, %v5388
        %v5390 = vsub.f32 1.0, %v5389
        %v5391 = vmul.f32 %v5388, %v5390
        %v5392 = vadd.f32 %v5388, %v5391
        %vm5393 = vweird.f32 %v5020
        %vm5394 = vweird.f32 %v5388
        %vm5395 = vmor %vm5393, %vm5394
        %v5396 = vsel %vm5395, %v5388, %v5392
        %v5397 = vand.u32 2147483647, %v5020
        %vm5398 = vcmp.eq.f32.partialorder %v5397, 8.507059e+37
        %v5399 = vand.u32 %v5020, 2147483648
        %v5400 = vor.u32 1.1754944e-38, %v5399
        %v5401 = vsel %vm5398, %v5400, %v5396
        %v5402 = vmul.f32 1.0, %v5401
        %v5403 = vrcp.pop %v5021
        %v5404 = vmul.f32 %v5021, %v5403
        %v5405 = vsub.f32 1.0, %v5404
        %v5406 = vmul.f32 %v5403, %v5405
        %v5407 = vadd.f32 %v5403, %v5406
        %vm5408 = vweird.f32 %v5021
        %vm5409 = vweird.f32 %v5403
        %vm5410 = vmor %vm5408, %vm5409
        %v5411 = vsel %vm5410, %v5403, %v5407
        %v5412 = vand.u32 2147483647, %v5021
        %vm5413 = vcmp.eq.f32.partialorder %v5412, 8.507059e+37
        %v5414 = vand.u32 %v5021, 2147483648
        %v5415 = vor.u32 1.1754944e-38, %v5414
        %v5416 = vsel %vm5413, %v5415, %v5411
        %v5417 = vmul.f32 1.0, %v5416
        %v5418 = vrcp.pop %v5022
        %v5419 = vmul.f32 %v5022, %v5418
        %v5420 = vsub.f32 1.0, %v5419
        %v5421 = vmul.f32 %v5418, %v5420
        %v5422 = vadd.f32 %v5418, %v5421
        %vm5423 = vweird.f32 %v5022
        %vm5424 = vweird.f32 %v5418
        %vm5425 = vmor %vm5423, %vm5424
        %v5426 = vsel %vm5425, %v5418, %v5422
        %v5427 = vand.u32 2147483647, %v5022
        %vm5428 = vcmp.eq.f32.partialorder %v5427, 8.507059e+37
        %v5429 = vand.u32 %v5022, 2147483648
        %v5430 = vor.u32 1.1754944e-38, %v5429
        %v5431 = vsel %vm5428, %v5430, %v5426
        %v5432 = vmul.f32 1.0, %v5431
        %v5433 = vrcp.pop %v5023
        %v5434 = vmul.f32 %v5023, %v5433
        %v5435 = vsub.f32 1.0, %v5434
        %v5436 = vmul.f32 %v5433, %v5435
        %v5437 = vadd.f32 %v5433, %v5436
        %vm5438 = vweird.f32 %v5023
        %vm5439 = vweird.f32 %v5433
        %vm5440 = vmor %vm5438, %vm5439
        %v5441 = vsel %vm5440, %v5433, %v5437
        %v5442 = vand.u32 2147483647, %v5023
        %vm5443 = vcmp.eq.f32.partialorder %v5442, 8.507059e+37
        %v5444 = vand.u32 %v5023, 2147483648
        %v5445 = vor.u32 1.1754944e-38, %v5444
        %v5446 = vsel %vm5443, %v5445, %v5441
        %v5447 = vmul.f32 1.0, %v5446
        %v5448 = vrcp.pop %v5024
        %v5449 = vmul.f32 %v5024, %v5448
        %v5450 = vsub.f32 1.0, %v5449
        %v5451 = vmul.f32 %v5448, %v5450
        %v5452 = vadd.f32 %v5448, %v5451
        %vm5453 = vweird.f32 %v5024
        %vm5454 = vweird.f32 %v5448
        %vm5455 = vmor %vm5453, %vm5454
        %v5456 = vsel %vm5455, %v5448, %v5452
        %v5457 = vand.u32 2147483647, %v5024
        %vm5458 = vcmp.eq.f32.partialorder %v5457, 8.507059e+37
        %v5459 = vand.u32 %v5024, 2147483648
        %v5460 = vor.u32 1.1754944e-38, %v5459
        %v5461 = vsel %vm5458, %v5460, %v5456
        %v5462 = vmul.f32 1.0, %v5461
        %v5463 = vrcp.pop %v5025
        %v5464 = vmul.f32 %v5025, %v5463
        %v5465 = vsub.f32 1.0, %v5464
        %v5466 = vmul.f32 %v5463, %v5465
        %v5467 = vadd.f32 %v5463, %v5466
        %vm5468 = vweird.f32 %v5025
        %vm5469 = vweird.f32 %v5463
        %vm5470 = vmor %vm5468, %vm5469
        %v5471 = vsel %vm5470, %v5463, %v5467
        %v5472 = vand.u32 2147483647, %v5025
        %vm5473 = vcmp.eq.f32.partialorder %v5472, 8.507059e+37
        %v5474 = vand.u32 %v5025, 2147483648
        %v5475 = vor.u32 1.1754944e-38, %v5474
        %v5476 = vsel %vm5473, %v5475, %v5471
        %v5477 = vmul.f32 1.0, %v5476
        %v5478 = vrcp.pop %v5026
        %v5479 = vmul.f32 %v5026, %v5478
        %v5480 = vsub.f32 1.0, %v5479
        %v5481 = vmul.f32 %v5478, %v5480
        %v5482 = vadd.f32 %v5478, %v5481
        %vm5483 = vweird.f32 %v5026
        %vm5484 = vweird.f32 %v5478
        %vm5485 = vmor %vm5483, %vm5484
        %v5486 = vsel %vm5485, %v5478, %v5482
        %v5487 = vand.u32 2147483647, %v5026
        %vm5488 = vcmp.eq.f32.partialorder %v5487, 8.507059e+37
        %v5489 = vand.u32 %v5026, 2147483648
        %v5490 = vor.u32 1.1754944e-38, %v5489
        %v5491 = vsel %vm5488, %v5490, %v5486
        %v5492 = vmul.f32 1.0, %v5491
        %v5493 = vrcp.pop %v5027
        %v5494 = vmul.f32 %v5027, %v5493
        %v5495 = vsub.f32 1.0, %v5494
        %v5496 = vmul.f32 %v5493, %v5495
        %v5497 = vadd.f32 %v5493, %v5496
        %vm5498 = vweird.f32 %v5027
        %vm5499 = vweird.f32 %v5493
        %vm5500 = vmor %vm5498, %vm5499
        %v5501 = vsel %vm5500, %v5493, %v5497
        %v5502 = vand.u32 2147483647, %v5027
        %vm5503 = vcmp.eq.f32.partialorder %v5502, 8.507059e+37
        %v5504 = vand.u32 %v5027, 2147483648
        %v5505 = vor.u32 1.1754944e-38, %v5504
        %v5506 = vsel %vm5503, %v5505, %v5501
        %v5507 = vmul.f32 1.0, %v5506
        %v5508 = vmul.f32 %v4458, %v5042
        %v5509 = vmul.f32 %v4461, %v5057
        %v5510 = vmul.f32 %v4464, %v5072
        %v5511 = vmul.f32 %v4467, %v5087
        %v5512 = vmul.f32 %v4470, %v5102
        %v5513 = vmul.f32 %v4473, %v5117
        %v5514 = vmul.f32 %v4476, %v5132
        %v5515 = vmul.f32 %v4479, %v5147
        %v5516 = vmul.f32 %v4482, %v5162
        %v5517 = vmul.f32 %v4485, %v5177
        %v5518 = vmul.f32 %v4488, %v5192
        %v5519 = vmul.f32 %v4491, %v5207
        %v5520 = vmul.f32 %v4494, %v5222
        %v5521 = vmul.f32 %v4497, %v5237
        %v5522 = vmul.f32 %v4500, %v5252
        %v5523 = vmul.f32 %v4503, %v5267
        %v5524 = vmul.f32 %v4506, %v5282
        %v5525 = vmul.f32 %v4509, %v5297
        %v5526 = vmul.f32 %v4512, %v5312
        %v5527 = vmul.f32 %v4515, %v5327
        %v5528 = vmul.f32 %v4518, %v5342
        %v5529 = vmul.f32 %v4521, %v5357
        %v5530 = vmul.f32 %v4524, %v5372
        %v5531 = vmul.f32 %v4527, %v5387
        %v5532 = vmul.f32 %v4530, %v5402
        %v5533 = vmul.f32 %v4533, %v5417
        %v5534 = vmul.f32 %v4536, %v5432
        %v5535 = vmul.f32 %v4539, %v5447
        %v5536 = vmul.f32 %v4542, %v5462
        %v5537 = vmul.f32 %v4545, %v5477
        %v5538 = vmul.f32 %v4548, %v5492
        %v5539 = vmul.f32 %v4551, %v5507
        %v5540 = vadd.f32 %v5508, %v3948
        %v5541 = vadd.f32 %v5509, %v3949
        %v5542 = vadd.f32 %v5510, %v3950
        %v5543 = vadd.f32 %v5511, %v3951
        %v5544 = vadd.f32 %v5512, %v3952
        %v5545 = vadd.f32 %v5513, %v3953
        %v5546 = vadd.f32 %v5514, %v3954
        %v5547 = vadd.f32 %v5515, %v3955
        %v5548 = vadd.f32 %v5516, %v3956
        %v5549 = vadd.f32 %v5517, %v3957
        %v5550 = vadd.f32 %v5518, %v3958
        %v5551 = vadd.f32 %v5519, %v3959
        %v5552 = vadd.f32 %v5520, %v3960
        %v5553 = vadd.f32 %v5521, %v3961
        %v5554 = vadd.f32 %v5522, %v3962
        %v5555 = vadd.f32 %v5523, %v3963
        %v5556 = vadd.f32 %v5524, %v3964
        %v5557 = vadd.f32 %v5525, %v3965
        %v5558 = vadd.f32 %v5526, %v3966
        %v5559 = vadd.f32 %v5527, %v3967
        %v5560 = vadd.f32 %v5528, %v3968
        %v5561 = vadd.f32 %v5529, %v3969
        %v5562 = vadd.f32 %v5530, %v3970
        %v5563 = vadd.f32 %v5531, %v3971
        %v5564 = vadd.f32 %v5532, %v3972
        %v5565 = vadd.f32 %v5533, %v3973
        %v5566 = vadd.f32 %v5534, %v3974
        %v5567 = vadd.f32 %v5535, %v3975
        %v5568 = vadd.f32 %v5536, %v3976
        %v5569 = vadd.f32 %v5537, %v3977
        %v5570 = vadd.f32 %v5538, %v3978
        %v5571 = vadd.f32 %v5539, %v3979
        %s5572 = scalar_lea.vmem [#allocation11], 1
        %v5573 = vld [vmem:[%s5572] sm:$0x1]
        %s5574 = scalar_lea.vmem %s7, 1
        %v5575 = vld [vmem:[%s5574] sm:$0x1]
        %5576 = vadd.xlane.f32.xlu0 %v5540
        %v5577 = vpop.xlane.xlu0 %5576
        %5578 = vadd.xlane.f32.xlu0 %v5541
        %v5579 = vpop.xlane.xlu0 %5578
        %5580 = vadd.xlane.f32.xlu0 %v5542
        %v5581 = vpop.xlane.xlu0 %5580
        %5582 = vadd.xlane.f32.xlu0 %v5543
        %v5583 = vpop.xlane.xlu0 %5582
        %5584 = vadd.xlane.f32.xlu0 %v5544
        %v5585 = vpop.xlane.xlu0 %5584
        %5586 = vadd.xlane.f32.xlu0 %v5545
        %v5587 = vpop.xlane.xlu0 %5586
        %5588 = vadd.xlane.f32.xlu0 %v5546
        %v5589 = vpop.xlane.xlu0 %5588
        %5590 = vadd.xlane.f32.xlu0 %v5547
        %v5591 = vpop.xlane.xlu0 %5590
        %5592 = vadd.xlane.f32.xlu0 %v5548
        %v5593 = vpop.xlane.xlu0 %5592
        %5594 = vadd.xlane.f32.xlu0 %v5549
        %v5595 = vpop.xlane.xlu0 %5594
        %5596 = vadd.xlane.f32.xlu0 %v5550
        %v5597 = vpop.xlane.xlu0 %5596
        %5598 = vadd.xlane.f32.xlu0 %v5551
        %v5599 = vpop.xlane.xlu0 %5598
        %5600 = vadd.xlane.f32.xlu0 %v5552
        %v5601 = vpop.xlane.xlu0 %5600
        %5602 = vadd.xlane.f32.xlu0 %v5553
        %v5603 = vpop.xlane.xlu0 %5602
        %5604 = vadd.xlane.f32.xlu0 %v5554
        %v5605 = vpop.xlane.xlu0 %5604
        %5606 = vadd.xlane.f32.xlu0 %v5555
        %v5607 = vpop.xlane.xlu0 %5606
        %5608 = vadd.xlane.f32.xlu0 %v5556
        %v5609 = vpop.xlane.xlu0 %5608
        %5610 = vadd.xlane.f32.xlu0 %v5557
        %v5611 = vpop.xlane.xlu0 %5610
        %5612 = vadd.xlane.f32.xlu0 %v5558
        %v5613 = vpop.xlane.xlu0 %5612
        %5614 = vadd.xlane.f32.xlu0 %v5559
        %v5615 = vpop.xlane.xlu0 %5614
        %5616 = vadd.xlane.f32.xlu0 %v5560
        %v5617 = vpop.xlane.xlu0 %5616
        %5618 = vadd.xlane.f32.xlu0 %v5561
        %v5619 = vpop.xlane.xlu0 %5618
        %5620 = vadd.xlane.f32.xlu0 %v5562
        %v5621 = vpop.xlane.xlu0 %5620
        %5622 = vadd.xlane.f32.xlu0 %v5563
        %v5623 = vpop.xlane.xlu0 %5622
        %5624 = vadd.xlane.f32.xlu0 %v5564
        %v5625 = vpop.xlane.xlu0 %5624
        %5626 = vadd.xlane.f32.xlu0 %v5565
        %v5627 = vpop.xlane.xlu0 %5626
        %5628 = vadd.xlane.f32.xlu0 %v5566
        %v5629 = vpop.xlane.xlu0 %5628
        %5630 = vadd.xlane.f32.xlu0 %v5567
        %v5631 = vpop.xlane.xlu0 %5630
        %5632 = vadd.xlane.f32.xlu0 %v5568
        %v5633 = vpop.xlane.xlu0 %5632
        %5634 = vadd.xlane.f32.xlu0 %v5569
        %v5635 = vpop.xlane.xlu0 %5634
        %5636 = vadd.xlane.f32.xlu0 %v5570
        %v5637 = vpop.xlane.xlu0 %5636
        %5638 = vadd.xlane.f32.xlu0 %v5571
        %v5639 = vpop.xlane.xlu0 %5638
        %v5640 = vmul.f32 %v5577, %v2227
        %v5641 = vmul.f32 %v5579, %v2227
        %v5642 = vmul.f32 %v5581, %v2227
        %v5643 = vmul.f32 %v5583, %v2227
        %v5644 = vmul.f32 %v5585, %v2227
        %v5645 = vmul.f32 %v5587, %v2227
        %v5646 = vmul.f32 %v5589, %v2227
        %v5647 = vmul.f32 %v5591, %v2227
        %v5648 = vmul.f32 %v5593, %v2227
        %v5649 = vmul.f32 %v5595, %v2227
        %v5650 = vmul.f32 %v5597, %v2227
        %v5651 = vmul.f32 %v5599, %v2227
        %v5652 = vmul.f32 %v5601, %v2227
        %v5653 = vmul.f32 %v5603, %v2227
        %v5654 = vmul.f32 %v5605, %v2227
        %v5655 = vmul.f32 %v5607, %v2227
        %v5656 = vmul.f32 %v5609, %v2227
        %v5657 = vmul.f32 %v5611, %v2227
        %v5658 = vmul.f32 %v5613, %v2227
        %v5659 = vmul.f32 %v5615, %v2227
        %v5660 = vmul.f32 %v5617, %v2227
        %v5661 = vmul.f32 %v5619, %v2227
        %v5662 = vmul.f32 %v5621, %v2227
        %v5663 = vmul.f32 %v5623, %v2227
        %v5664 = vmul.f32 %v5625, %v2227
        %v5665 = vmul.f32 %v5627, %v2227
        %v5666 = vmul.f32 %v5629, %v2227
        %v5667 = vmul.f32 %v5631, %v2227
        %v5668 = vmul.f32 %v5633, %v2227
        %v5669 = vmul.f32 %v5635, %v2227
        %v5670 = vmul.f32 %v5637, %v2227
        %v5671 = vmul.f32 %v5639, %v2227
        %v5672 = vsub.f32 %v5540, %v5640
        %v5673 = vsub.f32 %v5541, %v5641
        %v5674 = vsub.f32 %v5542, %v5642
        %v5675 = vsub.f32 %v5543, %v5643
        %v5676 = vsub.f32 %v5544, %v5644
        %v5677 = vsub.f32 %v5545, %v5645
        %v5678 = vsub.f32 %v5546, %v5646
        %v5679 = vsub.f32 %v5547, %v5647
        %v5680 = vsub.f32 %v5548, %v5648
        %v5681 = vsub.f32 %v5549, %v5649
        %v5682 = vsub.f32 %v5550, %v5650
        %v5683 = vsub.f32 %v5551, %v5651
        %v5684 = vsub.f32 %v5552, %v5652
        %v5685 = vsub.f32 %v5553, %v5653
        %v5686 = vsub.f32 %v5554, %v5654
        %v5687 = vsub.f32 %v5555, %v5655
        %v5688 = vsub.f32 %v5556, %v5656
        %v5689 = vsub.f32 %v5557, %v5657
        %v5690 = vsub.f32 %v5558, %v5658
        %v5691 = vsub.f32 %v5559, %v5659
        %v5692 = vsub.f32 %v5560, %v5660
        %v5693 = vsub.f32 %v5561, %v5661
        %v5694 = vsub.f32 %v5562, %v5662
        %v5695 = vsub.f32 %v5563, %v5663
        %v5696 = vsub.f32 %v5564, %v5664
        %v5697 = vsub.f32 %v5565, %v5665
        %v5698 = vsub.f32 %v5566, %v5666
        %v5699 = vsub.f32 %v5567, %v5667
        %v5700 = vsub.f32 %v5568, %v5668
        %v5701 = vsub.f32 %v5569, %v5669
        %v5702 = vsub.f32 %v5570, %v5670
        %v5703 = vsub.f32 %v5571, %v5671
        %v5704 = vmul.f32 %v5672, %v5672
        %v5705 = vmul.f32 %v5673, %v5673
        %v5706 = vmul.f32 %v5674, %v5674
        %v5707 = vmul.f32 %v5675, %v5675
        %v5708 = vmul.f32 %v5676, %v5676
        %v5709 = vmul.f32 %v5677, %v5677
        %v5710 = vmul.f32 %v5678, %v5678
        %v5711 = vmul.f32 %v5679, %v5679
        %v5712 = vmul.f32 %v5680, %v5680
        %v5713 = vmul.f32 %v5681, %v5681
        %v5714 = vmul.f32 %v5682, %v5682
        %v5715 = vmul.f32 %v5683, %v5683
        %v5716 = vmul.f32 %v5684, %v5684
        %v5717 = vmul.f32 %v5685, %v5685
        %v5718 = vmul.f32 %v5686, %v5686
        %v5719 = vmul.f32 %v5687, %v5687
        %v5720 = vmul.f32 %v5688, %v5688
        %v5721 = vmul.f32 %v5689, %v5689
        %v5722 = vmul.f32 %v5690, %v5690
        %v5723 = vmul.f32 %v5691, %v5691
        %v5724 = vmul.f32 %v5692, %v5692
        %v5725 = vmul.f32 %v5693, %v5693
        %v5726 = vmul.f32 %v5694, %v5694
        %v5727 = vmul.f32 %v5695, %v5695
        %v5728 = vmul.f32 %v5696, %v5696
        %v5729 = vmul.f32 %v5697, %v5697
        %v5730 = vmul.f32 %v5698, %v5698
        %v5731 = vmul.f32 %v5699, %v5699
        %v5732 = vmul.f32 %v5700, %v5700
        %v5733 = vmul.f32 %v5701, %v5701
        %v5734 = vmul.f32 %v5702, %v5702
        %v5735 = vmul.f32 %v5703, %v5703
        %5736 = vadd.xlane.f32.xlu0 %v5704
        %v5737 = vpop.xlane.xlu0 %5736
        %5738 = vadd.xlane.f32.xlu0 %v5705
        %v5739 = vpop.xlane.xlu0 %5738
        %5740 = vadd.xlane.f32.xlu0 %v5706
        %v5741 = vpop.xlane.xlu0 %5740
        %5742 = vadd.xlane.f32.xlu0 %v5707
        %v5743 = vpop.xlane.xlu0 %5742
        %5744 = vadd.xlane.f32.xlu0 %v5708
        %v5745 = vpop.xlane.xlu0 %5744
        %5746 = vadd.xlane.f32.xlu0 %v5709
        %v5747 = vpop.xlane.xlu0 %5746
        %5748 = vadd.xlane.f32.xlu0 %v5710
        %v5749 = vpop.xlane.xlu0 %5748
        %5750 = vadd.xlane.f32.xlu0 %v5711
        %v5751 = vpop.xlane.xlu0 %5750
        %5752 = vadd.xlane.f32.xlu0 %v5712
        %v5753 = vpop.xlane.xlu0 %5752
        %5754 = vadd.xlane.f32.xlu0 %v5713
        %v5755 = vpop.xlane.xlu0 %5754
        %5756 = vadd.xlane.f32.xlu0 %v5714
        %v5757 = vpop.xlane.xlu0 %5756
        %5758 = vadd.xlane.f32.xlu0 %v5715
        %v5759 = vpop.xlane.xlu0 %5758
        %5760 = vadd.xlane.f32.xlu0 %v5716
        %v5761 = vpop.xlane.xlu0 %5760
        %5762 = vadd.xlane.f32.xlu0 %v5717
        %v5763 = vpop.xlane.xlu0 %5762
        %5764 = vadd.xlane.f32.xlu0 %v5718
        %v5765 = vpop.xlane.xlu0 %5764
        %5766 = vadd.xlane.f32.xlu0 %v5719
        %v5767 = vpop.xlane.xlu0 %5766
        %5768 = vadd.xlane.f32.xlu0 %v5720
        %v5769 = vpop.xlane.xlu0 %5768
        %5770 = vadd.xlane.f32.xlu0 %v5721
        %v5771 = vpop.xlane.xlu0 %5770
        %5772 = vadd.xlane.f32.xlu0 %v5722
        %v5773 = vpop.xlane.xlu0 %5772
        %5774 = vadd.xlane.f32.xlu0 %v5723
        %v5775 = vpop.xlane.xlu0 %5774
        %5776 = vadd.xlane.f32.xlu0 %v5724
        %v5777 = vpop.xlane.xlu0 %5776
        %5778 = vadd.xlane.f32.xlu0 %v5725
        %v5779 = vpop.xlane.xlu0 %5778
        %5780 = vadd.xlane.f32.xlu0 %v5726
        %v5781 = vpop.xlane.xlu0 %5780
        %5782 = vadd.xlane.f32.xlu0 %v5727
        %v5783 = vpop.xlane.xlu0 %5782
        %5784 = vadd.xlane.f32.xlu0 %v5728
        %v5785 = vpop.xlane.xlu0 %5784
        %5786 = vadd.xlane.f32.xlu0 %v5729
        %v5787 = vpop.xlane.xlu0 %5786
        %5788 = vadd.xlane.f32.xlu0 %v5730
        %v5789 = vpop.xlane.xlu0 %5788
        %5790 = vadd.xlane.f32.xlu0 %v5731
        %v5791 = vpop.xlane.xlu0 %5790
        %5792 = vadd.xlane.f32.xlu0 %v5732
        %v5793 = vpop.xlane.xlu0 %5792
        %5794 = vadd.xlane.f32.xlu0 %v5733
        %v5795 = vpop.xlane.xlu0 %5794
        %5796 = vadd.xlane.f32.xlu0 %v5734
        %v5797 = vpop.xlane.xlu0 %5796
        %5798 = vadd.xlane.f32.xlu0 %v5735
        %v5799 = vpop.xlane.xlu0 %5798
        %v5800 = vmul.f32 %v5737, %v2227
        %v5801 = vmul.f32 %v5739, %v2227
        %v5802 = vmul.f32 %v5741, %v2227
        %v5803 = vmul.f32 %v5743, %v2227
        %v5804 = vmul.f32 %v5745, %v2227
        %v5805 = vmul.f32 %v5747, %v2227
        %v5806 = vmul.f32 %v5749, %v2227
        %v5807 = vmul.f32 %v5751, %v2227
        %v5808 = vmul.f32 %v5753, %v2227
        %v5809 = vmul.f32 %v5755, %v2227
        %v5810 = vmul.f32 %v5757, %v2227
        %v5811 = vmul.f32 %v5759, %v2227
        %v5812 = vmul.f32 %v5761, %v2227
        %v5813 = vmul.f32 %v5763, %v2227
        %v5814 = vmul.f32 %v5765, %v2227
        %v5815 = vmul.f32 %v5767, %v2227
        %v5816 = vmul.f32 %v5769, %v2227
        %v5817 = vmul.f32 %v5771, %v2227
        %v5818 = vmul.f32 %v5773, %v2227
        %v5819 = vmul.f32 %v5775, %v2227
        %v5820 = vmul.f32 %v5777, %v2227
        %v5821 = vmul.f32 %v5779, %v2227
        %v5822 = vmul.f32 %v5781, %v2227
        %v5823 = vmul.f32 %v5783, %v2227
        %v5824 = vmul.f32 %v5785, %v2227
        %v5825 = vmul.f32 %v5787, %v2227
        %v5826 = vmul.f32 %v5789, %v2227
        %v5827 = vmul.f32 %v5791, %v2227
        %v5828 = vmul.f32 %v5793, %v2227
        %v5829 = vmul.f32 %v5795, %v2227
        %v5830 = vmul.f32 %v5797, %v2227
        %v5831 = vmul.f32 %v5799, %v2227
        %v5832 = vadd.f32 %v5800, 1e-05
        %v5833 = vadd.f32 %v5801, 1e-05
        %v5834 = vadd.f32 %v5802, 1e-05
        %v5835 = vadd.f32 %v5803, 1e-05
        %v5836 = vadd.f32 %v5804, 1e-05
        %v5837 = vadd.f32 %v5805, 1e-05
        %v5838 = vadd.f32 %v5806, 1e-05
        %v5839 = vadd.f32 %v5807, 1e-05
        %v5840 = vadd.f32 %v5808, 1e-05
        %v5841 = vadd.f32 %v5809, 1e-05
        %v5842 = vadd.f32 %v5810, 1e-05
        %v5843 = vadd.f32 %v5811, 1e-05
        %v5844 = vadd.f32 %v5812, 1e-05
        %v5845 = vadd.f32 %v5813, 1e-05
        %v5846 = vadd.f32 %v5814, 1e-05
        %v5847 = vadd.f32 %v5815, 1e-05
        %v5848 = vadd.f32 %v5816, 1e-05
        %v5849 = vadd.f32 %v5817, 1e-05
        %v5850 = vadd.f32 %v5818, 1e-05
        %v5851 = vadd.f32 %v5819, 1e-05
        %v5852 = vadd.f32 %v5820, 1e-05
        %v5853 = vadd.f32 %v5821, 1e-05
        %v5854 = vadd.f32 %v5822, 1e-05
        %v5855 = vadd.f32 %v5823, 1e-05
        %v5856 = vadd.f32 %v5824, 1e-05
        %v5857 = vadd.f32 %v5825, 1e-05
        %v5858 = vadd.f32 %v5826, 1e-05
        %v5859 = vadd.f32 %v5827, 1e-05
        %v5860 = vadd.f32 %v5828, 1e-05
        %v5861 = vadd.f32 %v5829, 1e-05
        %v5862 = vadd.f32 %v5830, 1e-05
        %v5863 = vadd.f32 %v5831, 1e-05
        %v5864 = vrsqrt.pop %v5832
        %v5865 = vmul.f32 %v5864, %v5832
        %v5866 = vmul.f32 %v5865, %v5864
        %v5867 = vmul.f32 0.5, %v5866
        %v5868 = vsub.f32 1.5, %v5867
        %v5869 = vmul.f32 %v5864, %v5868
        %vm5870 = vweird.f32 %v5832
        %vm5871 = vweird.f32 %v5864
        %vm5872 = vmor %vm5870, %vm5871
        %v5873 = vsel %vm5872, %v5864, %v5869
        %v5874 = vrsqrt.pop %v5833
        %v5875 = vmul.f32 %v5874, %v5833
        %v5876 = vmul.f32 %v5875, %v5874
        %v5877 = vmul.f32 0.5, %v5876
        %v5878 = vsub.f32 1.5, %v5877
        %v5879 = vmul.f32 %v5874, %v5878
        %vm5880 = vweird.f32 %v5833
        %vm5881 = vweird.f32 %v5874
        %vm5882 = vmor %vm5880, %vm5881
        %v5883 = vsel %vm5882, %v5874, %v5879
        %v5884 = vrsqrt.pop %v5834
        %v5885 = vmul.f32 %v5884, %v5834
        %v5886 = vmul.f32 %v5885, %v5884
        %v5887 = vmul.f32 0.5, %v5886
        %v5888 = vsub.f32 1.5, %v5887
        %v5889 = vmul.f32 %v5884, %v5888
        %vm5890 = vweird.f32 %v5834
        %vm5891 = vweird.f32 %v5884
        %vm5892 = vmor %vm5890, %vm5891
        %v5893 = vsel %vm5892, %v5884, %v5889
        %v5894 = vrsqrt.pop %v5835
        %v5895 = vmul.f32 %v5894, %v5835
        %v5896 = vmul.f32 %v5895, %v5894
        %v5897 = vmul.f32 0.5, %v5896
        %v5898 = vsub.f32 1.5, %v5897
        %v5899 = vmul.f32 %v5894, %v5898
        %vm5900 = vweird.f32 %v5835
        %vm5901 = vweird.f32 %v5894
        %vm5902 = vmor %vm5900, %vm5901
        %v5903 = vsel %vm5902, %v5894, %v5899
        %v5904 = vrsqrt.pop %v5836
        %v5905 = vmul.f32 %v5904, %v5836
        %v5906 = vmul.f32 %v5905, %v5904
        %v5907 = vmul.f32 0.5, %v5906
        %v5908 = vsub.f32 1.5, %v5907
        %v5909 = vmul.f32 %v5904, %v5908
        %vm5910 = vweird.f32 %v5836
        %vm5911 = vweird.f32 %v5904
        %vm5912 = vmor %vm5910, %vm5911
        %v5913 = vsel %vm5912, %v5904, %v5909
        %v5914 = vrsqrt.pop %v5837
        %v5915 = vmul.f32 %v5914, %v5837
        %v5916 = vmul.f32 %v5915, %v5914
        %v5917 = vmul.f32 0.5, %v5916
        %v5918 = vsub.f32 1.5, %v5917
        %v5919 = vmul.f32 %v5914, %v5918
        %vm5920 = vweird.f32 %v5837
        %vm5921 = vweird.f32 %v5914
        %vm5922 = vmor %vm5920, %vm5921
        %v5923 = vsel %vm5922, %v5914, %v5919
        %v5924 = vrsqrt.pop %v5838
        %v5925 = vmul.f32 %v5924, %v5838
        %v5926 = vmul.f32 %v5925, %v5924
        %v5927 = vmul.f32 0.5, %v5926
        %v5928 = vsub.f32 1.5, %v5927
        %v5929 = vmul.f32 %v5924, %v5928
        %vm5930 = vweird.f32 %v5838
        %vm5931 = vweird.f32 %v5924
        %vm5932 = vmor %vm5930, %vm5931
        %v5933 = vsel %vm5932, %v5924, %v5929
        %v5934 = vrsqrt.pop %v5839
        %v5935 = vmul.f32 %v5934, %v5839
        %v5936 = vmul.f32 %v5935, %v5934
        %v5937 = vmul.f32 0.5, %v5936
        %v5938 = vsub.f32 1.5, %v5937
        %v5939 = vmul.f32 %v5934, %v5938
        %vm5940 = vweird.f32 %v5839
        %vm5941 = vweird.f32 %v5934
        %vm5942 = vmor %vm5940, %vm5941
        %v5943 = vsel %vm5942, %v5934, %v5939
        %v5944 = vrsqrt.pop %v5840
        %v5945 = vmul.f32 %v5944, %v5840
        %v5946 = vmul.f32 %v5945, %v5944
        %v5947 = vmul.f32 0.5, %v5946
        %v5948 = vsub.f32 1.5, %v5947
        %v5949 = vmul.f32 %v5944, %v5948
        %vm5950 = vweird.f32 %v5840
        %vm5951 = vweird.f32 %v5944
        %vm5952 = vmor %vm5950, %vm5951
        %v5953 = vsel %vm5952, %v5944, %v5949
        %v5954 = vrsqrt.pop %v5841
        %v5955 = vmul.f32 %v5954, %v5841
        %v5956 = vmul.f32 %v5955, %v5954
        %v5957 = vmul.f32 0.5, %v5956
        %v5958 = vsub.f32 1.5, %v5957
        %v5959 = vmul.f32 %v5954, %v5958
        %vm5960 = vweird.f32 %v5841
        %vm5961 = vweird.f32 %v5954
        %vm5962 = vmor %vm5960, %vm5961
        %v5963 = vsel %vm5962, %v5954, %v5959
        %v5964 = vrsqrt.pop %v5842
        %v5965 = vmul.f32 %v5964, %v5842
        %v5966 = vmul.f32 %v5965, %v5964
        %v5967 = vmul.f32 0.5, %v5966
        %v5968 = vsub.f32 1.5, %v5967
        %v5969 = vmul.f32 %v5964, %v5968
        %vm5970 = vweird.f32 %v5842
        %vm5971 = vweird.f32 %v5964
        %vm5972 = vmor %vm5970, %vm5971
        %v5973 = vsel %vm5972, %v5964, %v5969
        %v5974 = vrsqrt.pop %v5843
        %v5975 = vmul.f32 %v5974, %v5843
        %v5976 = vmul.f32 %v5975, %v5974
        %v5977 = vmul.f32 0.5, %v5976
        %v5978 = vsub.f32 1.5, %v5977
        %v5979 = vmul.f32 %v5974, %v5978
        %vm5980 = vweird.f32 %v5843
        %vm5981 = vweird.f32 %v5974
        %vm5982 = vmor %vm5980, %vm5981
        %v5983 = vsel %vm5982, %v5974, %v5979
        %v5984 = vrsqrt.pop %v5844
        %v5985 = vmul.f32 %v5984, %v5844
        %v5986 = vmul.f32 %v5985, %v5984
        %v5987 = vmul.f32 0.5, %v5986
        %v5988 = vsub.f32 1.5, %v5987
        %v5989 = vmul.f32 %v5984, %v5988
        %vm5990 = vweird.f32 %v5844
        %vm5991 = vweird.f32 %v5984
        %vm5992 = vmor %vm5990, %vm5991
        %v5993 = vsel %vm5992, %v5984, %v5989
        %v5994 = vrsqrt.pop %v5845
        %v5995 = vmul.f32 %v5994, %v5845
        %v5996 = vmul.f32 %v5995, %v5994
        %v5997 = vmul.f32 0.5, %v5996
        %v5998 = vsub.f32 1.5, %v5997
        %v5999 = vmul.f32 %v5994, %v5998
        %vm6000 = vweird.f32 %v5845
        %vm6001 = vweird.f32 %v5994
        %vm6002 = vmor %vm6000, %vm6001
        %v6003 = vsel %vm6002, %v5994, %v5999
        %v6004 = vrsqrt.pop %v5846
        %v6005 = vmul.f32 %v6004, %v5846
        %v6006 = vmul.f32 %v6005, %v6004
        %v6007 = vmul.f32 0.5, %v6006
        %v6008 = vsub.f32 1.5, %v6007
        %v6009 = vmul.f32 %v6004, %v6008
        %vm6010 = vweird.f32 %v5846
        %vm6011 = vweird.f32 %v6004
        %vm6012 = vmor %vm6010, %vm6011
        %v6013 = vsel %vm6012, %v6004, %v6009
        %v6014 = vrsqrt.pop %v5847
        %v6015 = vmul.f32 %v6014, %v5847
        %v6016 = vmul.f32 %v6015, %v6014
        %v6017 = vmul.f32 0.5, %v6016
        %v6018 = vsub.f32 1.5, %v6017
        %v6019 = vmul.f32 %v6014, %v6018
        %vm6020 = vweird.f32 %v5847
        %vm6021 = vweird.f32 %v6014
        %vm6022 = vmor %vm6020, %vm6021
        %v6023 = vsel %vm6022, %v6014, %v6019
        %v6024 = vrsqrt.pop %v5848
        %v6025 = vmul.f32 %v6024, %v5848
        %v6026 = vmul.f32 %v6025, %v6024
        %v6027 = vmul.f32 0.5, %v6026
        %v6028 = vsub.f32 1.5, %v6027
        %v6029 = vmul.f32 %v6024, %v6028
        %vm6030 = vweird.f32 %v5848
        %vm6031 = vweird.f32 %v6024
        %vm6032 = vmor %vm6030, %vm6031
        %v6033 = vsel %vm6032, %v6024, %v6029
        %v6034 = vrsqrt.pop %v5849
        %v6035 = vmul.f32 %v6034, %v5849
        %v6036 = vmul.f32 %v6035, %v6034
        %v6037 = vmul.f32 0.5, %v6036
        %v6038 = vsub.f32 1.5, %v6037
        %v6039 = vmul.f32 %v6034, %v6038
        %vm6040 = vweird.f32 %v5849
        %vm6041 = vweird.f32 %v6034
        %vm6042 = vmor %vm6040, %vm6041
        %v6043 = vsel %vm6042, %v6034, %v6039
        %v6044 = vrsqrt.pop %v5850
        %v6045 = vmul.f32 %v6044, %v5850
        %v6046 = vmul.f32 %v6045, %v6044
        %v6047 = vmul.f32 0.5, %v6046
        %v6048 = vsub.f32 1.5, %v6047
        %v6049 = vmul.f32 %v6044, %v6048
        %vm6050 = vweird.f32 %v5850
        %vm6051 = vweird.f32 %v6044
        %vm6052 = vmor %vm6050, %vm6051
        %v6053 = vsel %vm6052, %v6044, %v6049
        %v6054 = vrsqrt.pop %v5851
        %v6055 = vmul.f32 %v6054, %v5851
        %v6056 = vmul.f32 %v6055, %v6054
        %v6057 = vmul.f32 0.5, %v6056
        %v6058 = vsub.f32 1.5, %v6057
        %v6059 = vmul.f32 %v6054, %v6058
        %vm6060 = vweird.f32 %v5851
        %vm6061 = vweird.f32 %v6054
        %vm6062 = vmor %vm6060, %vm6061
        %v6063 = vsel %vm6062, %v6054, %v6059
        %v6064 = vrsqrt.pop %v5852
        %v6065 = vmul.f32 %v6064, %v5852
        %v6066 = vmul.f32 %v6065, %v6064
        %v6067 = vmul.f32 0.5, %v6066
        %v6068 = vsub.f32 1.5, %v6067
        %v6069 = vmul.f32 %v6064, %v6068
        %vm6070 = vweird.f32 %v5852
        %vm6071 = vweird.f32 %v6064
        %vm6072 = vmor %vm6070, %vm6071
        %v6073 = vsel %vm6072, %v6064, %v6069
        %v6074 = vrsqrt.pop %v5853
        %v6075 = vmul.f32 %v6074, %v5853
        %v6076 = vmul.f32 %v6075, %v6074
        %v6077 = vmul.f32 0.5, %v6076
        %v6078 = vsub.f32 1.5, %v6077
        %v6079 = vmul.f32 %v6074, %v6078
        %vm6080 = vweird.f32 %v5853
        %vm6081 = vweird.f32 %v6074
        %vm6082 = vmor %vm6080, %vm6081
        %v6083 = vsel %vm6082, %v6074, %v6079
        %v6084 = vrsqrt.pop %v5854
        %v6085 = vmul.f32 %v6084, %v5854
        %v6086 = vmul.f32 %v6085, %v6084
        %v6087 = vmul.f32 0.5, %v6086
        %v6088 = vsub.f32 1.5, %v6087
        %v6089 = vmul.f32 %v6084, %v6088
        %vm6090 = vweird.f32 %v5854
        %vm6091 = vweird.f32 %v6084
        %vm6092 = vmor %vm6090, %vm6091
        %v6093 = vsel %vm6092, %v6084, %v6089
        %v6094 = vrsqrt.pop %v5855
        %v6095 = vmul.f32 %v6094, %v5855
        %v6096 = vmul.f32 %v6095, %v6094
        %v6097 = vmul.f32 0.5, %v6096
        %v6098 = vsub.f32 1.5, %v6097
        %v6099 = vmul.f32 %v6094, %v6098
        %vm6100 = vweird.f32 %v5855
        %vm6101 = vweird.f32 %v6094
        %vm6102 = vmor %vm6100, %vm6101
        %v6103 = vsel %vm6102, %v6094, %v6099
        %v6104 = vrsqrt.pop %v5856
        %v6105 = vmul.f32 %v6104, %v5856
        %v6106 = vmul.f32 %v6105, %v6104
        %v6107 = vmul.f32 0.5, %v6106
        %v6108 = vsub.f32 1.5, %v6107
        %v6109 = vmul.f32 %v6104, %v6108
        %vm6110 = vweird.f32 %v5856
        %vm6111 = vweird.f32 %v6104
        %vm6112 = vmor %vm6110, %vm6111
        %v6113 = vsel %vm6112, %v6104, %v6109
        %v6114 = vrsqrt.pop %v5857
        %v6115 = vmul.f32 %v6114, %v5857
        %v6116 = vmul.f32 %v6115, %v6114
        %v6117 = vmul.f32 0.5, %v6116
        %v6118 = vsub.f32 1.5, %v6117
        %v6119 = vmul.f32 %v6114, %v6118
        %vm6120 = vweird.f32 %v5857
        %vm6121 = vweird.f32 %v6114
        %vm6122 = vmor %vm6120, %vm6121
        %v6123 = vsel %vm6122, %v6114, %v6119
        %v6124 = vrsqrt.pop %v5858
        %v6125 = vmul.f32 %v6124, %v5858
        %v6126 = vmul.f32 %v6125, %v6124
        %v6127 = vmul.f32 0.5, %v6126
        %v6128 = vsub.f32 1.5, %v6127
        %v6129 = vmul.f32 %v6124, %v6128
        %vm6130 = vweird.f32 %v5858
        %vm6131 = vweird.f32 %v6124
        %vm6132 = vmor %vm6130, %vm6131
        %v6133 = vsel %vm6132, %v6124, %v6129
        %v6134 = vrsqrt.pop %v5859
        %v6135 = vmul.f32 %v6134, %v5859
        %v6136 = vmul.f32 %v6135, %v6134
        %v6137 = vmul.f32 0.5, %v6136
        %v6138 = vsub.f32 1.5, %v6137
        %v6139 = vmul.f32 %v6134, %v6138
        %vm6140 = vweird.f32 %v5859
        %vm6141 = vweird.f32 %v6134
        %vm6142 = vmor %vm6140, %vm6141
        %v6143 = vsel %vm6142, %v6134, %v6139
        %v6144 = vrsqrt.pop %v5860
        %v6145 = vmul.f32 %v6144, %v5860
        %v6146 = vmul.f32 %v6145, %v6144
        %v6147 = vmul.f32 0.5, %v6146
        %v6148 = vsub.f32 1.5, %v6147
        %v6149 = vmul.f32 %v6144, %v6148
        %vm6150 = vweird.f32 %v5860
        %vm6151 = vweird.f32 %v6144
        %vm6152 = vmor %vm6150, %vm6151
        %v6153 = vsel %vm6152, %v6144, %v6149
        %v6154 = vrsqrt.pop %v5861
        %v6155 = vmul.f32 %v6154, %v5861
        %v6156 = vmul.f32 %v6155, %v6154
        %v6157 = vmul.f32 0.5, %v6156
        %v6158 = vsub.f32 1.5, %v6157
        %v6159 = vmul.f32 %v6154, %v6158
        %vm6160 = vweird.f32 %v5861
        %vm6161 = vweird.f32 %v6154
        %vm6162 = vmor %vm6160, %vm6161
        %v6163 = vsel %vm6162, %v6154, %v6159
        %v6164 = vrsqrt.pop %v5862
        %v6165 = vmul.f32 %v6164, %v5862
        %v6166 = vmul.f32 %v6165, %v6164
        %v6167 = vmul.f32 0.5, %v6166
        %v6168 = vsub.f32 1.5, %v6167
        %v6169 = vmul.f32 %v6164, %v6168
        %vm6170 = vweird.f32 %v5862
        %vm6171 = vweird.f32 %v6164
        %vm6172 = vmor %vm6170, %vm6171
        %v6173 = vsel %vm6172, %v6164, %v6169
        %v6174 = vrsqrt.pop %v5863
        %v6175 = vmul.f32 %v6174, %v5863
        %v6176 = vmul.f32 %v6175, %v6174
        %v6177 = vmul.f32 0.5, %v6176
        %v6178 = vsub.f32 1.5, %v6177
        %v6179 = vmul.f32 %v6174, %v6178
        %vm6180 = vweird.f32 %v5863
        %vm6181 = vweird.f32 %v6174
        %vm6182 = vmor %vm6180, %vm6181
        %v6183 = vsel %vm6182, %v6174, %v6179
        %v6184 = vmul.f32 %v5672, %v5873
        %v6185 = vmul.f32 %v5673, %v5883
        %v6186 = vmul.f32 %v5674, %v5893
        %v6187 = vmul.f32 %v5675, %v5903
        %v6188 = vmul.f32 %v5676, %v5913
        %v6189 = vmul.f32 %v5677, %v5923
        %v6190 = vmul.f32 %v5678, %v5933
        %v6191 = vmul.f32 %v5679, %v5943
        %v6192 = vmul.f32 %v5680, %v5953
        %v6193 = vmul.f32 %v5681, %v5963
        %v6194 = vmul.f32 %v5682, %v5973
        %v6195 = vmul.f32 %v5683, %v5983
        %v6196 = vmul.f32 %v5684, %v5993
        %v6197 = vmul.f32 %v5685, %v6003
        %v6198 = vmul.f32 %v5686, %v6013
        %v6199 = vmul.f32 %v5687, %v6023
        %v6200 = vmul.f32 %v5688, %v6033
        %v6201 = vmul.f32 %v5689, %v6043
        %v6202 = vmul.f32 %v5690, %v6053
        %v6203 = vmul.f32 %v5691, %v6063
        %v6204 = vmul.f32 %v5692, %v6073
        %v6205 = vmul.f32 %v5693, %v6083
        %v6206 = vmul.f32 %v5694, %v6093
        %v6207 = vmul.f32 %v5695, %v6103
        %v6208 = vmul.f32 %v5696, %v6113
        %v6209 = vmul.f32 %v5697, %v6123
        %v6210 = vmul.f32 %v5698, %v6133
        %v6211 = vmul.f32 %v5699, %v6143
        %v6212 = vmul.f32 %v5700, %v6153
        %v6213 = vmul.f32 %v5701, %v6163
        %v6214 = vmul.f32 %v5702, %v6173
        %v6215 = vmul.f32 %v5703, %v6183
        %v6217 = vperm.slane %v5573, 0
        %v6219 = vmul.f32 %v6184, %v6217
        %v6220 = vmul.f32 %v6185, %v6217
        %v6221 = vmul.f32 %v6186, %v6217
        %v6222 = vmul.f32 %v6187, %v6217
        %v6223 = vmul.f32 %v6188, %v6217
        %v6224 = vmul.f32 %v6189, %v6217
        %v6225 = vmul.f32 %v6190, %v6217
        %v6226 = vmul.f32 %v6191, %v6217
        %v6227 = vmul.f32 %v6192, %v6217
        %v6228 = vmul.f32 %v6193, %v6217
        %v6229 = vmul.f32 %v6194, %v6217
        %v6230 = vmul.f32 %v6195, %v6217
        %v6231 = vmul.f32 %v6196, %v6217
        %v6232 = vmul.f32 %v6197, %v6217
        %v6233 = vmul.f32 %v6198, %v6217
        %v6234 = vmul.f32 %v6199, %v6217
        %v6235 = vmul.f32 %v6200, %v6217
        %v6236 = vmul.f32 %v6201, %v6217
        %v6237 = vmul.f32 %v6202, %v6217
        %v6238 = vmul.f32 %v6203, %v6217
        %v6239 = vmul.f32 %v6204, %v6217
        %v6240 = vmul.f32 %v6205, %v6217
        %v6241 = vmul.f32 %v6206, %v6217
        %v6242 = vmul.f32 %v6207, %v6217
        %v6243 = vmul.f32 %v6208, %v6217
        %v6244 = vmul.f32 %v6209, %v6217
        %v6245 = vmul.f32 %v6210, %v6217
        %v6246 = vmul.f32 %v6211, %v6217
        %v6247 = vmul.f32 %v6212, %v6217
        %v6248 = vmul.f32 %v6213, %v6217
        %v6249 = vmul.f32 %v6214, %v6217
        %v6250 = vmul.f32 %v6215, %v6217
        %v6252 = vperm.slane %v5575, 0
        %v6254 = vadd.f32 %v6219, %v6252
        %v6255 = vadd.f32 %v6220, %v6252
        %v6256 = vadd.f32 %v6221, %v6252
        %v6257 = vadd.f32 %v6222, %v6252
        %v6258 = vadd.f32 %v6223, %v6252
        %v6259 = vadd.f32 %v6224, %v6252
        %v6260 = vadd.f32 %v6225, %v6252
        %v6261 = vadd.f32 %v6226, %v6252
        %v6262 = vadd.f32 %v6227, %v6252
        %v6263 = vadd.f32 %v6228, %v6252
        %v6264 = vadd.f32 %v6229, %v6252
        %v6265 = vadd.f32 %v6230, %v6252
        %v6266 = vadd.f32 %v6231, %v6252
        %v6267 = vadd.f32 %v6232, %v6252
        %v6268 = vadd.f32 %v6233, %v6252
        %v6269 = vadd.f32 %v6234, %v6252
        %v6270 = vadd.f32 %v6235, %v6252
        %v6271 = vadd.f32 %v6236, %v6252
        %v6272 = vadd.f32 %v6237, %v6252
        %v6273 = vadd.f32 %v6238, %v6252
        %v6274 = vadd.f32 %v6239, %v6252
        %v6275 = vadd.f32 %v6240, %v6252
        %v6276 = vadd.f32 %v6241, %v6252
        %v6277 = vadd.f32 %v6242, %v6252
        %v6278 = vadd.f32 %v6243, %v6252
        %v6279 = vadd.f32 %v6244, %v6252
        %v6280 = vadd.f32 %v6245, %v6252
        %v6281 = vadd.f32 %v6246, %v6252
        %v6282 = vadd.f32 %v6247, %v6252
        %v6283 = vadd.f32 %v6248, %v6252
        %v6284 = vadd.f32 %v6249, %v6252
        %v6285 = vadd.f32 %v6250, %v6252
        %s6286 = scalar_lea.vmem [#allocation8], 128
        %v6287 = vld [vmem:[%s6286] sm:$0xff]
        %v6288 = vld [vmem:[%s6286 + $0x8] sm:$0xff]
        %v6289 = vld [vmem:[%s6286 + $0x10] sm:$0xff]
        %v6290 = vld [vmem:[%s6286 + $0x18] sm:$0xff]
        %v6291 = vld [vmem:[%s6286 + $0x20] sm:$0xff]
        %v6292 = vld [vmem:[%s6286 + $0x28] sm:$0xff]
        %v6293 = vld [vmem:[%s6286 + $0x30] sm:$0xff]
        %v6294 = vld [vmem:[%s6286 + $0x38] sm:$0xff]
        %v6295 = vld [vmem:[%s6286 + $0x40] sm:$0xff]
        %v6296 = vld [vmem:[%s6286 + $0x48] sm:$0xff]
        %v6297 = vld [vmem:[%s6286 + $0x50] sm:$0xff]
        %v6298 = vld [vmem:[%s6286 + $0x58] sm:$0xff]
        %v6299 = vld [vmem:[%s6286 + $0x60] sm:$0xff]
        %v6300 = vld [vmem:[%s6286 + $0x68] sm:$0xff]
        %v6301 = vld [vmem:[%s6286 + $0x70] sm:$0xff]
        %v6302 = vld [vmem:[%s6286 + $0x78] sm:$0xff]
        %s6303 = scalar_lea.vmem %s3, 1
        %v6304 = vld [vmem:[%s6303] sm:$0x1]
        %v6306 = vperm.slane %v6304, 0
        %6308 = vmatpush.msra.mxu0 %v6302
        %6309 = vmatpush.msra.mxu0 %v6301
        %6310 = vmatpush.msra.mxu0 %v6300
        %6311 = vmatpush.msra.mxu0 %v6299
        %6312 = vmatpush.msra.mxu0 %v6298
        %6313 = vmatpush.msra.mxu0 %v6297
        %6314 = vmatpush.msra.mxu0 %v6296
        %6315 = vmatpush.msra.mxu0 %v6295
        %6316 = vmatpush.msra.mxu0 %v6294
        %6317 = vmatpush.msra.mxu0 %v6293
        %6318 = vmatpush.msra.mxu0 %v6292
        %6319 = vmatpush.msra.mxu0 %v6291
        %6320 = vmatpush.msra.mxu0 %v6290
        %6321 = vmatpush.msra.mxu0 %v6289
        %6322 = vmatpush.msra.mxu0 %v6288
        %6323 = vmatpush.msra.mxu0 %v6287
        %6324 = vmatmul.f32.gmra.mxu0 %v6254
        %v6325 = vpop.f32.mrf.mxu0
        %v6326 = vadd.f32 %v6306, %v6325
        %6327 = vmatmul.f32.gmra.mxu0 %v6255
        %v6328 = vpop.f32.mrf.mxu0
        %v6329 = vadd.f32 %v6306, %v6328
        %6330 = vmatmul.f32.gmra.mxu0 %v6256
        %v6331 = vpop.f32.mrf.mxu0
        %v6332 = vadd.f32 %v6306, %v6331
        %6333 = vmatmul.f32.gmra.mxu0 %v6257
        %v6334 = vpop.f32.mrf.mxu0
        %v6335 = vadd.f32 %v6306, %v6334
        %6336 = vmatmul.f32.gmra.mxu0 %v6258
        %v6337 = vpop.f32.mrf.mxu0
        %v6338 = vadd.f32 %v6306, %v6337
        %6339 = vmatmul.f32.gmra.mxu0 %v6259
        %v6340 = vpop.f32.mrf.mxu0
        %v6341 = vadd.f32 %v6306, %v6340
        %6342 = vmatmul.f32.gmra.mxu0 %v6260
        %v6343 = vpop.f32.mrf.mxu0
        %v6344 = vadd.f32 %v6306, %v6343
        %6345 = vmatmul.f32.gmra.mxu0 %v6261
        %v6346 = vpop.f32.mrf.mxu0
        %v6347 = vadd.f32 %v6306, %v6346
        %6348 = vmatmul.f32.gmra.mxu0 %v6262
        %v6349 = vpop.f32.mrf.mxu0
        %v6350 = vadd.f32 %v6306, %v6349
        %6351 = vmatmul.f32.gmra.mxu0 %v6263
        %v6352 = vpop.f32.mrf.mxu0
        %v6353 = vadd.f32 %v6306, %v6352
        %6354 = vmatmul.f32.gmra.mxu0 %v6264
        %v6355 = vpop.f32.mrf.mxu0
        %v6356 = vadd.f32 %v6306, %v6355
        %6357 = vmatmul.f32.gmra.mxu0 %v6265
        %v6358 = vpop.f32.mrf.mxu0
        %v6359 = vadd.f32 %v6306, %v6358
        %6360 = vmatmul.f32.gmra.mxu0 %v6266
        %v6361 = vpop.f32.mrf.mxu0
        %v6362 = vadd.f32 %v6306, %v6361
        %6363 = vmatmul.f32.gmra.mxu0 %v6267
        %v6364 = vpop.f32.mrf.mxu0
        %v6365 = vadd.f32 %v6306, %v6364
        %6366 = vmatmul.f32.gmra.mxu0 %v6268
        %v6367 = vpop.f32.mrf.mxu0
        %v6368 = vadd.f32 %v6306, %v6367
        %6369 = vmatmul.f32.gmra.mxu0 %v6269
        %v6370 = vpop.f32.mrf.mxu0
        %v6371 = vadd.f32 %v6306, %v6370
        %6372 = vmatmul.f32.gmra.mxu0 %v6270
        %v6373 = vpop.f32.mrf.mxu0
        %v6374 = vadd.f32 %v6306, %v6373
        %6375 = vmatmul.f32.gmra.mxu0 %v6271
        %v6376 = vpop.f32.mrf.mxu0
        %v6377 = vadd.f32 %v6306, %v6376
        %6378 = vmatmul.f32.gmra.mxu0 %v6272
        %v6379 = vpop.f32.mrf.mxu0
        %v6380 = vadd.f32 %v6306, %v6379
        %6381 = vmatmul.f32.gmra.mxu0 %v6273
        %v6382 = vpop.f32.mrf.mxu0
        %v6383 = vadd.f32 %v6306, %v6382
        %6384 = vmatmul.f32.gmra.mxu0 %v6274
        %v6385 = vpop.f32.mrf.mxu0
        %v6386 = vadd.f32 %v6306, %v6385
        %6387 = vmatmul.f32.gmra.mxu0 %v6275
        %v6388 = vpop.f32.mrf.mxu0
        %v6389 = vadd.f32 %v6306, %v6388
        %6390 = vmatmul.f32.gmra.mxu0 %v6276
        %v6391 = vpop.f32.mrf.mxu0
        %v6392 = vadd.f32 %v6306, %v6391
        %6393 = vmatmul.f32.gmra.mxu0 %v6277
        %v6394 = vpop.f32.mrf.mxu0
        %v6395 = vadd.f32 %v6306, %v6394
        %6396 = vmatmul.f32.gmra.mxu0 %v6278
        %v6397 = vpop.f32.mrf.mxu0
        %v6398 = vadd.f32 %v6306, %v6397
        %6399 = vmatmul.f32.gmra.mxu0 %v6279
        %v6400 = vpop.f32.mrf.mxu0
        %v6401 = vadd.f32 %v6306, %v6400
        %6402 = vmatmul.f32.gmra.mxu0 %v6280
        %v6403 = vpop.f32.mrf.mxu0
        %v6404 = vadd.f32 %v6306, %v6403
        %6405 = vmatmul.f32.gmra.mxu0 %v6281
        %v6406 = vpop.f32.mrf.mxu0
        %v6407 = vadd.f32 %v6306, %v6406
        %6408 = vmatmul.f32.gmra.mxu0 %v6282
        %v6409 = vpop.f32.mrf.mxu0
        %v6410 = vadd.f32 %v6306, %v6409
        %6411 = vmatmul.f32.gmra.mxu0 %v6283
        %v6412 = vpop.f32.mrf.mxu0
        %v6413 = vadd.f32 %v6306, %v6412
        %6414 = vmatmul.f32.gmra.mxu0 %v6284
        %v6415 = vpop.f32.mrf.mxu0
        %v6416 = vadd.f32 %v6306, %v6415
        %6417 = vmatmul.f32.gmra.mxu0 %v6285
        %v6418 = vpop.f32.mrf.mxu0
        %v6419 = vadd.f32 %v6306, %v6418
        %6420 = vdwg.mxu0
        %v6421 = vmax.f32 %v6326, 0.0
        %v6422 = vmax.f32 %v6329, 0.0
        %v6423 = vmax.f32 %v6332, 0.0
        %v6424 = vmax.f32 %v6335, 0.0
        %v6425 = vmax.f32 %v6338, 0.0
        %v6426 = vmax.f32 %v6341, 0.0
        %v6427 = vmax.f32 %v6344, 0.0
        %v6428 = vmax.f32 %v6347, 0.0
        %v6429 = vmax.f32 %v6350, 0.0
        %v6430 = vmax.f32 %v6353, 0.0
        %v6431 = vmax.f32 %v6356, 0.0
        %v6432 = vmax.f32 %v6359, 0.0
        %v6433 = vmax.f32 %v6362, 0.0
        %v6434 = vmax.f32 %v6365, 0.0
        %v6435 = vmax.f32 %v6368, 0.0
        %v6436 = vmax.f32 %v6371, 0.0
        %v6437 = vmax.f32 %v6374, 0.0
        %v6438 = vmax.f32 %v6377, 0.0
        %v6439 = vmax.f32 %v6380, 0.0
        %v6440 = vmax.f32 %v6383, 0.0
        %v6441 = vmax.f32 %v6386, 0.0
        %v6442 = vmax.f32 %v6389, 0.0
        %v6443 = vmax.f32 %v6392, 0.0
        %v6444 = vmax.f32 %v6395, 0.0
        %v6445 = vmax.f32 %v6398, 0.0
        %v6446 = vmax.f32 %v6401, 0.0
        %v6447 = vmax.f32 %v6404, 0.0
        %v6448 = vmax.f32 %v6407, 0.0
        %v6449 = vmax.f32 %v6410, 0.0
        %v6450 = vmax.f32 %v6413, 0.0
        %v6451 = vmax.f32 %v6416, 0.0
        %v6452 = vmax.f32 %v6419, 0.0
        %s6453 = scalar_lea.vmem [#allocation9], 128
        %v6454 = vld [vmem:[%s6453] sm:$0xff]
        %v6455 = vld [vmem:[%s6453 + $0x8] sm:$0xff]
        %v6456 = vld [vmem:[%s6453 + $0x10] sm:$0xff]
        %v6457 = vld [vmem:[%s6453 + $0x18] sm:$0xff]
        %v6458 = vld [vmem:[%s6453 + $0x20] sm:$0xff]
        %v6459 = vld [vmem:[%s6453 + $0x28] sm:$0xff]
        %v6460 = vld [vmem:[%s6453 + $0x30] sm:$0xff]
        %v6461 = vld [vmem:[%s6453 + $0x38] sm:$0xff]
        %v6462 = vld [vmem:[%s6453 + $0x40] sm:$0xff]
        %v6463 = vld [vmem:[%s6453 + $0x48] sm:$0xff]
        %v6464 = vld [vmem:[%s6453 + $0x50] sm:$0xff]
        %v6465 = vld [vmem:[%s6453 + $0x58] sm:$0xff]
        %v6466 = vld [vmem:[%s6453 + $0x60] sm:$0xff]
        %v6467 = vld [vmem:[%s6453 + $0x68] sm:$0xff]
        %v6468 = vld [vmem:[%s6453 + $0x70] sm:$0xff]
        %v6469 = vld [vmem:[%s6453 + $0x78] sm:$0xff]
        %s6470 = scalar_lea.vmem %s5, 1
        %v6471 = vld [vmem:[%s6470] sm:$0x1]
        %v6473 = vperm.slane %v6471, 0
        %6475 = vmatpush.msra.mxu0 %v6469
        %6476 = vmatpush.msra.mxu0 %v6468
        %6477 = vmatpush.msra.mxu0 %v6467
        %6478 = vmatpush.msra.mxu0 %v6466
        %6479 = vmatpush.msra.mxu0 %v6465
        %6480 = vmatpush.msra.mxu0 %v6464
        %6481 = vmatpush.msra.mxu0 %v6463
        %6482 = vmatpush.msra.mxu0 %v6462
        %6483 = vmatpush.msra.mxu0 %v6461
        %6484 = vmatpush.msra.mxu0 %v6460
        %6485 = vmatpush.msra.mxu0 %v6459
        %6486 = vmatpush.msra.mxu0 %v6458
        %6487 = vmatpush.msra.mxu0 %v6457
        %6488 = vmatpush.msra.mxu0 %v6456
        %6489 = vmatpush.msra.mxu0 %v6455
        %6490 = vmatpush.msra.mxu0 %v6454
        %6491 = vmatmul.f32.gmra.mxu0 %v6421
        %v6492 = vpop.f32.mrf.mxu0
        %v6493 = vadd.f32 %v6473, %v6492
        %6494 = vmatmul.f32.gmra.mxu0 %v6422
        %v6495 = vpop.f32.mrf.mxu0
        %v6496 = vadd.f32 %v6473, %v6495
        %6497 = vmatmul.f32.gmra.mxu0 %v6423
        %v6498 = vpop.f32.mrf.mxu0
        %v6499 = vadd.f32 %v6473, %v6498
        %6500 = vmatmul.f32.gmra.mxu0 %v6424
        %v6501 = vpop.f32.mrf.mxu0
        %v6502 = vadd.f32 %v6473, %v6501
        %6503 = vmatmul.f32.gmra.mxu0 %v6425
        %v6504 = vpop.f32.mrf.mxu0
        %v6505 = vadd.f32 %v6473, %v6504
        %6506 = vmatmul.f32.gmra.mxu0 %v6426
        %v6507 = vpop.f32.mrf.mxu0
        %v6508 = vadd.f32 %v6473, %v6507
        %6509 = vmatmul.f32.gmra.mxu0 %v6427
        %v6510 = vpop.f32.mrf.mxu0
        %v6511 = vadd.f32 %v6473, %v6510
        %6512 = vmatmul.f32.gmra.mxu0 %v6428
        %v6513 = vpop.f32.mrf.mxu0
        %v6514 = vadd.f32 %v6473, %v6513
        %6515 = vmatmul.f32.gmra.mxu0 %v6429
        %v6516 = vpop.f32.mrf.mxu0
        %v6517 = vadd.f32 %v6473, %v6516
        %6518 = vmatmul.f32.gmra.mxu0 %v6430
        %v6519 = vpop.f32.mrf.mxu0
        %v6520 = vadd.f32 %v6473, %v6519
        %6521 = vmatmul.f32.gmra.mxu0 %v6431
        %v6522 = vpop.f32.mrf.mxu0
        %v6523 = vadd.f32 %v6473, %v6522
        %6524 = vmatmul.f32.gmra.mxu0 %v6432
        %v6525 = vpop.f32.mrf.mxu0
        %v6526 = vadd.f32 %v6473, %v6525
        %6527 = vmatmul.f32.gmra.mxu0 %v6433
        %v6528 = vpop.f32.mrf.mxu0
        %v6529 = vadd.f32 %v6473, %v6528
        %6530 = vmatmul.f32.gmra.mxu0 %v6434
        %v6531 = vpop.f32.mrf.mxu0
        %v6532 = vadd.f32 %v6473, %v6531
        %6533 = vmatmul.f32.gmra.mxu0 %v6435
        %v6534 = vpop.f32.mrf.mxu0
        %v6535 = vadd.f32 %v6473, %v6534
        %6536 = vmatmul.f32.gmra.mxu0 %v6436
        %v6537 = vpop.f32.mrf.mxu0
        %v6538 = vadd.f32 %v6473, %v6537
        %6539 = vmatmul.f32.gmra.mxu0 %v6437
        %v6540 = vpop.f32.mrf.mxu0
        %v6541 = vadd.f32 %v6473, %v6540
        %6542 = vmatmul.f32.gmra.mxu0 %v6438
        %v6543 = vpop.f32.mrf.mxu0
        %v6544 = vadd.f32 %v6473, %v6543
        %6545 = vmatmul.f32.gmra.mxu0 %v6439
        %v6546 = vpop.f32.mrf.mxu0
        %v6547 = vadd.f32 %v6473, %v6546
        %6548 = vmatmul.f32.gmra.mxu0 %v6440
        %v6549 = vpop.f32.mrf.mxu0
        %v6550 = vadd.f32 %v6473, %v6549
        %6551 = vmatmul.f32.gmra.mxu0 %v6441
        %v6552 = vpop.f32.mrf.mxu0
        %v6553 = vadd.f32 %v6473, %v6552
        %6554 = vmatmul.f32.gmra.mxu0 %v6442
        %v6555 = vpop.f32.mrf.mxu0
        %v6556 = vadd.f32 %v6473, %v6555
        %6557 = vmatmul.f32.gmra.mxu0 %v6443
        %v6558 = vpop.f32.mrf.mxu0
        %v6559 = vadd.f32 %v6473, %v6558
        %6560 = vmatmul.f32.gmra.mxu0 %v6444
        %v6561 = vpop.f32.mrf.mxu0
        %v6562 = vadd.f32 %v6473, %v6561
        %6563 = vmatmul.f32.gmra.mxu0 %v6445
        %v6564 = vpop.f32.mrf.mxu0
        %v6565 = vadd.f32 %v6473, %v6564
        %6566 = vmatmul.f32.gmra.mxu0 %v6446
        %v6567 = vpop.f32.mrf.mxu0
        %v6568 = vadd.f32 %v6473, %v6567
        %6569 = vmatmul.f32.gmra.mxu0 %v6447
        %v6570 = vpop.f32.mrf.mxu0
        %v6571 = vadd.f32 %v6473, %v6570
        %6572 = vmatmul.f32.gmra.mxu0 %v6448
        %v6573 = vpop.f32.mrf.mxu0
        %v6574 = vadd.f32 %v6473, %v6573
        %6575 = vmatmul.f32.gmra.mxu0 %v6449
        %v6576 = vpop.f32.mrf.mxu0
        %v6577 = vadd.f32 %v6473, %v6576
        %6578 = vmatmul.f32.gmra.mxu0 %v6450
        %v6579 = vpop.f32.mrf.mxu0
        %v6580 = vadd.f32 %v6473, %v6579
        %6581 = vmatmul.f32.gmra.mxu0 %v6451
        %v6582 = vpop.f32.mrf.mxu0
        %v6583 = vadd.f32 %v6473, %v6582
        %6584 = vmatmul.f32.gmra.mxu0 %v6452
        %v6585 = vpop.f32.mrf.mxu0
        %v6586 = vadd.f32 %v6473, %v6585
        %6587 = vdwg.mxu0
        %v6588 = vadd.f32 %v6254, %v6493
        %v6589 = vadd.f32 %v6255, %v6496
        %v6590 = vadd.f32 %v6256, %v6499
        %v6591 = vadd.f32 %v6257, %v6502
        %v6592 = vadd.f32 %v6258, %v6505
        %v6593 = vadd.f32 %v6259, %v6508
        %v6594 = vadd.f32 %v6260, %v6511
        %v6595 = vadd.f32 %v6261, %v6514
        %v6596 = vadd.f32 %v6262, %v6517
        %v6597 = vadd.f32 %v6263, %v6520
        %v6598 = vadd.f32 %v6264, %v6523
        %v6599 = vadd.f32 %v6265, %v6526
        %v6600 = vadd.f32 %v6266, %v6529
        %v6601 = vadd.f32 %v6267, %v6532
        %v6602 = vadd.f32 %v6268, %v6535
        %v6603 = vadd.f32 %v6269, %v6538
        %v6604 = vadd.f32 %v6270, %v6541
        %v6605 = vadd.f32 %v6271, %v6544
        %v6606 = vadd.f32 %v6272, %v6547
        %v6607 = vadd.f32 %v6273, %v6550
        %v6608 = vadd.f32 %v6274, %v6553
        %v6609 = vadd.f32 %v6275, %v6556
        %v6610 = vadd.f32 %v6276, %v6559
        %v6611 = vadd.f32 %v6277, %v6562
        %v6612 = vadd.f32 %v6278, %v6565
        %v6613 = vadd.f32 %v6279, %v6568
        %v6614 = vadd.f32 %v6280, %v6571
        %v6615 = vadd.f32 %v6281, %v6574
        %v6616 = vadd.f32 %v6282, %v6577
        %v6617 = vadd.f32 %v6283, %v6580
        %v6618 = vadd.f32 %v6284, %v6583
        %v6619 = vadd.f32 %v6285, %v6586
        %s6620 = scalar_lea.vmem [#allocation12], 1
        %v6621 = vld [vmem:[%s6620] sm:$0x1]
        %s6622 = scalar_lea.vmem %s9, 1
        %v6623 = vld [vmem:[%s6622] sm:$0x1]
        %6624 = vadd.xlane.f32.xlu0 %v6588
        %v6625 = vpop.xlane.xlu0 %6624
        %6626 = vadd.xlane.f32.xlu0 %v6589
        %v6627 = vpop.xlane.xlu0 %6626
        %6628 = vadd.xlane.f32.xlu0 %v6590
        %v6629 = vpop.xlane.xlu0 %6628
        %6630 = vadd.xlane.f32.xlu0 %v6591
        %v6631 = vpop.xlane.xlu0 %6630
        %6632 = vadd.xlane.f32.xlu0 %v6592
        %v6633 = vpop.xlane.xlu0 %6632
        %6634 = vadd.xlane.f32.xlu0 %v6593
        %v6635 = vpop.xlane.xlu0 %6634
        %6636 = vadd.xlane.f32.xlu0 %v6594
        %v6637 = vpop.xlane.xlu0 %6636
        %6638 = vadd.xlane.f32.xlu0 %v6595
        %v6639 = vpop.xlane.xlu0 %6638
        %6640 = vadd.xlane.f32.xlu0 %v6596
        %v6641 = vpop.xlane.xlu0 %6640
        %6642 = vadd.xlane.f32.xlu0 %v6597
        %v6643 = vpop.xlane.xlu0 %6642
        %6644 = vadd.xlane.f32.xlu0 %v6598
        %v6645 = vpop.xlane.xlu0 %6644
        %6646 = vadd.xlane.f32.xlu0 %v6599
        %v6647 = vpop.xlane.xlu0 %6646
        %6648 = vadd.xlane.f32.xlu0 %v6600
        %v6649 = vpop.xlane.xlu0 %6648
        %6650 = vadd.xlane.f32.xlu0 %v6601
        %v6651 = vpop.xlane.xlu0 %6650
        %6652 = vadd.xlane.f32.xlu0 %v6602
        %v6653 = vpop.xlane.xlu0 %6652
        %6654 = vadd.xlane.f32.xlu0 %v6603
        %v6655 = vpop.xlane.xlu0 %6654
        %6656 = vadd.xlane.f32.xlu0 %v6604
        %v6657 = vpop.xlane.xlu0 %6656
        %6658 = vadd.xlane.f32.xlu0 %v6605
        %v6659 = vpop.xlane.xlu0 %6658
        %6660 = vadd.xlane.f32.xlu0 %v6606
        %v6661 = vpop.xlane.xlu0 %6660
        %6662 = vadd.xlane.f32.xlu0 %v6607
        %v6663 = vpop.xlane.xlu0 %6662
        %6664 = vadd.xlane.f32.xlu0 %v6608
        %v6665 = vpop.xlane.xlu0 %6664
        %6666 = vadd.xlane.f32.xlu0 %v6609
        %v6667 = vpop.xlane.xlu0 %6666
        %6668 = vadd.xlane.f32.xlu0 %v6610
        %v6669 = vpop.xlane.xlu0 %6668
        %6670 = vadd.xlane.f32.xlu0 %v6611
        %v6671 = vpop.xlane.xlu0 %6670
        %6672 = vadd.xlane.f32.xlu0 %v6612
        %v6673 = vpop.xlane.xlu0 %6672
        %6674 = vadd.xlane.f32.xlu0 %v6613
        %v6675 = vpop.xlane.xlu0 %6674
        %6676 = vadd.xlane.f32.xlu0 %v6614
        %v6677 = vpop.xlane.xlu0 %6676
        %6678 = vadd.xlane.f32.xlu0 %v6615
        %v6679 = vpop.xlane.xlu0 %6678
        %6680 = vadd.xlane.f32.xlu0 %v6616
        %v6681 = vpop.xlane.xlu0 %6680
        %6682 = vadd.xlane.f32.xlu0 %v6617
        %v6683 = vpop.xlane.xlu0 %6682
        %6684 = vadd.xlane.f32.xlu0 %v6618
        %v6685 = vpop.xlane.xlu0 %6684
        %6686 = vadd.xlane.f32.xlu0 %v6619
        %v6687 = vpop.xlane.xlu0 %6686
        %v6688 = vmul.f32 %v6625, %v2227
        %v6689 = vmul.f32 %v6627, %v2227
        %v6690 = vmul.f32 %v6629, %v2227
        %v6691 = vmul.f32 %v6631, %v2227
        %v6692 = vmul.f32 %v6633, %v2227
        %v6693 = vmul.f32 %v6635, %v2227
        %v6694 = vmul.f32 %v6637, %v2227
        %v6695 = vmul.f32 %v6639, %v2227
        %v6696 = vmul.f32 %v6641, %v2227
        %v6697 = vmul.f32 %v6643, %v2227
        %v6698 = vmul.f32 %v6645, %v2227
        %v6699 = vmul.f32 %v6647, %v2227
        %v6700 = vmul.f32 %v6649, %v2227
        %v6701 = vmul.f32 %v6651, %v2227
        %v6702 = vmul.f32 %v6653, %v2227
        %v6703 = vmul.f32 %v6655, %v2227
        %v6704 = vmul.f32 %v6657, %v2227
        %v6705 = vmul.f32 %v6659, %v2227
        %v6706 = vmul.f32 %v6661, %v2227
        %v6707 = vmul.f32 %v6663, %v2227
        %v6708 = vmul.f32 %v6665, %v2227
        %v6709 = vmul.f32 %v6667, %v2227
        %v6710 = vmul.f32 %v6669, %v2227
        %v6711 = vmul.f32 %v6671, %v2227
        %v6712 = vmul.f32 %v6673, %v2227
        %v6713 = vmul.f32 %v6675, %v2227
        %v6714 = vmul.f32 %v6677, %v2227
        %v6715 = vmul.f32 %v6679, %v2227
        %v6716 = vmul.f32 %v6681, %v2227
        %v6717 = vmul.f32 %v6683, %v2227
        %v6718 = vmul.f32 %v6685, %v2227
        %v6719 = vmul.f32 %v6687, %v2227
        %v6720 = vsub.f32 %v6588, %v6688
        %v6721 = vsub.f32 %v6589, %v6689
        %v6722 = vsub.f32 %v6590, %v6690
        %v6723 = vsub.f32 %v6591, %v6691
        %v6724 = vsub.f32 %v6592, %v6692
        %v6725 = vsub.f32 %v6593, %v6693
        %v6726 = vsub.f32 %v6594, %v6694
        %v6727 = vsub.f32 %v6595, %v6695
        %v6728 = vsub.f32 %v6596, %v6696
        %v6729 = vsub.f32 %v6597, %v6697
        %v6730 = vsub.f32 %v6598, %v6698
        %v6731 = vsub.f32 %v6599, %v6699
        %v6732 = vsub.f32 %v6600, %v6700
        %v6733 = vsub.f32 %v6601, %v6701
        %v6734 = vsub.f32 %v6602, %v6702
        %v6735 = vsub.f32 %v6603, %v6703
        %v6736 = vsub.f32 %v6604, %v6704
        %v6737 = vsub.f32 %v6605, %v6705
        %v6738 = vsub.f32 %v6606, %v6706
        %v6739 = vsub.f32 %v6607, %v6707
        %v6740 = vsub.f32 %v6608, %v6708
        %v6741 = vsub.f32 %v6609, %v6709
        %v6742 = vsub.f32 %v6610, %v6710
        %v6743 = vsub.f32 %v6611, %v6711
        %v6744 = vsub.f32 %v6612, %v6712
        %v6745 = vsub.f32 %v6613, %v6713
        %v6746 = vsub.f32 %v6614, %v6714
        %v6747 = vsub.f32 %v6615, %v6715
        %v6748 = vsub.f32 %v6616, %v6716
        %v6749 = vsub.f32 %v6617, %v6717
        %v6750 = vsub.f32 %v6618, %v6718
        %v6751 = vsub.f32 %v6619, %v6719
        %v6752 = vmul.f32 %v6720, %v6720
        %v6753 = vmul.f32 %v6721, %v6721
        %v6754 = vmul.f32 %v6722, %v6722
        %v6755 = vmul.f32 %v6723, %v6723
        %v6756 = vmul.f32 %v6724, %v6724
        %v6757 = vmul.f32 %v6725, %v6725
        %v6758 = vmul.f32 %v6726, %v6726
        %v6759 = vmul.f32 %v6727, %v6727
        %v6760 = vmul.f32 %v6728, %v6728
        %v6761 = vmul.f32 %v6729, %v6729
        %v6762 = vmul.f32 %v6730, %v6730
        %v6763 = vmul.f32 %v6731, %v6731
        %v6764 = vmul.f32 %v6732, %v6732
        %v6765 = vmul.f32 %v6733, %v6733
        %v6766 = vmul.f32 %v6734, %v6734
        %v6767 = vmul.f32 %v6735, %v6735
        %v6768 = vmul.f32 %v6736, %v6736
        %v6769 = vmul.f32 %v6737, %v6737
        %v6770 = vmul.f32 %v6738, %v6738
        %v6771 = vmul.f32 %v6739, %v6739
        %v6772 = vmul.f32 %v6740, %v6740
        %v6773 = vmul.f32 %v6741, %v6741
        %v6774 = vmul.f32 %v6742, %v6742
        %v6775 = vmul.f32 %v6743, %v6743
        %v6776 = vmul.f32 %v6744, %v6744
        %v6777 = vmul.f32 %v6745, %v6745
        %v6778 = vmul.f32 %v6746, %v6746
        %v6779 = vmul.f32 %v6747, %v6747
        %v6780 = vmul.f32 %v6748, %v6748
        %v6781 = vmul.f32 %v6749, %v6749
        %v6782 = vmul.f32 %v6750, %v6750
        %v6783 = vmul.f32 %v6751, %v6751
        %6784 = vadd.xlane.f32.xlu0 %v6752
        %v6785 = vpop.xlane.xlu0 %6784
        %6786 = vadd.xlane.f32.xlu0 %v6753
        %v6787 = vpop.xlane.xlu0 %6786
        %6788 = vadd.xlane.f32.xlu0 %v6754
        %v6789 = vpop.xlane.xlu0 %6788
        %6790 = vadd.xlane.f32.xlu0 %v6755
        %v6791 = vpop.xlane.xlu0 %6790
        %6792 = vadd.xlane.f32.xlu0 %v6756
        %v6793 = vpop.xlane.xlu0 %6792
        %6794 = vadd.xlane.f32.xlu0 %v6757
        %v6795 = vpop.xlane.xlu0 %6794
        %6796 = vadd.xlane.f32.xlu0 %v6758
        %v6797 = vpop.xlane.xlu0 %6796
        %6798 = vadd.xlane.f32.xlu0 %v6759
        %v6799 = vpop.xlane.xlu0 %6798
        %6800 = vadd.xlane.f32.xlu0 %v6760
        %v6801 = vpop.xlane.xlu0 %6800
        %6802 = vadd.xlane.f32.xlu0 %v6761
        %v6803 = vpop.xlane.xlu0 %6802
        %6804 = vadd.xlane.f32.xlu0 %v6762
        %v6805 = vpop.xlane.xlu0 %6804
        %6806 = vadd.xlane.f32.xlu0 %v6763
        %v6807 = vpop.xlane.xlu0 %6806
        %6808 = vadd.xlane.f32.xlu0 %v6764
        %v6809 = vpop.xlane.xlu0 %6808
        %6810 = vadd.xlane.f32.xlu0 %v6765
        %v6811 = vpop.xlane.xlu0 %6810
        %6812 = vadd.xlane.f32.xlu0 %v6766
        %v6813 = vpop.xlane.xlu0 %6812
        %6814 = vadd.xlane.f32.xlu0 %v6767
        %v6815 = vpop.xlane.xlu0 %6814
        %6816 = vadd.xlane.f32.xlu0 %v6768
        %v6817 = vpop.xlane.xlu0 %6816
        %6818 = vadd.xlane.f32.xlu0 %v6769
        %v6819 = vpop.xlane.xlu0 %6818
        %6820 = vadd.xlane.f32.xlu0 %v6770
        %v6821 = vpop.xlane.xlu0 %6820
        %6822 = vadd.xlane.f32.xlu0 %v6771
        %v6823 = vpop.xlane.xlu0 %6822
        %6824 = vadd.xlane.f32.xlu0 %v6772
        %v6825 = vpop.xlane.xlu0 %6824
        %6826 = vadd.xlane.f32.xlu0 %v6773
        %v6827 = vpop.xlane.xlu0 %6826
        %6828 = vadd.xlane.f32.xlu0 %v6774
        %v6829 = vpop.xlane.xlu0 %6828
        %6830 = vadd.xlane.f32.xlu0 %v6775
        %v6831 = vpop.xlane.xlu0 %6830
        %6832 = vadd.xlane.f32.xlu0 %v6776
        %v6833 = vpop.xlane.xlu0 %6832
        %6834 = vadd.xlane.f32.xlu0 %v6777
        %v6835 = vpop.xlane.xlu0 %6834
        %6836 = vadd.xlane.f32.xlu0 %v6778
        %v6837 = vpop.xlane.xlu0 %6836
        %6838 = vadd.xlane.f32.xlu0 %v6779
        %v6839 = vpop.xlane.xlu0 %6838
        %6840 = vadd.xlane.f32.xlu0 %v6780
        %v6841 = vpop.xlane.xlu0 %6840
        %6842 = vadd.xlane.f32.xlu0 %v6781
        %v6843 = vpop.xlane.xlu0 %6842
        %6844 = vadd.xlane.f32.xlu0 %v6782
        %v6845 = vpop.xlane.xlu0 %6844
        %6846 = vadd.xlane.f32.xlu0 %v6783
        %v6847 = vpop.xlane.xlu0 %6846
        %v6848 = vmul.f32 %v6785, %v2227
        %v6849 = vmul.f32 %v6787, %v2227
        %v6850 = vmul.f32 %v6789, %v2227
        %v6851 = vmul.f32 %v6791, %v2227
        %v6852 = vmul.f32 %v6793, %v2227
        %v6853 = vmul.f32 %v6795, %v2227
        %v6854 = vmul.f32 %v6797, %v2227
        %v6855 = vmul.f32 %v6799, %v2227
        %v6856 = vmul.f32 %v6801, %v2227
        %v6857 = vmul.f32 %v6803, %v2227
        %v6858 = vmul.f32 %v6805, %v2227
        %v6859 = vmul.f32 %v6807, %v2227
        %v6860 = vmul.f32 %v6809, %v2227
        %v6861 = vmul.f32 %v6811, %v2227
        %v6862 = vmul.f32 %v6813, %v2227
        %v6863 = vmul.f32 %v6815, %v2227
        %v6864 = vmul.f32 %v6817, %v2227
        %v6865 = vmul.f32 %v6819, %v2227
        %v6866 = vmul.f32 %v6821, %v2227
        %v6867 = vmul.f32 %v6823, %v2227
        %v6868 = vmul.f32 %v6825, %v2227
        %v6869 = vmul.f32 %v6827, %v2227
        %v6870 = vmul.f32 %v6829, %v2227
        %v6871 = vmul.f32 %v6831, %v2227
        %v6872 = vmul.f32 %v6833, %v2227
        %v6873 = vmul.f32 %v6835, %v2227
        %v6874 = vmul.f32 %v6837, %v2227
        %v6875 = vmul.f32 %v6839, %v2227
        %v6876 = vmul.f32 %v6841, %v2227
        %v6877 = vmul.f32 %v6843, %v2227
        %v6878 = vmul.f32 %v6845, %v2227
        %v6879 = vmul.f32 %v6847, %v2227
        %v6880 = vadd.f32 %v6848, 1e-05
        %v6881 = vadd.f32 %v6849, 1e-05
        %v6882 = vadd.f32 %v6850, 1e-05
        %v6883 = vadd.f32 %v6851, 1e-05
        %v6884 = vadd.f32 %v6852, 1e-05
        %v6885 = vadd.f32 %v6853, 1e-05
        %v6886 = vadd.f32 %v6854, 1e-05
        %v6887 = vadd.f32 %v6855, 1e-05
        %v6888 = vadd.f32 %v6856, 1e-05
        %v6889 = vadd.f32 %v6857, 1e-05
        %v6890 = vadd.f32 %v6858, 1e-05
        %v6891 = vadd.f32 %v6859, 1e-05
        %v6892 = vadd.f32 %v6860, 1e-05
        %v6893 = vadd.f32 %v6861, 1e-05
        %v6894 = vadd.f32 %v6862, 1e-05
        %v6895 = vadd.f32 %v6863, 1e-05
        %v6896 = vadd.f32 %v6864, 1e-05
        %v6897 = vadd.f32 %v6865, 1e-05
        %v6898 = vadd.f32 %v6866, 1e-05
        %v6899 = vadd.f32 %v6867, 1e-05
        %v6900 = vadd.f32 %v6868, 1e-05
        %v6901 = vadd.f32 %v6869, 1e-05
        %v6902 = vadd.f32 %v6870, 1e-05
        %v6903 = vadd.f32 %v6871, 1e-05
        %v6904 = vadd.f32 %v6872, 1e-05
        %v6905 = vadd.f32 %v6873, 1e-05
        %v6906 = vadd.f32 %v6874, 1e-05
        %v6907 = vadd.f32 %v6875, 1e-05
        %v6908 = vadd.f32 %v6876, 1e-05
        %v6909 = vadd.f32 %v6877, 1e-05
        %v6910 = vadd.f32 %v6878, 1e-05
        %v6911 = vadd.f32 %v6879, 1e-05
        %v6912 = vrsqrt.pop %v6880
        %v6913 = vmul.f32 %v6912, %v6880
        %v6914 = vmul.f32 %v6913, %v6912
        %v6915 = vmul.f32 0.5, %v6914
        %v6916 = vsub.f32 1.5, %v6915
        %v6917 = vmul.f32 %v6912, %v6916
        %vm6918 = vweird.f32 %v6880
        %vm6919 = vweird.f32 %v6912
        %vm6920 = vmor %vm6918, %vm6919
        %v6921 = vsel %vm6920, %v6912, %v6917
        %v6922 = vrsqrt.pop %v6881
        %v6923 = vmul.f32 %v6922, %v6881
        %v6924 = vmul.f32 %v6923, %v6922
        %v6925 = vmul.f32 0.5, %v6924
        %v6926 = vsub.f32 1.5, %v6925
        %v6927 = vmul.f32 %v6922, %v6926
        %vm6928 = vweird.f32 %v6881
        %vm6929 = vweird.f32 %v6922
        %vm6930 = vmor %vm6928, %vm6929
        %v6931 = vsel %vm6930, %v6922, %v6927
        %v6932 = vrsqrt.pop %v6882
        %v6933 = vmul.f32 %v6932, %v6882
        %v6934 = vmul.f32 %v6933, %v6932
        %v6935 = vmul.f32 0.5, %v6934
        %v6936 = vsub.f32 1.5, %v6935
        %v6937 = vmul.f32 %v6932, %v6936
        %vm6938 = vweird.f32 %v6882
        %vm6939 = vweird.f32 %v6932
        %vm6940 = vmor %vm6938, %vm6939
        %v6941 = vsel %vm6940, %v6932, %v6937
        %v6942 = vrsqrt.pop %v6883
        %v6943 = vmul.f32 %v6942, %v6883
        %v6944 = vmul.f32 %v6943, %v6942
        %v6945 = vmul.f32 0.5, %v6944
        %v6946 = vsub.f32 1.5, %v6945
        %v6947 = vmul.f32 %v6942, %v6946
        %vm6948 = vweird.f32 %v6883
        %vm6949 = vweird.f32 %v6942
        %vm6950 = vmor %vm6948, %vm6949
        %v6951 = vsel %vm6950, %v6942, %v6947
        %v6952 = vrsqrt.pop %v6884
        %v6953 = vmul.f32 %v6952, %v6884
        %v6954 = vmul.f32 %v6953, %v6952
        %v6955 = vmul.f32 0.5, %v6954
        %v6956 = vsub.f32 1.5, %v6955
        %v6957 = vmul.f32 %v6952, %v6956
        %vm6958 = vweird.f32 %v6884
        %vm6959 = vweird.f32 %v6952
        %vm6960 = vmor %vm6958, %vm6959
        %v6961 = vsel %vm6960, %v6952, %v6957
        %v6962 = vrsqrt.pop %v6885
        %v6963 = vmul.f32 %v6962, %v6885
        %v6964 = vmul.f32 %v6963, %v6962
        %v6965 = vmul.f32 0.5, %v6964
        %v6966 = vsub.f32 1.5, %v6965
        %v6967 = vmul.f32 %v6962, %v6966
        %vm6968 = vweird.f32 %v6885
        %vm6969 = vweird.f32 %v6962
        %vm6970 = vmor %vm6968, %vm6969
        %v6971 = vsel %vm6970, %v6962, %v6967
        %v6972 = vrsqrt.pop %v6886
        %v6973 = vmul.f32 %v6972, %v6886
        %v6974 = vmul.f32 %v6973, %v6972
        %v6975 = vmul.f32 0.5, %v6974
        %v6976 = vsub.f32 1.5, %v6975
        %v6977 = vmul.f32 %v6972, %v6976
        %vm6978 = vweird.f32 %v6886
        %vm6979 = vweird.f32 %v6972
        %vm6980 = vmor %vm6978, %vm6979
        %v6981 = vsel %vm6980, %v6972, %v6977
        %v6982 = vrsqrt.pop %v6887
        %v6983 = vmul.f32 %v6982, %v6887
        %v6984 = vmul.f32 %v6983, %v6982
        %v6985 = vmul.f32 0.5, %v6984
        %v6986 = vsub.f32 1.5, %v6985
        %v6987 = vmul.f32 %v6982, %v6986
        %vm6988 = vweird.f32 %v6887
        %vm6989 = vweird.f32 %v6982
        %vm6990 = vmor %vm6988, %vm6989
        %v6991 = vsel %vm6990, %v6982, %v6987
        %v6992 = vrsqrt.pop %v6888
        %v6993 = vmul.f32 %v6992, %v6888
        %v6994 = vmul.f32 %v6993, %v6992
        %v6995 = vmul.f32 0.5, %v6994
        %v6996 = vsub.f32 1.5, %v6995
        %v6997 = vmul.f32 %v6992, %v6996
        %vm6998 = vweird.f32 %v6888
        %vm6999 = vweird.f32 %v6992
        %vm7000 = vmor %vm6998, %vm6999
        %v7001 = vsel %vm7000, %v6992, %v6997
        %v7002 = vrsqrt.pop %v6889
        %v7003 = vmul.f32 %v7002, %v6889
        %v7004 = vmul.f32 %v7003, %v7002
        %v7005 = vmul.f32 0.5, %v7004
        %v7006 = vsub.f32 1.5, %v7005
        %v7007 = vmul.f32 %v7002, %v7006
        %vm7008 = vweird.f32 %v6889
        %vm7009 = vweird.f32 %v7002
        %vm7010 = vmor %vm7008, %vm7009
        %v7011 = vsel %vm7010, %v7002, %v7007
        %v7012 = vrsqrt.pop %v6890
        %v7013 = vmul.f32 %v7012, %v6890
        %v7014 = vmul.f32 %v7013, %v7012
        %v7015 = vmul.f32 0.5, %v7014
        %v7016 = vsub.f32 1.5, %v7015
        %v7017 = vmul.f32 %v7012, %v7016
        %vm7018 = vweird.f32 %v6890
        %vm7019 = vweird.f32 %v7012
        %vm7020 = vmor %vm7018, %vm7019
        %v7021 = vsel %vm7020, %v7012, %v7017
        %v7022 = vrsqrt.pop %v6891
        %v7023 = vmul.f32 %v7022, %v6891
        %v7024 = vmul.f32 %v7023, %v7022
        %v7025 = vmul.f32 0.5, %v7024
        %v7026 = vsub.f32 1.5, %v7025
        %v7027 = vmul.f32 %v7022, %v7026
        %vm7028 = vweird.f32 %v6891
        %vm7029 = vweird.f32 %v7022
        %vm7030 = vmor %vm7028, %vm7029
        %v7031 = vsel %vm7030, %v7022, %v7027
        %v7032 = vrsqrt.pop %v6892
        %v7033 = vmul.f32 %v7032, %v6892
        %v7034 = vmul.f32 %v7033, %v7032
        %v7035 = vmul.f32 0.5, %v7034
        %v7036 = vsub.f32 1.5, %v7035
        %v7037 = vmul.f32 %v7032, %v7036
        %vm7038 = vweird.f32 %v6892
        %vm7039 = vweird.f32 %v7032
        %vm7040 = vmor %vm7038, %vm7039
        %v7041 = vsel %vm7040, %v7032, %v7037
        %v7042 = vrsqrt.pop %v6893
        %v7043 = vmul.f32 %v7042, %v6893
        %v7044 = vmul.f32 %v7043, %v7042
        %v7045 = vmul.f32 0.5, %v7044
        %v7046 = vsub.f32 1.5, %v7045
        %v7047 = vmul.f32 %v7042, %v7046
        %vm7048 = vweird.f32 %v6893
        %vm7049 = vweird.f32 %v7042
        %vm7050 = vmor %vm7048, %vm7049
        %v7051 = vsel %vm7050, %v7042, %v7047
        %v7052 = vrsqrt.pop %v6894
        %v7053 = vmul.f32 %v7052, %v6894
        %v7054 = vmul.f32 %v7053, %v7052
        %v7055 = vmul.f32 0.5, %v7054
        %v7056 = vsub.f32 1.5, %v7055
        %v7057 = vmul.f32 %v7052, %v7056
        %vm7058 = vweird.f32 %v6894
        %vm7059 = vweird.f32 %v7052
        %vm7060 = vmor %vm7058, %vm7059
        %v7061 = vsel %vm7060, %v7052, %v7057
        %v7062 = vrsqrt.pop %v6895
        %v7063 = vmul.f32 %v7062, %v6895
        %v7064 = vmul.f32 %v7063, %v7062
        %v7065 = vmul.f32 0.5, %v7064
        %v7066 = vsub.f32 1.5, %v7065
        %v7067 = vmul.f32 %v7062, %v7066
        %vm7068 = vweird.f32 %v6895
        %vm7069 = vweird.f32 %v7062
        %vm7070 = vmor %vm7068, %vm7069
        %v7071 = vsel %vm7070, %v7062, %v7067
        %v7072 = vrsqrt.pop %v6896
        %v7073 = vmul.f32 %v7072, %v6896
        %v7074 = vmul.f32 %v7073, %v7072
        %v7075 = vmul.f32 0.5, %v7074
        %v7076 = vsub.f32 1.5, %v7075
        %v7077 = vmul.f32 %v7072, %v7076
        %vm7078 = vweird.f32 %v6896
        %vm7079 = vweird.f32 %v7072
        %vm7080 = vmor %vm7078, %vm7079
        %v7081 = vsel %vm7080, %v7072, %v7077
        %v7082 = vrsqrt.pop %v6897
        %v7083 = vmul.f32 %v7082, %v6897
        %v7084 = vmul.f32 %v7083, %v7082
        %v7085 = vmul.f32 0.5, %v7084
        %v7086 = vsub.f32 1.5, %v7085
        %v7087 = vmul.f32 %v7082, %v7086
        %vm7088 = vweird.f32 %v6897
        %vm7089 = vweird.f32 %v7082
        %vm7090 = vmor %vm7088, %vm7089
        %v7091 = vsel %vm7090, %v7082, %v7087
        %v7092 = vrsqrt.pop %v6898
        %v7093 = vmul.f32 %v7092, %v6898
        %v7094 = vmul.f32 %v7093, %v7092
        %v7095 = vmul.f32 0.5, %v7094
        %v7096 = vsub.f32 1.5, %v7095
        %v7097 = vmul.f32 %v7092, %v7096
        %vm7098 = vweird.f32 %v6898
        %vm7099 = vweird.f32 %v7092
        %vm7100 = vmor %vm7098, %vm7099
        %v7101 = vsel %vm7100, %v7092, %v7097
        %v7102 = vrsqrt.pop %v6899
        %v7103 = vmul.f32 %v7102, %v6899
        %v7104 = vmul.f32 %v7103, %v7102
        %v7105 = vmul.f32 0.5, %v7104
        %v7106 = vsub.f32 1.5, %v7105
        %v7107 = vmul.f32 %v7102, %v7106
        %vm7108 = vweird.f32 %v6899
        %vm7109 = vweird.f32 %v7102
        %vm7110 = vmor %vm7108, %vm7109
        %v7111 = vsel %vm7110, %v7102, %v7107
        %v7112 = vrsqrt.pop %v6900
        %v7113 = vmul.f32 %v7112, %v6900
        %v7114 = vmul.f32 %v7113, %v7112
        %v7115 = vmul.f32 0.5, %v7114
        %v7116 = vsub.f32 1.5, %v7115
        %v7117 = vmul.f32 %v7112, %v7116
        %vm7118 = vweird.f32 %v6900
        %vm7119 = vweird.f32 %v7112
        %vm7120 = vmor %vm7118, %vm7119
        %v7121 = vsel %vm7120, %v7112, %v7117
        %v7122 = vrsqrt.pop %v6901
        %v7123 = vmul.f32 %v7122, %v6901
        %v7124 = vmul.f32 %v7123, %v7122
        %v7125 = vmul.f32 0.5, %v7124
        %v7126 = vsub.f32 1.5, %v7125
        %v7127 = vmul.f32 %v7122, %v7126
        %vm7128 = vweird.f32 %v6901
        %vm7129 = vweird.f32 %v7122
        %vm7130 = vmor %vm7128, %vm7129
        %v7131 = vsel %vm7130, %v7122, %v7127
        %v7132 = vrsqrt.pop %v6902
        %v7133 = vmul.f32 %v7132, %v6902
        %v7134 = vmul.f32 %v7133, %v7132
        %v7135 = vmul.f32 0.5, %v7134
        %v7136 = vsub.f32 1.5, %v7135
        %v7137 = vmul.f32 %v7132, %v7136
        %vm7138 = vweird.f32 %v6902
        %vm7139 = vweird.f32 %v7132
        %vm7140 = vmor %vm7138, %vm7139
        %v7141 = vsel %vm7140, %v7132, %v7137
        %v7142 = vrsqrt.pop %v6903
        %v7143 = vmul.f32 %v7142, %v6903
        %v7144 = vmul.f32 %v7143, %v7142
        %v7145 = vmul.f32 0.5, %v7144
        %v7146 = vsub.f32 1.5, %v7145
        %v7147 = vmul.f32 %v7142, %v7146
        %vm7148 = vweird.f32 %v6903
        %vm7149 = vweird.f32 %v7142
        %vm7150 = vmor %vm7148, %vm7149
        %v7151 = vsel %vm7150, %v7142, %v7147
        %v7152 = vrsqrt.pop %v6904
        %v7153 = vmul.f32 %v7152, %v6904
        %v7154 = vmul.f32 %v7153, %v7152
        %v7155 = vmul.f32 0.5, %v7154
        %v7156 = vsub.f32 1.5, %v7155
        %v7157 = vmul.f32 %v7152, %v7156
        %vm7158 = vweird.f32 %v6904
        %vm7159 = vweird.f32 %v7152
        %vm7160 = vmor %vm7158, %vm7159
        %v7161 = vsel %vm7160, %v7152, %v7157
        %v7162 = vrsqrt.pop %v6905
        %v7163 = vmul.f32 %v7162, %v6905
        %v7164 = vmul.f32 %v7163, %v7162
        %v7165 = vmul.f32 0.5, %v7164
        %v7166 = vsub.f32 1.5, %v7165
        %v7167 = vmul.f32 %v7162, %v7166
        %vm7168 = vweird.f32 %v6905
        %vm7169 = vweird.f32 %v7162
        %vm7170 = vmor %vm7168, %vm7169
        %v7171 = vsel %vm7170, %v7162, %v7167
        %v7172 = vrsqrt.pop %v6906
        %v7173 = vmul.f32 %v7172, %v6906
        %v7174 = vmul.f32 %v7173, %v7172
        %v7175 = vmul.f32 0.5, %v7174
        %v7176 = vsub.f32 1.5, %v7175
        %v7177 = vmul.f32 %v7172, %v7176
        %vm7178 = vweird.f32 %v6906
        %vm7179 = vweird.f32 %v7172
        %vm7180 = vmor %vm7178, %vm7179
        %v7181 = vsel %vm7180, %v7172, %v7177
        %v7182 = vrsqrt.pop %v6907
        %v7183 = vmul.f32 %v7182, %v6907
        %v7184 = vmul.f32 %v7183, %v7182
        %v7185 = vmul.f32 0.5, %v7184
        %v7186 = vsub.f32 1.5, %v7185
        %v7187 = vmul.f32 %v7182, %v7186
        %vm7188 = vweird.f32 %v6907
        %vm7189 = vweird.f32 %v7182
        %vm7190 = vmor %vm7188, %vm7189
        %v7191 = vsel %vm7190, %v7182, %v7187
        %v7192 = vrsqrt.pop %v6908
        %v7193 = vmul.f32 %v7192, %v6908
        %v7194 = vmul.f32 %v7193, %v7192
        %v7195 = vmul.f32 0.5, %v7194
        %v7196 = vsub.f32 1.5, %v7195
        %v7197 = vmul.f32 %v7192, %v7196
        %vm7198 = vweird.f32 %v6908
        %vm7199 = vweird.f32 %v7192
        %vm7200 = vmor %vm7198, %vm7199
        %v7201 = vsel %vm7200, %v7192, %v7197
        %v7202 = vrsqrt.pop %v6909
        %v7203 = vmul.f32 %v7202, %v6909
        %v7204 = vmul.f32 %v7203, %v7202
        %v7205 = vmul.f32 0.5, %v7204
        %v7206 = vsub.f32 1.5, %v7205
        %v7207 = vmul.f32 %v7202, %v7206
        %vm7208 = vweird.f32 %v6909
        %vm7209 = vweird.f32 %v7202
        %vm7210 = vmor %vm7208, %vm7209
        %v7211 = vsel %vm7210, %v7202, %v7207
        %v7212 = vrsqrt.pop %v6910
        %v7213 = vmul.f32 %v7212, %v6910
        %v7214 = vmul.f32 %v7213, %v7212
        %v7215 = vmul.f32 0.5, %v7214
        %v7216 = vsub.f32 1.5, %v7215
        %v7217 = vmul.f32 %v7212, %v7216
        %vm7218 = vweird.f32 %v6910
        %vm7219 = vweird.f32 %v7212
        %vm7220 = vmor %vm7218, %vm7219
        %v7221 = vsel %vm7220, %v7212, %v7217
        %v7222 = vrsqrt.pop %v6911
        %v7223 = vmul.f32 %v7222, %v6911
        %v7224 = vmul.f32 %v7223, %v7222
        %v7225 = vmul.f32 0.5, %v7224
        %v7226 = vsub.f32 1.5, %v7225
        %v7227 = vmul.f32 %v7222, %v7226
        %vm7228 = vweird.f32 %v6911
        %vm7229 = vweird.f32 %v7222
        %vm7230 = vmor %vm7228, %vm7229
        %v7231 = vsel %vm7230, %v7222, %v7227
        %v7232 = vmul.f32 %v6720, %v6921
        %v7233 = vmul.f32 %v6721, %v6931
        %v7234 = vmul.f32 %v6722, %v6941
        %v7235 = vmul.f32 %v6723, %v6951
        %v7236 = vmul.f32 %v6724, %v6961
        %v7237 = vmul.f32 %v6725, %v6971
        %v7238 = vmul.f32 %v6726, %v6981
        %v7239 = vmul.f32 %v6727, %v6991
        %v7240 = vmul.f32 %v6728, %v7001
        %v7241 = vmul.f32 %v6729, %v7011
        %v7242 = vmul.f32 %v6730, %v7021
        %v7243 = vmul.f32 %v6731, %v7031
        %v7244 = vmul.f32 %v6732, %v7041
        %v7245 = vmul.f32 %v6733, %v7051
        %v7246 = vmul.f32 %v6734, %v7061
        %v7247 = vmul.f32 %v6735, %v7071
        %v7248 = vmul.f32 %v6736, %v7081
        %v7249 = vmul.f32 %v6737, %v7091
        %v7250 = vmul.f32 %v6738, %v7101
        %v7251 = vmul.f32 %v6739, %v7111
        %v7252 = vmul.f32 %v6740, %v7121
        %v7253 = vmul.f32 %v6741, %v7131
        %v7254 = vmul.f32 %v6742, %v7141
        %v7255 = vmul.f32 %v6743, %v7151
        %v7256 = vmul.f32 %v6744, %v7161
        %v7257 = vmul.f32 %v6745, %v7171
        %v7258 = vmul.f32 %v6746, %v7181
        %v7259 = vmul.f32 %v6747, %v7191
        %v7260 = vmul.f32 %v6748, %v7201
        %v7261 = vmul.f32 %v6749, %v7211
        %v7262 = vmul.f32 %v6750, %v7221
        %v7263 = vmul.f32 %v6751, %v7231
        %v7265 = vperm.slane %v6621, 0
        %v7267 = vmul.f32 %v7232, %v7265
        %v7268 = vmul.f32 %v7233, %v7265
        %v7269 = vmul.f32 %v7234, %v7265
        %v7270 = vmul.f32 %v7235, %v7265
        %v7271 = vmul.f32 %v7236, %v7265
        %v7272 = vmul.f32 %v7237, %v7265
        %v7273 = vmul.f32 %v7238, %v7265
        %v7274 = vmul.f32 %v7239, %v7265
        %v7275 = vmul.f32 %v7240, %v7265
        %v7276 = vmul.f32 %v7241, %v7265
        %v7277 = vmul.f32 %v7242, %v7265
        %v7278 = vmul.f32 %v7243, %v7265
        %v7279 = vmul.f32 %v7244, %v7265
        %v7280 = vmul.f32 %v7245, %v7265
        %v7281 = vmul.f32 %v7246, %v7265
        %v7282 = vmul.f32 %v7247, %v7265
        %v7283 = vmul.f32 %v7248, %v7265
        %v7284 = vmul.f32 %v7249, %v7265
        %v7285 = vmul.f32 %v7250, %v7265
        %v7286 = vmul.f32 %v7251, %v7265
        %v7287 = vmul.f32 %v7252, %v7265
        %v7288 = vmul.f32 %v7253, %v7265
        %v7289 = vmul.f32 %v7254, %v7265
        %v7290 = vmul.f32 %v7255, %v7265
        %v7291 = vmul.f32 %v7256, %v7265
        %v7292 = vmul.f32 %v7257, %v7265
        %v7293 = vmul.f32 %v7258, %v7265
        %v7294 = vmul.f32 %v7259, %v7265
        %v7295 = vmul.f32 %v7260, %v7265
        %v7296 = vmul.f32 %v7261, %v7265
        %v7297 = vmul.f32 %v7262, %v7265
        %v7298 = vmul.f32 %v7263, %v7265
        %v7300 = vperm.slane %v6623, 0
        %v7302 = vadd.f32 %v7267, %v7300
        %v7303 = vadd.f32 %v7268, %v7300
        %v7304 = vadd.f32 %v7269, %v7300
        %v7305 = vadd.f32 %v7270, %v7300
        %v7306 = vadd.f32 %v7271, %v7300
        %v7307 = vadd.f32 %v7272, %v7300
        %v7308 = vadd.f32 %v7273, %v7300
        %v7309 = vadd.f32 %v7274, %v7300
        %v7310 = vadd.f32 %v7275, %v7300
        %v7311 = vadd.f32 %v7276, %v7300
        %v7312 = vadd.f32 %v7277, %v7300
        %v7313 = vadd.f32 %v7278, %v7300
        %v7314 = vadd.f32 %v7279, %v7300
        %v7315 = vadd.f32 %v7280, %v7300
        %v7316 = vadd.f32 %v7281, %v7300
        %v7317 = vadd.f32 %v7282, %v7300
        %v7318 = vadd.f32 %v7283, %v7300
        %v7319 = vadd.f32 %v7284, %v7300
        %v7320 = vadd.f32 %v7285, %v7300
        %v7321 = vadd.f32 %v7286, %v7300
        %v7322 = vadd.f32 %v7287, %v7300
        %v7323 = vadd.f32 %v7288, %v7300
        %v7324 = vadd.f32 %v7289, %v7300
        %v7325 = vadd.f32 %v7290, %v7300
        %v7326 = vadd.f32 %v7291, %v7300
        %v7327 = vadd.f32 %v7292, %v7300
        %v7328 = vadd.f32 %v7293, %v7300
        %v7329 = vadd.f32 %v7294, %v7300
        %v7330 = vadd.f32 %v7295, %v7300
        %v7331 = vadd.f32 %v7296, %v7300
        %v7332 = vadd.f32 %v7297, %v7300
        %v7333 = vadd.f32 %v7298, %v7300
        %7334 = vst [vmem:[%s462] sm:$0xff] %v7302
        %7335 = vst [vmem:[%s462 + $0x8] sm:$0xff] %v7303
        %7336 = vst [vmem:[%s462 + $0x10] sm:$0xff] %v7304
        %7337 = vst [vmem:[%s462 + $0x18] sm:$0xff] %v7305
        %7338 = vst [vmem:[%s462 + $0x20] sm:$0xff] %v7306
        %7339 = vst [vmem:[%s462 + $0x28] sm:$0xff] %v7307
        %7340 = vst [vmem:[%s462 + $0x30] sm:$0xff] %v7308
        %7341 = vst [vmem:[%s462 + $0x38] sm:$0xff] %v7309
        %7342 = vst [vmem:[%s462 + $0x40] sm:$0xff] %v7310
        %7343 = vst [vmem:[%s462 + $0x48] sm:$0xff] %v7311
        %7344 = vst [vmem:[%s462 + $0x50] sm:$0xff] %v7312
        %7345 = vst [vmem:[%s462 + $0x58] sm:$0xff] %v7313
        %7346 = vst [vmem:[%s462 + $0x60] sm:$0xff] %v7314
        %7347 = vst [vmem:[%s462 + $0x68] sm:$0xff] %v7315
        %7348 = vst [vmem:[%s462 + $0x70] sm:$0xff] %v7316
        %7349 = vst [vmem:[%s462 + $0x78] sm:$0xff] %v7317
        %7350 = vst [vmem:[%s462 + $0x80] sm:$0xff] %v7318
        %7351 = vst [vmem:[%s462 + $0x88] sm:$0xff] %v7319
        %7352 = vst [vmem:[%s462 + $0x90] sm:$0xff] %v7320
        %7353 = vst [vmem:[%s462 + $0x98] sm:$0xff] %v7321
        %7354 = vst [vmem:[%s462 + $0xa0] sm:$0xff] %v7322
        %7355 = vst [vmem:[%s462 + $0xa8] sm:$0xff] %v7323
        %7356 = vst [vmem:[%s462 + $0xb0] sm:$0xff] %v7324
        %7357 = vst [vmem:[%s462 + $0xb8] sm:$0xff] %v7325
        %7358 = vst [vmem:[%s462 + $0xc0] sm:$0xff] %v7326
        %7359 = vst [vmem:[%s462 + $0xc8] sm:$0xff] %v7327
        %7360 = vst [vmem:[%s462 + $0xd0] sm:$0xff] %v7328
        %7361 = vst [vmem:[%s462 + $0xd8] sm:$0xff] %v7329
        %7362 = vst [vmem:[%s462 + $0xe0] sm:$0xff] %v7330
        %7363 = vst [vmem:[%s462 + $0xe8] sm:$0xff] %v7331
        %7364 = vst [vmem:[%s462 + $0xf0] sm:$0xff] %v7332
        %7365 = vst [vmem:[%s462 + $0xf8] sm:$0xff] %v7333
        %s7366 = sand.u32 %s253, 1
        %s7367 = scalar_lea.sflag [#allocation5], %s7366
        %s7368 = sand.u32 %s253, 1
        %s7369 = smul.addr %s7368, 256
        %s7370 = scalar_lea.vmem [#allocation14], %s7369
        // Predicated region
        $region85: #{tpu_custom_call.1} parent=59 // pred_check
          %p7371 = pneg %p263
        $region86: #{tpu_custom_call.1} parent=59 // pred_check_branch
          %7373 = sbr.rel (%p7371) target = $region88
        $region87: #{tpu_custom_call.1} parent=59 // pred_region
          %7375 = vsyncadd %s7367, 0
          %s7376 = smul.addr %s30, 32
          %s7377 = smul.addr %s7376, 8
          %s7378 = scalar_lea.hbm %s10, %s7377
          %s7379 = sshll.u32 %s7370, 4
          %s7380 = int_to_ptr.vmem [resolvable:$true] %s7379
          %s7381 = sshll.u32 %s7378, 4
          %s7382 = int_to_ptr.hbm [resolvable:$true] %s7381
          %7387 = dma.vmem_to_hbm [thread:$0]  %s7380, 4096, %s7382, %s7367, 128, 128, 8
        $region88: #{tpu_custom_call.1} parent=59 // pred_fallthru
          _
      $region60: #{tpu_custom_call.1} parent=5 // pred_fallthru
        _
      %p7388 = scmp.le.s32.totalorder 2, %s25
      // Predicated region
      $region89: #{tpu_custom_call.1} parent=5 // pred_check
        %p7389 = pneg %p7388
      $region90: #{tpu_custom_call.1} parent=5 // pred_check_branch
        %7391 = sbr.rel (%p7389) target = $region92
      $region91: #{tpu_custom_call.1} parent=5 // pred_region
        %s7392 = ssub.s32 %s25, 2
        // Predicated region
        $region93: #{tpu_custom_call.1} parent=91 // pred_check
          %p7393 = pneg %p269
        $region94: #{tpu_custom_call.1} parent=91 // pred_check_branch
          %7395 = sbr.rel (%p7393) target = $region96
        $region95: #{tpu_custom_call.1} parent=91 // pred_region
          %s7396 = sand.u32 %s254, 1
          %s7397 = scalar_lea.sflag [#allocation5], %s7396
          %s7398 = sand.u32 %s254, 1
          %s7399 = smul.addr %s7398, 256
          %s7400 = scalar_lea.vmem [#allocation14], %s7399
          %7402 = dma.done %s7397, 4096
        $region96: #{tpu_custom_call.1} parent=91 // pred_fallthru
          _
      $region92: #{tpu_custom_call.1} parent=5 // pred_fallthru
        _
    $region6: #{tpu_custom_call.1} parent=1 // loop_footer
      %s29 = sadd.s32 1, %s25
    $region7: #{tpu_custom_call.1} parent=1 // loop_footer_branch
      %24 = sbr.rel target = $region3
    $region8: #{tpu_custom_call.1} parent=1 // loop_exit
      _
    %7403 = vsyncpa [#allocation4], 1
    %s7404 = scalar_lea.sflag [#allocation4], 1
    %7405 = vsyncpa %s7404, 1
    %7406 = vsyncpa [#allocation7], 1
    %7407 = vsyncpa [#allocation10], 1
    %7408 = vsyncpa [#allocation13], 1
    %7409 = vsyncpa [#allocation5], 1
    %s7410 = scalar_lea.sflag [#allocation5], 1
    %7411 = vsyncpa %s7410, 1

</llo_original>
